<compile_context>
chip_gen: v5e
topology: v5e:2x2
jax: 0.10.0
libtpu: 0.0.40
codegen_flags: <defaults>
</compile_context>

<pallas_src>
import jax
import jax.numpy as jnp
from jax.experimental import pallas as pl
from jax.experimental.pallas import tpu as pltpu


def _make_resblocks_kernel(Bt, H, W, C, eps):
    HW = H * W
    M = Bt * HW

    def kernel(x_ref, w1_ref, w2_ref, o_ref, pad_ref):
        k = pl.program_id(1)

        # Column (w) index of every flattened spatial row; masks the row-wrap picked up by
        # the constant-offset shift trick below. vreg-scale -> cheap to recompute per step.
        q_col = jax.lax.broadcasted_iota(jnp.int32, (Bt, HW, 1), 1) % W
        is_left = q_col == 0
        is_right = q_col == (W - 1)

        @pl.when(k == 0)
        def _():
            # Zero the padded scratch once per batch tile: the interior is rewritten per
            # conv and the halo rows are never touched afterwards (scratch persists across
            # the k axis). Do NOT guard on program_id(0)==0: under megacore sharding of
            # the parallel batch axis each core has its own scratch.
            pad_ref[...] = jnp.zeros_like(pad_ref)
            # Seed the cross-block activation carry. The output block's index map is
            # constant in k, so it stays resident in VMEM across the whole block loop and
            # is flushed to HBM only when the batch tile changes. Carry stays in f32.
            o_ref[...] = x_ref[...]

        def conv3x3_in(inp, w_ref_, relu):
            # 3x3 zero-padded conv as 3 shifted MXU matmuls with the three ky taps fused
            # along the contraction dim (K = 3*C), then InstanceNorm2d(affine=False) and
            # optional ReLU. No conv bias: a per-channel constant is cancelled exactly by
            # the following mean subtraction.
            pad_ref[:, pl.ds(W + 1, HW), :] = inp
            acc = None
            for dx in range(3):
                slab = jnp.concatenate(
                    [pad_ref[:, pl.ds(dy * W + dx, HW), :] for dy in range(3)],
                    axis=-1)                                          # (Bt, HW, 3C)
                if dx == 0:
                    slab = jnp.where(is_left, 0.0, slab)
                elif dx == 2:
                    slab = jnp.where(is_right, 0.0, slab)
                slab = slab.reshape(M, 3 * C).astype(w_ref_.dtype)
                part = jnp.dot(slab, w_ref_[0, dx],
                               preferred_element_type=jnp.float32)    # (M, C)
                acc = part if acc is None else acc + part
            acc = acc.reshape(Bt, HW, C)
            mean = jnp.mean(acc, axis=1, keepdims=True)               # (Bt, 1, C)
            cent = acc - mean
            var = jnp.mean(cent * cent, axis=1, keepdims=True)        # biased variance
            out = cent * jax.lax.rsqrt(var + eps)
            if relu:
                out = jnp.maximum(out, 0.0)
            return out

        residual = o_ref[...]
        h = conv3x3_in(residual, w1_ref, relu=True)
        h = conv3x3_in(h, w2_ref, relu=False)
        o_ref[...] = residual + h        # carried across blocks; flushed when b changes

    return kernel


def _pick_batch_tile(B):
    # Largest divisor of B up to 4: amortizes per-block weight DMA over several samples.
    # TODO(synk): on v7x, if B//Bt == 1 the "parallel" axis no longer spans both
    #             TensorCores; a per-channel parallel split (valid since InstanceNorm
    #             stats are per-channel) would recover that.
    for bt in (4, 2, 1):
        if B % bt == 0:
            return bt
    return 1


def res_blocks(x_nchw, w1_oihw, w2_oihw, *, eps=1e-5, batch_tile=None,
               mxu_dtype=jnp.float32):
    """Fused ResBlocks forward (norm='in', activation='relu', pad_type='zero').

    x_nchw           : [B, C, H, W] (PyTorch layout); computed/carried in float32.
    w1_oihw, w2_oihw : [num_blocks, C, C, 3, 3] conv kernels, PyTorch OIHW layout
                       (conv1 / conv2 of each block). Biases are not needed: they are
                       cancelled exactly by InstanceNorm(affine=False).
    mxu_dtype        : dtype fed to the MXU (weights in HBM + activation slab cast).
    """
    B, C, H, W = x_nchw.shape
    num_blocks = w1_oihw.shape[0]
    HW = H * W
    pad_rows = HW + 2 * W + 2

    Bt = batch_tile if batch_tile is not None else _pick_batch_tile(B)
    assert B % Bt == 0, (B, Bt)

    # Channels-last, flattened spatial: lanes = channels, sublanes = spatial.
    x = jnp.transpose(x_nchw, (0, 2, 3, 1)).reshape(B, HW, C).astype(jnp.float32)

    # Fuse the 3 ky taps of each kx column along the contraction dim:
    #   (nb, O, I, ky, kx) -> (nb, kx, ky, I, O) -> (nb, 3, 3*C, C)
    # matching the lane-concatenated slab column order [ky=0 | ky=1 | ky=2].
    def fuse(w):
        return jnp.transpose(w, (0, 4, 3, 2, 1)).reshape(num_blocks, 3, 3 * C, C)

    w1 = fuse(w1_oihw).astype(mxu_dtype)
    w2 = fuse(w2_oihw).astype(mxu_dtype)
    w_itemsize = jnp.dtype(mxu_dtype).itemsize

    kernel = _make_resblocks_kernel(Bt, H, W, C, eps)

    # ---- VMEM budget (generation-aware: v7x 64 MiB/TC, v5e/v6e 128 MiB). ----
    try:
        phys_vmem = int(pltpu.get_tpu_info().vmem_capacity_bytes)
    except Exception:
        phys_vmem = 64 * 1024 * 1024          # conservative (v7x-sized) fallback
    vmem_cap = int(0.75 * phys_vmem)          # headroom for Mosaic internal scratch
    vmem_est = (
        4 * (2 * Bt * HW * C                  # x blocks, double-buffered
             + 2 * Bt * HW * C                # resident + outgoing output blocks
             + Bt * pad_rows * C)             # flat zero-padded conv-input scratch
        + w_itemsize * 2 * 2 * 9 * C * C)     # fused w1+w2 blocks, double-buffered
    vmem_limit = int(min(max(2 * vmem_est, 16 * 1024 * 1024), vmem_cap))

    flops = num_blocks * B * 2 * (2 * HW * 9 * C * C)            # 2 convs per block
    transcendentals = num_blocks * B * 2 * C                     # rsqrt per (sample, ch)
    bytes_accessed = (4 * 2 * B * HW * C                         # x in + out, once each
                      + w_itemsize * (B // Bt) * num_blocks * 2 * 9 * C * C)

    out = pl.pallas_call(
        kernel,
        out_shape=jax.ShapeDtypeStruct((B, HW, C), jnp.float32),
        grid_spec=pltpu.PrefetchScalarGridSpec(
            num_scalar_prefetch=0,
            grid=(B // Bt, num_blocks),
            in_specs=[
                # x: block index constant in k -> DMA'd once per batch tile.
                pl.BlockSpec((Bt, HW, C), lambda b, k: (b, 0, 0)),
                pl.BlockSpec((1, 3, 3 * C, C), lambda b, k: (k, 0, 0, 0)),  # conv1 w
                pl.BlockSpec((1, 3, 3 * C, C), lambda b, k: (k, 0, 0, 0)),  # conv2 w
            ],
            # Output block index constant in k -> resident across the block loop; doubles
            # as the f32 cross-block activation carry.
            out_specs=pl.BlockSpec((Bt, HW, C), lambda b, k: (b, 0, 0)),
            scratch_shapes=[
                pltpu.VMEM((Bt, pad_rows, C), jnp.float32),   # zero-padded conv input
            ],
        ),
        compiler_params=pltpu.CompilerParams(
            dimension_semantics=("parallel", "arbitrary"),
            vmem_limit_bytes=vmem_limit,
        ),
        cost_estimate=pl.CostEstimate(
            flops=flops,
            transcendentals=transcendentals,
            bytes_accessed=bytes_accessed,
        ),
    )(x, w1, w2)

    return jnp.transpose(out.reshape(B, H, W, C), (0, 3, 1, 2))


def _resblocks_reference(x, w1_list, b1_list, w2_list, b2_list, eps=1e-5):
    """Plain-JAX reference of the PyTorch ResBlocks forward (NCHW / OIHW, with biases)."""
    def conv(h, w, b):
        y = jax.lax.conv_general_dilated(
            h, w, window_strides=(1, 1), padding=((1, 1), (1, 1)),
            dimension_numbers=("NCHW", "OIHW", "NCHW"),
            precision=jax.lax.Precision.HIGHEST)
        return y + b[None, :, None, None]

    def inorm(y):
        m = jnp.mean(y, axis=(2, 3), keepdims=True)
        v = jnp.mean((y - m) ** 2, axis=(2, 3), keepdims=True)
        return (y - m) * jax.lax.rsqrt(v + eps)

    out = x
    for w1, b1, w2, b2 in zip(w1_list, b1_list, w2_list, b2_list):
        res = out
        h = jnp.maximum(inorm(conv(out, w1, b1)), 0.0)
        h = inorm(conv(h, w2, b2))
        out = res + h
    return out


if __name__ == "__main__":
    # Small shapes consistent with the module: batch=2, dim=128, spatial 16x16, 2 blocks.
    B, C, H, W = 2, 128, 16, 16
    num_blocks = 2

    key = jax.random.PRNGKey(0)
    keys = jax.random.split(key, 1 + 4 * num_blocks)
    x = jax.random.normal(keys[0], (B, C, H, W), jnp.float32)

    # Deterministic init mimicking nn.Conv2d's uniform(-1/sqrt(fan_in), 1/sqrt(fan_in)).
    bound = 1.0 / (C * 9) ** 0.5
    w1_t, b1_t, w2_t, b2_t = [], [], [], []
    for i in range(num_blocks):
        k1, k2, k3, k4 = keys[1 + 4 * i: 1 + 4 * i + 4]
        w1_t.append(jax.random.uniform(k1, (C, C, 3, 3), jnp.float32, -bound, bound))
        b1_t.append(jax.random.uniform(k2, (C,), jnp.float32, -bound, bound))
        w2_t.append(jax.random.uniform(k3, (C, C, 3, 3), jnp.float32, -bound, bound))
        b2_t.append(jax.random.uniform(k4, (C,), jnp.float32, -bound, bound))

    # The kernel never needs the biases: with InstanceNorm(affine=False) directly after
    # each conv, a per-channel constant bias is cancelled exactly by the mean subtraction.
    # The reference still applies them, which validates that claim numerically.
    out = res_blocks(x, jnp.stack(w1_t), jnp.stack(w2_t))
    out = jax.block_until_ready(out)

    ref = _resblocks_reference(x, w1_t, b1_t, w2_t, b2_t)
    assert out.shape == ref.shape
    err = float(jnp.max(jnp.abs(out - ref)))
    assert jnp.allclose(out, ref, atol=1e-3, rtol=1e-3), err

    print("KERNEL_OK")
</pallas_src>

<mosaic_0001>
module attributes {stable_mosaic.version = 11 : i64} {
  func.func @kernel(%arg0: i32, %arg1: i32, %arg2: memref<2x256x128xf32, #tpu.memory_space<vmem>>, %arg3: memref<1x3x384x128xf32, #tpu.memory_space<vmem>>, %arg4: memref<1x3x384x128xf32, #tpu.memory_space<vmem>>, %arg5: memref<2x256x128xf32, #tpu.memory_space<vmem>>, %arg6: memref<2x290x128xf32, #tpu.memory_space<vmem>>) attributes {dimension_semantics = [#tpu.dimension_semantics<parallel>, #tpu.dimension_semantics<arbitrary>], iteration_bounds = array<i64: 1, 2>, scalar_prefetch = 0 : i64, scratch_operands = 1 : i64, tpu.core_type = #tpu.core_type<tc>, window_params = [{transform_indices = @transform_0, window_bounds = array<i64: 2, 256, 128>}, {transform_indices = @transform_1, window_bounds = array<i64: 1, 3, 384, 128>}, {transform_indices = @transform_2, window_bounds = array<i64: 1, 3, 384, 128>}, {transform_indices = @transform_3, window_bounds = array<i64: 2, 256, 128>}]} {
    %0 = tpu.iota {dimensions = array<i32: 1>} : vector<2x256x1xi32>
    %c16_i32 = arith.constant 16 : i32
    %c0_i32 = arith.constant 0 : i32
    %1 = arith.cmpi eq, %c16_i32, %c0_i32 : i32
    %c1_i32 = arith.constant 1 : i32
    %2 = arith.select %1, %c1_i32, %c16_i32 : i32
    %3 = vector.broadcast %2 : i32 to vector<2x256x1xi32>
    %4 = arith.remsi %0, %3 : vector<2x256x1xi32>
    %c0_i32_0 = arith.constant 0 : i32
    %5 = vector.broadcast %c0_i32_0 : i32 to vector<2x256x1xi32>
    %6 = arith.cmpi ne, %4, %5 : vector<2x256x1xi32>
    %c0_i32_1 = arith.constant 0 : i32
    %7 = vector.broadcast %c0_i32_1 : i32 to vector<2x256x1xi32>
    %8 = arith.cmpi slt, %4, %7 : vector<2x256x1xi32>
    %c0_i32_2 = arith.constant 0 : i32
    %9 = arith.cmpi slt, %2, %c0_i32_2 : i32
    %10 = vector.broadcast %9 : i1 to vector<2x256x1xi1>
    %11 = vector.broadcast %10 : vector<2x256x1xi1> to vector<2x256x1xi1>
    %12 = arith.xori %8, %11 : vector<2x256x1xi1>
    %13 = arith.andi %12, %6 : vector<2x256x1xi1>
    %14 = vector.broadcast %2 : i32 to vector<2x256x1xi32>
    %15 = arith.addi %4, %14 : vector<2x256x1xi32>
    %16 = arith.select %13, %15, %4 : vector<2x256x1xi1>, vector<2x256x1xi32>
    %c0_i32_3 = arith.constant 0 : i32
    %17 = vector.broadcast %c0_i32_3 : i32 to vector<2x256x1xi32>
    %18 = arith.cmpi eq, %16, %17 : vector<2x256x1xi32>
    %c15_i32 = arith.constant 15 : i32
    %19 = vector.broadcast %c15_i32 : i32 to vector<2x256x1xi32>
    %20 = arith.cmpi eq, %16, %19 : vector<2x256x1xi32>
    %c0_i32_4 = arith.constant 0 : i32
    %21 = arith.cmpi eq, %arg1, %c0_i32_4 : i32
    %22 = arith.extui %21 : i1 to i32
    %c0_i32_5 = arith.constant 0 : i32
    %23 = arith.cmpi ne, %22, %c0_i32_5 : i32
    scf.if %23 {
      %cst_107 = arith.constant 0.000000e+00 : f32
      %133 = vector.broadcast %cst_107 : f32 to vector<2x290x128xf32>
      %c0_108 = arith.constant 0 : index
      %c0_109 = arith.constant 0 : index
      %c0_110 = arith.constant 0 : index
      %134 = vector.load %arg6[%c0_108, %c0_109, %c0_110] : memref<2x290x128xf32, #tpu.memory_space<vmem>>, vector<2x290x128xf32>
      tpu.vector_store %arg6[%c0_108, %c0_109, %c0_110], %133 {strides = array<i32>} : memref<2x290x128xf32, #tpu.memory_space<vmem>>, vector<2x290x128xf32>,
      %c0_111 = arith.constant 0 : index
      %c0_112 = arith.constant 0 : index
      %c0_113 = arith.constant 0 : index
      %135 = vector.load %arg2[%c0_111, %c0_112, %c0_113] : memref<2x256x128xf32, #tpu.memory_space<vmem>>, vector<2x256x128xf32>
      %c0_114 = arith.constant 0 : index
      %c0_115 = arith.constant 0 : index
      %c0_116 = arith.constant 0 : index
      %136 = vector.load %arg5[%c0_114, %c0_115, %c0_116] : memref<2x256x128xf32, #tpu.memory_space<vmem>>, vector<2x256x128xf32>
      tpu.vector_store %arg5[%c0_114, %c0_115, %c0_116], %135 {strides = array<i32>} : memref<2x256x128xf32, #tpu.memory_space<vmem>>, vector<2x256x128xf32>,
    } else {
    }
    %c0 = arith.constant 0 : index
    %c0_6 = arith.constant 0 : index
    %c0_7 = arith.constant 0 : index
    %24 = vector.load %arg5[%c0, %c0_6, %c0_7] : memref<2x256x128xf32, #tpu.memory_space<vmem>>, vector<2x256x128xf32>
    %c0_8 = arith.constant 0 : index
    %c17 = arith.constant 17 : index
    %c0_9 = arith.constant 0 : index
    %25 = vector.load %arg6[%c0_8, %c17, %c0_9] : memref<2x290x128xf32, #tpu.memory_space<vmem>>, vector<2x256x128xf32>
    tpu.vector_store %arg6[%c0_8, %c17, %c0_9], %24 {strides = array<i32>} : memref<2x290x128xf32, #tpu.memory_space<vmem>>, vector<2x256x128xf32>,
    %c0_10 = arith.constant 0 : index
    %c0_11 = arith.constant 0 : index
    %c0_12 = arith.constant 0 : index
    %26 = vector.load %arg6[%c0_10, %c0_11, %c0_12] : memref<2x290x128xf32, #tpu.memory_space<vmem>>, vector<2x256x128xf32>
    %c0_13 = arith.constant 0 : index
    %c16 = arith.constant 16 : index
    %c0_14 = arith.constant 0 : index
    %27 = vector.load %arg6[%c0_13, %c16, %c0_14] : memref<2x290x128xf32, #tpu.memory_space<vmem>>, vector<2x256x128xf32>
    %c0_15 = arith.constant 0 : index
    %c32 = arith.constant 32 : index
    %c0_16 = arith.constant 0 : index
    %28 = vector.load %arg6[%c0_15, %c32, %c0_16] : memref<2x290x128xf32, #tpu.memory_space<vmem>>, vector<2x256x128xf32>
    %29 = tpu.concatenate %26, %27, %28 in 2 : vector<2x256x128xf32>, vector<2x256x128xf32>, vector<2x256x128xf32> -> vector<2x256x384xf32>
    %cst = arith.constant 0.000000e+00 : f32
    %30 = vector.shape_cast %18 : vector<2x256x1xi1> to vector<2x256x1xi1>
    %31 = vector.broadcast %30 : vector<2x256x1xi1> to vector<2x256x384xi1>
    %32 = vector.broadcast %cst : f32 to vector<2x256x384xf32>
    %33 = arith.select %31, %32, %29 : vector<2x256x384xi1>, vector<2x256x384xf32>
    %34 = vector.shape_cast %33 : vector<2x256x384xf32> to vector<512x384xf32>
    %c0_17 = arith.constant 0 : index
    %c0_18 = arith.constant 0 : index
    %c0_19 = arith.constant 0 : index
    %c0_20 = arith.constant 0 : index
    %35 = vector.load %arg3[%c0_17, %c0_18, %c0_19, %c0_20] : memref<1x3x384x128xf32, #tpu.memory_space<vmem>>, vector<1x1x384x128xf32>
    %36 = vector.shape_cast %35 : vector<1x1x384x128xf32> to vector<384x128xf32>
    %cst_21 = arith.constant dense<0.000000e+00> : vector<512x128xf32>
    %37 = tpu.matmul %34, %36, %cst_21 {dimension_numbers = #tpu.dot_dimension_numbers<[1], [0], [0], [1], [0, 0, 1, 1], [], []>} : vector<512x384xf32>, vector<384x128xf32>, vector<512x128xf32> -> vector<512x128xf32>
    %c0_22 = arith.constant 0 : index
    %c1 = arith.constant 1 : index
    %c0_23 = arith.constant 0 : index
    %38 = vector.load %arg6[%c0_22, %c1, %c0_23] : memref<2x290x128xf32, #tpu.memory_space<vmem>>, vector<2x256x128xf32>
    %c0_24 = arith.constant 0 : index
    %c17_25 = arith.constant 17 : index
    %c0_26 = arith.constant 0 : index
    %39 = vector.load %arg6[%c0_24, %c17_25, %c0_26] : memref<2x290x128xf32, #tpu.memory_space<vmem>>, vector<2x256x128xf32>
    %c0_27 = arith.constant 0 : index
    %c33 = arith.constant 33 : index
    %c0_28 = arith.constant 0 : index
    %40 = vector.load %arg6[%c0_27, %c33, %c0_28] : memref<2x290x128xf32, #tpu.memory_space<vmem>>, vector<2x256x128xf32>
    %41 = tpu.concatenate %38, %39, %40 in 2 : vector<2x256x128xf32>, vector<2x256x128xf32>, vector<2x256x128xf32> -> vector<2x256x384xf32>
    %42 = vector.shape_cast %41 : vector<2x256x384xf32> to vector<512x384xf32>
    %c0_29 = arith.constant 0 : index
    %c1_30 = arith.constant 1 : index
    %c0_31 = arith.constant 0 : index
    %c0_32 = arith.constant 0 : index
    %43 = vector.load %arg3[%c0_29, %c1_30, %c0_31, %c0_32] : memref<1x3x384x128xf32, #tpu.memory_space<vmem>>, vector<1x1x384x128xf32>
    %44 = vector.shape_cast %43 : vector<1x1x384x128xf32> to vector<384x128xf32>
    %cst_33 = arith.constant dense<0.000000e+00> : vector<512x128xf32>
    %45 = tpu.matmul %42, %44, %cst_33 {dimension_numbers = #tpu.dot_dimension_numbers<[1], [0], [0], [1], [0, 0, 1, 1], [], []>} : vector<512x384xf32>, vector<384x128xf32>, vector<512x128xf32> -> vector<512x128xf32>
    %46 = arith.addf %37, %45 : vector<512x128xf32>
    %c0_34 = arith.constant 0 : index
    %c2 = arith.constant 2 : index
    %c0_35 = arith.constant 0 : index
    %47 = vector.load %arg6[%c0_34, %c2, %c0_35] : memref<2x290x128xf32, #tpu.memory_space<vmem>>, vector<2x256x128xf32>
    %c0_36 = arith.constant 0 : index
    %c18 = arith.constant 18 : index
    %c0_37 = arith.constant 0 : index
    %48 = vector.load %arg6[%c0_36, %c18, %c0_37] : memref<2x290x128xf32, #tpu.memory_space<vmem>>, vector<2x256x128xf32>
    %c0_38 = arith.constant 0 : index
    %c34 = arith.constant 34 : index
    %c0_39 = arith.constant 0 : index
    %49 = vector.load %arg6[%c0_38, %c34, %c0_39] : memref<2x290x128xf32, #tpu.memory_space<vmem>>, vector<2x256x128xf32>
    %50 = tpu.concatenate %47, %48, %49 in 2 : vector<2x256x128xf32>, vector<2x256x128xf32>, vector<2x256x128xf32> -> vector<2x256x384xf32>
    %cst_40 = arith.constant 0.000000e+00 : f32
    %51 = vector.shape_cast %20 : vector<2x256x1xi1> to vector<2x256x1xi1>
    %52 = vector.broadcast %51 : vector<2x256x1xi1> to vector<2x256x384xi1>
    %53 = vector.broadcast %cst_40 : f32 to vector<2x256x384xf32>
    %54 = arith.select %52, %53, %50 : vector<2x256x384xi1>, vector<2x256x384xf32>
    %55 = vector.shape_cast %54 : vector<2x256x384xf32> to vector<512x384xf32>
    %c0_41 = arith.constant 0 : index
    %c2_42 = arith.constant 2 : index
    %c0_43 = arith.constant 0 : index
    %c0_44 = arith.constant 0 : index
    %56 = vector.load %arg3[%c0_41, %c2_42, %c0_43, %c0_44] : memref<1x3x384x128xf32, #tpu.memory_space<vmem>>, vector<1x1x384x128xf32>
    %57 = vector.shape_cast %56 : vector<1x1x384x128xf32> to vector<384x128xf32>
    %cst_45 = arith.constant dense<0.000000e+00> : vector<512x128xf32>
    %58 = tpu.matmul %55, %57, %cst_45 {dimension_numbers = #tpu.dot_dimension_numbers<[1], [0], [0], [1], [0, 0, 1, 1], [], []>} : vector<512x384xf32>, vector<384x128xf32>, vector<512x128xf32> -> vector<512x128xf32>
    %59 = arith.addf %46, %58 : vector<512x128xf32>
    %60 = vector.shape_cast %59 : vector<512x128xf32> to vector<2x256x128xf32>
    %cst_46 = arith.constant dense<0.000000e+00> : vector<2x128xf32>
    %61 = vector.multi_reduction <add>, %60, %cst_46 [1] : vector<2x256x128xf32> to vector<2x128xf32>
    %62 = vector.shape_cast %61 : vector<2x128xf32> to vector<2x1x128xf32>
    %cst_47 = arith.constant 2.560000e+02 : f32
    %63 = vector.broadcast %cst_47 : f32 to vector<2x1x128xf32>
    %64 = arith.divf %62, %63 : vector<2x1x128xf32>
    %65 = vector.broadcast %64 : vector<2x1x128xf32> to vector<2x256x128xf32>
    %66 = arith.subf %60, %65 : vector<2x256x128xf32>
    %67 = arith.mulf %66, %66 : vector<2x256x128xf32>
    %cst_48 = arith.constant dense<0.000000e+00> : vector<2x128xf32>
    %68 = vector.multi_reduction <add>, %67, %cst_48 [1] : vector<2x256x128xf32> to vector<2x128xf32>
    %69 = vector.shape_cast %68 : vector<2x128xf32> to vector<2x1x128xf32>
    %cst_49 = arith.constant 2.560000e+02 : f32
    %70 = vector.broadcast %cst_49 : f32 to vector<2x1x128xf32>
    %71 = arith.divf %69, %70 : vector<2x1x128xf32>
    %cst_50 = arith.constant 9.99999974E-6 : f32
    %72 = vector.broadcast %cst_50 : f32 to vector<2x1x128xf32>
    %73 = arith.addf %71, %72 : vector<2x1x128xf32>
    %74 = math.rsqrt %73 : vector<2x1x128xf32>
    %75 = vector.broadcast %74 : vector<2x1x128xf32> to vector<2x256x128xf32>
    %76 = arith.mulf %66, %75 : vector<2x256x128xf32>
    %cst_51 = arith.constant 0.000000e+00 : f32
    %77 = vector.broadcast %cst_51 : f32 to vector<2x256x128xf32>
    %78 = arith.maximumf %76, %77 : vector<2x256x128xf32>
    %c0_52 = arith.constant 0 : index
    %c17_53 = arith.constant 17 : index
    %c0_54 = arith.constant 0 : index
    %79 = vector.load %arg6[%c0_52, %c17_53, %c0_54] : memref<2x290x128xf32, #tpu.memory_space<vmem>>, vector<2x256x128xf32>
    tpu.vector_store %arg6[%c0_52, %c17_53, %c0_54], %78 {strides = array<i32>} : memref<2x290x128xf32, #tpu.memory_space<vmem>>, vector<2x256x128xf32>,
    %c0_55 = arith.constant 0 : index
    %c0_56 = arith.constant 0 : index
    %c0_57 = arith.constant 0 : index
    %80 = vector.load %arg6[%c0_55, %c0_56, %c0_57] : memref<2x290x128xf32, #tpu.memory_space<vmem>>, vector<2x256x128xf32>
    %c0_58 = arith.constant 0 : index
    %c16_59 = arith.constant 16 : index
    %c0_60 = arith.constant 0 : index
    %81 = vector.load %arg6[%c0_58, %c16_59, %c0_60] : memref<2x290x128xf32, #tpu.memory_space<vmem>>, vector<2x256x128xf32>
    %c0_61 = arith.constant 0 : index
    %c32_62 = arith.constant 32 : index
    %c0_63 = arith.constant 0 : index
    %82 = vector.load %arg6[%c0_61, %c32_62, %c0_63] : memref<2x290x128xf32, #tpu.memory_space<vmem>>, vector<2x256x128xf32>
    %83 = tpu.concatenate %80, %81, %82 in 2 : vector<2x256x128xf32>, vector<2x256x128xf32>, vector<2x256x128xf32> -> vector<2x256x384xf32>
    %cst_64 = arith.constant 0.000000e+00 : f32
    %84 = vector.shape_cast %18 : vector<2x256x1xi1> to vector<2x256x1xi1>
    %85 = vector.broadcast %84 : vector<2x256x1xi1> to vector<2x256x384xi1>
    %86 = vector.broadcast %cst_64 : f32 to vector<2x256x384xf32>
    %87 = arith.select %85, %86, %83 : vector<2x256x384xi1>, vector<2x256x384xf32>
    %88 = vector.shape_cast %87 : vector<2x256x384xf32> to vector<512x384xf32>
    %c0_65 = arith.constant 0 : index
    %c0_66 = arith.constant 0 : index
    %c0_67 = arith.constant 0 : index
    %c0_68 = arith.constant 0 : index
    %89 = vector.load %arg4[%c0_65, %c0_66, %c0_67, %c0_68] : memref<1x3x384x128xf32, #tpu.memory_space<vmem>>, vector<1x1x384x128xf32>
    %90 = vector.shape_cast %89 : vector<1x1x384x128xf32> to vector<384x128xf32>
    %cst_69 = arith.constant dense<0.000000e+00> : vector<512x128xf32>
    %91 = tpu.matmul %88, %90, %cst_69 {dimension_numbers = #tpu.dot_dimension_numbers<[1], [0], [0], [1], [0, 0, 1, 1], [], []>} : vector<512x384xf32>, vector<384x128xf32>, vector<512x128xf32> -> vector<512x128xf32>
    %c0_70 = arith.constant 0 : index
    %c1_71 = arith.constant 1 : index
    %c0_72 = arith.constant 0 : index
    %92 = vector.load %arg6[%c0_70, %c1_71, %c0_72] : memref<2x290x128xf32, #tpu.memory_space<vmem>>, vector<2x256x128xf32>
    %c0_73 = arith.constant 0 : index
    %c17_74 = arith.constant 17 : index
    %c0_75 = arith.constant 0 : index
    %93 = vector.load %arg6[%c0_73, %c17_74, %c0_75] : memref<2x290x128xf32, #tpu.memory_space<vmem>>, vector<2x256x128xf32>
    %c0_76 = arith.constant 0 : index
    %c33_77 = arith.constant 33 : index
    %c0_78 = arith.constant 0 : index
    %94 = vector.load %arg6[%c0_76, %c33_77, %c0_78] : memref<2x290x128xf32, #tpu.memory_space<vmem>>, vector<2x256x128xf32>
    %95 = tpu.concatenate %92, %93, %94 in 2 : vector<2x256x128xf32>, vector<2x256x128xf32>, vector<2x256x128xf32> -> vector<2x256x384xf32>
    %96 = vector.shape_cast %95 : vector<2x256x384xf32> to vector<512x384xf32>
    %c0_79 = arith.constant 0 : index
    %c1_80 = arith.constant 1 : index
    %c0_81 = arith.constant 0 : index
    %c0_82 = arith.constant 0 : index
    %97 = vector.load %arg4[%c0_79, %c1_80, %c0_81, %c0_82] : memref<1x3x384x128xf32, #tpu.memory_space<vmem>>, vector<1x1x384x128xf32>
    %98 = vector.shape_cast %97 : vector<1x1x384x128xf32> to vector<384x128xf32>
    %cst_83 = arith.constant dense<0.000000e+00> : vector<512x128xf32>
    %99 = tpu.matmul %96, %98, %cst_83 {dimension_numbers = #tpu.dot_dimension_numbers<[1], [0], [0], [1], [0, 0, 1, 1], [], []>} : vector<512x384xf32>, vector<384x128xf32>, vector<512x128xf32> -> vector<512x128xf32>
    %100 = arith.addf %91, %99 : vector<512x128xf32>
    %c0_84 = arith.constant 0 : index
    %c2_85 = arith.constant 2 : index
    %c0_86 = arith.constant 0 : index
    %101 = vector.load %arg6[%c0_84, %c2_85, %c0_86] : memref<2x290x128xf32, #tpu.memory_space<vmem>>, vector<2x256x128xf32>
    %c0_87 = arith.constant 0 : index
    %c18_88 = arith.constant 18 : index
    %c0_89 = arith.constant 0 : index
    %102 = vector.load %arg6[%c0_87, %c18_88, %c0_89] : memref<2x290x128xf32, #tpu.memory_space<vmem>>, vector<2x256x128xf32>
    %c0_90 = arith.constant 0 : index
    %c34_91 = arith.constant 34 : index
    %c0_92 = arith.constant 0 : index
    %103 = vector.load %arg6[%c0_90, %c34_91, %c0_92] : memref<2x290x128xf32, #tpu.memory_space<vmem>>, vector<2x256x128xf32>
    %104 = tpu.concatenate %101, %102, %103 in 2 : vector<2x256x128xf32>, vector<2x256x128xf32>, vector<2x256x128xf32> -> vector<2x256x384xf32>
    %cst_93 = arith.constant 0.000000e+00 : f32
    %105 = vector.shape_cast %20 : vector<2x256x1xi1> to vector<2x256x1xi1>
    %106 = vector.broadcast %105 : vector<2x256x1xi1> to vector<2x256x384xi1>
    %107 = vector.broadcast %cst_93 : f32 to vector<2x256x384xf32>
    %108 = arith.select %106, %107, %104 : vector<2x256x384xi1>, vector<2x256x384xf32>
    %109 = vector.shape_cast %108 : vector<2x256x384xf32> to vector<512x384xf32>
    %c0_94 = arith.constant 0 : index
    %c2_95 = arith.constant 2 : index
    %c0_96 = arith.constant 0 : index
    %c0_97 = arith.constant 0 : index
    %110 = vector.load %arg4[%c0_94, %c2_95, %c0_96, %c0_97] : memref<1x3x384x128xf32, #tpu.memory_space<vmem>>, vector<1x1x384x128xf32>
    %111 = vector.shape_cast %110 : vector<1x1x384x128xf32> to vector<384x128xf32>
    %cst_98 = arith.constant dense<0.000000e+00> : vector<512x128xf32>
    %112 = tpu.matmul %109, %111, %cst_98 {dimension_numbers = #tpu.dot_dimension_numbers<[1], [0], [0], [1], [0, 0, 1, 1], [], []>} : vector<512x384xf32>, vector<384x128xf32>, vector<512x128xf32> -> vector<512x128xf32>
    %113 = arith.addf %100, %112 : vector<512x128xf32>
    %114 = vector.shape_cast %113 : vector<512x128xf32> to vector<2x256x128xf32>
    %cst_99 = arith.constant dense<0.000000e+00> : vector<2x128xf32>
    %115 = vector.multi_reduction <add>, %114, %cst_99 [1] : vector<2x256x128xf32> to vector<2x128xf32>
    %116 = vector.shape_cast %115 : vector<2x128xf32> to vector<2x1x128xf32>
    %cst_100 = arith.constant 2.560000e+02 : f32
    %117 = vector.broadcast %cst_100 : f32 to vector<2x1x128xf32>
    %118 = arith.divf %116, %117 : vector<2x1x128xf32>
    %119 = vector.broadcast %118 : vector<2x1x128xf32> to vector<2x256x128xf32>
    %120 = arith.subf %114, %119 : vector<2x256x128xf32>
    %121 = arith.mulf %120, %120 : vector<2x256x128xf32>
    %cst_101 = arith.constant dense<0.000000e+00> : vector<2x128xf32>
    %122 = vector.multi_reduction <add>, %121, %cst_101 [1] : vector<2x256x128xf32> to vector<2x128xf32>
    %123 = vector.shape_cast %122 : vector<2x128xf32> to vector<2x1x128xf32>
    %cst_102 = arith.constant 2.560000e+02 : f32
    %124 = vector.broadcast %cst_102 : f32 to vector<2x1x128xf32>
    %125 = arith.divf %123, %124 : vector<2x1x128xf32>
    %cst_103 = arith.constant 9.99999974E-6 : f32
    %126 = vector.broadcast %cst_103 : f32 to vector<2x1x128xf32>
    %127 = arith.addf %125, %126 : vector<2x1x128xf32>
    %128 = math.rsqrt %127 : vector<2x1x128xf32>
    %129 = vector.broadcast %128 : vector<2x1x128xf32> to vector<2x256x128xf32>
    %130 = arith.mulf %120, %129 : vector<2x256x128xf32>
    %131 = arith.addf %24, %130 : vector<2x256x128xf32>
    %c0_104 = arith.constant 0 : index
    %c0_105 = arith.constant 0 : index
    %c0_106 = arith.constant 0 : index
    %132 = vector.load %arg5[%c0_104, %c0_105, %c0_106] : memref<2x256x128xf32, #tpu.memory_space<vmem>>, vector<2x256x128xf32>
    tpu.vector_store %arg5[%c0_104, %c0_105, %c0_106], %131 {strides = array<i32>} : memref<2x256x128xf32, #tpu.memory_space<vmem>>, vector<2x256x128xf32>,
    return
  }
  func.func @transform_0(%arg0: i32, %arg1: i32) -> (i32, i32, i32) {
    %c0_i32 = arith.constant 0 : i32
    %c0_i32_0 = arith.constant 0 : i32
    %c0_i32_1 = arith.constant 0 : i32
    return %arg0, %c0_i32, %c0_i32_0 : i32, i32, i32
  }
  func.func @transform_1(%arg0: i32, %arg1: i32) -> (i32, i32, i32, i32) {
    %c0_i32 = arith.constant 0 : i32
    %c0_i32_0 = arith.constant 0 : i32
    %c0_i32_1 = arith.constant 0 : i32
    %c0_i32_2 = arith.constant 0 : i32
    return %arg1, %c0_i32, %c0_i32_0, %c0_i32_1 : i32, i32, i32, i32
  }
  func.func @transform_2(%arg0: i32, %arg1: i32) -> (i32, i32, i32, i32) {
    %c0_i32 = arith.constant 0 : i32
    %c0_i32_0 = arith.constant 0 : i32
    %c0_i32_1 = arith.constant 0 : i32
    %c0_i32_2 = arith.constant 0 : i32
    return %arg1, %c0_i32, %c0_i32_0, %c0_i32_1 : i32, i32, i32, i32
  }
  func.func @transform_3(%arg0: i32, %arg1: i32) -> (i32, i32, i32) {
    %c0_i32 = arith.constant 0 : i32
    %c0_i32_0 = arith.constant 0 : i32
    %c0_i32_1 = arith.constant 0 : i32
    return %arg0, %c0_i32, %c0_i32_0 : i32, i32, i32
  }
}

</mosaic_0001>

<llo_original>
// kernel: tpu_custom_call.1
$region0: #{tpu_custom_call.1}
  #allocation0 [shape = 'u32[]', space=smem, size = 0x4, offset = 0x4, fixed_abs, tag = 'smem constant byte address 0x4 - core index']
  #allocation1 [shape = 'u32[72,128]{1,0:T(1,128)}', space=vmem, size = 0x9000, scoped, tag = 'internal scratch']
  #allocation2 [shape = 'f32[2,290,128]{2,1,0:T(8,128)}', space=vmem, size = 0x4a000, scoped, tag = 'scratch operand']
  %s0 = inlined_call_operand.hbm [shape: f32[2,256,128], index: 0, kind: input, shape index: {}]
  %s1 = inlined_call_operand.hbm [shape: f32[2,3,384,128], index: 1, kind: input, shape index: {}]
  %s2 = inlined_call_operand.hbm [shape: f32[2,3,384,128], index: 2, kind: input, shape index: {}]
  %s3 = inlined_call_operand.hbm [shape: f32[2,256,128], index: 3, kind: output, shape index: {}]
  %s4 = sld [smem:[#allocation0]]
  $region61: #{tpu_custom_call.1} parent=0
    _
  %s6 = ssub.s32 1, %s4
  %s7 = scalar_select 0, %s6, %s4
  $region1: #{tpu_custom_call.1} parent=0
    #allocation3 [shape = 'u8[262144]{0}', space=vmem, size = 0x40000, scoped, tag = 'input window, operand 0, single buffered']
    #allocation4 [shape = 's32[2]{0}', space=sflag, size = 0x8, scoped, tag = 'scoped memory for tpu_custom_call.1']
    #allocation5 [shape = 's32[2]{0}', space=sflag, size = 0x8, scoped, tag = 'scoped memory for tpu_custom_call.1']
    #allocation6 [shape = 'u8[1179648]{0}', space=vmem, size = 0x120000, scoped, tag = 'input window, operand 1']
    #allocation7 [shape = 's32[2]{0}', space=sflag, size = 0x8, scoped, tag = 'scoped memory for tpu_custom_call.1']
    #allocation8 [shape = 'u8[1179648]{0}', space=vmem, size = 0x120000, scoped, tag = 'input window, operand 2']
    #allocation9 [shape = 'u8[262144]{0}', space=vmem, size = 0x40000, scoped, tag = 'output window, operand 0, single buffered']
    %8 = vsyncpa [#allocation4], 0
    %9 = vsyncpa [#allocation7], 0
    %s10 = scalar_lea.sflag [#allocation7], 1
    %11 = vsyncpa %s10, 0
    %12 = vsyncpa [#allocation5], 0
    loop: start=0, step=1, limit=4
    $region2: #{tpu_custom_call.1} parent=1 // loop_pre_header
      _
    $region3: #{tpu_custom_call.1} parent=1 // loop_header
      %s14 = sphi 0, %s18
      %p15 = scmp.ge.s32.totalorder %s14, 4
      %s21 = sphi 0, %s33
      %s22 = sphi 0, %s29
      %s23 = sphi 0, %s21
      %s24 = sphi 0, %s22
      %s25 = sphi 0, %s23
      %s26 = sphi 0, %s24
      %s36 = sphi 0, %s38
      %s39 = sphi 0, %s36
      %s40 = sphi 0, %s39
      %s56 = sphi 0, %s40
      %s62 = sphi 0, %s64
      %s65 = sphi 0, %s62
      %s66 = sphi 0, %s65
      %s82 = sphi 0, %s66
      %s88 = sphi 0, %s90
      %s91 = sphi 0, %s88
      %s92 = sphi 0, %s91
      %s108 = sphi 0, %s92
      %s114 = sphi 0, %s116
      %s117 = sphi 0, %s114
      %s118 = sphi 0, %s117
      %s134 = sphi 0, %s118
    $region4: #{tpu_custom_call.1} parent=1 // loop_header_branch
      %17 = sbr.rel (%p15) target = $region8
    $region5: #{tpu_custom_call.1} parent=1 // loop_body
      %s19 = ssub.s32 %s14, 1
      %s20 = ssub.s32 %s14, 2
      %s27 = sadd.s32 1, %s22
      %p28 = scmp.ge.s32.totalorder %s27, 2
      %s29 = scalar_select %p28, 0, %s27
      %s30 = sadd.s32 1, %s21
      %s31 = scalar_select %p28, %s30, %s21
      %p32 = scmp.ge.s32.totalorder %s31, 1
      %s33 = scalar_select %p32, 0, %s31
      %s34 = ssub.s32 %s21, %s33
      %p35 = scmp.eq.s32.totalorder %s34, 0
      %s37 = sadd.s32 %s36, 1
      %s38 = scalar_select %p35, %s36, %s37
      %p41 = pneg %p35
      %p42 = scmp.eq.s32.totalorder %s14, 1
      %p43 = por %p41, %p42
      %p44 = scmp.ne.s32.totalorder %s36, %s39
      %p45 = scmp.eq.s32.totalorder %s14, 0
      %p46 = por %p44, %p45
      %p47 = scmp.ne.s32.totalorder %s36, %s39
      %p48 = scmp.eq.s32.totalorder %s19, 1
      %p49 = por %p47, %p48
      %p50 = scmp.ne.s32.totalorder %s39, %s40
      %p51 = scmp.eq.s32.totalorder %s19, 0
      %p52 = por %p50, %p51
      %p53 = scmp.ne.s32.totalorder %s39, %s40
      %p54 = scmp.eq.s32.totalorder %s20, 1
      %p55 = por %p53, %p54
      %p57 = scmp.ne.s32.totalorder %s40, %s56
      %p58 = scmp.eq.s32.totalorder %s20, 0
      %p59 = por %p57, %p58
      %s60 = ssub.s32 %s22, %s29
      %p61 = scmp.eq.s32.totalorder %s60, 0
      %s63 = sadd.s32 %s62, 1
      %s64 = scalar_select %p61, %s62, %s63
      %p67 = pneg %p61
      %p68 = scmp.eq.s32.totalorder %s14, 1
      %p69 = por %p67, %p68
      %p70 = scmp.ne.s32.totalorder %s62, %s65
      %p71 = scmp.eq.s32.totalorder %s14, 0
      %p72 = por %p70, %p71
      %p73 = scmp.ne.s32.totalorder %s62, %s65
      %p74 = scmp.eq.s32.totalorder %s19, 1
      %p75 = por %p73, %p74
      %p76 = scmp.ne.s32.totalorder %s65, %s66
      %p77 = scmp.eq.s32.totalorder %s19, 0
      %p78 = por %p76, %p77
      %p79 = scmp.ne.s32.totalorder %s65, %s66
      %p80 = scmp.eq.s32.totalorder %s20, 1
      %p81 = por %p79, %p80
      %p83 = scmp.ne.s32.totalorder %s66, %s82
      %p84 = scmp.eq.s32.totalorder %s20, 0
      %p85 = por %p83, %p84
      %s86 = ssub.s32 %s22, %s29
      %p87 = scmp.eq.s32.totalorder %s86, 0
      %s89 = sadd.s32 %s88, 1
      %s90 = scalar_select %p87, %s88, %s89
      %p93 = pneg %p87
      %p94 = scmp.eq.s32.totalorder %s14, 1
      %p95 = por %p93, %p94
      %p96 = scmp.ne.s32.totalorder %s88, %s91
      %p97 = scmp.eq.s32.totalorder %s14, 0
      %p98 = por %p96, %p97
      %p99 = scmp.ne.s32.totalorder %s88, %s91
      %p100 = scmp.eq.s32.totalorder %s19, 1
      %p101 = por %p99, %p100
      %p102 = scmp.ne.s32.totalorder %s91, %s92
      %p103 = scmp.eq.s32.totalorder %s19, 0
      %p104 = por %p102, %p103
      %p105 = scmp.ne.s32.totalorder %s91, %s92
      %p106 = scmp.eq.s32.totalorder %s20, 1
      %p107 = por %p105, %p106
      %p109 = scmp.ne.s32.totalorder %s92, %s108
      %p110 = scmp.eq.s32.totalorder %s20, 0
      %p111 = por %p109, %p110
      %s112 = ssub.s32 %s21, %s33
      %p113 = scmp.eq.s32.totalorder %s112, 0
      %s115 = sadd.s32 %s114, 1
      %s116 = scalar_select %p113, %s114, %s115
      %p119 = pneg %p113
      %p120 = scmp.eq.s32.totalorder %s14, 1
      %p121 = por %p119, %p120
      %p122 = scmp.ne.s32.totalorder %s114, %s117
      %p123 = scmp.eq.s32.totalorder %s14, 0
      %p124 = por %p122, %p123
      %p125 = scmp.ne.s32.totalorder %s114, %s117
      %p126 = scmp.eq.s32.totalorder %s19, 1
      %p127 = por %p125, %p126
      %p128 = scmp.ne.s32.totalorder %s117, %s118
      %p129 = scmp.eq.s32.totalorder %s19, 0
      %p130 = por %p128, %p129
      %p131 = scmp.ne.s32.totalorder %s117, %s118
      %p132 = scmp.eq.s32.totalorder %s20, 1
      %p133 = por %p131, %p132
      %p135 = scmp.ne.s32.totalorder %s118, %s134
      %p136 = scmp.eq.s32.totalorder %s20, 0
      %p137 = por %p135, %p136
      %p138 = scmp.le.s32.totalorder 1, %s14
      %p139 = scmp.lt.s32.totalorder %s14, 3
      %p140 = pnand %p138, %p139
      %p141 = pneg %p140
      // Predicated region
      $region9: #{tpu_custom_call.1} parent=5 // pred_check
        _
      $region10: #{tpu_custom_call.1} parent=5 // pred_check_branch
        %143 = sbr.rel (%p140) target = $region12
      $region11: #{tpu_custom_call.1} parent=5 // pred_region
        %s144 = ssub.s32 %s14, 1
        // Predicated region
        $region13: #{tpu_custom_call.1} parent=11 // pred_check
          %p145 = pneg %p52
        $region14: #{tpu_custom_call.1} parent=11 // pred_check_branch
          %147 = sbr.rel (%p145) target = $region16
        $region15: #{tpu_custom_call.1} parent=11 // pred_region
          %s148 = smul.u32 2, %s23
          %150 = vsyncadd [#allocation4], 0
          %s151 = smul.addr %s148, 32
          %s152 = smul.addr %s151, 8
          %s153 = scalar_lea.hbm %s0, %s152
          %s154 = sshll.u32 %s153, 4
          %s155 = int_to_ptr.hbm [resolvable:$true] %s154
          %s156 = sshll.u32 [#allocation3], 4
          %s157 = int_to_ptr.vmem [resolvable:$true] %s156
          %162 = dma.hbm_to_vmem [thread:$0]  %s155, 8192, %s157, [#allocation4], 128, 128, 8
        $region16: #{tpu_custom_call.1} parent=11 // pred_fallthru
          _
      $region12: #{tpu_custom_call.1} parent=5 // pred_fallthru
        _
      %p163 = scmp.lt.s32.totalorder %s14, 2
      // Predicated region
      $region17: #{tpu_custom_call.1} parent=5 // pred_check
        %p164 = pneg %p163
      $region18: #{tpu_custom_call.1} parent=5 // pred_check_branch
        %166 = sbr.rel (%p164) target = $region20
      $region19: #{tpu_custom_call.1} parent=5 // pred_region
        // Predicated region
        $region21: #{tpu_custom_call.1} parent=19 // pred_check
          %p167 = pneg %p72
        $region22: #{tpu_custom_call.1} parent=19 // pred_check_branch
          %169 = sbr.rel (%p167) target = $region24
        $region23: #{tpu_custom_call.1} parent=19 // pred_region
          %s170 = sand.u32 %s14, 1
          %s171 = scalar_lea.sflag [#allocation7], %s170
          %s172 = sand.u32 %s62, 1
          %s173 = smul.addr %s172, 1152
          %s174 = scalar_lea.vmem [#allocation6], %s173
          %176 = vsyncadd %s171, 0
          %s177 = smul.addr %s22, 144
          %s178 = smul.addr %s177, 8
          %s179 = scalar_lea.hbm %s1, %s178
          %s180 = sshll.u32 %s179, 4
          %s181 = int_to_ptr.hbm [resolvable:$true] %s180
          %s182 = sshll.u32 %s174, 4
          %s183 = int_to_ptr.vmem [resolvable:$true] %s182
          %188 = dma.hbm_to_vmem [thread:$0]  %s181, 18432, %s183, %s171, 128, 128, 8
        $region24: #{tpu_custom_call.1} parent=19 // pred_fallthru
          _
        // Predicated region
        $region25: #{tpu_custom_call.1} parent=19 // pred_check
          %p189 = pneg %p98
        $region26: #{tpu_custom_call.1} parent=19 // pred_check_branch
          %191 = sbr.rel (%p189) target = $region28
        $region27: #{tpu_custom_call.1} parent=19 // pred_region
          %s192 = sand.u32 %s14, 1
          %s193 = scalar_lea.sflag [#allocation7], %s192
          %s194 = sand.u32 %s88, 1
          %s195 = smul.addr %s194, 1152
          %s196 = scalar_lea.vmem [#allocation8], %s195
          %198 = vsyncadd %s193, 0
          %s199 = smul.addr %s22, 144
          %s200 = smul.addr %s199, 8
          %s201 = scalar_lea.hbm %s2, %s200
          %s202 = sshll.u32 %s201, 4
          %s203 = int_to_ptr.hbm [resolvable:$true] %s202
          %s204 = sshll.u32 %s196, 4
          %s205 = int_to_ptr.vmem [resolvable:$true] %s204
          %210 = dma.hbm_to_vmem [thread:$0]  %s203, 18432, %s205, %s193, 128, 128, 8
        $region28: #{tpu_custom_call.1} parent=19 // pred_fallthru
          _
      $region20: #{tpu_custom_call.1} parent=5 // pred_fallthru
        _
      %p211 = scmp.le.s32.totalorder 1, %s14
      %p212 = scmp.lt.s32.totalorder %s14, 3
      %p213 = pnand %p211, %p212
      %p214 = pneg %p213
      // Predicated region
      $region29: #{tpu_custom_call.1} parent=5 // pred_check
        _
      $region30: #{tpu_custom_call.1} parent=5 // pred_check_branch
        %216 = sbr.rel (%p213) target = $region32
      $region31: #{tpu_custom_call.1} parent=5 // pred_region
        %s217 = ssub.s32 %s14, 1
        // Predicated region
        $region33: #{tpu_custom_call.1} parent=31 // pred_check
          %p218 = pneg %p52
        $region34: #{tpu_custom_call.1} parent=31 // pred_check_branch
          %220 = sbr.rel (%p218) target = $region36
        $region35: #{tpu_custom_call.1} parent=31 // pred_region
          %222 = dma.done [#allocation4], 8192
        $region36: #{tpu_custom_call.1} parent=31 // pred_fallthru
          _
        %s223 = sand.u32 %s19, 1
        %s224 = scalar_lea.sflag [#allocation7], %s223
        %s225 = sand.u32 %s65, 1
        %s226 = smul.addr %s225, 1152
        %s227 = scalar_lea.vmem [#allocation6], %s226
        // Predicated region
        $region37: #{tpu_custom_call.1} parent=31 // pred_check
          %p228 = pneg %p78
        $region38: #{tpu_custom_call.1} parent=31 // pred_check_branch
          %230 = sbr.rel (%p228) target = $region40
        $region39: #{tpu_custom_call.1} parent=31 // pred_region
          %232 = dma.done %s224, 18432
        $region40: #{tpu_custom_call.1} parent=31 // pred_fallthru
          _
        %s233 = sand.u32 %s19, 1
        %s234 = scalar_lea.sflag [#allocation7], %s233
        %s235 = sand.u32 %s91, 1
        %s236 = smul.addr %s235, 1152
        %s237 = scalar_lea.vmem [#allocation8], %s236
        // Predicated region
        $region41: #{tpu_custom_call.1} parent=31 // pred_check
          %p238 = pneg %p104
        $region42: #{tpu_custom_call.1} parent=31 // pred_check_branch
          %240 = sbr.rel (%p238) target = $region44
        $region43: #{tpu_custom_call.1} parent=31 // pred_region
          %242 = dma.done %s234, 18432
        $region44: #{tpu_custom_call.1} parent=31 // pred_fallthru
          _
        %p243 = pneg %p52
        %p244 = pneg %p49
        %s245 = sand.u32 %s19, 1
        %s246 = scalar_lea.sflag [#allocation7], %s245
        %s247 = sand.u32 %s65, 1
        %s248 = smul.addr %s247, 1152
        %s249 = scalar_lea.vmem [#allocation6], %s248
        %p250 = pneg %p78
        %p251 = pneg %p75
        %s252 = sand.u32 %s19, 1
        %s253 = scalar_lea.sflag [#allocation7], %s252
        %s254 = sand.u32 %s91, 1
        %s255 = smul.addr %s254, 1152
        %s256 = scalar_lea.vmem [#allocation8], %s255
        %p257 = pneg %p104
        %p258 = pneg %p101
        %p259 = pneg %p130
        %p260 = pneg %p127
        %s261 = smul.u32 2, %s23
        %s262 = smul.u32 2, %s23
        %v263 = vlaneseq
        %v264 = vshrl.u32 %v263, 7
        %v265 = vadd.s32 %v264, 8
        %v266 = vadd.s32 %v264, 16
        %v267 = vadd.s32 %v264, 24
        %v268 = vadd.s32 %v264, 32
        %v269 = vadd.s32 %v264, 40
        %v270 = vadd.s32 %v264, 48
        %v271 = vadd.s32 %v264, 56
        %v272 = vadd.s32 %v264, 64
        %v273 = vadd.s32 %v264, 72
        %v274 = vadd.s32 %v264, 80
        %v275 = vadd.s32 %v264, 88
        %v276 = vadd.s32 %v264, 96
        %v277 = vadd.s32 %v264, 104
        %v278 = vadd.s32 %v264, 112
        %v279 = vadd.s32 %v264, 120
        %v280 = vadd.s32 %v264, 128
        %v281 = vadd.s32 %v264, 136
        %v282 = vadd.s32 %v264, 144
        %v283 = vadd.s32 %v264, 152
        %v284 = vadd.s32 %v264, 160
        %v285 = vadd.s32 %v264, 168
        %v286 = vadd.s32 %v264, 176
        %v287 = vadd.s32 %v264, 184
        %v288 = vadd.s32 %v264, 192
        %v289 = vadd.s32 %v264, 200
        %v290 = vadd.s32 %v264, 208
        %v291 = vadd.s32 %v264, 216
        %v292 = vadd.s32 %v264, 224
        %v293 = vadd.s32 %v264, 232
        %v294 = vadd.s32 %v264, 240
        %v295 = vadd.s32 %v264, 248
        %vm296 = vcmp.lt.s32.totalorder %v264, 0
        %v297 = vsub.s32 0, %v264
        %v298 = vsel %vm296, %v297, %v264
        %v299 = vshrl.u32 %v298, 4
        %v300 = vand.u32 %v298, 15
        %v301 = vsub.s32 0, %v300
        %v302 = vsel %vm296, %v301, %v300
        %vm303 = vcmp.lt.s32.totalorder %v265, 0
        %v304 = vsub.s32 0, %v265
        %v305 = vsel %vm303, %v304, %v265
        %v306 = vshrl.u32 %v305, 4
        %v307 = vand.u32 %v305, 15
        %v308 = vsub.s32 0, %v307
        %v309 = vsel %vm303, %v308, %v307
        %vm310 = vcmp.lt.s32.totalorder %v266, 0
        %v311 = vsub.s32 0, %v266
        %v312 = vsel %vm310, %v311, %v266
        %v313 = vshrl.u32 %v312, 4
        %v314 = vand.u32 %v312, 15
        %v315 = vsub.s32 0, %v314
        %v316 = vsel %vm310, %v315, %v314
        %vm317 = vcmp.lt.s32.totalorder %v267, 0
        %v318 = vsub.s32 0, %v267
        %v319 = vsel %vm317, %v318, %v267
        %v320 = vshrl.u32 %v319, 4
        %v321 = vand.u32 %v319, 15
        %v322 = vsub.s32 0, %v321
        %v323 = vsel %vm317, %v322, %v321
        %vm324 = vcmp.lt.s32.totalorder %v268, 0
        %v325 = vsub.s32 0, %v268
        %v326 = vsel %vm324, %v325, %v268
        %v327 = vshrl.u32 %v326, 4
        %v328 = vand.u32 %v326, 15
        %v329 = vsub.s32 0, %v328
        %v330 = vsel %vm324, %v329, %v328
        %vm331 = vcmp.lt.s32.totalorder %v269, 0
        %v332 = vsub.s32 0, %v269
        %v333 = vsel %vm331, %v332, %v269
        %v334 = vshrl.u32 %v333, 4
        %v335 = vand.u32 %v333, 15
        %v336 = vsub.s32 0, %v335
        %v337 = vsel %vm331, %v336, %v335
        %vm338 = vcmp.lt.s32.totalorder %v270, 0
        %v339 = vsub.s32 0, %v270
        %v340 = vsel %vm338, %v339, %v270
        %v341 = vshrl.u32 %v340, 4
        %v342 = vand.u32 %v340, 15
        %v343 = vsub.s32 0, %v342
        %v344 = vsel %vm338, %v343, %v342
        %vm345 = vcmp.lt.s32.totalorder %v271, 0
        %v346 = vsub.s32 0, %v271
        %v347 = vsel %vm345, %v346, %v271
        %v348 = vshrl.u32 %v347, 4
        %v349 = vand.u32 %v347, 15
        %v350 = vsub.s32 0, %v349
        %v351 = vsel %vm345, %v350, %v349
        %vm352 = vcmp.lt.s32.totalorder %v272, 0
        %v353 = vsub.s32 0, %v272
        %v354 = vsel %vm352, %v353, %v272
        %v355 = vshrl.u32 %v354, 4
        %v356 = vand.u32 %v354, 15
        %v357 = vsub.s32 0, %v356
        %v358 = vsel %vm352, %v357, %v356
        %vm359 = vcmp.lt.s32.totalorder %v273, 0
        %v360 = vsub.s32 0, %v273
        %v361 = vsel %vm359, %v360, %v273
        %v362 = vshrl.u32 %v361, 4
        %v363 = vand.u32 %v361, 15
        %v364 = vsub.s32 0, %v363
        %v365 = vsel %vm359, %v364, %v363
        %vm366 = vcmp.lt.s32.totalorder %v274, 0
        %v367 = vsub.s32 0, %v274
        %v368 = vsel %vm366, %v367, %v274
        %v369 = vshrl.u32 %v368, 4
        %v370 = vand.u32 %v368, 15
        %v371 = vsub.s32 0, %v370
        %v372 = vsel %vm366, %v371, %v370
        %vm373 = vcmp.lt.s32.totalorder %v275, 0
        %v374 = vsub.s32 0, %v275
        %v375 = vsel %vm373, %v374, %v275
        %v376 = vshrl.u32 %v375, 4
        %v377 = vand.u32 %v375, 15
        %v378 = vsub.s32 0, %v377
        %v379 = vsel %vm373, %v378, %v377
        %vm380 = vcmp.lt.s32.totalorder %v276, 0
        %v381 = vsub.s32 0, %v276
        %v382 = vsel %vm380, %v381, %v276
        %v383 = vshrl.u32 %v382, 4
        %v384 = vand.u32 %v382, 15
        %v385 = vsub.s32 0, %v384
        %v386 = vsel %vm380, %v385, %v384
        %vm387 = vcmp.lt.s32.totalorder %v277, 0
        %v388 = vsub.s32 0, %v277
        %v389 = vsel %vm387, %v388, %v277
        %v390 = vshrl.u32 %v389, 4
        %v391 = vand.u32 %v389, 15
        %v392 = vsub.s32 0, %v391
        %v393 = vsel %vm387, %v392, %v391
        %vm394 = vcmp.lt.s32.totalorder %v278, 0
        %v395 = vsub.s32 0, %v278
        %v396 = vsel %vm394, %v395, %v278
        %v397 = vshrl.u32 %v396, 4
        %v398 = vand.u32 %v396, 15
        %v399 = vsub.s32 0, %v398
        %v400 = vsel %vm394, %v399, %v398
        %vm401 = vcmp.lt.s32.totalorder %v279, 0
        %v402 = vsub.s32 0, %v279
        %v403 = vsel %vm401, %v402, %v279
        %v404 = vshrl.u32 %v403, 4
        %v405 = vand.u32 %v403, 15
        %v406 = vsub.s32 0, %v405
        %v407 = vsel %vm401, %v406, %v405
        %vm408 = vcmp.lt.s32.totalorder %v280, 0
        %v409 = vsub.s32 0, %v280
        %v410 = vsel %vm408, %v409, %v280
        %v411 = vshrl.u32 %v410, 4
        %v412 = vand.u32 %v410, 15
        %v413 = vsub.s32 0, %v412
        %v414 = vsel %vm408, %v413, %v412
        %vm415 = vcmp.lt.s32.totalorder %v281, 0
        %v416 = vsub.s32 0, %v281
        %v417 = vsel %vm415, %v416, %v281
        %v418 = vshrl.u32 %v417, 4
        %v419 = vand.u32 %v417, 15
        %v420 = vsub.s32 0, %v419
        %v421 = vsel %vm415, %v420, %v419
        %vm422 = vcmp.lt.s32.totalorder %v282, 0
        %v423 = vsub.s32 0, %v282
        %v424 = vsel %vm422, %v423, %v282
        %v425 = vshrl.u32 %v424, 4
        %v426 = vand.u32 %v424, 15
        %v427 = vsub.s32 0, %v426
        %v428 = vsel %vm422, %v427, %v426
        %vm429 = vcmp.lt.s32.totalorder %v283, 0
        %v430 = vsub.s32 0, %v283
        %v431 = vsel %vm429, %v430, %v283
        %v432 = vshrl.u32 %v431, 4
        %v433 = vand.u32 %v431, 15
        %v434 = vsub.s32 0, %v433
        %v435 = vsel %vm429, %v434, %v433
        %vm436 = vcmp.lt.s32.totalorder %v284, 0
        %v437 = vsub.s32 0, %v284
        %v438 = vsel %vm436, %v437, %v284
        %v439 = vshrl.u32 %v438, 4
        %v440 = vand.u32 %v438, 15
        %v441 = vsub.s32 0, %v440
        %v442 = vsel %vm436, %v441, %v440
        %vm443 = vcmp.lt.s32.totalorder %v285, 0
        %v444 = vsub.s32 0, %v285
        %v445 = vsel %vm443, %v444, %v285
        %v446 = vshrl.u32 %v445, 4
        %v447 = vand.u32 %v445, 15
        %v448 = vsub.s32 0, %v447
        %v449 = vsel %vm443, %v448, %v447
        %vm450 = vcmp.lt.s32.totalorder %v286, 0
        %v451 = vsub.s32 0, %v286
        %v452 = vsel %vm450, %v451, %v286
        %v453 = vshrl.u32 %v452, 4
        %v454 = vand.u32 %v452, 15
        %v455 = vsub.s32 0, %v454
        %v456 = vsel %vm450, %v455, %v454
        %vm457 = vcmp.lt.s32.totalorder %v287, 0
        %v458 = vsub.s32 0, %v287
        %v459 = vsel %vm457, %v458, %v287
        %v460 = vshrl.u32 %v459, 4
        %v461 = vand.u32 %v459, 15
        %v462 = vsub.s32 0, %v461
        %v463 = vsel %vm457, %v462, %v461
        %vm464 = vcmp.lt.s32.totalorder %v288, 0
        %v465 = vsub.s32 0, %v288
        %v466 = vsel %vm464, %v465, %v288
        %v467 = vshrl.u32 %v466, 4
        %v468 = vand.u32 %v466, 15
        %v469 = vsub.s32 0, %v468
        %v470 = vsel %vm464, %v469, %v468
        %vm471 = vcmp.lt.s32.totalorder %v289, 0
        %v472 = vsub.s32 0, %v289
        %v473 = vsel %vm471, %v472, %v289
        %v474 = vshrl.u32 %v473, 4
        %v475 = vand.u32 %v473, 15
        %v476 = vsub.s32 0, %v475
        %v477 = vsel %vm471, %v476, %v475
        %vm478 = vcmp.lt.s32.totalorder %v290, 0
        %v479 = vsub.s32 0, %v290
        %v480 = vsel %vm478, %v479, %v290
        %v481 = vshrl.u32 %v480, 4
        %v482 = vand.u32 %v480, 15
        %v483 = vsub.s32 0, %v482
        %v484 = vsel %vm478, %v483, %v482
        %vm485 = vcmp.lt.s32.totalorder %v291, 0
        %v486 = vsub.s32 0, %v291
        %v487 = vsel %vm485, %v486, %v291
        %v488 = vshrl.u32 %v487, 4
        %v489 = vand.u32 %v487, 15
        %v490 = vsub.s32 0, %v489
        %v491 = vsel %vm485, %v490, %v489
        %vm492 = vcmp.lt.s32.totalorder %v292, 0
        %v493 = vsub.s32 0, %v292
        %v494 = vsel %vm492, %v493, %v292
        %v495 = vshrl.u32 %v494, 4
        %v496 = vand.u32 %v494, 15
        %v497 = vsub.s32 0, %v496
        %v498 = vsel %vm492, %v497, %v496
        %vm499 = vcmp.lt.s32.totalorder %v293, 0
        %v500 = vsub.s32 0, %v293
        %v501 = vsel %vm499, %v500, %v293
        %v502 = vshrl.u32 %v501, 4
        %v503 = vand.u32 %v501, 15
        %v504 = vsub.s32 0, %v503
        %v505 = vsel %vm499, %v504, %v503
        %vm506 = vcmp.lt.s32.totalorder %v294, 0
        %v507 = vsub.s32 0, %v294
        %v508 = vsel %vm506, %v507, %v294
        %v509 = vshrl.u32 %v508, 4
        %v510 = vand.u32 %v508, 15
        %v511 = vsub.s32 0, %v510
        %v512 = vsel %vm506, %v511, %v510
        %vm513 = vcmp.lt.s32.totalorder %v295, 0
        %v514 = vsub.s32 0, %v295
        %v515 = vsel %vm513, %v514, %v295
        %v516 = vshrl.u32 %v515, 4
        %v517 = vand.u32 %v515, 15
        %v518 = vsub.s32 0, %v517
        %v519 = vsel %vm513, %v518, %v517
        %vm520 = vcmp.ne.s32.totalorder %v302, 0
        %vm521 = vcmp.ne.s32.totalorder %v309, 0
        %vm522 = vcmp.ne.s32.totalorder %v316, 0
        %vm523 = vcmp.ne.s32.totalorder %v323, 0
        %vm524 = vcmp.ne.s32.totalorder %v330, 0
        %vm525 = vcmp.ne.s32.totalorder %v337, 0
        %vm526 = vcmp.ne.s32.totalorder %v344, 0
        %vm527 = vcmp.ne.s32.totalorder %v351, 0
        %vm528 = vcmp.ne.s32.totalorder %v358, 0
        %vm529 = vcmp.ne.s32.totalorder %v365, 0
        %vm530 = vcmp.ne.s32.totalorder %v372, 0
        %vm531 = vcmp.ne.s32.totalorder %v379, 0
        %vm532 = vcmp.ne.s32.totalorder %v386, 0
        %vm533 = vcmp.ne.s32.totalorder %v393, 0
        %vm534 = vcmp.ne.s32.totalorder %v400, 0
        %vm535 = vcmp.ne.s32.totalorder %v407, 0
        %vm536 = vcmp.ne.s32.totalorder %v414, 0
        %vm537 = vcmp.ne.s32.totalorder %v421, 0
        %vm538 = vcmp.ne.s32.totalorder %v428, 0
        %vm539 = vcmp.ne.s32.totalorder %v435, 0
        %vm540 = vcmp.ne.s32.totalorder %v442, 0
        %vm541 = vcmp.ne.s32.totalorder %v449, 0
        %vm542 = vcmp.ne.s32.totalorder %v456, 0
        %vm543 = vcmp.ne.s32.totalorder %v463, 0
        %vm544 = vcmp.ne.s32.totalorder %v470, 0
        %vm545 = vcmp.ne.s32.totalorder %v477, 0
        %vm546 = vcmp.ne.s32.totalorder %v484, 0
        %vm547 = vcmp.ne.s32.totalorder %v491, 0
        %vm548 = vcmp.ne.s32.totalorder %v498, 0
        %vm549 = vcmp.ne.s32.totalorder %v505, 0
        %vm550 = vcmp.ne.s32.totalorder %v512, 0
        %vm551 = vcmp.ne.s32.totalorder %v519, 0
        %vm552 = vcmp.lt.s32.totalorder %v302, 0
        %vm553 = vcmp.lt.s32.totalorder %v309, 0
        %vm554 = vcmp.lt.s32.totalorder %v316, 0
        %vm555 = vcmp.lt.s32.totalorder %v323, 0
        %vm556 = vcmp.lt.s32.totalorder %v330, 0
        %vm557 = vcmp.lt.s32.totalorder %v337, 0
        %vm558 = vcmp.lt.s32.totalorder %v344, 0
        %vm559 = vcmp.lt.s32.totalorder %v351, 0
        %vm560 = vcmp.lt.s32.totalorder %v358, 0
        %vm561 = vcmp.lt.s32.totalorder %v365, 0
        %vm562 = vcmp.lt.s32.totalorder %v372, 0
        %vm563 = vcmp.lt.s32.totalorder %v379, 0
        %vm564 = vcmp.lt.s32.totalorder %v386, 0
        %vm565 = vcmp.lt.s32.totalorder %v393, 0
        %vm566 = vcmp.lt.s32.totalorder %v400, 0
        %vm567 = vcmp.lt.s32.totalorder %v407, 0
        %vm568 = vcmp.lt.s32.totalorder %v414, 0
        %vm569 = vcmp.lt.s32.totalorder %v421, 0
        %vm570 = vcmp.lt.s32.totalorder %v428, 0
        %vm571 = vcmp.lt.s32.totalorder %v435, 0
        %vm572 = vcmp.lt.s32.totalorder %v442, 0
        %vm573 = vcmp.lt.s32.totalorder %v449, 0
        %vm574 = vcmp.lt.s32.totalorder %v456, 0
        %vm575 = vcmp.lt.s32.totalorder %v463, 0
        %vm576 = vcmp.lt.s32.totalorder %v470, 0
        %vm577 = vcmp.lt.s32.totalorder %v477, 0
        %vm578 = vcmp.lt.s32.totalorder %v484, 0
        %vm579 = vcmp.lt.s32.totalorder %v491, 0
        %vm580 = vcmp.lt.s32.totalorder %v498, 0
        %vm581 = vcmp.lt.s32.totalorder %v505, 0
        %vm582 = vcmp.lt.s32.totalorder %v512, 0
        %vm583 = vcmp.lt.s32.totalorder %v519, 0
        %vm584 = vmand %vm552, %vm520
        %vm585 = vmand %vm553, %vm521
        %vm586 = vmand %vm554, %vm522
        %vm587 = vmand %vm555, %vm523
        %vm588 = vmand %vm556, %vm524
        %vm589 = vmand %vm557, %vm525
        %vm590 = vmand %vm558, %vm526
        %vm591 = vmand %vm559, %vm527
        %vm592 = vmand %vm560, %vm528
        %vm593 = vmand %vm561, %vm529
        %vm594 = vmand %vm562, %vm530
        %vm595 = vmand %vm563, %vm531
        %vm596 = vmand %vm564, %vm532
        %vm597 = vmand %vm565, %vm533
        %vm598 = vmand %vm566, %vm534
        %vm599 = vmand %vm567, %vm535
        %vm600 = vmand %vm568, %vm536
        %vm601 = vmand %vm569, %vm537
        %vm602 = vmand %vm570, %vm538
        %vm603 = vmand %vm571, %vm539
        %vm604 = vmand %vm572, %vm540
        %vm605 = vmand %vm573, %vm541
        %vm606 = vmand %vm574, %vm542
        %vm607 = vmand %vm575, %vm543
        %vm608 = vmand %vm576, %vm544
        %vm609 = vmand %vm577, %vm545
        %vm610 = vmand %vm578, %vm546
        %vm611 = vmand %vm579, %vm547
        %vm612 = vmand %vm580, %vm548
        %vm613 = vmand %vm581, %vm549
        %vm614 = vmand %vm582, %vm550
        %vm615 = vmand %vm583, %vm551
        %v616 = vadd.s32 %v302, 16
        %v617 = vadd.s32 %v309, 16
        %v618 = vadd.s32 %v316, 16
        %v619 = vadd.s32 %v323, 16
        %v620 = vadd.s32 %v330, 16
        %v621 = vadd.s32 %v337, 16
        %v622 = vadd.s32 %v344, 16
        %v623 = vadd.s32 %v351, 16
        %v624 = vadd.s32 %v358, 16
        %v625 = vadd.s32 %v365, 16
        %v626 = vadd.s32 %v372, 16
        %v627 = vadd.s32 %v379, 16
        %v628 = vadd.s32 %v386, 16
        %v629 = vadd.s32 %v393, 16
        %v630 = vadd.s32 %v400, 16
        %v631 = vadd.s32 %v407, 16
        %v632 = vadd.s32 %v414, 16
        %v633 = vadd.s32 %v421, 16
        %v634 = vadd.s32 %v428, 16
        %v635 = vadd.s32 %v435, 16
        %v636 = vadd.s32 %v442, 16
        %v637 = vadd.s32 %v449, 16
        %v638 = vadd.s32 %v456, 16
        %v639 = vadd.s32 %v463, 16
        %v640 = vadd.s32 %v470, 16
        %v641 = vadd.s32 %v477, 16
        %v642 = vadd.s32 %v484, 16
        %v643 = vadd.s32 %v491, 16
        %v644 = vadd.s32 %v498, 16
        %v645 = vadd.s32 %v505, 16
        %v646 = vadd.s32 %v512, 16
        %v647 = vadd.s32 %v519, 16
        %v648 = vsel %vm584, %v616, %v302
        %v649 = vsel %vm585, %v617, %v309
        %v650 = vsel %vm586, %v618, %v316
        %v651 = vsel %vm587, %v619, %v323
        %v652 = vsel %vm588, %v620, %v330
        %v653 = vsel %vm589, %v621, %v337
        %v654 = vsel %vm590, %v622, %v344
        %v655 = vsel %vm591, %v623, %v351
        %v656 = vsel %vm592, %v624, %v358
        %v657 = vsel %vm593, %v625, %v365
        %v658 = vsel %vm594, %v626, %v372
        %v659 = vsel %vm595, %v627, %v379
        %v660 = vsel %vm596, %v628, %v386
        %v661 = vsel %vm597, %v629, %v393
        %v662 = vsel %vm598, %v630, %v400
        %v663 = vsel %vm599, %v631, %v407
        %v664 = vsel %vm600, %v632, %v414
        %v665 = vsel %vm601, %v633, %v421
        %v666 = vsel %vm602, %v634, %v428
        %v667 = vsel %vm603, %v635, %v435
        %v668 = vsel %vm604, %v636, %v442
        %v669 = vsel %vm605, %v637, %v449
        %v670 = vsel %vm606, %v638, %v456
        %v671 = vsel %vm607, %v639, %v463
        %v672 = vsel %vm608, %v640, %v470
        %v673 = vsel %vm609, %v641, %v477
        %v674 = vsel %vm610, %v642, %v484
        %v675 = vsel %vm611, %v643, %v491
        %v676 = vsel %vm612, %v644, %v498
        %v677 = vsel %vm613, %v645, %v505
        %v678 = vsel %vm614, %v646, %v512
        %v679 = vsel %vm615, %v647, %v519
        %vm680 = vcmp.eq.s32.totalorder %v648, 0
        %vm681 = vcmp.eq.s32.totalorder %v649, 0
        %vm682 = vcmp.eq.s32.totalorder %v650, 0
        %vm683 = vcmp.eq.s32.totalorder %v651, 0
        %vm684 = vcmp.eq.s32.totalorder %v652, 0
        %vm685 = vcmp.eq.s32.totalorder %v653, 0
        %vm686 = vcmp.eq.s32.totalorder %v654, 0
        %vm687 = vcmp.eq.s32.totalorder %v655, 0
        %vm688 = vcmp.eq.s32.totalorder %v656, 0
        %vm689 = vcmp.eq.s32.totalorder %v657, 0
        %vm690 = vcmp.eq.s32.totalorder %v658, 0
        %vm691 = vcmp.eq.s32.totalorder %v659, 0
        %vm692 = vcmp.eq.s32.totalorder %v660, 0
        %vm693 = vcmp.eq.s32.totalorder %v661, 0
        %vm694 = vcmp.eq.s32.totalorder %v662, 0
        %vm695 = vcmp.eq.s32.totalorder %v663, 0
        %vm696 = vcmp.eq.s32.totalorder %v664, 0
        %vm697 = vcmp.eq.s32.totalorder %v665, 0
        %vm698 = vcmp.eq.s32.totalorder %v666, 0
        %vm699 = vcmp.eq.s32.totalorder %v667, 0
        %vm700 = vcmp.eq.s32.totalorder %v668, 0
        %vm701 = vcmp.eq.s32.totalorder %v669, 0
        %vm702 = vcmp.eq.s32.totalorder %v670, 0
        %vm703 = vcmp.eq.s32.totalorder %v671, 0
        %vm704 = vcmp.eq.s32.totalorder %v672, 0
        %vm705 = vcmp.eq.s32.totalorder %v673, 0
        %vm706 = vcmp.eq.s32.totalorder %v674, 0
        %vm707 = vcmp.eq.s32.totalorder %v675, 0
        %vm708 = vcmp.eq.s32.totalorder %v676, 0
        %vm709 = vcmp.eq.s32.totalorder %v677, 0
        %vm710 = vcmp.eq.s32.totalorder %v678, 0
        %vm711 = vcmp.eq.s32.totalorder %v679, 0
        %vm712 = vcmp.eq.s32.totalorder %v648, 15
        %vm713 = vcmp.eq.s32.totalorder %v649, 15
        %vm714 = vcmp.eq.s32.totalorder %v650, 15
        %vm715 = vcmp.eq.s32.totalorder %v651, 15
        %vm716 = vcmp.eq.s32.totalorder %v652, 15
        %vm717 = vcmp.eq.s32.totalorder %v653, 15
        %vm718 = vcmp.eq.s32.totalorder %v654, 15
        %vm719 = vcmp.eq.s32.totalorder %v655, 15
        %vm720 = vcmp.eq.s32.totalorder %v656, 15
        %vm721 = vcmp.eq.s32.totalorder %v657, 15
        %vm722 = vcmp.eq.s32.totalorder %v658, 15
        %vm723 = vcmp.eq.s32.totalorder %v659, 15
        %vm724 = vcmp.eq.s32.totalorder %v660, 15
        %vm725 = vcmp.eq.s32.totalorder %v661, 15
        %vm726 = vcmp.eq.s32.totalorder %v662, 15
        %vm727 = vcmp.eq.s32.totalorder %v663, 15
        %vm728 = vcmp.eq.s32.totalorder %v664, 15
        %vm729 = vcmp.eq.s32.totalorder %v665, 15
        %vm730 = vcmp.eq.s32.totalorder %v666, 15
        %vm731 = vcmp.eq.s32.totalorder %v667, 15
        %vm732 = vcmp.eq.s32.totalorder %v668, 15
        %vm733 = vcmp.eq.s32.totalorder %v669, 15
        %vm734 = vcmp.eq.s32.totalorder %v670, 15
        %vm735 = vcmp.eq.s32.totalorder %v671, 15
        %vm736 = vcmp.eq.s32.totalorder %v672, 15
        %vm737 = vcmp.eq.s32.totalorder %v673, 15
        %vm738 = vcmp.eq.s32.totalorder %v674, 15
        %vm739 = vcmp.eq.s32.totalorder %v675, 15
        %vm740 = vcmp.eq.s32.totalorder %v676, 15
        %vm741 = vcmp.eq.s32.totalorder %v677, 15
        %vm742 = vcmp.eq.s32.totalorder %v678, 15
        %vm743 = vcmp.eq.s32.totalorder %v679, 15
        %p744 = scmp.eq.s32.totalorder %s24, 0
        // Predicated region
        $region45: #{tpu_custom_call.1} parent=31 // pred_check
          %p745 = pneg %p744
        $region46: #{tpu_custom_call.1} parent=31 // pred_check_branch
          %747 = sbr.rel (%p745) target = $region48
        $region47: #{tpu_custom_call.1} parent=31 // pred_region
          %748 = vst [vmem:[#allocation2] sm:$0xff] 0.0
          %749 = vst [vmem:[#allocation2 + $0x8] sm:$0xff] 0.0
          %750 = vst [vmem:[#allocation2 + $0x10] sm:$0xff] 0.0
          %751 = vst [vmem:[#allocation2 + $0x18] sm:$0xff] 0.0
          %752 = vst [vmem:[#allocation2 + $0x20] sm:$0xff] 0.0
          %753 = vst [vmem:[#allocation2 + $0x28] sm:$0xff] 0.0
          %754 = vst [vmem:[#allocation2 + $0x30] sm:$0xff] 0.0
          %755 = vst [vmem:[#allocation2 + $0x38] sm:$0xff] 0.0
          %756 = vst [vmem:[#allocation2 + $0x40] sm:$0xff] 0.0
          %757 = vst [vmem:[#allocation2 + $0x48] sm:$0xff] 0.0
          %758 = vst [vmem:[#allocation2 + $0x50] sm:$0xff] 0.0
          %759 = vst [vmem:[#allocation2 + $0x58] sm:$0xff] 0.0
          %760 = vst [vmem:[#allocation2 + $0x60] sm:$0xff] 0.0
          %761 = vst [vmem:[#allocation2 + $0x68] sm:$0xff] 0.0
          %762 = vst [vmem:[#allocation2 + $0x70] sm:$0xff] 0.0
          %763 = vst [vmem:[#allocation2 + $0x78] sm:$0xff] 0.0
          %764 = vst [vmem:[#allocation2 + $0x80] sm:$0xff] 0.0
          %765 = vst [vmem:[#allocation2 + $0x88] sm:$0xff] 0.0
          %766 = vst [vmem:[#allocation2 + $0x90] sm:$0xff] 0.0
          %767 = vst [vmem:[#allocation2 + $0x98] sm:$0xff] 0.0
          %768 = vst [vmem:[#allocation2 + $0xa0] sm:$0xff] 0.0
          %769 = vst [vmem:[#allocation2 + $0xa8] sm:$0xff] 0.0
          %770 = vst [vmem:[#allocation2 + $0xb0] sm:$0xff] 0.0
          %771 = vst [vmem:[#allocation2 + $0xb8] sm:$0xff] 0.0
          %772 = vst [vmem:[#allocation2 + $0xc0] sm:$0xff] 0.0
          %773 = vst [vmem:[#allocation2 + $0xc8] sm:$0xff] 0.0
          %774 = vst [vmem:[#allocation2 + $0xd0] sm:$0xff] 0.0
          %775 = vst [vmem:[#allocation2 + $0xd8] sm:$0xff] 0.0
          %776 = vst [vmem:[#allocation2 + $0xe0] sm:$0xff] 0.0
          %777 = vst [vmem:[#allocation2 + $0xe8] sm:$0xff] 0.0
          %778 = vst [vmem:[#allocation2 + $0xf0] sm:$0xff] 0.0
          %779 = vst [vmem:[#allocation2 + $0xf8] sm:$0xff] 0.0
          %780 = vst [vmem:[#allocation2 + $0x100] sm:$0xff] 0.0
          %781 = vst [vmem:[#allocation2 + $0x108] sm:$0xff] 0.0
          %782 = vst [vmem:[#allocation2 + $0x110] sm:$0xff] 0.0
          %783 = vst [vmem:[#allocation2 + $0x118] sm:$0xff] 0.0
          %784 = vst [vmem:[#allocation2 + $0x120] sm:$0x3] 0.0
          %785 = vst [vmem:[#allocation2 + $0x128] sm:$0xff] 0.0
          %786 = vst [vmem:[#allocation2 + $0x130] sm:$0xff] 0.0
          %787 = vst [vmem:[#allocation2 + $0x138] sm:$0xff] 0.0
          %788 = vst [vmem:[#allocation2 + $0x140] sm:$0xff] 0.0
          %789 = vst [vmem:[#allocation2 + $0x148] sm:$0xff] 0.0
          %790 = vst [vmem:[#allocation2 + $0x150] sm:$0xff] 0.0
          %791 = vst [vmem:[#allocation2 + $0x158] sm:$0xff] 0.0
          %792 = vst [vmem:[#allocation2 + $0x160] sm:$0xff] 0.0
          %793 = vst [vmem:[#allocation2 + $0x168] sm:$0xff] 0.0
          %794 = vst [vmem:[#allocation2 + $0x170] sm:$0xff] 0.0
          %795 = vst [vmem:[#allocation2 + $0x178] sm:$0xff] 0.0
          %796 = vst [vmem:[#allocation2 + $0x180] sm:$0xff] 0.0
          %797 = vst [vmem:[#allocation2 + $0x188] sm:$0xff] 0.0
          %798 = vst [vmem:[#allocation2 + $0x190] sm:$0xff] 0.0
          %799 = vst [vmem:[#allocation2 + $0x198] sm:$0xff] 0.0
          %800 = vst [vmem:[#allocation2 + $0x1a0] sm:$0xff] 0.0
          %801 = vst [vmem:[#allocation2 + $0x1a8] sm:$0xff] 0.0
          %802 = vst [vmem:[#allocation2 + $0x1b0] sm:$0xff] 0.0
          %803 = vst [vmem:[#allocation2 + $0x1b8] sm:$0xff] 0.0
          %804 = vst [vmem:[#allocation2 + $0x1c0] sm:$0xff] 0.0
          %805 = vst [vmem:[#allocation2 + $0x1c8] sm:$0xff] 0.0
          %806 = vst [vmem:[#allocation2 + $0x1d0] sm:$0xff] 0.0
          %807 = vst [vmem:[#allocation2 + $0x1d8] sm:$0xff] 0.0
          %808 = vst [vmem:[#allocation2 + $0x1e0] sm:$0xff] 0.0
          %809 = vst [vmem:[#allocation2 + $0x1e8] sm:$0xff] 0.0
          %810 = vst [vmem:[#allocation2 + $0x1f0] sm:$0xff] 0.0
          %811 = vst [vmem:[#allocation2 + $0x1f8] sm:$0xff] 0.0
          %812 = vst [vmem:[#allocation2 + $0x200] sm:$0xff] 0.0
          %813 = vst [vmem:[#allocation2 + $0x208] sm:$0xff] 0.0
          %814 = vst [vmem:[#allocation2 + $0x210] sm:$0xff] 0.0
          %815 = vst [vmem:[#allocation2 + $0x218] sm:$0xff] 0.0
          %816 = vst [vmem:[#allocation2 + $0x220] sm:$0xff] 0.0
          %817 = vst [vmem:[#allocation2 + $0x228] sm:$0xff] 0.0
          %818 = vst [vmem:[#allocation2 + $0x230] sm:$0xff] 0.0
          %819 = vst [vmem:[#allocation2 + $0x238] sm:$0xff] 0.0
          %820 = vst [vmem:[#allocation2 + $0x240] sm:$0xff] 0.0
          %821 = vst [vmem:[#allocation2 + $0x248] sm:$0x3] 0.0
          %v822 = vld [vmem:[#allocation3] sm:$0xff]
          %v823 = vld [vmem:[#allocation3 + $0x8] sm:$0xff]
          %v824 = vld [vmem:[#allocation3 + $0x10] sm:$0xff]
          %v825 = vld [vmem:[#allocation3 + $0x18] sm:$0xff]
          %v826 = vld [vmem:[#allocation3 + $0x20] sm:$0xff]
          %v827 = vld [vmem:[#allocation3 + $0x28] sm:$0xff]
          %v828 = vld [vmem:[#allocation3 + $0x30] sm:$0xff]
          %v829 = vld [vmem:[#allocation3 + $0x38] sm:$0xff]
          %v830 = vld [vmem:[#allocation3 + $0x40] sm:$0xff]
          %v831 = vld [vmem:[#allocation3 + $0x48] sm:$0xff]
          %v832 = vld [vmem:[#allocation3 + $0x50] sm:$0xff]
          %v833 = vld [vmem:[#allocation3 + $0x58] sm:$0xff]
          %v834 = vld [vmem:[#allocation3 + $0x60] sm:$0xff]
          %v835 = vld [vmem:[#allocation3 + $0x68] sm:$0xff]
          %v836 = vld [vmem:[#allocation3 + $0x70] sm:$0xff]
          %v837 = vld [vmem:[#allocation3 + $0x78] sm:$0xff]
          %v838 = vld [vmem:[#allocation3 + $0x80] sm:$0xff]
          %v839 = vld [vmem:[#allocation3 + $0x88] sm:$0xff]
          %v840 = vld [vmem:[#allocation3 + $0x90] sm:$0xff]
          %v841 = vld [vmem:[#allocation3 + $0x98] sm:$0xff]
          %v842 = vld [vmem:[#allocation3 + $0xa0] sm:$0xff]
          %v843 = vld [vmem:[#allocation3 + $0xa8] sm:$0xff]
          %v844 = vld [vmem:[#allocation3 + $0xb0] sm:$0xff]
          %v845 = vld [vmem:[#allocation3 + $0xb8] sm:$0xff]
          %v846 = vld [vmem:[#allocation3 + $0xc0] sm:$0xff]
          %v847 = vld [vmem:[#allocation3 + $0xc8] sm:$0xff]
          %v848 = vld [vmem:[#allocation3 + $0xd0] sm:$0xff]
          %v849 = vld [vmem:[#allocation3 + $0xd8] sm:$0xff]
          %v850 = vld [vmem:[#allocation3 + $0xe0] sm:$0xff]
          %v851 = vld [vmem:[#allocation3 + $0xe8] sm:$0xff]
          %v852 = vld [vmem:[#allocation3 + $0xf0] sm:$0xff]
          %v853 = vld [vmem:[#allocation3 + $0xf8] sm:$0xff]
          %v854 = vld [vmem:[#allocation3 + $0x100] sm:$0xff]
          %v855 = vld [vmem:[#allocation3 + $0x108] sm:$0xff]
          %v856 = vld [vmem:[#allocation3 + $0x110] sm:$0xff]
          %v857 = vld [vmem:[#allocation3 + $0x118] sm:$0xff]
          %v858 = vld [vmem:[#allocation3 + $0x120] sm:$0xff]
          %v859 = vld [vmem:[#allocation3 + $0x128] sm:$0xff]
          %v860 = vld [vmem:[#allocation3 + $0x130] sm:$0xff]
          %v861 = vld [vmem:[#allocation3 + $0x138] sm:$0xff]
          %v862 = vld [vmem:[#allocation3 + $0x140] sm:$0xff]
          %v863 = vld [vmem:[#allocation3 + $0x148] sm:$0xff]
          %v864 = vld [vmem:[#allocation3 + $0x150] sm:$0xff]
          %v865 = vld [vmem:[#allocation3 + $0x158] sm:$0xff]
          %v866 = vld [vmem:[#allocation3 + $0x160] sm:$0xff]
          %v867 = vld [vmem:[#allocation3 + $0x168] sm:$0xff]
          %v868 = vld [vmem:[#allocation3 + $0x170] sm:$0xff]
          %v869 = vld [vmem:[#allocation3 + $0x178] sm:$0xff]
          %v870 = vld [vmem:[#allocation3 + $0x180] sm:$0xff]
          %v871 = vld [vmem:[#allocation3 + $0x188] sm:$0xff]
          %v872 = vld [vmem:[#allocation3 + $0x190] sm:$0xff]
          %v873 = vld [vmem:[#allocation3 + $0x198] sm:$0xff]
          %v874 = vld [vmem:[#allocation3 + $0x1a0] sm:$0xff]
          %v875 = vld [vmem:[#allocation3 + $0x1a8] sm:$0xff]
          %v876 = vld [vmem:[#allocation3 + $0x1b0] sm:$0xff]
          %v877 = vld [vmem:[#allocation3 + $0x1b8] sm:$0xff]
          %v878 = vld [vmem:[#allocation3 + $0x1c0] sm:$0xff]
          %v879 = vld [vmem:[#allocation3 + $0x1c8] sm:$0xff]
          %v880 = vld [vmem:[#allocation3 + $0x1d0] sm:$0xff]
          %v881 = vld [vmem:[#allocation3 + $0x1d8] sm:$0xff]
          %v882 = vld [vmem:[#allocation3 + $0x1e0] sm:$0xff]
          %v883 = vld [vmem:[#allocation3 + $0x1e8] sm:$0xff]
          %v884 = vld [vmem:[#allocation3 + $0x1f0] sm:$0xff]
          %v885 = vld [vmem:[#allocation3 + $0x1f8] sm:$0xff]
          %886 = vst [vmem:[#allocation9] sm:$0xff] %v822
          %887 = vst [vmem:[#allocation9 + $0x8] sm:$0xff] %v823
          %888 = vst [vmem:[#allocation9 + $0x10] sm:$0xff] %v824
          %889 = vst [vmem:[#allocation9 + $0x18] sm:$0xff] %v825
          %890 = vst [vmem:[#allocation9 + $0x20] sm:$0xff] %v826
          %891 = vst [vmem:[#allocation9 + $0x28] sm:$0xff] %v827
          %892 = vst [vmem:[#allocation9 + $0x30] sm:$0xff] %v828
          %893 = vst [vmem:[#allocation9 + $0x38] sm:$0xff] %v829
          %894 = vst [vmem:[#allocation9 + $0x40] sm:$0xff] %v830
          %895 = vst [vmem:[#allocation9 + $0x48] sm:$0xff] %v831
          %896 = vst [vmem:[#allocation9 + $0x50] sm:$0xff] %v832
          %897 = vst [vmem:[#allocation9 + $0x58] sm:$0xff] %v833
          %898 = vst [vmem:[#allocation9 + $0x60] sm:$0xff] %v834
          %899 = vst [vmem:[#allocation9 + $0x68] sm:$0xff] %v835
          %900 = vst [vmem:[#allocation9 + $0x70] sm:$0xff] %v836
          %901 = vst [vmem:[#allocation9 + $0x78] sm:$0xff] %v837
          %902 = vst [vmem:[#allocation9 + $0x80] sm:$0xff] %v838
          %903 = vst [vmem:[#allocation9 + $0x88] sm:$0xff] %v839
          %904 = vst [vmem:[#allocation9 + $0x90] sm:$0xff] %v840
          %905 = vst [vmem:[#allocation9 + $0x98] sm:$0xff] %v841
          %906 = vst [vmem:[#allocation9 + $0xa0] sm:$0xff] %v842
          %907 = vst [vmem:[#allocation9 + $0xa8] sm:$0xff] %v843
          %908 = vst [vmem:[#allocation9 + $0xb0] sm:$0xff] %v844
          %909 = vst [vmem:[#allocation9 + $0xb8] sm:$0xff] %v845
          %910 = vst [vmem:[#allocation9 + $0xc0] sm:$0xff] %v846
          %911 = vst [vmem:[#allocation9 + $0xc8] sm:$0xff] %v847
          %912 = vst [vmem:[#allocation9 + $0xd0] sm:$0xff] %v848
          %913 = vst [vmem:[#allocation9 + $0xd8] sm:$0xff] %v849
          %914 = vst [vmem:[#allocation9 + $0xe0] sm:$0xff] %v850
          %915 = vst [vmem:[#allocation9 + $0xe8] sm:$0xff] %v851
          %916 = vst [vmem:[#allocation9 + $0xf0] sm:$0xff] %v852
          %917 = vst [vmem:[#allocation9 + $0xf8] sm:$0xff] %v853
          %918 = vst [vmem:[#allocation9 + $0x100] sm:$0xff] %v854
          %919 = vst [vmem:[#allocation9 + $0x108] sm:$0xff] %v855
          %920 = vst [vmem:[#allocation9 + $0x110] sm:$0xff] %v856
          %921 = vst [vmem:[#allocation9 + $0x118] sm:$0xff] %v857
          %922 = vst [vmem:[#allocation9 + $0x120] sm:$0xff] %v858
          %923 = vst [vmem:[#allocation9 + $0x128] sm:$0xff] %v859
          %924 = vst [vmem:[#allocation9 + $0x130] sm:$0xff] %v860
          %925 = vst [vmem:[#allocation9 + $0x138] sm:$0xff] %v861
          %926 = vst [vmem:[#allocation9 + $0x140] sm:$0xff] %v862
          %927 = vst [vmem:[#allocation9 + $0x148] sm:$0xff] %v863
          %928 = vst [vmem:[#allocation9 + $0x150] sm:$0xff] %v864
          %929 = vst [vmem:[#allocation9 + $0x158] sm:$0xff] %v865
          %930 = vst [vmem:[#allocation9 + $0x160] sm:$0xff] %v866
          %931 = vst [vmem:[#allocation9 + $0x168] sm:$0xff] %v867
          %932 = vst [vmem:[#allocation9 + $0x170] sm:$0xff] %v868
          %933 = vst [vmem:[#allocation9 + $0x178] sm:$0xff] %v869
          %934 = vst [vmem:[#allocation9 + $0x180] sm:$0xff] %v870
          %935 = vst [vmem:[#allocation9 + $0x188] sm:$0xff] %v871
          %936 = vst [vmem:[#allocation9 + $0x190] sm:$0xff] %v872
          %937 = vst [vmem:[#allocation9 + $0x198] sm:$0xff] %v873
          %938 = vst [vmem:[#allocation9 + $0x1a0] sm:$0xff] %v874
          %939 = vst [vmem:[#allocation9 + $0x1a8] sm:$0xff] %v875
          %940 = vst [vmem:[#allocation9 + $0x1b0] sm:$0xff] %v876
          %941 = vst [vmem:[#allocation9 + $0x1b8] sm:$0xff] %v877
          %942 = vst [vmem:[#allocation9 + $0x1c0] sm:$0xff] %v878
          %943 = vst [vmem:[#allocation9 + $0x1c8] sm:$0xff] %v879
          %944 = vst [vmem:[#allocation9 + $0x1d0] sm:$0xff] %v880
          %945 = vst [vmem:[#allocation9 + $0x1d8] sm:$0xff] %v881
          %946 = vst [vmem:[#allocation9 + $0x1e0] sm:$0xff] %v882
          %947 = vst [vmem:[#allocation9 + $0x1e8] sm:$0xff] %v883
          %948 = vst [vmem:[#allocation9 + $0x1f0] sm:$0xff] %v884
          %949 = vst [vmem:[#allocation9 + $0x1f8] sm:$0xff] %v885
        $region48: #{tpu_custom_call.1} parent=31 // pred_fallthru
          _
        %v950 = vld [vmem:[#allocation9] sm:$0xff]
        %v951 = vld [vmem:[#allocation9 + $0x8] sm:$0xff]
        %v952 = vld [vmem:[#allocation9 + $0x10] sm:$0xff]
        %v953 = vld [vmem:[#allocation9 + $0x18] sm:$0xff]
        %v954 = vld [vmem:[#allocation9 + $0x20] sm:$0xff]
        %v955 = vld [vmem:[#allocation9 + $0x28] sm:$0xff]
        %v956 = vld [vmem:[#allocation9 + $0x30] sm:$0xff]
        %v957 = vld [vmem:[#allocation9 + $0x38] sm:$0xff]
        %v958 = vld [vmem:[#allocation9 + $0x40] sm:$0xff]
        %v959 = vld [vmem:[#allocation9 + $0x48] sm:$0xff]
        %v960 = vld [vmem:[#allocation9 + $0x50] sm:$0xff]
        %v961 = vld [vmem:[#allocation9 + $0x58] sm:$0xff]
        %v962 = vld [vmem:[#allocation9 + $0x60] sm:$0xff]
        %v963 = vld [vmem:[#allocation9 + $0x68] sm:$0xff]
        %v964 = vld [vmem:[#allocation9 + $0x70] sm:$0xff]
        %v965 = vld [vmem:[#allocation9 + $0x78] sm:$0xff]
        %v966 = vld [vmem:[#allocation9 + $0x80] sm:$0xff]
        %v967 = vld [vmem:[#allocation9 + $0x88] sm:$0xff]
        %v968 = vld [vmem:[#allocation9 + $0x90] sm:$0xff]
        %v969 = vld [vmem:[#allocation9 + $0x98] sm:$0xff]
        %v970 = vld [vmem:[#allocation9 + $0xa0] sm:$0xff]
        %v971 = vld [vmem:[#allocation9 + $0xa8] sm:$0xff]
        %v972 = vld [vmem:[#allocation9 + $0xb0] sm:$0xff]
        %v973 = vld [vmem:[#allocation9 + $0xb8] sm:$0xff]
        %v974 = vld [vmem:[#allocation9 + $0xc0] sm:$0xff]
        %v975 = vld [vmem:[#allocation9 + $0xc8] sm:$0xff]
        %v976 = vld [vmem:[#allocation9 + $0xd0] sm:$0xff]
        %v977 = vld [vmem:[#allocation9 + $0xd8] sm:$0xff]
        %v978 = vld [vmem:[#allocation9 + $0xe0] sm:$0xff]
        %v979 = vld [vmem:[#allocation9 + $0xe8] sm:$0xff]
        %v980 = vld [vmem:[#allocation9 + $0xf0] sm:$0xff]
        %v981 = vld [vmem:[#allocation9 + $0xf8] sm:$0xff]
        %v982 = vld [vmem:[#allocation9 + $0x100] sm:$0xff]
        %v983 = vld [vmem:[#allocation9 + $0x108] sm:$0xff]
        %v984 = vld [vmem:[#allocation9 + $0x110] sm:$0xff]
        %v985 = vld [vmem:[#allocation9 + $0x118] sm:$0xff]
        %v986 = vld [vmem:[#allocation9 + $0x120] sm:$0xff]
        %v987 = vld [vmem:[#allocation9 + $0x128] sm:$0xff]
        %v988 = vld [vmem:[#allocation9 + $0x130] sm:$0xff]
        %v989 = vld [vmem:[#allocation9 + $0x138] sm:$0xff]
        %v990 = vld [vmem:[#allocation9 + $0x140] sm:$0xff]
        %v991 = vld [vmem:[#allocation9 + $0x148] sm:$0xff]
        %v992 = vld [vmem:[#allocation9 + $0x150] sm:$0xff]
        %v993 = vld [vmem:[#allocation9 + $0x158] sm:$0xff]
        %v994 = vld [vmem:[#allocation9 + $0x160] sm:$0xff]
        %v995 = vld [vmem:[#allocation9 + $0x168] sm:$0xff]
        %v996 = vld [vmem:[#allocation9 + $0x170] sm:$0xff]
        %v997 = vld [vmem:[#allocation9 + $0x178] sm:$0xff]
        %v998 = vld [vmem:[#allocation9 + $0x180] sm:$0xff]
        %v999 = vld [vmem:[#allocation9 + $0x188] sm:$0xff]
        %v1000 = vld [vmem:[#allocation9 + $0x190] sm:$0xff]
        %v1001 = vld [vmem:[#allocation9 + $0x198] sm:$0xff]
        %v1002 = vld [vmem:[#allocation9 + $0x1a0] sm:$0xff]
        %v1003 = vld [vmem:[#allocation9 + $0x1a8] sm:$0xff]
        %v1004 = vld [vmem:[#allocation9 + $0x1b0] sm:$0xff]
        %v1005 = vld [vmem:[#allocation9 + $0x1b8] sm:$0xff]
        %v1006 = vld [vmem:[#allocation9 + $0x1c0] sm:$0xff]
        %v1007 = vld [vmem:[#allocation9 + $0x1c8] sm:$0xff]
        %v1008 = vld [vmem:[#allocation9 + $0x1d0] sm:$0xff]
        %v1009 = vld [vmem:[#allocation9 + $0x1d8] sm:$0xff]
        %v1010 = vld [vmem:[#allocation9 + $0x1e0] sm:$0xff]
        %v1011 = vld [vmem:[#allocation9 + $0x1e8] sm:$0xff]
        %v1012 = vld [vmem:[#allocation9 + $0x1f0] sm:$0xff]
        %v1013 = vld [vmem:[#allocation9 + $0x1f8] sm:$0xff]
        %1014 = vst [vmem:[#allocation2 + $0x11] sm:$0xff] %v950
        %1015 = vst [vmem:[#allocation2 + $0x19] sm:$0xff] %v951
        %1016 = vst [vmem:[#allocation2 + $0x21] sm:$0xff] %v952
        %1017 = vst [vmem:[#allocation2 + $0x29] sm:$0xff] %v953
        %1018 = vst [vmem:[#allocation2 + $0x31] sm:$0xff] %v954
        %1019 = vst [vmem:[#allocation2 + $0x39] sm:$0xff] %v955
        %1020 = vst [vmem:[#allocation2 + $0x41] sm:$0xff] %v956
        %1021 = vst [vmem:[#allocation2 + $0x49] sm:$0xff] %v957
        %1022 = vst [vmem:[#allocation2 + $0x51] sm:$0xff] %v958
        %1023 = vst [vmem:[#allocation2 + $0x59] sm:$0xff] %v959
        %1024 = vst [vmem:[#allocation2 + $0x61] sm:$0xff] %v960
        %1025 = vst [vmem:[#allocation2 + $0x69] sm:$0xff] %v961
        %1026 = vst [vmem:[#allocation2 + $0x71] sm:$0xff] %v962
        %1027 = vst [vmem:[#allocation2 + $0x79] sm:$0xff] %v963
        %1028 = vst [vmem:[#allocation2 + $0x81] sm:$0xff] %v964
        %1029 = vst [vmem:[#allocation2 + $0x89] sm:$0xff] %v965
        %1030 = vst [vmem:[#allocation2 + $0x91] sm:$0xff] %v966
        %1031 = vst [vmem:[#allocation2 + $0x99] sm:$0xff] %v967
        %1032 = vst [vmem:[#allocation2 + $0xa1] sm:$0xff] %v968
        %1033 = vst [vmem:[#allocation2 + $0xa9] sm:$0xff] %v969
        %1034 = vst [vmem:[#allocation2 + $0xb1] sm:$0xff] %v970
        %1035 = vst [vmem:[#allocation2 + $0xb9] sm:$0xff] %v971
        %1036 = vst [vmem:[#allocation2 + $0xc1] sm:$0xff] %v972
        %1037 = vst [vmem:[#allocation2 + $0xc9] sm:$0xff] %v973
        %1038 = vst [vmem:[#allocation2 + $0xd1] sm:$0xff] %v974
        %1039 = vst [vmem:[#allocation2 + $0xd9] sm:$0xff] %v975
        %1040 = vst [vmem:[#allocation2 + $0xe1] sm:$0xff] %v976
        %1041 = vst [vmem:[#allocation2 + $0xe9] sm:$0xff] %v977
        %1042 = vst [vmem:[#allocation2 + $0xf1] sm:$0xff] %v978
        %1043 = vst [vmem:[#allocation2 + $0xf9] sm:$0xff] %v979
        %1044 = vst [vmem:[#allocation2 + $0x101] sm:$0xff] %v980
        %1045 = vst [vmem:[#allocation2 + $0x109] sm:$0xff] %v981
        %1046 = vst [vmem:[#allocation2 + $0x139] sm:$0xff] %v982
        %1047 = vst [vmem:[#allocation2 + $0x141] sm:$0xff] %v983
        %1048 = vst [vmem:[#allocation2 + $0x149] sm:$0xff] %v984
        %1049 = vst [vmem:[#allocation2 + $0x151] sm:$0xff] %v985
        %1050 = vst [vmem:[#allocation2 + $0x159] sm:$0xff] %v986
        %1051 = vst [vmem:[#allocation2 + $0x161] sm:$0xff] %v987
        %1052 = vst [vmem:[#allocation2 + $0x169] sm:$0xff] %v988
        %1053 = vst [vmem:[#allocation2 + $0x171] sm:$0xff] %v989
        %1054 = vst [vmem:[#allocation2 + $0x179] sm:$0xff] %v990
        %1055 = vst [vmem:[#allocation2 + $0x181] sm:$0xff] %v991
        %1056 = vst [vmem:[#allocation2 + $0x189] sm:$0xff] %v992
        %1057 = vst [vmem:[#allocation2 + $0x191] sm:$0xff] %v993
        %1058 = vst [vmem:[#allocation2 + $0x199] sm:$0xff] %v994
        %1059 = vst [vmem:[#allocation2 + $0x1a1] sm:$0xff] %v995
        %1060 = vst [vmem:[#allocation2 + $0x1a9] sm:$0xff] %v996
        %1061 = vst [vmem:[#allocation2 + $0x1b1] sm:$0xff] %v997
        %1062 = vst [vmem:[#allocation2 + $0x1b9] sm:$0xff] %v998
        %1063 = vst [vmem:[#allocation2 + $0x1c1] sm:$0xff] %v999
        %1064 = vst [vmem:[#allocation2 + $0x1c9] sm:$0xff] %v1000
        %1065 = vst [vmem:[#allocation2 + $0x1d1] sm:$0xff] %v1001
        %1066 = vst [vmem:[#allocation2 + $0x1d9] sm:$0xff] %v1002
        %1067 = vst [vmem:[#allocation2 + $0x1e1] sm:$0xff] %v1003
        %1068 = vst [vmem:[#allocation2 + $0x1e9] sm:$0xff] %v1004
        %1069 = vst [vmem:[#allocation2 + $0x1f1] sm:$0xff] %v1005
        %1070 = vst [vmem:[#allocation2 + $0x1f9] sm:$0xff] %v1006
        %1071 = vst [vmem:[#allocation2 + $0x201] sm:$0xff] %v1007
        %1072 = vst [vmem:[#allocation2 + $0x209] sm:$0xff] %v1008
        %1073 = vst [vmem:[#allocation2 + $0x211] sm:$0xff] %v1009
        %1074 = vst [vmem:[#allocation2 + $0x219] sm:$0xff] %v1010
        %1075 = vst [vmem:[#allocation2 + $0x221] sm:$0xff] %v1011
        %1076 = vst [vmem:[#allocation2 + $0x229] sm:$0xff] %v1012
        %1077 = vst [vmem:[#allocation2 + $0x231] sm:$0xff] %v1013
        %v1078 = vld [vmem:[#allocation2] sm:$0xff]
        %v1079 = vld [vmem:[#allocation2 + $0x8] sm:$0xff]
        %v1080 = vld [vmem:[#allocation2 + $0x10] sm:$0xff]
        %v1081 = vld [vmem:[#allocation2 + $0x18] sm:$0xff]
        %v1082 = vld [vmem:[#allocation2 + $0x20] sm:$0xff]
        %v1083 = vld [vmem:[#allocation2 + $0x28] sm:$0xff]
        %v1084 = vld [vmem:[#allocation2 + $0x30] sm:$0xff]
        %v1085 = vld [vmem:[#allocation2 + $0x38] sm:$0xff]
        %v1086 = vld [vmem:[#allocation2 + $0x40] sm:$0xff]
        %v1087 = vld [vmem:[#allocation2 + $0x48] sm:$0xff]
        %v1088 = vld [vmem:[#allocation2 + $0x50] sm:$0xff]
        %v1089 = vld [vmem:[#allocation2 + $0x58] sm:$0xff]
        %v1090 = vld [vmem:[#allocation2 + $0x60] sm:$0xff]
        %v1091 = vld [vmem:[#allocation2 + $0x68] sm:$0xff]
        %v1092 = vld [vmem:[#allocation2 + $0x70] sm:$0xff]
        %v1093 = vld [vmem:[#allocation2 + $0x78] sm:$0xff]
        %v1094 = vld [vmem:[#allocation2 + $0x80] sm:$0xff]
        %v1095 = vld [vmem:[#allocation2 + $0x88] sm:$0xff]
        %v1096 = vld [vmem:[#allocation2 + $0x90] sm:$0xff]
        %v1097 = vld [vmem:[#allocation2 + $0x98] sm:$0xff]
        %v1098 = vld [vmem:[#allocation2 + $0xa0] sm:$0xff]
        %v1099 = vld [vmem:[#allocation2 + $0xa8] sm:$0xff]
        %v1100 = vld [vmem:[#allocation2 + $0xb0] sm:$0xff]
        %v1101 = vld [vmem:[#allocation2 + $0xb8] sm:$0xff]
        %v1102 = vld [vmem:[#allocation2 + $0xc0] sm:$0xff]
        %v1103 = vld [vmem:[#allocation2 + $0xc8] sm:$0xff]
        %v1104 = vld [vmem:[#allocation2 + $0xd0] sm:$0xff]
        %v1105 = vld [vmem:[#allocation2 + $0xd8] sm:$0xff]
        %v1106 = vld [vmem:[#allocation2 + $0xe0] sm:$0xff]
        %v1107 = vld [vmem:[#allocation2 + $0xe8] sm:$0xff]
        %v1108 = vld [vmem:[#allocation2 + $0xf0] sm:$0xff]
        %v1109 = vld [vmem:[#allocation2 + $0xf8] sm:$0xff]
        %v1110 = vld [vmem:[#allocation2 + $0x128] sm:$0xff]
        %v1111 = vld [vmem:[#allocation2 + $0x130] sm:$0xff]
        %v1112 = vld [vmem:[#allocation2 + $0x138] sm:$0xff]
        %v1113 = vld [vmem:[#allocation2 + $0x140] sm:$0xff]
        %v1114 = vld [vmem:[#allocation2 + $0x148] sm:$0xff]
        %v1115 = vld [vmem:[#allocation2 + $0x150] sm:$0xff]
        %v1116 = vld [vmem:[#allocation2 + $0x158] sm:$0xff]
        %v1117 = vld [vmem:[#allocation2 + $0x160] sm:$0xff]
        %v1118 = vld [vmem:[#allocation2 + $0x168] sm:$0xff]
        %v1119 = vld [vmem:[#allocation2 + $0x170] sm:$0xff]
        %v1120 = vld [vmem:[#allocation2 + $0x178] sm:$0xff]
        %v1121 = vld [vmem:[#allocation2 + $0x180] sm:$0xff]
        %v1122 = vld [vmem:[#allocation2 + $0x188] sm:$0xff]
        %v1123 = vld [vmem:[#allocation2 + $0x190] sm:$0xff]
        %v1124 = vld [vmem:[#allocation2 + $0x198] sm:$0xff]
        %v1125 = vld [vmem:[#allocation2 + $0x1a0] sm:$0xff]
        %v1126 = vld [vmem:[#allocation2 + $0x1a8] sm:$0xff]
        %v1127 = vld [vmem:[#allocation2 + $0x1b0] sm:$0xff]
        %v1128 = vld [vmem:[#allocation2 + $0x1b8] sm:$0xff]
        %v1129 = vld [vmem:[#allocation2 + $0x1c0] sm:$0xff]
        %v1130 = vld [vmem:[#allocation2 + $0x1c8] sm:$0xff]
        %v1131 = vld [vmem:[#allocation2 + $0x1d0] sm:$0xff]
        %v1132 = vld [vmem:[#allocation2 + $0x1d8] sm:$0xff]
        %v1133 = vld [vmem:[#allocation2 + $0x1e0] sm:$0xff]
        %v1134 = vld [vmem:[#allocation2 + $0x1e8] sm:$0xff]
        %v1135 = vld [vmem:[#allocation2 + $0x1f0] sm:$0xff]
        %v1136 = vld [vmem:[#allocation2 + $0x1f8] sm:$0xff]
        %v1137 = vld [vmem:[#allocation2 + $0x200] sm:$0xff]
        %v1138 = vld [vmem:[#allocation2 + $0x208] sm:$0xff]
        %v1139 = vld [vmem:[#allocation2 + $0x210] sm:$0xff]
        %v1140 = vld [vmem:[#allocation2 + $0x218] sm:$0xff]
        %v1141 = vld [vmem:[#allocation2 + $0x220] sm:$0xff]
        %v1142 = vld [vmem:[#allocation2 + $0x100] sm:$0xff]
        %v1143 = vld [vmem:[#allocation2 + $0x108] sm:$0xff]
        %v1144 = vld [vmem:[#allocation2 + $0x228] sm:$0xff]
        %v1145 = vld [vmem:[#allocation2 + $0x230] sm:$0xff]
        %v1146 = vld [vmem:[#allocation2 + $0x110] sm:$0xff]
        %v1147 = vld [vmem:[#allocation2 + $0x118] sm:$0xff]
        %v1148 = vld [vmem:[#allocation2 + $0x238] sm:$0xff]
        %v1149 = vld [vmem:[#allocation2 + $0x240] sm:$0xff]
        %v1150 = vsel %vm680, 1, 0
        %v1151 = vsel %vm681, 1, 0
        %v1152 = vsel %vm682, 1, 0
        %v1153 = vsel %vm683, 1, 0
        %v1154 = vsel %vm684, 1, 0
        %v1155 = vsel %vm685, 1, 0
        %v1156 = vsel %vm686, 1, 0
        %v1157 = vsel %vm687, 1, 0
        %v1158 = vsel %vm688, 1, 0
        %v1159 = vsel %vm689, 1, 0
        %v1160 = vsel %vm690, 1, 0
        %v1161 = vsel %vm691, 1, 0
        %v1162 = vsel %vm692, 1, 0
        %v1163 = vsel %vm693, 1, 0
        %v1164 = vsel %vm694, 1, 0
        %v1165 = vsel %vm695, 1, 0
        %v1166 = vsel %vm696, 1, 0
        %v1167 = vsel %vm697, 1, 0
        %v1168 = vsel %vm698, 1, 0
        %v1169 = vsel %vm699, 1, 0
        %v1170 = vsel %vm700, 1, 0
        %v1171 = vsel %vm701, 1, 0
        %v1172 = vsel %vm702, 1, 0
        %v1173 = vsel %vm703, 1, 0
        %v1174 = vsel %vm704, 1, 0
        %v1175 = vsel %vm705, 1, 0
        %v1176 = vsel %vm706, 1, 0
        %v1177 = vsel %vm707, 1, 0
        %v1178 = vsel %vm708, 1, 0
        %v1179 = vsel %vm709, 1, 0
        %v1180 = vsel %vm710, 1, 0
        %v1181 = vsel %vm711, 1, 0
        %vm1182 = vcmp.eq.s32.totalorder %v1150, 1
        %vm1183 = vcmp.eq.s32.totalorder %v1151, 1
        %vm1184 = vcmp.eq.s32.totalorder %v1152, 1
        %vm1185 = vcmp.eq.s32.totalorder %v1153, 1
        %vm1186 = vcmp.eq.s32.totalorder %v1154, 1
        %vm1187 = vcmp.eq.s32.totalorder %v1155, 1
        %vm1188 = vcmp.eq.s32.totalorder %v1156, 1
        %vm1189 = vcmp.eq.s32.totalorder %v1157, 1
        %vm1190 = vcmp.eq.s32.totalorder %v1158, 1
        %vm1191 = vcmp.eq.s32.totalorder %v1159, 1
        %vm1192 = vcmp.eq.s32.totalorder %v1160, 1
        %vm1193 = vcmp.eq.s32.totalorder %v1161, 1
        %vm1194 = vcmp.eq.s32.totalorder %v1162, 1
        %vm1195 = vcmp.eq.s32.totalorder %v1163, 1
        %vm1196 = vcmp.eq.s32.totalorder %v1164, 1
        %vm1197 = vcmp.eq.s32.totalorder %v1165, 1
        %vm1198 = vcmp.eq.s32.totalorder %v1166, 1
        %vm1199 = vcmp.eq.s32.totalorder %v1167, 1
        %vm1200 = vcmp.eq.s32.totalorder %v1168, 1
        %vm1201 = vcmp.eq.s32.totalorder %v1169, 1
        %vm1202 = vcmp.eq.s32.totalorder %v1170, 1
        %vm1203 = vcmp.eq.s32.totalorder %v1171, 1
        %vm1204 = vcmp.eq.s32.totalorder %v1172, 1
        %vm1205 = vcmp.eq.s32.totalorder %v1173, 1
        %vm1206 = vcmp.eq.s32.totalorder %v1174, 1
        %vm1207 = vcmp.eq.s32.totalorder %v1175, 1
        %vm1208 = vcmp.eq.s32.totalorder %v1176, 1
        %vm1209 = vcmp.eq.s32.totalorder %v1177, 1
        %vm1210 = vcmp.eq.s32.totalorder %v1178, 1
        %vm1211 = vcmp.eq.s32.totalorder %v1179, 1
        %vm1212 = vcmp.eq.s32.totalorder %v1180, 1
        %vm1213 = vcmp.eq.s32.totalorder %v1181, 1
        %v1214 = vsel %vm1182, 0.0, %v1078
        %v1215 = vsel %vm1182, 0.0, %v1080
        %v1216 = vsel %vm1182, 0.0, %v1082
        %v1217 = vsel %vm1183, 0.0, %v1079
        %v1218 = vsel %vm1183, 0.0, %v1081
        %v1219 = vsel %vm1183, 0.0, %v1083
        %v1220 = vsel %vm1184, 0.0, %v1080
        %v1221 = vsel %vm1184, 0.0, %v1082
        %v1222 = vsel %vm1184, 0.0, %v1084
        %v1223 = vsel %vm1185, 0.0, %v1081
        %v1224 = vsel %vm1185, 0.0, %v1083
        %v1225 = vsel %vm1185, 0.0, %v1085
        %v1226 = vsel %vm1186, 0.0, %v1082
        %v1227 = vsel %vm1186, 0.0, %v1084
        %v1228 = vsel %vm1186, 0.0, %v1086
        %v1229 = vsel %vm1187, 0.0, %v1083
        %v1230 = vsel %vm1187, 0.0, %v1085
        %v1231 = vsel %vm1187, 0.0, %v1087
        %v1232 = vsel %vm1188, 0.0, %v1084
        %v1233 = vsel %vm1188, 0.0, %v1086
        %v1234 = vsel %vm1188, 0.0, %v1088
        %v1235 = vsel %vm1189, 0.0, %v1085
        %v1236 = vsel %vm1189, 0.0, %v1087
        %v1237 = vsel %vm1189, 0.0, %v1089
        %v1238 = vsel %vm1190, 0.0, %v1086
        %v1239 = vsel %vm1190, 0.0, %v1088
        %v1240 = vsel %vm1190, 0.0, %v1090
        %v1241 = vsel %vm1191, 0.0, %v1087
        %v1242 = vsel %vm1191, 0.0, %v1089
        %v1243 = vsel %vm1191, 0.0, %v1091
        %v1244 = vsel %vm1192, 0.0, %v1088
        %v1245 = vsel %vm1192, 0.0, %v1090
        %v1246 = vsel %vm1192, 0.0, %v1092
        %v1247 = vsel %vm1193, 0.0, %v1089
        %v1248 = vsel %vm1193, 0.0, %v1091
        %v1249 = vsel %vm1193, 0.0, %v1093
        %v1250 = vsel %vm1194, 0.0, %v1090
        %v1251 = vsel %vm1194, 0.0, %v1092
        %v1252 = vsel %vm1194, 0.0, %v1094
        %v1253 = vsel %vm1195, 0.0, %v1091
        %v1254 = vsel %vm1195, 0.0, %v1093
        %v1255 = vsel %vm1195, 0.0, %v1095
        %v1256 = vsel %vm1196, 0.0, %v1092
        %v1257 = vsel %vm1196, 0.0, %v1094
        %v1258 = vsel %vm1196, 0.0, %v1096
        %v1259 = vsel %vm1197, 0.0, %v1093
        %v1260 = vsel %vm1197, 0.0, %v1095
        %v1261 = vsel %vm1197, 0.0, %v1097
        %v1262 = vsel %vm1198, 0.0, %v1094
        %v1263 = vsel %vm1198, 0.0, %v1096
        %v1264 = vsel %vm1198, 0.0, %v1098
        %v1265 = vsel %vm1199, 0.0, %v1095
        %v1266 = vsel %vm1199, 0.0, %v1097
        %v1267 = vsel %vm1199, 0.0, %v1099
        %v1268 = vsel %vm1200, 0.0, %v1096
        %v1269 = vsel %vm1200, 0.0, %v1098
        %v1270 = vsel %vm1200, 0.0, %v1100
        %v1271 = vsel %vm1201, 0.0, %v1097
        %v1272 = vsel %vm1201, 0.0, %v1099
        %v1273 = vsel %vm1201, 0.0, %v1101
        %v1274 = vsel %vm1202, 0.0, %v1098
        %v1275 = vsel %vm1202, 0.0, %v1100
        %v1276 = vsel %vm1202, 0.0, %v1102
        %v1277 = vsel %vm1203, 0.0, %v1099
        %v1278 = vsel %vm1203, 0.0, %v1101
        %v1279 = vsel %vm1203, 0.0, %v1103
        %v1280 = vsel %vm1204, 0.0, %v1100
        %v1281 = vsel %vm1204, 0.0, %v1102
        %v1282 = vsel %vm1204, 0.0, %v1104
        %v1283 = vsel %vm1205, 0.0, %v1101
        %v1284 = vsel %vm1205, 0.0, %v1103
        %v1285 = vsel %vm1205, 0.0, %v1105
        %v1286 = vsel %vm1206, 0.0, %v1102
        %v1287 = vsel %vm1206, 0.0, %v1104
        %v1288 = vsel %vm1206, 0.0, %v1106
        %v1289 = vsel %vm1207, 0.0, %v1103
        %v1290 = vsel %vm1207, 0.0, %v1105
        %v1291 = vsel %vm1207, 0.0, %v1107
        %v1292 = vsel %vm1208, 0.0, %v1104
        %v1293 = vsel %vm1208, 0.0, %v1106
        %v1294 = vsel %vm1208, 0.0, %v1108
        %v1295 = vsel %vm1209, 0.0, %v1105
        %v1296 = vsel %vm1209, 0.0, %v1107
        %v1297 = vsel %vm1209, 0.0, %v1109
        %v1298 = vsel %vm1210, 0.0, %v1106
        %v1299 = vsel %vm1210, 0.0, %v1108
        %v1300 = vsel %vm1210, 0.0, %v1142
        %v1301 = vsel %vm1211, 0.0, %v1107
        %v1302 = vsel %vm1211, 0.0, %v1109
        %v1303 = vsel %vm1211, 0.0, %v1143
        %v1304 = vsel %vm1212, 0.0, %v1108
        %v1305 = vsel %vm1212, 0.0, %v1142
        %v1306 = vsel %vm1212, 0.0, %v1146
        %v1307 = vsel %vm1213, 0.0, %v1109
        %v1308 = vsel %vm1213, 0.0, %v1143
        %v1309 = vsel %vm1213, 0.0, %v1147
        %v1310 = vsel %vm1182, 0.0, %v1110
        %v1311 = vsel %vm1182, 0.0, %v1112
        %v1312 = vsel %vm1182, 0.0, %v1114
        %v1313 = vsel %vm1183, 0.0, %v1111
        %v1314 = vsel %vm1183, 0.0, %v1113
        %v1315 = vsel %vm1183, 0.0, %v1115
        %v1316 = vsel %vm1184, 0.0, %v1112
        %v1317 = vsel %vm1184, 0.0, %v1114
        %v1318 = vsel %vm1184, 0.0, %v1116
        %v1319 = vsel %vm1185, 0.0, %v1113
        %v1320 = vsel %vm1185, 0.0, %v1115
        %v1321 = vsel %vm1185, 0.0, %v1117
        %v1322 = vsel %vm1186, 0.0, %v1114
        %v1323 = vsel %vm1186, 0.0, %v1116
        %v1324 = vsel %vm1186, 0.0, %v1118
        %v1325 = vsel %vm1187, 0.0, %v1115
        %v1326 = vsel %vm1187, 0.0, %v1117
        %v1327 = vsel %vm1187, 0.0, %v1119
        %v1328 = vsel %vm1188, 0.0, %v1116
        %v1329 = vsel %vm1188, 0.0, %v1118
        %v1330 = vsel %vm1188, 0.0, %v1120
        %v1331 = vsel %vm1189, 0.0, %v1117
        %v1332 = vsel %vm1189, 0.0, %v1119
        %v1333 = vsel %vm1189, 0.0, %v1121
        %v1334 = vsel %vm1190, 0.0, %v1118
        %v1335 = vsel %vm1190, 0.0, %v1120
        %v1336 = vsel %vm1190, 0.0, %v1122
        %v1337 = vsel %vm1191, 0.0, %v1119
        %v1338 = vsel %vm1191, 0.0, %v1121
        %v1339 = vsel %vm1191, 0.0, %v1123
        %v1340 = vsel %vm1192, 0.0, %v1120
        %v1341 = vsel %vm1192, 0.0, %v1122
        %v1342 = vsel %vm1192, 0.0, %v1124
        %v1343 = vsel %vm1193, 0.0, %v1121
        %v1344 = vsel %vm1193, 0.0, %v1123
        %v1345 = vsel %vm1193, 0.0, %v1125
        %v1346 = vsel %vm1194, 0.0, %v1122
        %v1347 = vsel %vm1194, 0.0, %v1124
        %v1348 = vsel %vm1194, 0.0, %v1126
        %v1349 = vsel %vm1195, 0.0, %v1123
        %v1350 = vsel %vm1195, 0.0, %v1125
        %v1351 = vsel %vm1195, 0.0, %v1127
        %v1352 = vsel %vm1196, 0.0, %v1124
        %v1353 = vsel %vm1196, 0.0, %v1126
        %v1354 = vsel %vm1196, 0.0, %v1128
        %v1355 = vsel %vm1197, 0.0, %v1125
        %v1356 = vsel %vm1197, 0.0, %v1127
        %v1357 = vsel %vm1197, 0.0, %v1129
        %v1358 = vsel %vm1198, 0.0, %v1126
        %v1359 = vsel %vm1198, 0.0, %v1128
        %v1360 = vsel %vm1198, 0.0, %v1130
        %v1361 = vsel %vm1199, 0.0, %v1127
        %v1362 = vsel %vm1199, 0.0, %v1129
        %v1363 = vsel %vm1199, 0.0, %v1131
        %v1364 = vsel %vm1200, 0.0, %v1128
        %v1365 = vsel %vm1200, 0.0, %v1130
        %v1366 = vsel %vm1200, 0.0, %v1132
        %v1367 = vsel %vm1201, 0.0, %v1129
        %v1368 = vsel %vm1201, 0.0, %v1131
        %v1369 = vsel %vm1201, 0.0, %v1133
        %v1370 = vsel %vm1202, 0.0, %v1130
        %v1371 = vsel %vm1202, 0.0, %v1132
        %v1372 = vsel %vm1202, 0.0, %v1134
        %v1373 = vsel %vm1203, 0.0, %v1131
        %v1374 = vsel %vm1203, 0.0, %v1133
        %v1375 = vsel %vm1203, 0.0, %v1135
        %v1376 = vsel %vm1204, 0.0, %v1132
        %v1377 = vsel %vm1204, 0.0, %v1134
        %v1378 = vsel %vm1204, 0.0, %v1136
        %v1379 = vsel %vm1205, 0.0, %v1133
        %v1380 = vsel %vm1205, 0.0, %v1135
        %v1381 = vsel %vm1205, 0.0, %v1137
        %v1382 = vsel %vm1206, 0.0, %v1134
        %v1383 = vsel %vm1206, 0.0, %v1136
        %v1384 = vsel %vm1206, 0.0, %v1138
        %v1385 = vsel %vm1207, 0.0, %v1135
        %v1386 = vsel %vm1207, 0.0, %v1137
        %v1387 = vsel %vm1207, 0.0, %v1139
        %v1388 = vsel %vm1208, 0.0, %v1136
        %v1389 = vsel %vm1208, 0.0, %v1138
        %v1390 = vsel %vm1208, 0.0, %v1140
        %v1391 = vsel %vm1209, 0.0, %v1137
        %v1392 = vsel %vm1209, 0.0, %v1139
        %v1393 = vsel %vm1209, 0.0, %v1141
        %v1394 = vsel %vm1210, 0.0, %v1138
        %v1395 = vsel %vm1210, 0.0, %v1140
        %v1396 = vsel %vm1210, 0.0, %v1144
        %v1397 = vsel %vm1211, 0.0, %v1139
        %v1398 = vsel %vm1211, 0.0, %v1141
        %v1399 = vsel %vm1211, 0.0, %v1145
        %v1400 = vsel %vm1212, 0.0, %v1140
        %v1401 = vsel %vm1212, 0.0, %v1144
        %v1402 = vsel %vm1212, 0.0, %v1148
        %v1403 = vsel %vm1213, 0.0, %v1141
        %v1404 = vsel %vm1213, 0.0, %v1145
        %v1405 = vsel %vm1213, 0.0, %v1149
        %v1406 = vld [vmem:[%s227] sm:$0xff]
        %v1407 = vld [vmem:[%s227 + $0x8] sm:$0xff]
        %v1408 = vld [vmem:[%s227 + $0x10] sm:$0xff]
        %v1409 = vld [vmem:[%s227 + $0x18] sm:$0xff]
        %v1410 = vld [vmem:[%s227 + $0x20] sm:$0xff]
        %v1411 = vld [vmem:[%s227 + $0x28] sm:$0xff]
        %v1412 = vld [vmem:[%s227 + $0x30] sm:$0xff]
        %v1413 = vld [vmem:[%s227 + $0x38] sm:$0xff]
        %v1414 = vld [vmem:[%s227 + $0x40] sm:$0xff]
        %v1415 = vld [vmem:[%s227 + $0x48] sm:$0xff]
        %v1416 = vld [vmem:[%s227 + $0x50] sm:$0xff]
        %v1417 = vld [vmem:[%s227 + $0x58] sm:$0xff]
        %v1418 = vld [vmem:[%s227 + $0x60] sm:$0xff]
        %v1419 = vld [vmem:[%s227 + $0x68] sm:$0xff]
        %v1420 = vld [vmem:[%s227 + $0x70] sm:$0xff]
        %v1421 = vld [vmem:[%s227 + $0x78] sm:$0xff]
        %v1422 = vld [vmem:[%s227 + $0x80] sm:$0xff]
        %v1423 = vld [vmem:[%s227 + $0x88] sm:$0xff]
        %v1424 = vld [vmem:[%s227 + $0x90] sm:$0xff]
        %v1425 = vld [vmem:[%s227 + $0x98] sm:$0xff]
        %v1426 = vld [vmem:[%s227 + $0xa0] sm:$0xff]
        %v1427 = vld [vmem:[%s227 + $0xa8] sm:$0xff]
        %v1428 = vld [vmem:[%s227 + $0xb0] sm:$0xff]
        %v1429 = vld [vmem:[%s227 + $0xb8] sm:$0xff]
        %v1430 = vld [vmem:[%s227 + $0xc0] sm:$0xff]
        %v1431 = vld [vmem:[%s227 + $0xc8] sm:$0xff]
        %v1432 = vld [vmem:[%s227 + $0xd0] sm:$0xff]
        %v1433 = vld [vmem:[%s227 + $0xd8] sm:$0xff]
        %v1434 = vld [vmem:[%s227 + $0xe0] sm:$0xff]
        %v1435 = vld [vmem:[%s227 + $0xe8] sm:$0xff]
        %v1436 = vld [vmem:[%s227 + $0xf0] sm:$0xff]
        %v1437 = vld [vmem:[%s227 + $0xf8] sm:$0xff]
        %v1438 = vld [vmem:[%s227 + $0x100] sm:$0xff]
        %v1439 = vld [vmem:[%s227 + $0x108] sm:$0xff]
        %v1440 = vld [vmem:[%s227 + $0x110] sm:$0xff]
        %v1441 = vld [vmem:[%s227 + $0x118] sm:$0xff]
        %v1442 = vld [vmem:[%s227 + $0x120] sm:$0xff]
        %v1443 = vld [vmem:[%s227 + $0x128] sm:$0xff]
        %v1444 = vld [vmem:[%s227 + $0x130] sm:$0xff]
        %v1445 = vld [vmem:[%s227 + $0x138] sm:$0xff]
        %v1446 = vld [vmem:[%s227 + $0x140] sm:$0xff]
        %v1447 = vld [vmem:[%s227 + $0x148] sm:$0xff]
        %v1448 = vld [vmem:[%s227 + $0x150] sm:$0xff]
        %v1449 = vld [vmem:[%s227 + $0x158] sm:$0xff]
        %v1450 = vld [vmem:[%s227 + $0x160] sm:$0xff]
        %v1451 = vld [vmem:[%s227 + $0x168] sm:$0xff]
        %v1452 = vld [vmem:[%s227 + $0x170] sm:$0xff]
        %v1453 = vld [vmem:[%s227 + $0x178] sm:$0xff]
        %v1454 = vld [vmem:[#allocation2 + $0x1] sm:$0xff]
        %v1455 = vld [vmem:[#allocation2 + $0x9] sm:$0xff]
        %v1456 = vld [vmem:[#allocation2 + $0x11] sm:$0xff]
        %v1457 = vld [vmem:[#allocation2 + $0x19] sm:$0xff]
        %v1458 = vld [vmem:[#allocation2 + $0x21] sm:$0xff]
        %v1459 = vld [vmem:[#allocation2 + $0x29] sm:$0xff]
        %v1460 = vld [vmem:[#allocation2 + $0x31] sm:$0xff]
        %v1461 = vld [vmem:[#allocation2 + $0x39] sm:$0xff]
        %v1462 = vld [vmem:[#allocation2 + $0x41] sm:$0xff]
        %v1463 = vld [vmem:[#allocation2 + $0x49] sm:$0xff]
        %v1464 = vld [vmem:[#allocation2 + $0x51] sm:$0xff]
        %v1465 = vld [vmem:[#allocation2 + $0x59] sm:$0xff]
        %v1466 = vld [vmem:[#allocation2 + $0x61] sm:$0xff]
        %v1467 = vld [vmem:[#allocation2 + $0x69] sm:$0xff]
        %v1468 = vld [vmem:[#allocation2 + $0x71] sm:$0xff]
        %v1469 = vld [vmem:[#allocation2 + $0x79] sm:$0xff]
        %v1470 = vld [vmem:[#allocation2 + $0x81] sm:$0xff]
        %v1471 = vld [vmem:[#allocation2 + $0x89] sm:$0xff]
        %v1472 = vld [vmem:[#allocation2 + $0x91] sm:$0xff]
        %v1473 = vld [vmem:[#allocation2 + $0x99] sm:$0xff]
        %v1474 = vld [vmem:[#allocation2 + $0xa1] sm:$0xff]
        %v1475 = vld [vmem:[#allocation2 + $0xa9] sm:$0xff]
        %v1476 = vld [vmem:[#allocation2 + $0xb1] sm:$0xff]
        %v1477 = vld [vmem:[#allocation2 + $0xb9] sm:$0xff]
        %v1478 = vld [vmem:[#allocation2 + $0xc1] sm:$0xff]
        %v1479 = vld [vmem:[#allocation2 + $0xc9] sm:$0xff]
        %v1480 = vld [vmem:[#allocation2 + $0xd1] sm:$0xff]
        %v1481 = vld [vmem:[#allocation2 + $0xd9] sm:$0xff]
        %v1482 = vld [vmem:[#allocation2 + $0xe1] sm:$0xff]
        %v1483 = vld [vmem:[#allocation2 + $0xe9] sm:$0xff]
        %v1484 = vld [vmem:[#allocation2 + $0xf1] sm:$0xff]
        %v1485 = vld [vmem:[#allocation2 + $0xf9] sm:$0xff]
        %v1486 = vld [vmem:[#allocation2 + $0x129] sm:$0xff]
        %v1487 = vld [vmem:[#allocation2 + $0x131] sm:$0xff]
        %v1488 = vld [vmem:[#allocation2 + $0x139] sm:$0xff]
        %v1489 = vld [vmem:[#allocation2 + $0x141] sm:$0xff]
        %v1490 = vld [vmem:[#allocation2 + $0x149] sm:$0xff]
        %v1491 = vld [vmem:[#allocation2 + $0x151] sm:$0xff]
        %v1492 = vld [vmem:[#allocation2 + $0x159] sm:$0xff]
        %v1493 = vld [vmem:[#allocation2 + $0x161] sm:$0xff]
        %v1494 = vld [vmem:[#allocation2 + $0x169] sm:$0xff]
        %v1495 = vld [vmem:[#allocation2 + $0x171] sm:$0xff]
        %v1496 = vld [vmem:[#allocation2 + $0x179] sm:$0xff]
        %v1497 = vld [vmem:[#allocation2 + $0x181] sm:$0xff]
        %v1498 = vld [vmem:[#allocation2 + $0x189] sm:$0xff]
        %v1499 = vld [vmem:[#allocation2 + $0x191] sm:$0xff]
        %v1500 = vld [vmem:[#allocation2 + $0x199] sm:$0xff]
        %v1501 = vld [vmem:[#allocation2 + $0x1a1] sm:$0xff]
        %v1502 = vld [vmem:[#allocation2 + $0x1a9] sm:$0xff]
        %v1503 = vld [vmem:[#allocation2 + $0x1b1] sm:$0xff]
        %v1504 = vld [vmem:[#allocation2 + $0x1b9] sm:$0xff]
        %v1505 = vld [vmem:[#allocation2 + $0x1c1] sm:$0xff]
        %v1506 = vld [vmem:[#allocation2 + $0x1c9] sm:$0xff]
        %v1507 = vld [vmem:[#allocation2 + $0x1d1] sm:$0xff]
        %v1508 = vld [vmem:[#allocation2 + $0x1d9] sm:$0xff]
        %v1509 = vld [vmem:[#allocation2 + $0x1e1] sm:$0xff]
        %v1510 = vld [vmem:[#allocation2 + $0x1e9] sm:$0xff]
        %v1511 = vld [vmem:[#allocation2 + $0x1f1] sm:$0xff]
        %v1512 = vld [vmem:[#allocation2 + $0x1f9] sm:$0xff]
        %v1513 = vld [vmem:[#allocation2 + $0x201] sm:$0xff]
        %v1514 = vld [vmem:[#allocation2 + $0x209] sm:$0xff]
        %v1515 = vld [vmem:[#allocation2 + $0x211] sm:$0xff]
        %v1516 = vld [vmem:[#allocation2 + $0x219] sm:$0xff]
        %v1517 = vld [vmem:[#allocation2 + $0x221] sm:$0xff]
        %v1518 = vld [vmem:[#allocation2 + $0x101] sm:$0xff]
        %v1519 = vld [vmem:[#allocation2 + $0x109] sm:$0xff]
        %v1520 = vld [vmem:[#allocation2 + $0x229] sm:$0xff]
        %v1521 = vld [vmem:[#allocation2 + $0x231] sm:$0xff]
        %v1522 = vld [vmem:[#allocation2 + $0x111] sm:$0xff]
        %v1523 = vld [vmem:[#allocation2 + $0x119] sm:$0xff]
        %v1524 = vld [vmem:[#allocation2 + $0x239] sm:$0xff]
        %v1525 = vld [vmem:[#allocation2 + $0x241] sm:$0xff]
        %s1526 = scalar_lea.vmem %s227, 384 [#allocation6]
        %v1527 = vld [vmem:[%s1526] sm:$0xff]
        %v1528 = vld [vmem:[%s1526 + $0x8] sm:$0xff]
        %v1529 = vld [vmem:[%s1526 + $0x10] sm:$0xff]
        %v1530 = vld [vmem:[%s1526 + $0x18] sm:$0xff]
        %v1531 = vld [vmem:[%s1526 + $0x20] sm:$0xff]
        %v1532 = vld [vmem:[%s1526 + $0x28] sm:$0xff]
        %v1533 = vld [vmem:[%s1526 + $0x30] sm:$0xff]
        %v1534 = vld [vmem:[%s1526 + $0x38] sm:$0xff]
        %v1535 = vld [vmem:[%s1526 + $0x40] sm:$0xff]
        %v1536 = vld [vmem:[%s1526 + $0x48] sm:$0xff]
        %v1537 = vld [vmem:[%s1526 + $0x50] sm:$0xff]
        %v1538 = vld [vmem:[%s1526 + $0x58] sm:$0xff]
        %v1539 = vld [vmem:[%s1526 + $0x60] sm:$0xff]
        %v1540 = vld [vmem:[%s1526 + $0x68] sm:$0xff]
        %v1541 = vld [vmem:[%s1526 + $0x70] sm:$0xff]
        %v1542 = vld [vmem:[%s1526 + $0x78] sm:$0xff]
        %v1543 = vld [vmem:[%s1526 + $0x80] sm:$0xff]
        %v1544 = vld [vmem:[%s1526 + $0x88] sm:$0xff]
        %v1545 = vld [vmem:[%s1526 + $0x90] sm:$0xff]
        %v1546 = vld [vmem:[%s1526 + $0x98] sm:$0xff]
        %v1547 = vld [vmem:[%s1526 + $0xa0] sm:$0xff]
        %v1548 = vld [vmem:[%s1526 + $0xa8] sm:$0xff]
        %v1549 = vld [vmem:[%s1526 + $0xb0] sm:$0xff]
        %v1550 = vld [vmem:[%s1526 + $0xb8] sm:$0xff]
        %v1551 = vld [vmem:[%s1526 + $0xc0] sm:$0xff]
        %v1552 = vld [vmem:[%s1526 + $0xc8] sm:$0xff]
        %v1553 = vld [vmem:[%s1526 + $0xd0] sm:$0xff]
        %v1554 = vld [vmem:[%s1526 + $0xd8] sm:$0xff]
        %v1555 = vld [vmem:[%s1526 + $0xe0] sm:$0xff]
        %v1556 = vld [vmem:[%s1526 + $0xe8] sm:$0xff]
        %v1557 = vld [vmem:[%s1526 + $0xf0] sm:$0xff]
        %v1558 = vld [vmem:[%s1526 + $0xf8] sm:$0xff]
        %v1559 = vld [vmem:[%s1526 + $0x100] sm:$0xff]
        %v1560 = vld [vmem:[%s1526 + $0x108] sm:$0xff]
        %v1561 = vld [vmem:[%s1526 + $0x110] sm:$0xff]
        %v1562 = vld [vmem:[%s1526 + $0x118] sm:$0xff]
        %v1563 = vld [vmem:[%s1526 + $0x120] sm:$0xff]
        %v1564 = vld [vmem:[%s1526 + $0x128] sm:$0xff]
        %v1565 = vld [vmem:[%s1526 + $0x130] sm:$0xff]
        %v1566 = vld [vmem:[%s1526 + $0x138] sm:$0xff]
        %v1567 = vld [vmem:[%s1526 + $0x140] sm:$0xff]
        %v1568 = vld [vmem:[%s1526 + $0x148] sm:$0xff]
        %v1569 = vld [vmem:[%s1526 + $0x150] sm:$0xff]
        %v1570 = vld [vmem:[%s1526 + $0x158] sm:$0xff]
        %v1571 = vld [vmem:[%s1526 + $0x160] sm:$0xff]
        %v1572 = vld [vmem:[%s1526 + $0x168] sm:$0xff]
        %v1573 = vld [vmem:[%s1526 + $0x170] sm:$0xff]
        %v1574 = vld [vmem:[%s1526 + $0x178] sm:$0xff]
        %1575 = vmatpush.msra.mxu0 %v1542
        %1576 = vmatpush.msra.mxu0 %v1541
        %1577 = vmatpush.msra.mxu0 %v1540
        %1578 = vmatpush.msra.mxu0 %v1539
        %1579 = vmatpush.msra.mxu0 %v1538
        %1580 = vmatpush.msra.mxu0 %v1537
        %1581 = vmatpush.msra.mxu0 %v1536
        %1582 = vmatpush.msra.mxu0 %v1535
        %1583 = vmatpush.msra.mxu0 %v1534
        %1584 = vmatpush.msra.mxu0 %v1533
        %1585 = vmatpush.msra.mxu0 %v1532
        %1586 = vmatpush.msra.mxu0 %v1531
        %1587 = vmatpush.msra.mxu0 %v1530
        %1588 = vmatpush.msra.mxu0 %v1529
        %1589 = vmatpush.msra.mxu0 %v1528
        %1590 = vmatpush.msra.mxu0 %v1527
        %1591 = vmatmul.f32.gmra.mxu0 %v1454
        %v1592 = vpop.f32.mrf.mxu0
        %v1593 = vadd.f32 0.0, %v1592
        %1594 = vmatmul.f32.gmra.mxu0 %v1455
        %v1595 = vpop.f32.mrf.mxu0
        %v1596 = vadd.f32 0.0, %v1595
        %1597 = vmatmul.f32.gmra.mxu0 %v1456
        %v1598 = vpop.f32.mrf.mxu0
        %v1599 = vadd.f32 0.0, %v1598
        %1600 = vmatmul.f32.gmra.mxu0 %v1457
        %v1601 = vpop.f32.mrf.mxu0
        %v1602 = vadd.f32 0.0, %v1601
        %1603 = vmatmul.f32.gmra.mxu0 %v1458
        %v1604 = vpop.f32.mrf.mxu0
        %v1605 = vadd.f32 0.0, %v1604
        %1606 = vmatmul.f32.gmra.mxu0 %v1459
        %v1607 = vpop.f32.mrf.mxu0
        %v1608 = vadd.f32 0.0, %v1607
        %1609 = vmatmul.f32.gmra.mxu0 %v1460
        %v1610 = vpop.f32.mrf.mxu0
        %v1611 = vadd.f32 0.0, %v1610
        %1612 = vmatmul.f32.gmra.mxu0 %v1461
        %v1613 = vpop.f32.mrf.mxu0
        %v1614 = vadd.f32 0.0, %v1613
        %1615 = vmatmul.f32.gmra.mxu0 %v1462
        %v1616 = vpop.f32.mrf.mxu0
        %v1617 = vadd.f32 0.0, %v1616
        %1618 = vmatmul.f32.gmra.mxu0 %v1463
        %v1619 = vpop.f32.mrf.mxu0
        %v1620 = vadd.f32 0.0, %v1619
        %1621 = vmatmul.f32.gmra.mxu0 %v1464
        %v1622 = vpop.f32.mrf.mxu0
        %v1623 = vadd.f32 0.0, %v1622
        %1624 = vmatmul.f32.gmra.mxu0 %v1465
        %v1625 = vpop.f32.mrf.mxu0
        %v1626 = vadd.f32 0.0, %v1625
        %1627 = vmatmul.f32.gmra.mxu0 %v1466
        %v1628 = vpop.f32.mrf.mxu0
        %v1629 = vadd.f32 0.0, %v1628
        %1630 = vmatmul.f32.gmra.mxu0 %v1467
        %v1631 = vpop.f32.mrf.mxu0
        %v1632 = vadd.f32 0.0, %v1631
        %1633 = vmatmul.f32.gmra.mxu0 %v1468
        %v1634 = vpop.f32.mrf.mxu0
        %v1635 = vadd.f32 0.0, %v1634
        %1636 = vmatmul.f32.gmra.mxu0 %v1469
        %v1637 = vpop.f32.mrf.mxu0
        %v1638 = vadd.f32 0.0, %v1637
        %1639 = vmatmul.f32.gmra.mxu0 %v1470
        %v1640 = vpop.f32.mrf.mxu0
        %v1641 = vadd.f32 0.0, %v1640
        %1642 = vmatmul.f32.gmra.mxu0 %v1471
        %v1643 = vpop.f32.mrf.mxu0
        %v1644 = vadd.f32 0.0, %v1643
        %1645 = vmatmul.f32.gmra.mxu0 %v1472
        %v1646 = vpop.f32.mrf.mxu0
        %v1647 = vadd.f32 0.0, %v1646
        %1648 = vmatmul.f32.gmra.mxu0 %v1473
        %v1649 = vpop.f32.mrf.mxu0
        %v1650 = vadd.f32 0.0, %v1649
        %1651 = vmatmul.f32.gmra.mxu0 %v1474
        %v1652 = vpop.f32.mrf.mxu0
        %v1653 = vadd.f32 0.0, %v1652
        %1654 = vmatmul.f32.gmra.mxu0 %v1475
        %v1655 = vpop.f32.mrf.mxu0
        %v1656 = vadd.f32 0.0, %v1655
        %1657 = vmatmul.f32.gmra.mxu0 %v1476
        %v1658 = vpop.f32.mrf.mxu0
        %v1659 = vadd.f32 0.0, %v1658
        %1660 = vmatmul.f32.gmra.mxu0 %v1477
        %v1661 = vpop.f32.mrf.mxu0
        %v1662 = vadd.f32 0.0, %v1661
        %1663 = vmatmul.f32.gmra.mxu0 %v1478
        %v1664 = vpop.f32.mrf.mxu0
        %v1665 = vadd.f32 0.0, %v1664
        %1666 = vmatmul.f32.gmra.mxu0 %v1479
        %v1667 = vpop.f32.mrf.mxu0
        %v1668 = vadd.f32 0.0, %v1667
        %1669 = vmatmul.f32.gmra.mxu0 %v1480
        %v1670 = vpop.f32.mrf.mxu0
        %v1671 = vadd.f32 0.0, %v1670
        %1672 = vmatmul.f32.gmra.mxu0 %v1481
        %v1673 = vpop.f32.mrf.mxu0
        %v1674 = vadd.f32 0.0, %v1673
        %1675 = vmatmul.f32.gmra.mxu0 %v1482
        %v1676 = vpop.f32.mrf.mxu0
        %v1677 = vadd.f32 0.0, %v1676
        %1678 = vmatmul.f32.gmra.mxu0 %v1483
        %v1679 = vpop.f32.mrf.mxu0
        %v1680 = vadd.f32 0.0, %v1679
        %1681 = vmatmul.f32.gmra.mxu0 %v1484
        %v1682 = vpop.f32.mrf.mxu0
        %v1683 = vadd.f32 0.0, %v1682
        %1684 = vmatmul.f32.gmra.mxu0 %v1485
        %v1685 = vpop.f32.mrf.mxu0
        %v1686 = vadd.f32 0.0, %v1685
        %1687 = vmatmul.f32.gmra.mxu0 %v1486
        %v1688 = vpop.f32.mrf.mxu0
        %v1689 = vadd.f32 0.0, %v1688
        %1690 = vmatmul.f32.gmra.mxu0 %v1487
        %v1691 = vpop.f32.mrf.mxu0
        %v1692 = vadd.f32 0.0, %v1691
        %1693 = vmatmul.f32.gmra.mxu0 %v1488
        %v1694 = vpop.f32.mrf.mxu0
        %v1695 = vadd.f32 0.0, %v1694
        %1696 = vmatmul.f32.gmra.mxu0 %v1489
        %v1697 = vpop.f32.mrf.mxu0
        %v1698 = vadd.f32 0.0, %v1697
        %1699 = vmatmul.f32.gmra.mxu0 %v1490
        %v1700 = vpop.f32.mrf.mxu0
        %v1701 = vadd.f32 0.0, %v1700
        %1702 = vmatmul.f32.gmra.mxu0 %v1491
        %v1703 = vpop.f32.mrf.mxu0
        %v1704 = vadd.f32 0.0, %v1703
        %1705 = vmatmul.f32.gmra.mxu0 %v1492
        %v1706 = vpop.f32.mrf.mxu0
        %v1707 = vadd.f32 0.0, %v1706
        %1708 = vmatmul.f32.gmra.mxu0 %v1493
        %v1709 = vpop.f32.mrf.mxu0
        %v1710 = vadd.f32 0.0, %v1709
        %1711 = vmatmul.f32.gmra.mxu0 %v1494
        %v1712 = vpop.f32.mrf.mxu0
        %v1713 = vadd.f32 0.0, %v1712
        %1714 = vmatmul.f32.gmra.mxu0 %v1495
        %v1715 = vpop.f32.mrf.mxu0
        %v1716 = vadd.f32 0.0, %v1715
        %1717 = vmatmul.f32.gmra.mxu0 %v1496
        %v1718 = vpop.f32.mrf.mxu0
        %v1719 = vadd.f32 0.0, %v1718
        %1720 = vmatmul.f32.gmra.mxu0 %v1497
        %v1721 = vpop.f32.mrf.mxu0
        %v1722 = vadd.f32 0.0, %v1721
        %1723 = vmatmul.f32.gmra.mxu0 %v1498
        %v1724 = vpop.f32.mrf.mxu0
        %v1725 = vadd.f32 0.0, %v1724
        %1726 = vmatmul.f32.gmra.mxu0 %v1499
        %v1727 = vpop.f32.mrf.mxu0
        %v1728 = vadd.f32 0.0, %v1727
        %1729 = vmatmul.f32.gmra.mxu0 %v1500
        %v1730 = vpop.f32.mrf.mxu0
        %v1731 = vadd.f32 0.0, %v1730
        %1732 = vmatmul.f32.gmra.mxu0 %v1501
        %v1733 = vpop.f32.mrf.mxu0
        %v1734 = vadd.f32 0.0, %v1733
        %1735 = vmatmul.f32.gmra.mxu0 %v1502
        %v1736 = vpop.f32.mrf.mxu0
        %v1737 = vadd.f32 0.0, %v1736
        %1738 = vmatmul.f32.gmra.mxu0 %v1503
        %v1739 = vpop.f32.mrf.mxu0
        %v1740 = vadd.f32 0.0, %v1739
        %1741 = vmatmul.f32.gmra.mxu0 %v1504
        %v1742 = vpop.f32.mrf.mxu0
        %v1743 = vadd.f32 0.0, %v1742
        %1744 = vmatmul.f32.gmra.mxu0 %v1505
        %v1745 = vpop.f32.mrf.mxu0
        %v1746 = vadd.f32 0.0, %v1745
        %1747 = vmatmul.f32.gmra.mxu0 %v1506
        %v1748 = vpop.f32.mrf.mxu0
        %v1749 = vadd.f32 0.0, %v1748
        %1750 = vmatmul.f32.gmra.mxu0 %v1507
        %v1751 = vpop.f32.mrf.mxu0
        %v1752 = vadd.f32 0.0, %v1751
        %1753 = vmatmul.f32.gmra.mxu0 %v1508
        %v1754 = vpop.f32.mrf.mxu0
        %v1755 = vadd.f32 0.0, %v1754
        %1756 = vmatmul.f32.gmra.mxu0 %v1509
        %v1757 = vpop.f32.mrf.mxu0
        %v1758 = vadd.f32 0.0, %v1757
        %1759 = vmatmul.f32.gmra.mxu0 %v1510
        %v1760 = vpop.f32.mrf.mxu0
        %v1761 = vadd.f32 0.0, %v1760
        %1762 = vmatmul.f32.gmra.mxu0 %v1511
        %v1763 = vpop.f32.mrf.mxu0
        %v1764 = vadd.f32 0.0, %v1763
        %1765 = vmatmul.f32.gmra.mxu0 %v1512
        %v1766 = vpop.f32.mrf.mxu0
        %v1767 = vadd.f32 0.0, %v1766
        %1768 = vmatmul.f32.gmra.mxu0 %v1513
        %v1769 = vpop.f32.mrf.mxu0
        %v1770 = vadd.f32 0.0, %v1769
        %1771 = vmatmul.f32.gmra.mxu0 %v1514
        %v1772 = vpop.f32.mrf.mxu0
        %v1773 = vadd.f32 0.0, %v1772
        %1774 = vmatmul.f32.gmra.mxu0 %v1515
        %v1775 = vpop.f32.mrf.mxu0
        %v1776 = vadd.f32 0.0, %v1775
        %1777 = vmatmul.f32.gmra.mxu0 %v1516
        %v1778 = vpop.f32.mrf.mxu0
        %v1779 = vadd.f32 0.0, %v1778
        %1780 = vmatmul.f32.gmra.mxu0 %v1517
        %v1781 = vpop.f32.mrf.mxu0
        %v1782 = vadd.f32 0.0, %v1781
        %1783 = vdwg.mxu0
        %1784 = vmatpush.msra.mxu0 %v1558
        %1785 = vmatpush.msra.mxu0 %v1557
        %1786 = vmatpush.msra.mxu0 %v1556
        %1787 = vmatpush.msra.mxu0 %v1555
        %1788 = vmatpush.msra.mxu0 %v1554
        %1789 = vmatpush.msra.mxu0 %v1553
        %1790 = vmatpush.msra.mxu0 %v1552
        %1791 = vmatpush.msra.mxu0 %v1551
        %1792 = vmatpush.msra.mxu0 %v1550
        %1793 = vmatpush.msra.mxu0 %v1549
        %1794 = vmatpush.msra.mxu0 %v1548
        %1795 = vmatpush.msra.mxu0 %v1547
        %1796 = vmatpush.msra.mxu0 %v1546
        %1797 = vmatpush.msra.mxu0 %v1545
        %1798 = vmatpush.msra.mxu0 %v1544
        %1799 = vmatpush.msra.mxu0 %v1543
        %1800 = vmatmul.f32.gmra.mxu0 %v1456
        %v1801 = vpop.f32.mrf.mxu0
        %v1802 = vadd.f32 %v1593, %v1801
        %1803 = vmatmul.f32.gmra.mxu0 %v1457
        %v1804 = vpop.f32.mrf.mxu0
        %v1805 = vadd.f32 %v1596, %v1804
        %1806 = vmatmul.f32.gmra.mxu0 %v1458
        %v1807 = vpop.f32.mrf.mxu0
        %v1808 = vadd.f32 %v1599, %v1807
        %1809 = vmatmul.f32.gmra.mxu0 %v1459
        %v1810 = vpop.f32.mrf.mxu0
        %v1811 = vadd.f32 %v1602, %v1810
        %1812 = vmatmul.f32.gmra.mxu0 %v1460
        %v1813 = vpop.f32.mrf.mxu0
        %v1814 = vadd.f32 %v1605, %v1813
        %1815 = vmatmul.f32.gmra.mxu0 %v1461
        %v1816 = vpop.f32.mrf.mxu0
        %v1817 = vadd.f32 %v1608, %v1816
        %1818 = vmatmul.f32.gmra.mxu0 %v1462
        %v1819 = vpop.f32.mrf.mxu0
        %v1820 = vadd.f32 %v1611, %v1819
        %1821 = vmatmul.f32.gmra.mxu0 %v1463
        %v1822 = vpop.f32.mrf.mxu0
        %v1823 = vadd.f32 %v1614, %v1822
        %1824 = vmatmul.f32.gmra.mxu0 %v1464
        %v1825 = vpop.f32.mrf.mxu0
        %v1826 = vadd.f32 %v1617, %v1825
        %1827 = vmatmul.f32.gmra.mxu0 %v1465
        %v1828 = vpop.f32.mrf.mxu0
        %v1829 = vadd.f32 %v1620, %v1828
        %1830 = vmatmul.f32.gmra.mxu0 %v1466
        %v1831 = vpop.f32.mrf.mxu0
        %v1832 = vadd.f32 %v1623, %v1831
        %1833 = vmatmul.f32.gmra.mxu0 %v1467
        %v1834 = vpop.f32.mrf.mxu0
        %v1835 = vadd.f32 %v1626, %v1834
        %1836 = vmatmul.f32.gmra.mxu0 %v1468
        %v1837 = vpop.f32.mrf.mxu0
        %v1838 = vadd.f32 %v1629, %v1837
        %1839 = vmatmul.f32.gmra.mxu0 %v1469
        %v1840 = vpop.f32.mrf.mxu0
        %v1841 = vadd.f32 %v1632, %v1840
        %1842 = vmatmul.f32.gmra.mxu0 %v1470
        %v1843 = vpop.f32.mrf.mxu0
        %v1844 = vadd.f32 %v1635, %v1843
        %1845 = vmatmul.f32.gmra.mxu0 %v1471
        %v1846 = vpop.f32.mrf.mxu0
        %v1847 = vadd.f32 %v1638, %v1846
        %1848 = vmatmul.f32.gmra.mxu0 %v1472
        %v1849 = vpop.f32.mrf.mxu0
        %v1850 = vadd.f32 %v1641, %v1849
        %1851 = vmatmul.f32.gmra.mxu0 %v1473
        %v1852 = vpop.f32.mrf.mxu0
        %v1853 = vadd.f32 %v1644, %v1852
        %1854 = vmatmul.f32.gmra.mxu0 %v1474
        %v1855 = vpop.f32.mrf.mxu0
        %v1856 = vadd.f32 %v1647, %v1855
        %1857 = vmatmul.f32.gmra.mxu0 %v1475
        %v1858 = vpop.f32.mrf.mxu0
        %v1859 = vadd.f32 %v1650, %v1858
        %1860 = vmatmul.f32.gmra.mxu0 %v1476
        %v1861 = vpop.f32.mrf.mxu0
        %v1862 = vadd.f32 %v1653, %v1861
        %1863 = vmatmul.f32.gmra.mxu0 %v1477
        %v1864 = vpop.f32.mrf.mxu0
        %v1865 = vadd.f32 %v1656, %v1864
        %1866 = vmatmul.f32.gmra.mxu0 %v1478
        %v1867 = vpop.f32.mrf.mxu0
        %v1868 = vadd.f32 %v1659, %v1867
        %1869 = vmatmul.f32.gmra.mxu0 %v1479
        %v1870 = vpop.f32.mrf.mxu0
        %v1871 = vadd.f32 %v1662, %v1870
        %1872 = vmatmul.f32.gmra.mxu0 %v1480
        %v1873 = vpop.f32.mrf.mxu0
        %v1874 = vadd.f32 %v1665, %v1873
        %1875 = vmatmul.f32.gmra.mxu0 %v1481
        %v1876 = vpop.f32.mrf.mxu0
        %v1877 = vadd.f32 %v1668, %v1876
        %1878 = vmatmul.f32.gmra.mxu0 %v1482
        %v1879 = vpop.f32.mrf.mxu0
        %v1880 = vadd.f32 %v1671, %v1879
        %1881 = vmatmul.f32.gmra.mxu0 %v1483
        %v1882 = vpop.f32.mrf.mxu0
        %v1883 = vadd.f32 %v1674, %v1882
        %1884 = vmatmul.f32.gmra.mxu0 %v1484
        %v1885 = vpop.f32.mrf.mxu0
        %v1886 = vadd.f32 %v1677, %v1885
        %1887 = vmatmul.f32.gmra.mxu0 %v1485
        %v1888 = vpop.f32.mrf.mxu0
        %v1889 = vadd.f32 %v1680, %v1888
        %1890 = vmatmul.f32.gmra.mxu0 %v1518
        %v1891 = vpop.f32.mrf.mxu0
        %v1892 = vadd.f32 %v1683, %v1891
        %1893 = vmatmul.f32.gmra.mxu0 %v1519
        %v1894 = vpop.f32.mrf.mxu0
        %v1895 = vadd.f32 %v1686, %v1894
        %1896 = vmatmul.f32.gmra.mxu0 %v1488
        %v1897 = vpop.f32.mrf.mxu0
        %v1898 = vadd.f32 %v1689, %v1897
        %1899 = vmatmul.f32.gmra.mxu0 %v1489
        %v1900 = vpop.f32.mrf.mxu0
        %v1901 = vadd.f32 %v1692, %v1900
        %1902 = vmatmul.f32.gmra.mxu0 %v1490
        %v1903 = vpop.f32.mrf.mxu0
        %v1904 = vadd.f32 %v1695, %v1903
        %1905 = vmatmul.f32.gmra.mxu0 %v1491
        %v1906 = vpop.f32.mrf.mxu0
        %v1907 = vadd.f32 %v1698, %v1906
        %1908 = vmatmul.f32.gmra.mxu0 %v1492
        %v1909 = vpop.f32.mrf.mxu0
        %v1910 = vadd.f32 %v1701, %v1909
        %1911 = vmatmul.f32.gmra.mxu0 %v1493
        %v1912 = vpop.f32.mrf.mxu0
        %v1913 = vadd.f32 %v1704, %v1912
        %1914 = vmatmul.f32.gmra.mxu0 %v1494
        %v1915 = vpop.f32.mrf.mxu0
        %v1916 = vadd.f32 %v1707, %v1915
        %1917 = vmatmul.f32.gmra.mxu0 %v1495
        %v1918 = vpop.f32.mrf.mxu0
        %v1919 = vadd.f32 %v1710, %v1918
        %1920 = vmatmul.f32.gmra.mxu0 %v1496
        %v1921 = vpop.f32.mrf.mxu0
        %v1922 = vadd.f32 %v1713, %v1921
        %1923 = vmatmul.f32.gmra.mxu0 %v1497
        %v1924 = vpop.f32.mrf.mxu0
        %v1925 = vadd.f32 %v1716, %v1924
        %1926 = vmatmul.f32.gmra.mxu0 %v1498
        %v1927 = vpop.f32.mrf.mxu0
        %v1928 = vadd.f32 %v1719, %v1927
        %1929 = vmatmul.f32.gmra.mxu0 %v1499
        %v1930 = vpop.f32.mrf.mxu0
        %v1931 = vadd.f32 %v1722, %v1930
        %1932 = vmatmul.f32.gmra.mxu0 %v1500
        %v1933 = vpop.f32.mrf.mxu0
        %v1934 = vadd.f32 %v1725, %v1933
        %1935 = vmatmul.f32.gmra.mxu0 %v1501
        %v1936 = vpop.f32.mrf.mxu0
        %v1937 = vadd.f32 %v1728, %v1936
        %1938 = vmatmul.f32.gmra.mxu0 %v1502
        %v1939 = vpop.f32.mrf.mxu0
        %v1940 = vadd.f32 %v1731, %v1939
        %1941 = vmatmul.f32.gmra.mxu0 %v1503
        %v1942 = vpop.f32.mrf.mxu0
        %v1943 = vadd.f32 %v1734, %v1942
        %1944 = vmatmul.f32.gmra.mxu0 %v1504
        %v1945 = vpop.f32.mrf.mxu0
        %v1946 = vadd.f32 %v1737, %v1945
        %1947 = vmatmul.f32.gmra.mxu0 %v1505
        %v1948 = vpop.f32.mrf.mxu0
        %v1949 = vadd.f32 %v1740, %v1948
        %1950 = vmatmul.f32.gmra.mxu0 %v1506
        %v1951 = vpop.f32.mrf.mxu0
        %v1952 = vadd.f32 %v1743, %v1951
        %1953 = vmatmul.f32.gmra.mxu0 %v1507
        %v1954 = vpop.f32.mrf.mxu0
        %v1955 = vadd.f32 %v1746, %v1954
        %1956 = vmatmul.f32.gmra.mxu0 %v1508
        %v1957 = vpop.f32.mrf.mxu0
        %v1958 = vadd.f32 %v1749, %v1957
        %1959 = vmatmul.f32.gmra.mxu0 %v1509
        %v1960 = vpop.f32.mrf.mxu0
        %v1961 = vadd.f32 %v1752, %v1960
        %1962 = vmatmul.f32.gmra.mxu0 %v1510
        %v1963 = vpop.f32.mrf.mxu0
        %v1964 = vadd.f32 %v1755, %v1963
        %1965 = vmatmul.f32.gmra.mxu0 %v1511
        %v1966 = vpop.f32.mrf.mxu0
        %v1967 = vadd.f32 %v1758, %v1966
        %1968 = vmatmul.f32.gmra.mxu0 %v1512
        %v1969 = vpop.f32.mrf.mxu0
        %v1970 = vadd.f32 %v1761, %v1969
        %1971 = vmatmul.f32.gmra.mxu0 %v1513
        %v1972 = vpop.f32.mrf.mxu0
        %v1973 = vadd.f32 %v1764, %v1972
        %1974 = vmatmul.f32.gmra.mxu0 %v1514
        %v1975 = vpop.f32.mrf.mxu0
        %v1976 = vadd.f32 %v1767, %v1975
        %1977 = vmatmul.f32.gmra.mxu0 %v1515
        %v1978 = vpop.f32.mrf.mxu0
        %v1979 = vadd.f32 %v1770, %v1978
        %1980 = vmatmul.f32.gmra.mxu0 %v1516
        %v1981 = vpop.f32.mrf.mxu0
        %v1982 = vadd.f32 %v1773, %v1981
        %1983 = vmatmul.f32.gmra.mxu0 %v1517
        %v1984 = vpop.f32.mrf.mxu0
        %v1985 = vadd.f32 %v1776, %v1984
        %1986 = vmatmul.f32.gmra.mxu0 %v1520
        %v1987 = vpop.f32.mrf.mxu0
        %v1988 = vadd.f32 %v1779, %v1987
        %1989 = vmatmul.f32.gmra.mxu0 %v1521
        %v1990 = vpop.f32.mrf.mxu0
        %v1991 = vadd.f32 %v1782, %v1990
        %1992 = vdwg.mxu0
        %1993 = vmatpush.msra.mxu0 %v1574
        %1994 = vmatpush.msra.mxu0 %v1573
        %1995 = vmatpush.msra.mxu0 %v1572
        %1996 = vmatpush.msra.mxu0 %v1571
        %1997 = vmatpush.msra.mxu0 %v1570
        %1998 = vmatpush.msra.mxu0 %v1569
        %1999 = vmatpush.msra.mxu0 %v1568
        %2000 = vmatpush.msra.mxu0 %v1567
        %2001 = vmatpush.msra.mxu0 %v1566
        %2002 = vmatpush.msra.mxu0 %v1565
        %2003 = vmatpush.msra.mxu0 %v1564
        %2004 = vmatpush.msra.mxu0 %v1563
        %2005 = vmatpush.msra.mxu0 %v1562
        %2006 = vmatpush.msra.mxu0 %v1561
        %2007 = vmatpush.msra.mxu0 %v1560
        %2008 = vmatpush.msra.mxu0 %v1559
        %2009 = vmatmul.f32.gmra.mxu0 %v1458
        %v2010 = vpop.f32.mrf.mxu0
        %v2011 = vadd.f32 %v1802, %v2010
        %2012 = vmatmul.f32.gmra.mxu0 %v1459
        %v2013 = vpop.f32.mrf.mxu0
        %v2014 = vadd.f32 %v1805, %v2013
        %2015 = vmatmul.f32.gmra.mxu0 %v1460
        %v2016 = vpop.f32.mrf.mxu0
        %v2017 = vadd.f32 %v1808, %v2016
        %2018 = vmatmul.f32.gmra.mxu0 %v1461
        %v2019 = vpop.f32.mrf.mxu0
        %v2020 = vadd.f32 %v1811, %v2019
        %2021 = vmatmul.f32.gmra.mxu0 %v1462
        %v2022 = vpop.f32.mrf.mxu0
        %v2023 = vadd.f32 %v1814, %v2022
        %2024 = vmatmul.f32.gmra.mxu0 %v1463
        %v2025 = vpop.f32.mrf.mxu0
        %v2026 = vadd.f32 %v1817, %v2025
        %2027 = vmatmul.f32.gmra.mxu0 %v1464
        %v2028 = vpop.f32.mrf.mxu0
        %v2029 = vadd.f32 %v1820, %v2028
        %2030 = vmatmul.f32.gmra.mxu0 %v1465
        %v2031 = vpop.f32.mrf.mxu0
        %v2032 = vadd.f32 %v1823, %v2031
        %2033 = vmatmul.f32.gmra.mxu0 %v1466
        %v2034 = vpop.f32.mrf.mxu0
        %v2035 = vadd.f32 %v1826, %v2034
        %2036 = vmatmul.f32.gmra.mxu0 %v1467
        %v2037 = vpop.f32.mrf.mxu0
        %v2038 = vadd.f32 %v1829, %v2037
        %2039 = vmatmul.f32.gmra.mxu0 %v1468
        %v2040 = vpop.f32.mrf.mxu0
        %v2041 = vadd.f32 %v1832, %v2040
        %2042 = vmatmul.f32.gmra.mxu0 %v1469
        %v2043 = vpop.f32.mrf.mxu0
        %v2044 = vadd.f32 %v1835, %v2043
        %2045 = vmatmul.f32.gmra.mxu0 %v1470
        %v2046 = vpop.f32.mrf.mxu0
        %v2047 = vadd.f32 %v1838, %v2046
        %2048 = vmatmul.f32.gmra.mxu0 %v1471
        %v2049 = vpop.f32.mrf.mxu0
        %v2050 = vadd.f32 %v1841, %v2049
        %2051 = vmatmul.f32.gmra.mxu0 %v1472
        %v2052 = vpop.f32.mrf.mxu0
        %v2053 = vadd.f32 %v1844, %v2052
        %2054 = vmatmul.f32.gmra.mxu0 %v1473
        %v2055 = vpop.f32.mrf.mxu0
        %v2056 = vadd.f32 %v1847, %v2055
        %2057 = vmatmul.f32.gmra.mxu0 %v1474
        %v2058 = vpop.f32.mrf.mxu0
        %v2059 = vadd.f32 %v1850, %v2058
        %2060 = vmatmul.f32.gmra.mxu0 %v1475
        %v2061 = vpop.f32.mrf.mxu0
        %v2062 = vadd.f32 %v1853, %v2061
        %2063 = vmatmul.f32.gmra.mxu0 %v1476
        %v2064 = vpop.f32.mrf.mxu0
        %v2065 = vadd.f32 %v1856, %v2064
        %2066 = vmatmul.f32.gmra.mxu0 %v1477
        %v2067 = vpop.f32.mrf.mxu0
        %v2068 = vadd.f32 %v1859, %v2067
        %2069 = vmatmul.f32.gmra.mxu0 %v1478
        %v2070 = vpop.f32.mrf.mxu0
        %v2071 = vadd.f32 %v1862, %v2070
        %2072 = vmatmul.f32.gmra.mxu0 %v1479
        %v2073 = vpop.f32.mrf.mxu0
        %v2074 = vadd.f32 %v1865, %v2073
        %2075 = vmatmul.f32.gmra.mxu0 %v1480
        %v2076 = vpop.f32.mrf.mxu0
        %v2077 = vadd.f32 %v1868, %v2076
        %2078 = vmatmul.f32.gmra.mxu0 %v1481
        %v2079 = vpop.f32.mrf.mxu0
        %v2080 = vadd.f32 %v1871, %v2079
        %2081 = vmatmul.f32.gmra.mxu0 %v1482
        %v2082 = vpop.f32.mrf.mxu0
        %v2083 = vadd.f32 %v1874, %v2082
        %2084 = vmatmul.f32.gmra.mxu0 %v1483
        %v2085 = vpop.f32.mrf.mxu0
        %v2086 = vadd.f32 %v1877, %v2085
        %2087 = vmatmul.f32.gmra.mxu0 %v1484
        %v2088 = vpop.f32.mrf.mxu0
        %v2089 = vadd.f32 %v1880, %v2088
        %2090 = vmatmul.f32.gmra.mxu0 %v1485
        %v2091 = vpop.f32.mrf.mxu0
        %v2092 = vadd.f32 %v1883, %v2091
        %2093 = vmatmul.f32.gmra.mxu0 %v1518
        %v2094 = vpop.f32.mrf.mxu0
        %v2095 = vadd.f32 %v1886, %v2094
        %2096 = vmatmul.f32.gmra.mxu0 %v1519
        %v2097 = vpop.f32.mrf.mxu0
        %v2098 = vadd.f32 %v1889, %v2097
        %2099 = vmatmul.f32.gmra.mxu0 %v1522
        %v2100 = vpop.f32.mrf.mxu0
        %v2101 = vadd.f32 %v1892, %v2100
        %2102 = vmatmul.f32.gmra.mxu0 %v1523
        %v2103 = vpop.f32.mrf.mxu0
        %v2104 = vadd.f32 %v1895, %v2103
        %2105 = vmatmul.f32.gmra.mxu0 %v1490
        %v2106 = vpop.f32.mrf.mxu0
        %v2107 = vadd.f32 %v1898, %v2106
        %2108 = vmatmul.f32.gmra.mxu0 %v1491
        %v2109 = vpop.f32.mrf.mxu0
        %v2110 = vadd.f32 %v1901, %v2109
        %2111 = vmatmul.f32.gmra.mxu0 %v1492
        %v2112 = vpop.f32.mrf.mxu0
        %v2113 = vadd.f32 %v1904, %v2112
        %2114 = vmatmul.f32.gmra.mxu0 %v1493
        %v2115 = vpop.f32.mrf.mxu0
        %v2116 = vadd.f32 %v1907, %v2115
        %2117 = vmatmul.f32.gmra.mxu0 %v1494
        %v2118 = vpop.f32.mrf.mxu0
        %v2119 = vadd.f32 %v1910, %v2118
        %2120 = vmatmul.f32.gmra.mxu0 %v1495
        %v2121 = vpop.f32.mrf.mxu0
        %v2122 = vadd.f32 %v1913, %v2121
        %2123 = vmatmul.f32.gmra.mxu0 %v1496
        %v2124 = vpop.f32.mrf.mxu0
        %v2125 = vadd.f32 %v1916, %v2124
        %2126 = vmatmul.f32.gmra.mxu0 %v1497
        %v2127 = vpop.f32.mrf.mxu0
        %v2128 = vadd.f32 %v1919, %v2127
        %2129 = vmatmul.f32.gmra.mxu0 %v1498
        %v2130 = vpop.f32.mrf.mxu0
        %v2131 = vadd.f32 %v1922, %v2130
        %2132 = vmatmul.f32.gmra.mxu0 %v1499
        %v2133 = vpop.f32.mrf.mxu0
        %v2134 = vadd.f32 %v1925, %v2133
        %2135 = vmatmul.f32.gmra.mxu0 %v1500
        %v2136 = vpop.f32.mrf.mxu0
        %v2137 = vadd.f32 %v1928, %v2136
        %2138 = vmatmul.f32.gmra.mxu0 %v1501
        %v2139 = vpop.f32.mrf.mxu0
        %v2140 = vadd.f32 %v1931, %v2139
        %2141 = vmatmul.f32.gmra.mxu0 %v1502
        %v2142 = vpop.f32.mrf.mxu0
        %v2143 = vadd.f32 %v1934, %v2142
        %2144 = vmatmul.f32.gmra.mxu0 %v1503
        %v2145 = vpop.f32.mrf.mxu0
        %v2146 = vadd.f32 %v1937, %v2145
        %2147 = vmatmul.f32.gmra.mxu0 %v1504
        %v2148 = vpop.f32.mrf.mxu0
        %v2149 = vadd.f32 %v1940, %v2148
        %2150 = vmatmul.f32.gmra.mxu0 %v1505
        %v2151 = vpop.f32.mrf.mxu0
        %v2152 = vadd.f32 %v1943, %v2151
        %2153 = vmatmul.f32.gmra.mxu0 %v1506
        %v2154 = vpop.f32.mrf.mxu0
        %v2155 = vadd.f32 %v1946, %v2154
        %2156 = vmatmul.f32.gmra.mxu0 %v1507
        %v2157 = vpop.f32.mrf.mxu0
        %v2158 = vadd.f32 %v1949, %v2157
        %2159 = vmatmul.f32.gmra.mxu0 %v1508
        %v2160 = vpop.f32.mrf.mxu0
        %v2161 = vadd.f32 %v1952, %v2160
        %2162 = vmatmul.f32.gmra.mxu0 %v1509
        %v2163 = vpop.f32.mrf.mxu0
        %v2164 = vadd.f32 %v1955, %v2163
        %2165 = vmatmul.f32.gmra.mxu0 %v1510
        %v2166 = vpop.f32.mrf.mxu0
        %v2167 = vadd.f32 %v1958, %v2166
        %2168 = vmatmul.f32.gmra.mxu0 %v1511
        %v2169 = vpop.f32.mrf.mxu0
        %v2170 = vadd.f32 %v1961, %v2169
        %2171 = vmatmul.f32.gmra.mxu0 %v1512
        %v2172 = vpop.f32.mrf.mxu0
        %v2173 = vadd.f32 %v1964, %v2172
        %2174 = vmatmul.f32.gmra.mxu0 %v1513
        %v2175 = vpop.f32.mrf.mxu0
        %v2176 = vadd.f32 %v1967, %v2175
        %2177 = vmatmul.f32.gmra.mxu0 %v1514
        %v2178 = vpop.f32.mrf.mxu0
        %v2179 = vadd.f32 %v1970, %v2178
        %2180 = vmatmul.f32.gmra.mxu0 %v1515
        %v2181 = vpop.f32.mrf.mxu0
        %v2182 = vadd.f32 %v1973, %v2181
        %2183 = vmatmul.f32.gmra.mxu0 %v1516
        %v2184 = vpop.f32.mrf.mxu0
        %v2185 = vadd.f32 %v1976, %v2184
        %2186 = vmatmul.f32.gmra.mxu0 %v1517
        %v2187 = vpop.f32.mrf.mxu0
        %v2188 = vadd.f32 %v1979, %v2187
        %2189 = vmatmul.f32.gmra.mxu0 %v1520
        %v2190 = vpop.f32.mrf.mxu0
        %v2191 = vadd.f32 %v1982, %v2190
        %2192 = vmatmul.f32.gmra.mxu0 %v1521
        %v2193 = vpop.f32.mrf.mxu0
        %v2194 = vadd.f32 %v1985, %v2193
        %2195 = vmatmul.f32.gmra.mxu0 %v1524
        %v2196 = vpop.f32.mrf.mxu0
        %v2197 = vadd.f32 %v1988, %v2196
        %2198 = vmatmul.f32.gmra.mxu0 %v1525
        %v2199 = vpop.f32.mrf.mxu0
        %v2200 = vadd.f32 %v1991, %v2199
        %2201 = vdwg.mxu0
        %2202 = vmatpush.msra.mxu0 %v1421
        %2203 = vmatpush.msra.mxu0 %v1420
        %2204 = vmatpush.msra.mxu0 %v1419
        %2205 = vmatpush.msra.mxu0 %v1418
        %2206 = vmatpush.msra.mxu0 %v1417
        %2207 = vmatpush.msra.mxu0 %v1416
        %2208 = vmatpush.msra.mxu0 %v1415
        %2209 = vmatpush.msra.mxu0 %v1414
        %2210 = vmatpush.msra.mxu0 %v1413
        %2211 = vmatpush.msra.mxu0 %v1412
        %2212 = vmatpush.msra.mxu0 %v1411
        %2213 = vmatpush.msra.mxu0 %v1410
        %2214 = vmatpush.msra.mxu0 %v1409
        %2215 = vmatpush.msra.mxu0 %v1408
        %2216 = vmatpush.msra.mxu0 %v1407
        %2217 = vmatpush.msra.mxu0 %v1406
        %2218 = vmatmul.f32.gmra.mxu0 %v1214
        %v2219 = vpop.f32.mrf.mxu0
        %v2220 = vadd.f32 %v2011, %v2219
        %2221 = vmatmul.f32.gmra.mxu0 %v1217
        %v2222 = vpop.f32.mrf.mxu0
        %v2223 = vadd.f32 %v2014, %v2222
        %2224 = vmatmul.f32.gmra.mxu0 %v1220
        %v2225 = vpop.f32.mrf.mxu0
        %v2226 = vadd.f32 %v2017, %v2225
        %2227 = vmatmul.f32.gmra.mxu0 %v1223
        %v2228 = vpop.f32.mrf.mxu0
        %v2229 = vadd.f32 %v2020, %v2228
        %2230 = vmatmul.f32.gmra.mxu0 %v1226
        %v2231 = vpop.f32.mrf.mxu0
        %v2232 = vadd.f32 %v2023, %v2231
        %2233 = vmatmul.f32.gmra.mxu0 %v1229
        %v2234 = vpop.f32.mrf.mxu0
        %v2235 = vadd.f32 %v2026, %v2234
        %2236 = vmatmul.f32.gmra.mxu0 %v1232
        %v2237 = vpop.f32.mrf.mxu0
        %v2238 = vadd.f32 %v2029, %v2237
        %2239 = vmatmul.f32.gmra.mxu0 %v1235
        %v2240 = vpop.f32.mrf.mxu0
        %v2241 = vadd.f32 %v2032, %v2240
        %2242 = vmatmul.f32.gmra.mxu0 %v1238
        %v2243 = vpop.f32.mrf.mxu0
        %v2244 = vadd.f32 %v2035, %v2243
        %2245 = vmatmul.f32.gmra.mxu0 %v1241
        %v2246 = vpop.f32.mrf.mxu0
        %v2247 = vadd.f32 %v2038, %v2246
        %2248 = vmatmul.f32.gmra.mxu0 %v1244
        %v2249 = vpop.f32.mrf.mxu0
        %v2250 = vadd.f32 %v2041, %v2249
        %2251 = vmatmul.f32.gmra.mxu0 %v1247
        %v2252 = vpop.f32.mrf.mxu0
        %v2253 = vadd.f32 %v2044, %v2252
        %2254 = vmatmul.f32.gmra.mxu0 %v1250
        %v2255 = vpop.f32.mrf.mxu0
        %v2256 = vadd.f32 %v2047, %v2255
        %2257 = vmatmul.f32.gmra.mxu0 %v1253
        %v2258 = vpop.f32.mrf.mxu0
        %v2259 = vadd.f32 %v2050, %v2258
        %2260 = vmatmul.f32.gmra.mxu0 %v1256
        %v2261 = vpop.f32.mrf.mxu0
        %v2262 = vadd.f32 %v2053, %v2261
        %2263 = vmatmul.f32.gmra.mxu0 %v1259
        %v2264 = vpop.f32.mrf.mxu0
        %v2265 = vadd.f32 %v2056, %v2264
        %2266 = vmatmul.f32.gmra.mxu0 %v1262
        %v2267 = vpop.f32.mrf.mxu0
        %v2268 = vadd.f32 %v2059, %v2267
        %2269 = vmatmul.f32.gmra.mxu0 %v1265
        %v2270 = vpop.f32.mrf.mxu0
        %v2271 = vadd.f32 %v2062, %v2270
        %2272 = vmatmul.f32.gmra.mxu0 %v1268
        %v2273 = vpop.f32.mrf.mxu0
        %v2274 = vadd.f32 %v2065, %v2273
        %2275 = vmatmul.f32.gmra.mxu0 %v1271
        %v2276 = vpop.f32.mrf.mxu0
        %v2277 = vadd.f32 %v2068, %v2276
        %2278 = vmatmul.f32.gmra.mxu0 %v1274
        %v2279 = vpop.f32.mrf.mxu0
        %v2280 = vadd.f32 %v2071, %v2279
        %2281 = vmatmul.f32.gmra.mxu0 %v1277
        %v2282 = vpop.f32.mrf.mxu0
        %v2283 = vadd.f32 %v2074, %v2282
        %2284 = vmatmul.f32.gmra.mxu0 %v1280
        %v2285 = vpop.f32.mrf.mxu0
        %v2286 = vadd.f32 %v2077, %v2285
        %2287 = vmatmul.f32.gmra.mxu0 %v1283
        %v2288 = vpop.f32.mrf.mxu0
        %v2289 = vadd.f32 %v2080, %v2288
        %2290 = vmatmul.f32.gmra.mxu0 %v1286
        %v2291 = vpop.f32.mrf.mxu0
        %v2292 = vadd.f32 %v2083, %v2291
        %2293 = vmatmul.f32.gmra.mxu0 %v1289
        %v2294 = vpop.f32.mrf.mxu0
        %v2295 = vadd.f32 %v2086, %v2294
        %2296 = vmatmul.f32.gmra.mxu0 %v1292
        %v2297 = vpop.f32.mrf.mxu0
        %v2298 = vadd.f32 %v2089, %v2297
        %2299 = vmatmul.f32.gmra.mxu0 %v1295
        %v2300 = vpop.f32.mrf.mxu0
        %v2301 = vadd.f32 %v2092, %v2300
        %2302 = vmatmul.f32.gmra.mxu0 %v1298
        %v2303 = vpop.f32.mrf.mxu0
        %v2304 = vadd.f32 %v2095, %v2303
        %2305 = vmatmul.f32.gmra.mxu0 %v1301
        %v2306 = vpop.f32.mrf.mxu0
        %v2307 = vadd.f32 %v2098, %v2306
        %2308 = vmatmul.f32.gmra.mxu0 %v1304
        %v2309 = vpop.f32.mrf.mxu0
        %v2310 = vadd.f32 %v2101, %v2309
        %2311 = vmatmul.f32.gmra.mxu0 %v1307
        %v2312 = vpop.f32.mrf.mxu0
        %v2313 = vadd.f32 %v2104, %v2312
        %2314 = vmatmul.f32.gmra.mxu0 %v1310
        %v2315 = vpop.f32.mrf.mxu0
        %v2316 = vadd.f32 %v2107, %v2315
        %2317 = vmatmul.f32.gmra.mxu0 %v1313
        %v2318 = vpop.f32.mrf.mxu0
        %v2319 = vadd.f32 %v2110, %v2318
        %2320 = vmatmul.f32.gmra.mxu0 %v1316
        %v2321 = vpop.f32.mrf.mxu0
        %v2322 = vadd.f32 %v2113, %v2321
        %2323 = vmatmul.f32.gmra.mxu0 %v1319
        %v2324 = vpop.f32.mrf.mxu0
        %v2325 = vadd.f32 %v2116, %v2324
        %2326 = vmatmul.f32.gmra.mxu0 %v1322
        %v2327 = vpop.f32.mrf.mxu0
        %v2328 = vadd.f32 %v2119, %v2327
        %2329 = vmatmul.f32.gmra.mxu0 %v1325
        %v2330 = vpop.f32.mrf.mxu0
        %v2331 = vadd.f32 %v2122, %v2330
        %2332 = vmatmul.f32.gmra.mxu0 %v1328
        %v2333 = vpop.f32.mrf.mxu0
        %v2334 = vadd.f32 %v2125, %v2333
        %2335 = vmatmul.f32.gmra.mxu0 %v1331
        %v2336 = vpop.f32.mrf.mxu0
        %v2337 = vadd.f32 %v2128, %v2336
        %2338 = vmatmul.f32.gmra.mxu0 %v1334
        %v2339 = vpop.f32.mrf.mxu0
        %v2340 = vadd.f32 %v2131, %v2339
        %2341 = vmatmul.f32.gmra.mxu0 %v1337
        %v2342 = vpop.f32.mrf.mxu0
        %v2343 = vadd.f32 %v2134, %v2342
        %2344 = vmatmul.f32.gmra.mxu0 %v1340
        %v2345 = vpop.f32.mrf.mxu0
        %v2346 = vadd.f32 %v2137, %v2345
        %2347 = vmatmul.f32.gmra.mxu0 %v1343
        %v2348 = vpop.f32.mrf.mxu0
        %v2349 = vadd.f32 %v2140, %v2348
        %2350 = vmatmul.f32.gmra.mxu0 %v1346
        %v2351 = vpop.f32.mrf.mxu0
        %v2352 = vadd.f32 %v2143, %v2351
        %2353 = vmatmul.f32.gmra.mxu0 %v1349
        %v2354 = vpop.f32.mrf.mxu0
        %v2355 = vadd.f32 %v2146, %v2354
        %2356 = vmatmul.f32.gmra.mxu0 %v1352
        %v2357 = vpop.f32.mrf.mxu0
        %v2358 = vadd.f32 %v2149, %v2357
        %2359 = vmatmul.f32.gmra.mxu0 %v1355
        %v2360 = vpop.f32.mrf.mxu0
        %v2361 = vadd.f32 %v2152, %v2360
        %2362 = vmatmul.f32.gmra.mxu0 %v1358
        %v2363 = vpop.f32.mrf.mxu0
        %v2364 = vadd.f32 %v2155, %v2363
        %2365 = vmatmul.f32.gmra.mxu0 %v1361
        %v2366 = vpop.f32.mrf.mxu0
        %v2367 = vadd.f32 %v2158, %v2366
        %2368 = vmatmul.f32.gmra.mxu0 %v1364
        %v2369 = vpop.f32.mrf.mxu0
        %v2370 = vadd.f32 %v2161, %v2369
        %2371 = vmatmul.f32.gmra.mxu0 %v1367
        %v2372 = vpop.f32.mrf.mxu0
        %v2373 = vadd.f32 %v2164, %v2372
        %2374 = vmatmul.f32.gmra.mxu0 %v1370
        %v2375 = vpop.f32.mrf.mxu0
        %v2376 = vadd.f32 %v2167, %v2375
        %2377 = vmatmul.f32.gmra.mxu0 %v1373
        %v2378 = vpop.f32.mrf.mxu0
        %v2379 = vadd.f32 %v2170, %v2378
        %2380 = vmatmul.f32.gmra.mxu0 %v1376
        %v2381 = vpop.f32.mrf.mxu0
        %v2382 = vadd.f32 %v2173, %v2381
        %2383 = vmatmul.f32.gmra.mxu0 %v1379
        %v2384 = vpop.f32.mrf.mxu0
        %v2385 = vadd.f32 %v2176, %v2384
        %2386 = vmatmul.f32.gmra.mxu0 %v1382
        %v2387 = vpop.f32.mrf.mxu0
        %v2388 = vadd.f32 %v2179, %v2387
        %2389 = vmatmul.f32.gmra.mxu0 %v1385
        %v2390 = vpop.f32.mrf.mxu0
        %v2391 = vadd.f32 %v2182, %v2390
        %2392 = vmatmul.f32.gmra.mxu0 %v1388
        %v2393 = vpop.f32.mrf.mxu0
        %v2394 = vadd.f32 %v2185, %v2393
        %2395 = vmatmul.f32.gmra.mxu0 %v1391
        %v2396 = vpop.f32.mrf.mxu0
        %v2397 = vadd.f32 %v2188, %v2396
        %2398 = vmatmul.f32.gmra.mxu0 %v1394
        %v2399 = vpop.f32.mrf.mxu0
        %v2400 = vadd.f32 %v2191, %v2399
        %2401 = vmatmul.f32.gmra.mxu0 %v1397
        %v2402 = vpop.f32.mrf.mxu0
        %v2403 = vadd.f32 %v2194, %v2402
        %2404 = vmatmul.f32.gmra.mxu0 %v1400
        %v2405 = vpop.f32.mrf.mxu0
        %v2406 = vadd.f32 %v2197, %v2405
        %2407 = vmatmul.f32.gmra.mxu0 %v1403
        %v2408 = vpop.f32.mrf.mxu0
        %v2409 = vadd.f32 %v2200, %v2408
        %2410 = vdwg.mxu0
        %2411 = vmatpush.msra.mxu0 %v1437
        %2412 = vmatpush.msra.mxu0 %v1436
        %2413 = vmatpush.msra.mxu0 %v1435
        %2414 = vmatpush.msra.mxu0 %v1434
        %2415 = vmatpush.msra.mxu0 %v1433
        %2416 = vmatpush.msra.mxu0 %v1432
        %2417 = vmatpush.msra.mxu0 %v1431
        %2418 = vmatpush.msra.mxu0 %v1430
        %2419 = vmatpush.msra.mxu0 %v1429
        %2420 = vmatpush.msra.mxu0 %v1428
        %2421 = vmatpush.msra.mxu0 %v1427
        %2422 = vmatpush.msra.mxu0 %v1426
        %2423 = vmatpush.msra.mxu0 %v1425
        %2424 = vmatpush.msra.mxu0 %v1424
        %2425 = vmatpush.msra.mxu0 %v1423
        %2426 = vmatpush.msra.mxu0 %v1422
        %2427 = vmatmul.f32.gmra.mxu0 %v1215
        %v2428 = vpop.f32.mrf.mxu0
        %v2429 = vadd.f32 %v2220, %v2428
        %2430 = vmatmul.f32.gmra.mxu0 %v1218
        %v2431 = vpop.f32.mrf.mxu0
        %v2432 = vadd.f32 %v2223, %v2431
        %2433 = vmatmul.f32.gmra.mxu0 %v1221
        %v2434 = vpop.f32.mrf.mxu0
        %v2435 = vadd.f32 %v2226, %v2434
        %2436 = vmatmul.f32.gmra.mxu0 %v1224
        %v2437 = vpop.f32.mrf.mxu0
        %v2438 = vadd.f32 %v2229, %v2437
        %2439 = vmatmul.f32.gmra.mxu0 %v1227
        %v2440 = vpop.f32.mrf.mxu0
        %v2441 = vadd.f32 %v2232, %v2440
        %2442 = vmatmul.f32.gmra.mxu0 %v1230
        %v2443 = vpop.f32.mrf.mxu0
        %v2444 = vadd.f32 %v2235, %v2443
        %2445 = vmatmul.f32.gmra.mxu0 %v1233
        %v2446 = vpop.f32.mrf.mxu0
        %v2447 = vadd.f32 %v2238, %v2446
        %2448 = vmatmul.f32.gmra.mxu0 %v1236
        %v2449 = vpop.f32.mrf.mxu0
        %v2450 = vadd.f32 %v2241, %v2449
        %2451 = vmatmul.f32.gmra.mxu0 %v1239
        %v2452 = vpop.f32.mrf.mxu0
        %v2453 = vadd.f32 %v2244, %v2452
        %2454 = vmatmul.f32.gmra.mxu0 %v1242
        %v2455 = vpop.f32.mrf.mxu0
        %v2456 = vadd.f32 %v2247, %v2455
        %2457 = vmatmul.f32.gmra.mxu0 %v1245
        %v2458 = vpop.f32.mrf.mxu0
        %v2459 = vadd.f32 %v2250, %v2458
        %2460 = vmatmul.f32.gmra.mxu0 %v1248
        %v2461 = vpop.f32.mrf.mxu0
        %v2462 = vadd.f32 %v2253, %v2461
        %2463 = vmatmul.f32.gmra.mxu0 %v1251
        %v2464 = vpop.f32.mrf.mxu0
        %v2465 = vadd.f32 %v2256, %v2464
        %2466 = vmatmul.f32.gmra.mxu0 %v1254
        %v2467 = vpop.f32.mrf.mxu0
        %v2468 = vadd.f32 %v2259, %v2467
        %2469 = vmatmul.f32.gmra.mxu0 %v1257
        %v2470 = vpop.f32.mrf.mxu0
        %v2471 = vadd.f32 %v2262, %v2470
        %2472 = vmatmul.f32.gmra.mxu0 %v1260
        %v2473 = vpop.f32.mrf.mxu0
        %v2474 = vadd.f32 %v2265, %v2473
        %2475 = vmatmul.f32.gmra.mxu0 %v1263
        %v2476 = vpop.f32.mrf.mxu0
        %v2477 = vadd.f32 %v2268, %v2476
        %2478 = vmatmul.f32.gmra.mxu0 %v1266
        %v2479 = vpop.f32.mrf.mxu0
        %v2480 = vadd.f32 %v2271, %v2479
        %2481 = vmatmul.f32.gmra.mxu0 %v1269
        %v2482 = vpop.f32.mrf.mxu0
        %v2483 = vadd.f32 %v2274, %v2482
        %2484 = vmatmul.f32.gmra.mxu0 %v1272
        %v2485 = vpop.f32.mrf.mxu0
        %v2486 = vadd.f32 %v2277, %v2485
        %2487 = vmatmul.f32.gmra.mxu0 %v1275
        %v2488 = vpop.f32.mrf.mxu0
        %v2489 = vadd.f32 %v2280, %v2488
        %2490 = vmatmul.f32.gmra.mxu0 %v1278
        %v2491 = vpop.f32.mrf.mxu0
        %v2492 = vadd.f32 %v2283, %v2491
        %2493 = vmatmul.f32.gmra.mxu0 %v1281
        %v2494 = vpop.f32.mrf.mxu0
        %v2495 = vadd.f32 %v2286, %v2494
        %2496 = vmatmul.f32.gmra.mxu0 %v1284
        %v2497 = vpop.f32.mrf.mxu0
        %v2498 = vadd.f32 %v2289, %v2497
        %2499 = vmatmul.f32.gmra.mxu0 %v1287
        %v2500 = vpop.f32.mrf.mxu0
        %v2501 = vadd.f32 %v2292, %v2500
        %2502 = vmatmul.f32.gmra.mxu0 %v1290
        %v2503 = vpop.f32.mrf.mxu0
        %v2504 = vadd.f32 %v2295, %v2503
        %2505 = vmatmul.f32.gmra.mxu0 %v1293
        %v2506 = vpop.f32.mrf.mxu0
        %v2507 = vadd.f32 %v2298, %v2506
        %2508 = vmatmul.f32.gmra.mxu0 %v1296
        %v2509 = vpop.f32.mrf.mxu0
        %v2510 = vadd.f32 %v2301, %v2509
        %2511 = vmatmul.f32.gmra.mxu0 %v1299
        %v2512 = vpop.f32.mrf.mxu0
        %v2513 = vadd.f32 %v2304, %v2512
        %2514 = vmatmul.f32.gmra.mxu0 %v1302
        %v2515 = vpop.f32.mrf.mxu0
        %v2516 = vadd.f32 %v2307, %v2515
        %2517 = vmatmul.f32.gmra.mxu0 %v1305
        %v2518 = vpop.f32.mrf.mxu0
        %v2519 = vadd.f32 %v2310, %v2518
        %2520 = vmatmul.f32.gmra.mxu0 %v1308
        %v2521 = vpop.f32.mrf.mxu0
        %v2522 = vadd.f32 %v2313, %v2521
        %2523 = vmatmul.f32.gmra.mxu0 %v1311
        %v2524 = vpop.f32.mrf.mxu0
        %v2525 = vadd.f32 %v2316, %v2524
        %2526 = vmatmul.f32.gmra.mxu0 %v1314
        %v2527 = vpop.f32.mrf.mxu0
        %v2528 = vadd.f32 %v2319, %v2527
        %2529 = vmatmul.f32.gmra.mxu0 %v1317
        %v2530 = vpop.f32.mrf.mxu0
        %v2531 = vadd.f32 %v2322, %v2530
        %2532 = vmatmul.f32.gmra.mxu0 %v1320
        %v2533 = vpop.f32.mrf.mxu0
        %v2534 = vadd.f32 %v2325, %v2533
        %2535 = vmatmul.f32.gmra.mxu0 %v1323
        %v2536 = vpop.f32.mrf.mxu0
        %v2537 = vadd.f32 %v2328, %v2536
        %2538 = vmatmul.f32.gmra.mxu0 %v1326
        %v2539 = vpop.f32.mrf.mxu0
        %v2540 = vadd.f32 %v2331, %v2539
        %2541 = vmatmul.f32.gmra.mxu0 %v1329
        %v2542 = vpop.f32.mrf.mxu0
        %v2543 = vadd.f32 %v2334, %v2542
        %2544 = vmatmul.f32.gmra.mxu0 %v1332
        %v2545 = vpop.f32.mrf.mxu0
        %v2546 = vadd.f32 %v2337, %v2545
        %2547 = vmatmul.f32.gmra.mxu0 %v1335
        %v2548 = vpop.f32.mrf.mxu0
        %v2549 = vadd.f32 %v2340, %v2548
        %2550 = vmatmul.f32.gmra.mxu0 %v1338
        %v2551 = vpop.f32.mrf.mxu0
        %v2552 = vadd.f32 %v2343, %v2551
        %2553 = vmatmul.f32.gmra.mxu0 %v1341
        %v2554 = vpop.f32.mrf.mxu0
        %v2555 = vadd.f32 %v2346, %v2554
        %2556 = vmatmul.f32.gmra.mxu0 %v1344
        %v2557 = vpop.f32.mrf.mxu0
        %v2558 = vadd.f32 %v2349, %v2557
        %2559 = vmatmul.f32.gmra.mxu0 %v1347
        %v2560 = vpop.f32.mrf.mxu0
        %v2561 = vadd.f32 %v2352, %v2560
        %2562 = vmatmul.f32.gmra.mxu0 %v1350
        %v2563 = vpop.f32.mrf.mxu0
        %v2564 = vadd.f32 %v2355, %v2563
        %2565 = vmatmul.f32.gmra.mxu0 %v1353
        %v2566 = vpop.f32.mrf.mxu0
        %v2567 = vadd.f32 %v2358, %v2566
        %2568 = vmatmul.f32.gmra.mxu0 %v1356
        %v2569 = vpop.f32.mrf.mxu0
        %v2570 = vadd.f32 %v2361, %v2569
        %2571 = vmatmul.f32.gmra.mxu0 %v1359
        %v2572 = vpop.f32.mrf.mxu0
        %v2573 = vadd.f32 %v2364, %v2572
        %2574 = vmatmul.f32.gmra.mxu0 %v1362
        %v2575 = vpop.f32.mrf.mxu0
        %v2576 = vadd.f32 %v2367, %v2575
        %2577 = vmatmul.f32.gmra.mxu0 %v1365
        %v2578 = vpop.f32.mrf.mxu0
        %v2579 = vadd.f32 %v2370, %v2578
        %2580 = vmatmul.f32.gmra.mxu0 %v1368
        %v2581 = vpop.f32.mrf.mxu0
        %v2582 = vadd.f32 %v2373, %v2581
        %2583 = vmatmul.f32.gmra.mxu0 %v1371
        %v2584 = vpop.f32.mrf.mxu0
        %v2585 = vadd.f32 %v2376, %v2584
        %2586 = vmatmul.f32.gmra.mxu0 %v1374
        %v2587 = vpop.f32.mrf.mxu0
        %v2588 = vadd.f32 %v2379, %v2587
        %2589 = vmatmul.f32.gmra.mxu0 %v1377
        %v2590 = vpop.f32.mrf.mxu0
        %v2591 = vadd.f32 %v2382, %v2590
        %2592 = vmatmul.f32.gmra.mxu0 %v1380
        %v2593 = vpop.f32.mrf.mxu0
        %v2594 = vadd.f32 %v2385, %v2593
        %2595 = vmatmul.f32.gmra.mxu0 %v1383
        %v2596 = vpop.f32.mrf.mxu0
        %v2597 = vadd.f32 %v2388, %v2596
        %2598 = vmatmul.f32.gmra.mxu0 %v1386
        %v2599 = vpop.f32.mrf.mxu0
        %v2600 = vadd.f32 %v2391, %v2599
        %2601 = vmatmul.f32.gmra.mxu0 %v1389
        %v2602 = vpop.f32.mrf.mxu0
        %v2603 = vadd.f32 %v2394, %v2602
        %2604 = vmatmul.f32.gmra.mxu0 %v1392
        %v2605 = vpop.f32.mrf.mxu0
        %v2606 = vadd.f32 %v2397, %v2605
        %2607 = vmatmul.f32.gmra.mxu0 %v1395
        %v2608 = vpop.f32.mrf.mxu0
        %v2609 = vadd.f32 %v2400, %v2608
        %2610 = vmatmul.f32.gmra.mxu0 %v1398
        %v2611 = vpop.f32.mrf.mxu0
        %v2612 = vadd.f32 %v2403, %v2611
        %2613 = vmatmul.f32.gmra.mxu0 %v1401
        %v2614 = vpop.f32.mrf.mxu0
        %v2615 = vadd.f32 %v2406, %v2614
        %2616 = vmatmul.f32.gmra.mxu0 %v1404
        %v2617 = vpop.f32.mrf.mxu0
        %v2618 = vadd.f32 %v2409, %v2617
        %2619 = vdwg.mxu0
        %2620 = vmatpush.msra.mxu0 %v1453
        %2621 = vmatpush.msra.mxu0 %v1452
        %2622 = vmatpush.msra.mxu0 %v1451
        %2623 = vmatpush.msra.mxu0 %v1450
        %2624 = vmatpush.msra.mxu0 %v1449
        %2625 = vmatpush.msra.mxu0 %v1448
        %2626 = vmatpush.msra.mxu0 %v1447
        %2627 = vmatpush.msra.mxu0 %v1446
        %2628 = vmatpush.msra.mxu0 %v1445
        %2629 = vmatpush.msra.mxu0 %v1444
        %2630 = vmatpush.msra.mxu0 %v1443
        %2631 = vmatpush.msra.mxu0 %v1442
        %2632 = vmatpush.msra.mxu0 %v1441
        %2633 = vmatpush.msra.mxu0 %v1440
        %2634 = vmatpush.msra.mxu0 %v1439
        %2635 = vmatpush.msra.mxu0 %v1438
        %2636 = vmatmul.f32.gmra.mxu0 %v1216
        %v2637 = vpop.f32.mrf.mxu0
        %v2638 = vadd.f32 %v2429, %v2637
        %2639 = vmatmul.f32.gmra.mxu0 %v1219
        %v2640 = vpop.f32.mrf.mxu0
        %v2641 = vadd.f32 %v2432, %v2640
        %2642 = vmatmul.f32.gmra.mxu0 %v1222
        %v2643 = vpop.f32.mrf.mxu0
        %v2644 = vadd.f32 %v2435, %v2643
        %2645 = vmatmul.f32.gmra.mxu0 %v1225
        %v2646 = vpop.f32.mrf.mxu0
        %v2647 = vadd.f32 %v2438, %v2646
        %2648 = vmatmul.f32.gmra.mxu0 %v1228
        %v2649 = vpop.f32.mrf.mxu0
        %v2650 = vadd.f32 %v2441, %v2649
        %2651 = vmatmul.f32.gmra.mxu0 %v1231
        %v2652 = vpop.f32.mrf.mxu0
        %v2653 = vadd.f32 %v2444, %v2652
        %2654 = vmatmul.f32.gmra.mxu0 %v1234
        %v2655 = vpop.f32.mrf.mxu0
        %v2656 = vadd.f32 %v2447, %v2655
        %2657 = vmatmul.f32.gmra.mxu0 %v1237
        %v2658 = vpop.f32.mrf.mxu0
        %v2659 = vadd.f32 %v2450, %v2658
        %2660 = vmatmul.f32.gmra.mxu0 %v1240
        %v2661 = vpop.f32.mrf.mxu0
        %v2662 = vadd.f32 %v2453, %v2661
        %2663 = vmatmul.f32.gmra.mxu0 %v1243
        %v2664 = vpop.f32.mrf.mxu0
        %v2665 = vadd.f32 %v2456, %v2664
        %2666 = vmatmul.f32.gmra.mxu0 %v1246
        %v2667 = vpop.f32.mrf.mxu0
        %v2668 = vadd.f32 %v2459, %v2667
        %2669 = vmatmul.f32.gmra.mxu0 %v1249
        %v2670 = vpop.f32.mrf.mxu0
        %v2671 = vadd.f32 %v2462, %v2670
        %2672 = vmatmul.f32.gmra.mxu0 %v1252
        %v2673 = vpop.f32.mrf.mxu0
        %v2674 = vadd.f32 %v2465, %v2673
        %2675 = vmatmul.f32.gmra.mxu0 %v1255
        %v2676 = vpop.f32.mrf.mxu0
        %v2677 = vadd.f32 %v2468, %v2676
        %2678 = vmatmul.f32.gmra.mxu0 %v1258
        %v2679 = vpop.f32.mrf.mxu0
        %v2680 = vadd.f32 %v2471, %v2679
        %2681 = vmatmul.f32.gmra.mxu0 %v1261
        %v2682 = vpop.f32.mrf.mxu0
        %v2683 = vadd.f32 %v2474, %v2682
        %2684 = vmatmul.f32.gmra.mxu0 %v1264
        %v2685 = vpop.f32.mrf.mxu0
        %v2686 = vadd.f32 %v2477, %v2685
        %2687 = vmatmul.f32.gmra.mxu0 %v1267
        %v2688 = vpop.f32.mrf.mxu0
        %v2689 = vadd.f32 %v2480, %v2688
        %2690 = vmatmul.f32.gmra.mxu0 %v1270
        %v2691 = vpop.f32.mrf.mxu0
        %v2692 = vadd.f32 %v2483, %v2691
        %2693 = vmatmul.f32.gmra.mxu0 %v1273
        %v2694 = vpop.f32.mrf.mxu0
        %v2695 = vadd.f32 %v2486, %v2694
        %2696 = vmatmul.f32.gmra.mxu0 %v1276
        %v2697 = vpop.f32.mrf.mxu0
        %v2698 = vadd.f32 %v2489, %v2697
        %2699 = vmatmul.f32.gmra.mxu0 %v1279
        %v2700 = vpop.f32.mrf.mxu0
        %v2701 = vadd.f32 %v2492, %v2700
        %2702 = vmatmul.f32.gmra.mxu0 %v1282
        %v2703 = vpop.f32.mrf.mxu0
        %v2704 = vadd.f32 %v2495, %v2703
        %2705 = vmatmul.f32.gmra.mxu0 %v1285
        %v2706 = vpop.f32.mrf.mxu0
        %v2707 = vadd.f32 %v2498, %v2706
        %2708 = vmatmul.f32.gmra.mxu0 %v1288
        %v2709 = vpop.f32.mrf.mxu0
        %v2710 = vadd.f32 %v2501, %v2709
        %2711 = vmatmul.f32.gmra.mxu0 %v1291
        %v2712 = vpop.f32.mrf.mxu0
        %v2713 = vadd.f32 %v2504, %v2712
        %2714 = vmatmul.f32.gmra.mxu0 %v1294
        %v2715 = vpop.f32.mrf.mxu0
        %v2716 = vadd.f32 %v2507, %v2715
        %2717 = vmatmul.f32.gmra.mxu0 %v1297
        %v2718 = vpop.f32.mrf.mxu0
        %v2719 = vadd.f32 %v2510, %v2718
        %2720 = vmatmul.f32.gmra.mxu0 %v1300
        %v2721 = vpop.f32.mrf.mxu0
        %v2722 = vadd.f32 %v2513, %v2721
        %2723 = vmatmul.f32.gmra.mxu0 %v1303
        %v2724 = vpop.f32.mrf.mxu0
        %v2725 = vadd.f32 %v2516, %v2724
        %2726 = vmatmul.f32.gmra.mxu0 %v1306
        %v2727 = vpop.f32.mrf.mxu0
        %v2728 = vadd.f32 %v2519, %v2727
        %2729 = vmatmul.f32.gmra.mxu0 %v1309
        %v2730 = vpop.f32.mrf.mxu0
        %v2731 = vadd.f32 %v2522, %v2730
        %2732 = vmatmul.f32.gmra.mxu0 %v1312
        %v2733 = vpop.f32.mrf.mxu0
        %v2734 = vadd.f32 %v2525, %v2733
        %2735 = vmatmul.f32.gmra.mxu0 %v1315
        %v2736 = vpop.f32.mrf.mxu0
        %v2737 = vadd.f32 %v2528, %v2736
        %2738 = vmatmul.f32.gmra.mxu0 %v1318
        %v2739 = vpop.f32.mrf.mxu0
        %v2740 = vadd.f32 %v2531, %v2739
        %2741 = vmatmul.f32.gmra.mxu0 %v1321
        %v2742 = vpop.f32.mrf.mxu0
        %v2743 = vadd.f32 %v2534, %v2742
        %2744 = vmatmul.f32.gmra.mxu0 %v1324
        %v2745 = vpop.f32.mrf.mxu0
        %v2746 = vadd.f32 %v2537, %v2745
        %2747 = vmatmul.f32.gmra.mxu0 %v1327
        %v2748 = vpop.f32.mrf.mxu0
        %v2749 = vadd.f32 %v2540, %v2748
        %2750 = vmatmul.f32.gmra.mxu0 %v1330
        %v2751 = vpop.f32.mrf.mxu0
        %v2752 = vadd.f32 %v2543, %v2751
        %2753 = vmatmul.f32.gmra.mxu0 %v1333
        %v2754 = vpop.f32.mrf.mxu0
        %v2755 = vadd.f32 %v2546, %v2754
        %2756 = vmatmul.f32.gmra.mxu0 %v1336
        %v2757 = vpop.f32.mrf.mxu0
        %v2758 = vadd.f32 %v2549, %v2757
        %2759 = vmatmul.f32.gmra.mxu0 %v1339
        %v2760 = vpop.f32.mrf.mxu0
        %v2761 = vadd.f32 %v2552, %v2760
        %2762 = vmatmul.f32.gmra.mxu0 %v1342
        %v2763 = vpop.f32.mrf.mxu0
        %v2764 = vadd.f32 %v2555, %v2763
        %2765 = vmatmul.f32.gmra.mxu0 %v1345
        %v2766 = vpop.f32.mrf.mxu0
        %v2767 = vadd.f32 %v2558, %v2766
        %2768 = vmatmul.f32.gmra.mxu0 %v1348
        %v2769 = vpop.f32.mrf.mxu0
        %v2770 = vadd.f32 %v2561, %v2769
        %2771 = vmatmul.f32.gmra.mxu0 %v1351
        %v2772 = vpop.f32.mrf.mxu0
        %v2773 = vadd.f32 %v2564, %v2772
        %2774 = vmatmul.f32.gmra.mxu0 %v1354
        %v2775 = vpop.f32.mrf.mxu0
        %v2776 = vadd.f32 %v2567, %v2775
        %2777 = vmatmul.f32.gmra.mxu0 %v1357
        %v2778 = vpop.f32.mrf.mxu0
        %v2779 = vadd.f32 %v2570, %v2778
        %2780 = vmatmul.f32.gmra.mxu0 %v1360
        %v2781 = vpop.f32.mrf.mxu0
        %v2782 = vadd.f32 %v2573, %v2781
        %2783 = vmatmul.f32.gmra.mxu0 %v1363
        %v2784 = vpop.f32.mrf.mxu0
        %v2785 = vadd.f32 %v2576, %v2784
        %2786 = vmatmul.f32.gmra.mxu0 %v1366
        %v2787 = vpop.f32.mrf.mxu0
        %v2788 = vadd.f32 %v2579, %v2787
        %2789 = vmatmul.f32.gmra.mxu0 %v1369
        %v2790 = vpop.f32.mrf.mxu0
        %v2791 = vadd.f32 %v2582, %v2790
        %2792 = vmatmul.f32.gmra.mxu0 %v1372
        %v2793 = vpop.f32.mrf.mxu0
        %v2794 = vadd.f32 %v2585, %v2793
        %2795 = vmatmul.f32.gmra.mxu0 %v1375
        %v2796 = vpop.f32.mrf.mxu0
        %v2797 = vadd.f32 %v2588, %v2796
        %2798 = vmatmul.f32.gmra.mxu0 %v1378
        %v2799 = vpop.f32.mrf.mxu0
        %v2800 = vadd.f32 %v2591, %v2799
        %2801 = vmatmul.f32.gmra.mxu0 %v1381
        %v2802 = vpop.f32.mrf.mxu0
        %v2803 = vadd.f32 %v2594, %v2802
        %2804 = vmatmul.f32.gmra.mxu0 %v1384
        %v2805 = vpop.f32.mrf.mxu0
        %v2806 = vadd.f32 %v2597, %v2805
        %2807 = vmatmul.f32.gmra.mxu0 %v1387
        %v2808 = vpop.f32.mrf.mxu0
        %v2809 = vadd.f32 %v2600, %v2808
        %2810 = vmatmul.f32.gmra.mxu0 %v1390
        %v2811 = vpop.f32.mrf.mxu0
        %v2812 = vadd.f32 %v2603, %v2811
        %2813 = vmatmul.f32.gmra.mxu0 %v1393
        %v2814 = vpop.f32.mrf.mxu0
        %v2815 = vadd.f32 %v2606, %v2814
        %2816 = vmatmul.f32.gmra.mxu0 %v1396
        %v2817 = vpop.f32.mrf.mxu0
        %v2818 = vadd.f32 %v2609, %v2817
        %2819 = vmatmul.f32.gmra.mxu0 %v1399
        %v2820 = vpop.f32.mrf.mxu0
        %v2821 = vadd.f32 %v2612, %v2820
        %2822 = vmatmul.f32.gmra.mxu0 %v1402
        %v2823 = vpop.f32.mrf.mxu0
        %v2824 = vadd.f32 %v2615, %v2823
        %2825 = vmatmul.f32.gmra.mxu0 %v1405
        %v2826 = vpop.f32.mrf.mxu0
        %v2827 = vadd.f32 %v2618, %v2826
        %2828 = vdwg.mxu0
        %v2829 = vld [vmem:[#allocation2 + $0x2] sm:$0xff]
        %v2830 = vld [vmem:[#allocation2 + $0xa] sm:$0xff]
        %v2831 = vld [vmem:[#allocation2 + $0x12] sm:$0xff]
        %v2832 = vld [vmem:[#allocation2 + $0x1a] sm:$0xff]
        %v2833 = vld [vmem:[#allocation2 + $0x22] sm:$0xff]
        %v2834 = vld [vmem:[#allocation2 + $0x2a] sm:$0xff]
        %v2835 = vld [vmem:[#allocation2 + $0x32] sm:$0xff]
        %v2836 = vld [vmem:[#allocation2 + $0x3a] sm:$0xff]
        %v2837 = vld [vmem:[#allocation2 + $0x42] sm:$0xff]
        %v2838 = vld [vmem:[#allocation2 + $0x4a] sm:$0xff]
        %v2839 = vld [vmem:[#allocation2 + $0x52] sm:$0xff]
        %v2840 = vld [vmem:[#allocation2 + $0x5a] sm:$0xff]
        %v2841 = vld [vmem:[#allocation2 + $0x62] sm:$0xff]
        %v2842 = vld [vmem:[#allocation2 + $0x6a] sm:$0xff]
        %v2843 = vld [vmem:[#allocation2 + $0x72] sm:$0xff]
        %v2844 = vld [vmem:[#allocation2 + $0x7a] sm:$0xff]
        %v2845 = vld [vmem:[#allocation2 + $0x82] sm:$0xff]
        %v2846 = vld [vmem:[#allocation2 + $0x8a] sm:$0xff]
        %v2847 = vld [vmem:[#allocation2 + $0x92] sm:$0xff]
        %v2848 = vld [vmem:[#allocation2 + $0x9a] sm:$0xff]
        %v2849 = vld [vmem:[#allocation2 + $0xa2] sm:$0xff]
        %v2850 = vld [vmem:[#allocation2 + $0xaa] sm:$0xff]
        %v2851 = vld [vmem:[#allocation2 + $0xb2] sm:$0xff]
        %v2852 = vld [vmem:[#allocation2 + $0xba] sm:$0xff]
        %v2853 = vld [vmem:[#allocation2 + $0xc2] sm:$0xff]
        %v2854 = vld [vmem:[#allocation2 + $0xca] sm:$0xff]
        %v2855 = vld [vmem:[#allocation2 + $0xd2] sm:$0xff]
        %v2856 = vld [vmem:[#allocation2 + $0xda] sm:$0xff]
        %v2857 = vld [vmem:[#allocation2 + $0xe2] sm:$0xff]
        %v2858 = vld [vmem:[#allocation2 + $0xea] sm:$0xff]
        %v2859 = vld [vmem:[#allocation2 + $0xf2] sm:$0xff]
        %v2860 = vld [vmem:[#allocation2 + $0xfa] sm:$0xff]
        %v2861 = vld [vmem:[#allocation2 + $0x12a] sm:$0xff]
        %v2862 = vld [vmem:[#allocation2 + $0x132] sm:$0xff]
        %v2863 = vld [vmem:[#allocation2 + $0x13a] sm:$0xff]
        %v2864 = vld [vmem:[#allocation2 + $0x142] sm:$0xff]
        %v2865 = vld [vmem:[#allocation2 + $0x14a] sm:$0xff]
        %v2866 = vld [vmem:[#allocation2 + $0x152] sm:$0xff]
        %v2867 = vld [vmem:[#allocation2 + $0x15a] sm:$0xff]
        %v2868 = vld [vmem:[#allocation2 + $0x162] sm:$0xff]
        %v2869 = vld [vmem:[#allocation2 + $0x16a] sm:$0xff]
        %v2870 = vld [vmem:[#allocation2 + $0x172] sm:$0xff]
        %v2871 = vld [vmem:[#allocation2 + $0x17a] sm:$0xff]
        %v2872 = vld [vmem:[#allocation2 + $0x182] sm:$0xff]
        %v2873 = vld [vmem:[#allocation2 + $0x18a] sm:$0xff]
        %v2874 = vld [vmem:[#allocation2 + $0x192] sm:$0xff]
        %v2875 = vld [vmem:[#allocation2 + $0x19a] sm:$0xff]
        %v2876 = vld [vmem:[#allocation2 + $0x1a2] sm:$0xff]
        %v2877 = vld [vmem:[#allocation2 + $0x1aa] sm:$0xff]
        %v2878 = vld [vmem:[#allocation2 + $0x1b2] sm:$0xff]
        %v2879 = vld [vmem:[#allocation2 + $0x1ba] sm:$0xff]
        %v2880 = vld [vmem:[#allocation2 + $0x1c2] sm:$0xff]
        %v2881 = vld [vmem:[#allocation2 + $0x1ca] sm:$0xff]
        %v2882 = vld [vmem:[#allocation2 + $0x1d2] sm:$0xff]
        %v2883 = vld [vmem:[#allocation2 + $0x1da] sm:$0xff]
        %v2884 = vld [vmem:[#allocation2 + $0x1e2] sm:$0xff]
        %v2885 = vld [vmem:[#allocation2 + $0x1ea] sm:$0xff]
        %v2886 = vld [vmem:[#allocation2 + $0x1f2] sm:$0xff]
        %v2887 = vld [vmem:[#allocation2 + $0x1fa] sm:$0xff]
        %v2888 = vld [vmem:[#allocation2 + $0x202] sm:$0xff]
        %v2889 = vld [vmem:[#allocation2 + $0x20a] sm:$0xff]
        %v2890 = vld [vmem:[#allocation2 + $0x212] sm:$0xff]
        %v2891 = vld [vmem:[#allocation2 + $0x21a] sm:$0xff]
        %v2892 = vld [vmem:[#allocation2 + $0x222] sm:$0xff]
        %v2893 = vld [vmem:[#allocation2 + $0x102] sm:$0xff]
        %v2894 = vld [vmem:[#allocation2 + $0x10a] sm:$0xff]
        %v2895 = vld [vmem:[#allocation2 + $0x22a] sm:$0xff]
        %v2896 = vld [vmem:[#allocation2 + $0x232] sm:$0xff]
        %v2897 = vld [vmem:[#allocation2 + $0x22] sm:$0xff]
        %v2898 = vld [vmem:[#allocation2 + $0x2a] sm:$0xff]
        %v2899 = vld [vmem:[#allocation2 + $0x32] sm:$0xff]
        %v2900 = vld [vmem:[#allocation2 + $0x3a] sm:$0xff]
        %v2901 = vld [vmem:[#allocation2 + $0x42] sm:$0xff]
        %v2902 = vld [vmem:[#allocation2 + $0x4a] sm:$0xff]
        %v2903 = vld [vmem:[#allocation2 + $0x52] sm:$0xff]
        %v2904 = vld [vmem:[#allocation2 + $0x5a] sm:$0xff]
        %v2905 = vld [vmem:[#allocation2 + $0x62] sm:$0xff]
        %v2906 = vld [vmem:[#allocation2 + $0x6a] sm:$0xff]
        %v2907 = vld [vmem:[#allocation2 + $0x72] sm:$0xff]
        %v2908 = vld [vmem:[#allocation2 + $0x7a] sm:$0xff]
        %v2909 = vld [vmem:[#allocation2 + $0x82] sm:$0xff]
        %v2910 = vld [vmem:[#allocation2 + $0x8a] sm:$0xff]
        %v2911 = vld [vmem:[#allocation2 + $0x92] sm:$0xff]
        %v2912 = vld [vmem:[#allocation2 + $0x9a] sm:$0xff]
        %v2913 = vld [vmem:[#allocation2 + $0xa2] sm:$0xff]
        %v2914 = vld [vmem:[#allocation2 + $0xaa] sm:$0xff]
        %v2915 = vld [vmem:[#allocation2 + $0xb2] sm:$0xff]
        %v2916 = vld [vmem:[#allocation2 + $0xba] sm:$0xff]
        %v2917 = vld [vmem:[#allocation2 + $0xc2] sm:$0xff]
        %v2918 = vld [vmem:[#allocation2 + $0xca] sm:$0xff]
        %v2919 = vld [vmem:[#allocation2 + $0xd2] sm:$0xff]
        %v2920 = vld [vmem:[#allocation2 + $0xda] sm:$0xff]
        %v2921 = vld [vmem:[#allocation2 + $0xe2] sm:$0xff]
        %v2922 = vld [vmem:[#allocation2 + $0xea] sm:$0xff]
        %v2923 = vld [vmem:[#allocation2 + $0xf2] sm:$0xff]
        %v2924 = vld [vmem:[#allocation2 + $0xfa] sm:$0xff]
        %v2925 = vld [vmem:[#allocation2 + $0x102] sm:$0xff]
        %v2926 = vld [vmem:[#allocation2 + $0x10a] sm:$0xff]
        %v2927 = vld [vmem:[#allocation2 + $0x112] sm:$0xff]
        %v2928 = vld [vmem:[#allocation2 + $0x11a] sm:$0xff]
        %v2929 = vld [vmem:[#allocation2 + $0x14a] sm:$0xff]
        %v2930 = vld [vmem:[#allocation2 + $0x152] sm:$0xff]
        %v2931 = vld [vmem:[#allocation2 + $0x15a] sm:$0xff]
        %v2932 = vld [vmem:[#allocation2 + $0x162] sm:$0xff]
        %v2933 = vld [vmem:[#allocation2 + $0x16a] sm:$0xff]
        %v2934 = vld [vmem:[#allocation2 + $0x172] sm:$0xff]
        %v2935 = vld [vmem:[#allocation2 + $0x17a] sm:$0xff]
        %v2936 = vld [vmem:[#allocation2 + $0x182] sm:$0xff]
        %v2937 = vld [vmem:[#allocation2 + $0x18a] sm:$0xff]
        %v2938 = vld [vmem:[#allocation2 + $0x192] sm:$0xff]
        %v2939 = vld [vmem:[#allocation2 + $0x19a] sm:$0xff]
        %v2940 = vld [vmem:[#allocation2 + $0x1a2] sm:$0xff]
        %v2941 = vld [vmem:[#allocation2 + $0x1aa] sm:$0xff]
        %v2942 = vld [vmem:[#allocation2 + $0x1b2] sm:$0xff]
        %v2943 = vld [vmem:[#allocation2 + $0x1ba] sm:$0xff]
        %v2944 = vld [vmem:[#allocation2 + $0x1c2] sm:$0xff]
        %v2945 = vld [vmem:[#allocation2 + $0x1ca] sm:$0xff]
        %v2946 = vld [vmem:[#allocation2 + $0x1d2] sm:$0xff]
        %v2947 = vld [vmem:[#allocation2 + $0x1da] sm:$0xff]
        %v2948 = vld [vmem:[#allocation2 + $0x1e2] sm:$0xff]
        %v2949 = vld [vmem:[#allocation2 + $0x1ea] sm:$0xff]
        %v2950 = vld [vmem:[#allocation2 + $0x1f2] sm:$0xff]
        %v2951 = vld [vmem:[#allocation2 + $0x1fa] sm:$0xff]
        %v2952 = vld [vmem:[#allocation2 + $0x202] sm:$0xff]
        %v2953 = vld [vmem:[#allocation2 + $0x20a] sm:$0xff]
        %v2954 = vld [vmem:[#allocation2 + $0x212] sm:$0xff]
        %v2955 = vld [vmem:[#allocation2 + $0x21a] sm:$0xff]
        %v2956 = vld [vmem:[#allocation2 + $0x222] sm:$0xff]
        %v2957 = vld [vmem:[#allocation2 + $0x22a] sm:$0xff]
        %v2958 = vld [vmem:[#allocation2 + $0x232] sm:$0xff]
        %v2959 = vld [vmem:[#allocation2 + $0x23a] sm:$0xff]
        %v2960 = vld [vmem:[#allocation2 + $0x242] sm:$0xff]
        %v2961 = vsel %vm712, 1, 0
        %v2962 = vsel %vm713, 1, 0
        %v2963 = vsel %vm714, 1, 0
        %v2964 = vsel %vm715, 1, 0
        %v2965 = vsel %vm716, 1, 0
        %v2966 = vsel %vm717, 1, 0
        %v2967 = vsel %vm718, 1, 0
        %v2968 = vsel %vm719, 1, 0
        %v2969 = vsel %vm720, 1, 0
        %v2970 = vsel %vm721, 1, 0
        %v2971 = vsel %vm722, 1, 0
        %v2972 = vsel %vm723, 1, 0
        %v2973 = vsel %vm724, 1, 0
        %v2974 = vsel %vm725, 1, 0
        %v2975 = vsel %vm726, 1, 0
        %v2976 = vsel %vm727, 1, 0
        %v2977 = vsel %vm728, 1, 0
        %v2978 = vsel %vm729, 1, 0
        %v2979 = vsel %vm730, 1, 0
        %v2980 = vsel %vm731, 1, 0
        %v2981 = vsel %vm732, 1, 0
        %v2982 = vsel %vm733, 1, 0
        %v2983 = vsel %vm734, 1, 0
        %v2984 = vsel %vm735, 1, 0
        %v2985 = vsel %vm736, 1, 0
        %v2986 = vsel %vm737, 1, 0
        %v2987 = vsel %vm738, 1, 0
        %v2988 = vsel %vm739, 1, 0
        %v2989 = vsel %vm740, 1, 0
        %v2990 = vsel %vm741, 1, 0
        %v2991 = vsel %vm742, 1, 0
        %v2992 = vsel %vm743, 1, 0
        %vm2993 = vcmp.eq.s32.totalorder %v2961, 1
        %vm2994 = vcmp.eq.s32.totalorder %v2962, 1
        %vm2995 = vcmp.eq.s32.totalorder %v2963, 1
        %vm2996 = vcmp.eq.s32.totalorder %v2964, 1
        %vm2997 = vcmp.eq.s32.totalorder %v2965, 1
        %vm2998 = vcmp.eq.s32.totalorder %v2966, 1
        %vm2999 = vcmp.eq.s32.totalorder %v2967, 1
        %vm3000 = vcmp.eq.s32.totalorder %v2968, 1
        %vm3001 = vcmp.eq.s32.totalorder %v2969, 1
        %vm3002 = vcmp.eq.s32.totalorder %v2970, 1
        %vm3003 = vcmp.eq.s32.totalorder %v2971, 1
        %vm3004 = vcmp.eq.s32.totalorder %v2972, 1
        %vm3005 = vcmp.eq.s32.totalorder %v2973, 1
        %vm3006 = vcmp.eq.s32.totalorder %v2974, 1
        %vm3007 = vcmp.eq.s32.totalorder %v2975, 1
        %vm3008 = vcmp.eq.s32.totalorder %v2976, 1
        %vm3009 = vcmp.eq.s32.totalorder %v2977, 1
        %vm3010 = vcmp.eq.s32.totalorder %v2978, 1
        %vm3011 = vcmp.eq.s32.totalorder %v2979, 1
        %vm3012 = vcmp.eq.s32.totalorder %v2980, 1
        %vm3013 = vcmp.eq.s32.totalorder %v2981, 1
        %vm3014 = vcmp.eq.s32.totalorder %v2982, 1
        %vm3015 = vcmp.eq.s32.totalorder %v2983, 1
        %vm3016 = vcmp.eq.s32.totalorder %v2984, 1
        %vm3017 = vcmp.eq.s32.totalorder %v2985, 1
        %vm3018 = vcmp.eq.s32.totalorder %v2986, 1
        %vm3019 = vcmp.eq.s32.totalorder %v2987, 1
        %vm3020 = vcmp.eq.s32.totalorder %v2988, 1
        %vm3021 = vcmp.eq.s32.totalorder %v2989, 1
        %vm3022 = vcmp.eq.s32.totalorder %v2990, 1
        %vm3023 = vcmp.eq.s32.totalorder %v2991, 1
        %vm3024 = vcmp.eq.s32.totalorder %v2992, 1
        %v3025 = vsel %vm2993, 0.0, %v2829
        %v3026 = vsel %vm2993, 0.0, %v2831
        %v3027 = vsel %vm2993, 0.0, %v2897
        %v3028 = vsel %vm2994, 0.0, %v2830
        %v3029 = vsel %vm2994, 0.0, %v2832
        %v3030 = vsel %vm2994, 0.0, %v2898
        %v3031 = vsel %vm2995, 0.0, %v2831
        %v3032 = vsel %vm2995, 0.0, %v2833
        %v3033 = vsel %vm2995, 0.0, %v2899
        %v3034 = vsel %vm2996, 0.0, %v2832
        %v3035 = vsel %vm2996, 0.0, %v2834
        %v3036 = vsel %vm2996, 0.0, %v2900
        %v3037 = vsel %vm2997, 0.0, %v2833
        %v3038 = vsel %vm2997, 0.0, %v2835
        %v3039 = vsel %vm2997, 0.0, %v2901
        %v3040 = vsel %vm2998, 0.0, %v2834
        %v3041 = vsel %vm2998, 0.0, %v2836
        %v3042 = vsel %vm2998, 0.0, %v2902
        %v3043 = vsel %vm2999, 0.0, %v2835
        %v3044 = vsel %vm2999, 0.0, %v2837
        %v3045 = vsel %vm2999, 0.0, %v2903
        %v3046 = vsel %vm3000, 0.0, %v2836
        %v3047 = vsel %vm3000, 0.0, %v2838
        %v3048 = vsel %vm3000, 0.0, %v2904
        %v3049 = vsel %vm3001, 0.0, %v2837
        %v3050 = vsel %vm3001, 0.0, %v2839
        %v3051 = vsel %vm3001, 0.0, %v2905
        %v3052 = vsel %vm3002, 0.0, %v2838
        %v3053 = vsel %vm3002, 0.0, %v2840
        %v3054 = vsel %vm3002, 0.0, %v2906
        %v3055 = vsel %vm3003, 0.0, %v2839
        %v3056 = vsel %vm3003, 0.0, %v2841
        %v3057 = vsel %vm3003, 0.0, %v2907
        %v3058 = vsel %vm3004, 0.0, %v2840
        %v3059 = vsel %vm3004, 0.0, %v2842
        %v3060 = vsel %vm3004, 0.0, %v2908
        %v3061 = vsel %vm3005, 0.0, %v2841
        %v3062 = vsel %vm3005, 0.0, %v2843
        %v3063 = vsel %vm3005, 0.0, %v2909
        %v3064 = vsel %vm3006, 0.0, %v2842
        %v3065 = vsel %vm3006, 0.0, %v2844
        %v3066 = vsel %vm3006, 0.0, %v2910
        %v3067 = vsel %vm3007, 0.0, %v2843
        %v3068 = vsel %vm3007, 0.0, %v2845
        %v3069 = vsel %vm3007, 0.0, %v2911
        %v3070 = vsel %vm3008, 0.0, %v2844
        %v3071 = vsel %vm3008, 0.0, %v2846
        %v3072 = vsel %vm3008, 0.0, %v2912
        %v3073 = vsel %vm3009, 0.0, %v2845
        %v3074 = vsel %vm3009, 0.0, %v2847
        %v3075 = vsel %vm3009, 0.0, %v2913
        %v3076 = vsel %vm3010, 0.0, %v2846
        %v3077 = vsel %vm3010, 0.0, %v2848
        %v3078 = vsel %vm3010, 0.0, %v2914
        %v3079 = vsel %vm3011, 0.0, %v2847
        %v3080 = vsel %vm3011, 0.0, %v2849
        %v3081 = vsel %vm3011, 0.0, %v2915
        %v3082 = vsel %vm3012, 0.0, %v2848
        %v3083 = vsel %vm3012, 0.0, %v2850
        %v3084 = vsel %vm3012, 0.0, %v2916
        %v3085 = vsel %vm3013, 0.0, %v2849
        %v3086 = vsel %vm3013, 0.0, %v2851
        %v3087 = vsel %vm3013, 0.0, %v2917
        %v3088 = vsel %vm3014, 0.0, %v2850
        %v3089 = vsel %vm3014, 0.0, %v2852
        %v3090 = vsel %vm3014, 0.0, %v2918
        %v3091 = vsel %vm3015, 0.0, %v2851
        %v3092 = vsel %vm3015, 0.0, %v2853
        %v3093 = vsel %vm3015, 0.0, %v2919
        %v3094 = vsel %vm3016, 0.0, %v2852
        %v3095 = vsel %vm3016, 0.0, %v2854
        %v3096 = vsel %vm3016, 0.0, %v2920
        %v3097 = vsel %vm3017, 0.0, %v2853
        %v3098 = vsel %vm3017, 0.0, %v2855
        %v3099 = vsel %vm3017, 0.0, %v2921
        %v3100 = vsel %vm3018, 0.0, %v2854
        %v3101 = vsel %vm3018, 0.0, %v2856
        %v3102 = vsel %vm3018, 0.0, %v2922
        %v3103 = vsel %vm3019, 0.0, %v2855
        %v3104 = vsel %vm3019, 0.0, %v2857
        %v3105 = vsel %vm3019, 0.0, %v2923
        %v3106 = vsel %vm3020, 0.0, %v2856
        %v3107 = vsel %vm3020, 0.0, %v2858
        %v3108 = vsel %vm3020, 0.0, %v2924
        %v3109 = vsel %vm3021, 0.0, %v2857
        %v3110 = vsel %vm3021, 0.0, %v2859
        %v3111 = vsel %vm3021, 0.0, %v2925
        %v3112 = vsel %vm3022, 0.0, %v2858
        %v3113 = vsel %vm3022, 0.0, %v2860
        %v3114 = vsel %vm3022, 0.0, %v2926
        %v3115 = vsel %vm3023, 0.0, %v2859
        %v3116 = vsel %vm3023, 0.0, %v2893
        %v3117 = vsel %vm3023, 0.0, %v2927
        %v3118 = vsel %vm3024, 0.0, %v2860
        %v3119 = vsel %vm3024, 0.0, %v2894
        %v3120 = vsel %vm3024, 0.0, %v2928
        %v3121 = vsel %vm2993, 0.0, %v2861
        %v3122 = vsel %vm2993, 0.0, %v2863
        %v3123 = vsel %vm2993, 0.0, %v2929
        %v3124 = vsel %vm2994, 0.0, %v2862
        %v3125 = vsel %vm2994, 0.0, %v2864
        %v3126 = vsel %vm2994, 0.0, %v2930
        %v3127 = vsel %vm2995, 0.0, %v2863
        %v3128 = vsel %vm2995, 0.0, %v2865
        %v3129 = vsel %vm2995, 0.0, %v2931
        %v3130 = vsel %vm2996, 0.0, %v2864
        %v3131 = vsel %vm2996, 0.0, %v2866
        %v3132 = vsel %vm2996, 0.0, %v2932
        %v3133 = vsel %vm2997, 0.0, %v2865
        %v3134 = vsel %vm2997, 0.0, %v2867
        %v3135 = vsel %vm2997, 0.0, %v2933
        %v3136 = vsel %vm2998, 0.0, %v2866
        %v3137 = vsel %vm2998, 0.0, %v2868
        %v3138 = vsel %vm2998, 0.0, %v2934
        %v3139 = vsel %vm2999, 0.0, %v2867
        %v3140 = vsel %vm2999, 0.0, %v2869
        %v3141 = vsel %vm2999, 0.0, %v2935
        %v3142 = vsel %vm3000, 0.0, %v2868
        %v3143 = vsel %vm3000, 0.0, %v2870
        %v3144 = vsel %vm3000, 0.0, %v2936
        %v3145 = vsel %vm3001, 0.0, %v2869
        %v3146 = vsel %vm3001, 0.0, %v2871
        %v3147 = vsel %vm3001, 0.0, %v2937
        %v3148 = vsel %vm3002, 0.0, %v2870
        %v3149 = vsel %vm3002, 0.0, %v2872
        %v3150 = vsel %vm3002, 0.0, %v2938
        %v3151 = vsel %vm3003, 0.0, %v2871
        %v3152 = vsel %vm3003, 0.0, %v2873
        %v3153 = vsel %vm3003, 0.0, %v2939
        %v3154 = vsel %vm3004, 0.0, %v2872
        %v3155 = vsel %vm3004, 0.0, %v2874
        %v3156 = vsel %vm3004, 0.0, %v2940
        %v3157 = vsel %vm3005, 0.0, %v2873
        %v3158 = vsel %vm3005, 0.0, %v2875
        %v3159 = vsel %vm3005, 0.0, %v2941
        %v3160 = vsel %vm3006, 0.0, %v2874
        %v3161 = vsel %vm3006, 0.0, %v2876
        %v3162 = vsel %vm3006, 0.0, %v2942
        %v3163 = vsel %vm3007, 0.0, %v2875
        %v3164 = vsel %vm3007, 0.0, %v2877
        %v3165 = vsel %vm3007, 0.0, %v2943
        %v3166 = vsel %vm3008, 0.0, %v2876
        %v3167 = vsel %vm3008, 0.0, %v2878
        %v3168 = vsel %vm3008, 0.0, %v2944
        %v3169 = vsel %vm3009, 0.0, %v2877
        %v3170 = vsel %vm3009, 0.0, %v2879
        %v3171 = vsel %vm3009, 0.0, %v2945
        %v3172 = vsel %vm3010, 0.0, %v2878
        %v3173 = vsel %vm3010, 0.0, %v2880
        %v3174 = vsel %vm3010, 0.0, %v2946
        %v3175 = vsel %vm3011, 0.0, %v2879
        %v3176 = vsel %vm3011, 0.0, %v2881
        %v3177 = vsel %vm3011, 0.0, %v2947
        %v3178 = vsel %vm3012, 0.0, %v2880
        %v3179 = vsel %vm3012, 0.0, %v2882
        %v3180 = vsel %vm3012, 0.0, %v2948
        %v3181 = vsel %vm3013, 0.0, %v2881
        %v3182 = vsel %vm3013, 0.0, %v2883
        %v3183 = vsel %vm3013, 0.0, %v2949
        %v3184 = vsel %vm3014, 0.0, %v2882
        %v3185 = vsel %vm3014, 0.0, %v2884
        %v3186 = vsel %vm3014, 0.0, %v2950
        %v3187 = vsel %vm3015, 0.0, %v2883
        %v3188 = vsel %vm3015, 0.0, %v2885
        %v3189 = vsel %vm3015, 0.0, %v2951
        %v3190 = vsel %vm3016, 0.0, %v2884
        %v3191 = vsel %vm3016, 0.0, %v2886
        %v3192 = vsel %vm3016, 0.0, %v2952
        %v3193 = vsel %vm3017, 0.0, %v2885
        %v3194 = vsel %vm3017, 0.0, %v2887
        %v3195 = vsel %vm3017, 0.0, %v2953
        %v3196 = vsel %vm3018, 0.0, %v2886
        %v3197 = vsel %vm3018, 0.0, %v2888
        %v3198 = vsel %vm3018, 0.0, %v2954
        %v3199 = vsel %vm3019, 0.0, %v2887
        %v3200 = vsel %vm3019, 0.0, %v2889
        %v3201 = vsel %vm3019, 0.0, %v2955
        %v3202 = vsel %vm3020, 0.0, %v2888
        %v3203 = vsel %vm3020, 0.0, %v2890
        %v3204 = vsel %vm3020, 0.0, %v2956
        %v3205 = vsel %vm3021, 0.0, %v2889
        %v3206 = vsel %vm3021, 0.0, %v2891
        %v3207 = vsel %vm3021, 0.0, %v2957
        %v3208 = vsel %vm3022, 0.0, %v2890
        %v3209 = vsel %vm3022, 0.0, %v2892
        %v3210 = vsel %vm3022, 0.0, %v2958
        %v3211 = vsel %vm3023, 0.0, %v2891
        %v3212 = vsel %vm3023, 0.0, %v2895
        %v3213 = vsel %vm3023, 0.0, %v2959
        %v3214 = vsel %vm3024, 0.0, %v2892
        %v3215 = vsel %vm3024, 0.0, %v2896
        %v3216 = vsel %vm3024, 0.0, %v2960
        %s3217 = scalar_lea.vmem %s227, 768 [#allocation6]
        %v3218 = vld [vmem:[%s3217] sm:$0xff]
        %v3219 = vld [vmem:[%s3217 + $0x8] sm:$0xff]
        %v3220 = vld [vmem:[%s3217 + $0x10] sm:$0xff]
        %v3221 = vld [vmem:[%s3217 + $0x18] sm:$0xff]
        %v3222 = vld [vmem:[%s3217 + $0x20] sm:$0xff]
        %v3223 = vld [vmem:[%s3217 + $0x28] sm:$0xff]
        %v3224 = vld [vmem:[%s3217 + $0x30] sm:$0xff]
        %v3225 = vld [vmem:[%s3217 + $0x38] sm:$0xff]
        %v3226 = vld [vmem:[%s3217 + $0x40] sm:$0xff]
        %v3227 = vld [vmem:[%s3217 + $0x48] sm:$0xff]
        %v3228 = vld [vmem:[%s3217 + $0x50] sm:$0xff]
        %v3229 = vld [vmem:[%s3217 + $0x58] sm:$0xff]
        %v3230 = vld [vmem:[%s3217 + $0x60] sm:$0xff]
        %v3231 = vld [vmem:[%s3217 + $0x68] sm:$0xff]
        %v3232 = vld [vmem:[%s3217 + $0x70] sm:$0xff]
        %v3233 = vld [vmem:[%s3217 + $0x78] sm:$0xff]
        %v3234 = vld [vmem:[%s3217 + $0x80] sm:$0xff]
        %v3235 = vld [vmem:[%s3217 + $0x88] sm:$0xff]
        %v3236 = vld [vmem:[%s3217 + $0x90] sm:$0xff]
        %v3237 = vld [vmem:[%s3217 + $0x98] sm:$0xff]
        %v3238 = vld [vmem:[%s3217 + $0xa0] sm:$0xff]
        %v3239 = vld [vmem:[%s3217 + $0xa8] sm:$0xff]
        %v3240 = vld [vmem:[%s3217 + $0xb0] sm:$0xff]
        %v3241 = vld [vmem:[%s3217 + $0xb8] sm:$0xff]
        %v3242 = vld [vmem:[%s3217 + $0xc0] sm:$0xff]
        %v3243 = vld [vmem:[%s3217 + $0xc8] sm:$0xff]
        %v3244 = vld [vmem:[%s3217 + $0xd0] sm:$0xff]
        %v3245 = vld [vmem:[%s3217 + $0xd8] sm:$0xff]
        %v3246 = vld [vmem:[%s3217 + $0xe0] sm:$0xff]
        %v3247 = vld [vmem:[%s3217 + $0xe8] sm:$0xff]
        %v3248 = vld [vmem:[%s3217 + $0xf0] sm:$0xff]
        %v3249 = vld [vmem:[%s3217 + $0xf8] sm:$0xff]
        %v3250 = vld [vmem:[%s3217 + $0x100] sm:$0xff]
        %v3251 = vld [vmem:[%s3217 + $0x108] sm:$0xff]
        %v3252 = vld [vmem:[%s3217 + $0x110] sm:$0xff]
        %v3253 = vld [vmem:[%s3217 + $0x118] sm:$0xff]
        %v3254 = vld [vmem:[%s3217 + $0x120] sm:$0xff]
        %v3255 = vld [vmem:[%s3217 + $0x128] sm:$0xff]
        %v3256 = vld [vmem:[%s3217 + $0x130] sm:$0xff]
        %v3257 = vld [vmem:[%s3217 + $0x138] sm:$0xff]
        %v3258 = vld [vmem:[%s3217 + $0x140] sm:$0xff]
        %v3259 = vld [vmem:[%s3217 + $0x148] sm:$0xff]
        %v3260 = vld [vmem:[%s3217 + $0x150] sm:$0xff]
        %v3261 = vld [vmem:[%s3217 + $0x158] sm:$0xff]
        %v3262 = vld [vmem:[%s3217 + $0x160] sm:$0xff]
        %v3263 = vld [vmem:[%s3217 + $0x168] sm:$0xff]
        %v3264 = vld [vmem:[%s3217 + $0x170] sm:$0xff]
        %v3265 = vld [vmem:[%s3217 + $0x178] sm:$0xff]
        %3266 = vmatpush.msra.mxu0 %v3233
        %3267 = vmatpush.msra.mxu0 %v3232
        %3268 = vmatpush.msra.mxu0 %v3231
        %3269 = vmatpush.msra.mxu0 %v3230
        %3270 = vmatpush.msra.mxu0 %v3229
        %3271 = vmatpush.msra.mxu0 %v3228
        %3272 = vmatpush.msra.mxu0 %v3227
        %3273 = vmatpush.msra.mxu0 %v3226
        %3274 = vmatpush.msra.mxu0 %v3225
        %3275 = vmatpush.msra.mxu0 %v3224
        %3276 = vmatpush.msra.mxu0 %v3223
        %3277 = vmatpush.msra.mxu0 %v3222
        %3278 = vmatpush.msra.mxu0 %v3221
        %3279 = vmatpush.msra.mxu0 %v3220
        %3280 = vmatpush.msra.mxu0 %v3219
        %3281 = vmatpush.msra.mxu0 %v3218
        %3282 = vmatmul.f32.gmra.mxu0 %v3025
        %v3283 = vpop.f32.mrf.mxu0
        %v3284 = vadd.f32 0.0, %v3283
        %3285 = vmatmul.f32.gmra.mxu0 %v3028
        %v3286 = vpop.f32.mrf.mxu0
        %v3287 = vadd.f32 0.0, %v3286
        %3288 = vmatmul.f32.gmra.mxu0 %v3031
        %v3289 = vpop.f32.mrf.mxu0
        %v3290 = vadd.f32 0.0, %v3289
        %3291 = vmatmul.f32.gmra.mxu0 %v3034
        %v3292 = vpop.f32.mrf.mxu0
        %v3293 = vadd.f32 0.0, %v3292
        %3294 = vmatmul.f32.gmra.mxu0 %v3037
        %v3295 = vpop.f32.mrf.mxu0
        %v3296 = vadd.f32 0.0, %v3295
        %3297 = vmatmul.f32.gmra.mxu0 %v3040
        %v3298 = vpop.f32.mrf.mxu0
        %v3299 = vadd.f32 0.0, %v3298
        %3300 = vmatmul.f32.gmra.mxu0 %v3043
        %v3301 = vpop.f32.mrf.mxu0
        %v3302 = vadd.f32 0.0, %v3301
        %3303 = vmatmul.f32.gmra.mxu0 %v3046
        %v3304 = vpop.f32.mrf.mxu0
        %v3305 = vadd.f32 0.0, %v3304
        %3306 = vmatmul.f32.gmra.mxu0 %v3049
        %v3307 = vpop.f32.mrf.mxu0
        %v3308 = vadd.f32 0.0, %v3307
        %3309 = vmatmul.f32.gmra.mxu0 %v3052
        %v3310 = vpop.f32.mrf.mxu0
        %v3311 = vadd.f32 0.0, %v3310
        %3312 = vmatmul.f32.gmra.mxu0 %v3055
        %v3313 = vpop.f32.mrf.mxu0
        %v3314 = vadd.f32 0.0, %v3313
        %3315 = vmatmul.f32.gmra.mxu0 %v3058
        %v3316 = vpop.f32.mrf.mxu0
        %v3317 = vadd.f32 0.0, %v3316
        %3318 = vmatmul.f32.gmra.mxu0 %v3061
        %v3319 = vpop.f32.mrf.mxu0
        %v3320 = vadd.f32 0.0, %v3319
        %3321 = vmatmul.f32.gmra.mxu0 %v3064
        %v3322 = vpop.f32.mrf.mxu0
        %v3323 = vadd.f32 0.0, %v3322
        %3324 = vmatmul.f32.gmra.mxu0 %v3067
        %v3325 = vpop.f32.mrf.mxu0
        %v3326 = vadd.f32 0.0, %v3325
        %3327 = vmatmul.f32.gmra.mxu0 %v3070
        %v3328 = vpop.f32.mrf.mxu0
        %v3329 = vadd.f32 0.0, %v3328
        %3330 = vmatmul.f32.gmra.mxu0 %v3073
        %v3331 = vpop.f32.mrf.mxu0
        %v3332 = vadd.f32 0.0, %v3331
        %3333 = vmatmul.f32.gmra.mxu0 %v3076
        %v3334 = vpop.f32.mrf.mxu0
        %v3335 = vadd.f32 0.0, %v3334
        %3336 = vmatmul.f32.gmra.mxu0 %v3079
        %v3337 = vpop.f32.mrf.mxu0
        %v3338 = vadd.f32 0.0, %v3337
        %3339 = vmatmul.f32.gmra.mxu0 %v3082
        %v3340 = vpop.f32.mrf.mxu0
        %v3341 = vadd.f32 0.0, %v3340
        %3342 = vmatmul.f32.gmra.mxu0 %v3085
        %v3343 = vpop.f32.mrf.mxu0
        %v3344 = vadd.f32 0.0, %v3343
        %3345 = vmatmul.f32.gmra.mxu0 %v3088
        %v3346 = vpop.f32.mrf.mxu0
        %v3347 = vadd.f32 0.0, %v3346
        %3348 = vmatmul.f32.gmra.mxu0 %v3091
        %v3349 = vpop.f32.mrf.mxu0
        %v3350 = vadd.f32 0.0, %v3349
        %3351 = vmatmul.f32.gmra.mxu0 %v3094
        %v3352 = vpop.f32.mrf.mxu0
        %v3353 = vadd.f32 0.0, %v3352
        %3354 = vmatmul.f32.gmra.mxu0 %v3097
        %v3355 = vpop.f32.mrf.mxu0
        %v3356 = vadd.f32 0.0, %v3355
        %3357 = vmatmul.f32.gmra.mxu0 %v3100
        %v3358 = vpop.f32.mrf.mxu0
        %v3359 = vadd.f32 0.0, %v3358
        %3360 = vmatmul.f32.gmra.mxu0 %v3103
        %v3361 = vpop.f32.mrf.mxu0
        %v3362 = vadd.f32 0.0, %v3361
        %3363 = vmatmul.f32.gmra.mxu0 %v3106
        %v3364 = vpop.f32.mrf.mxu0
        %v3365 = vadd.f32 0.0, %v3364
        %3366 = vmatmul.f32.gmra.mxu0 %v3109
        %v3367 = vpop.f32.mrf.mxu0
        %v3368 = vadd.f32 0.0, %v3367
        %3369 = vmatmul.f32.gmra.mxu0 %v3112
        %v3370 = vpop.f32.mrf.mxu0
        %v3371 = vadd.f32 0.0, %v3370
        %3372 = vmatmul.f32.gmra.mxu0 %v3115
        %v3373 = vpop.f32.mrf.mxu0
        %v3374 = vadd.f32 0.0, %v3373
        %3375 = vmatmul.f32.gmra.mxu0 %v3118
        %v3376 = vpop.f32.mrf.mxu0
        %v3377 = vadd.f32 0.0, %v3376
        %3378 = vmatmul.f32.gmra.mxu0 %v3121
        %v3379 = vpop.f32.mrf.mxu0
        %v3380 = vadd.f32 0.0, %v3379
        %3381 = vmatmul.f32.gmra.mxu0 %v3124
        %v3382 = vpop.f32.mrf.mxu0
        %v3383 = vadd.f32 0.0, %v3382
        %3384 = vmatmul.f32.gmra.mxu0 %v3127
        %v3385 = vpop.f32.mrf.mxu0
        %v3386 = vadd.f32 0.0, %v3385
        %3387 = vmatmul.f32.gmra.mxu0 %v3130
        %v3388 = vpop.f32.mrf.mxu0
        %v3389 = vadd.f32 0.0, %v3388
        %3390 = vmatmul.f32.gmra.mxu0 %v3133
        %v3391 = vpop.f32.mrf.mxu0
        %v3392 = vadd.f32 0.0, %v3391
        %3393 = vmatmul.f32.gmra.mxu0 %v3136
        %v3394 = vpop.f32.mrf.mxu0
        %v3395 = vadd.f32 0.0, %v3394
        %3396 = vmatmul.f32.gmra.mxu0 %v3139
        %v3397 = vpop.f32.mrf.mxu0
        %v3398 = vadd.f32 0.0, %v3397
        %3399 = vmatmul.f32.gmra.mxu0 %v3142
        %v3400 = vpop.f32.mrf.mxu0
        %v3401 = vadd.f32 0.0, %v3400
        %3402 = vmatmul.f32.gmra.mxu0 %v3145
        %v3403 = vpop.f32.mrf.mxu0
        %v3404 = vadd.f32 0.0, %v3403
        %3405 = vmatmul.f32.gmra.mxu0 %v3148
        %v3406 = vpop.f32.mrf.mxu0
        %v3407 = vadd.f32 0.0, %v3406
        %3408 = vmatmul.f32.gmra.mxu0 %v3151
        %v3409 = vpop.f32.mrf.mxu0
        %v3410 = vadd.f32 0.0, %v3409
        %3411 = vmatmul.f32.gmra.mxu0 %v3154
        %v3412 = vpop.f32.mrf.mxu0
        %v3413 = vadd.f32 0.0, %v3412
        %3414 = vmatmul.f32.gmra.mxu0 %v3157
        %v3415 = vpop.f32.mrf.mxu0
        %v3416 = vadd.f32 0.0, %v3415
        %3417 = vmatmul.f32.gmra.mxu0 %v3160
        %v3418 = vpop.f32.mrf.mxu0
        %v3419 = vadd.f32 0.0, %v3418
        %3420 = vmatmul.f32.gmra.mxu0 %v3163
        %v3421 = vpop.f32.mrf.mxu0
        %v3422 = vadd.f32 0.0, %v3421
        %3423 = vmatmul.f32.gmra.mxu0 %v3166
        %v3424 = vpop.f32.mrf.mxu0
        %v3425 = vadd.f32 0.0, %v3424
        %3426 = vmatmul.f32.gmra.mxu0 %v3169
        %v3427 = vpop.f32.mrf.mxu0
        %v3428 = vadd.f32 0.0, %v3427
        %3429 = vmatmul.f32.gmra.mxu0 %v3172
        %v3430 = vpop.f32.mrf.mxu0
        %v3431 = vadd.f32 0.0, %v3430
        %3432 = vmatmul.f32.gmra.mxu0 %v3175
        %v3433 = vpop.f32.mrf.mxu0
        %v3434 = vadd.f32 0.0, %v3433
        %3435 = vmatmul.f32.gmra.mxu0 %v3178
        %v3436 = vpop.f32.mrf.mxu0
        %v3437 = vadd.f32 0.0, %v3436
        %3438 = vmatmul.f32.gmra.mxu0 %v3181
        %v3439 = vpop.f32.mrf.mxu0
        %v3440 = vadd.f32 0.0, %v3439
        %3441 = vmatmul.f32.gmra.mxu0 %v3184
        %v3442 = vpop.f32.mrf.mxu0
        %v3443 = vadd.f32 0.0, %v3442
        %3444 = vmatmul.f32.gmra.mxu0 %v3187
        %v3445 = vpop.f32.mrf.mxu0
        %v3446 = vadd.f32 0.0, %v3445
        %3447 = vmatmul.f32.gmra.mxu0 %v3190
        %v3448 = vpop.f32.mrf.mxu0
        %v3449 = vadd.f32 0.0, %v3448
        %3450 = vmatmul.f32.gmra.mxu0 %v3193
        %v3451 = vpop.f32.mrf.mxu0
        %v3452 = vadd.f32 0.0, %v3451
        %3453 = vmatmul.f32.gmra.mxu0 %v3196
        %v3454 = vpop.f32.mrf.mxu0
        %v3455 = vadd.f32 0.0, %v3454
        %3456 = vmatmul.f32.gmra.mxu0 %v3199
        %v3457 = vpop.f32.mrf.mxu0
        %v3458 = vadd.f32 0.0, %v3457
        %3459 = vmatmul.f32.gmra.mxu0 %v3202
        %v3460 = vpop.f32.mrf.mxu0
        %v3461 = vadd.f32 0.0, %v3460
        %3462 = vmatmul.f32.gmra.mxu0 %v3205
        %v3463 = vpop.f32.mrf.mxu0
        %v3464 = vadd.f32 0.0, %v3463
        %3465 = vmatmul.f32.gmra.mxu0 %v3208
        %v3466 = vpop.f32.mrf.mxu0
        %v3467 = vadd.f32 0.0, %v3466
        %3468 = vmatmul.f32.gmra.mxu0 %v3211
        %v3469 = vpop.f32.mrf.mxu0
        %v3470 = vadd.f32 0.0, %v3469
        %3471 = vmatmul.f32.gmra.mxu0 %v3214
        %v3472 = vpop.f32.mrf.mxu0
        %v3473 = vadd.f32 0.0, %v3472
        %3474 = vdwg.mxu0
        %3475 = vmatpush.msra.mxu0 %v3249
        %3476 = vmatpush.msra.mxu0 %v3248
        %3477 = vmatpush.msra.mxu0 %v3247
        %3478 = vmatpush.msra.mxu0 %v3246
        %3479 = vmatpush.msra.mxu0 %v3245
        %3480 = vmatpush.msra.mxu0 %v3244
        %3481 = vmatpush.msra.mxu0 %v3243
        %3482 = vmatpush.msra.mxu0 %v3242
        %3483 = vmatpush.msra.mxu0 %v3241
        %3484 = vmatpush.msra.mxu0 %v3240
        %3485 = vmatpush.msra.mxu0 %v3239
        %3486 = vmatpush.msra.mxu0 %v3238
        %3487 = vmatpush.msra.mxu0 %v3237
        %3488 = vmatpush.msra.mxu0 %v3236
        %3489 = vmatpush.msra.mxu0 %v3235
        %3490 = vmatpush.msra.mxu0 %v3234
        %3491 = vmatmul.f32.gmra.mxu0 %v3026
        %v3492 = vpop.f32.mrf.mxu0
        %v3493 = vadd.f32 %v3284, %v3492
        %3494 = vmatmul.f32.gmra.mxu0 %v3029
        %v3495 = vpop.f32.mrf.mxu0
        %v3496 = vadd.f32 %v3287, %v3495
        %3497 = vmatmul.f32.gmra.mxu0 %v3032
        %v3498 = vpop.f32.mrf.mxu0
        %v3499 = vadd.f32 %v3290, %v3498
        %3500 = vmatmul.f32.gmra.mxu0 %v3035
        %v3501 = vpop.f32.mrf.mxu0
        %v3502 = vadd.f32 %v3293, %v3501
        %3503 = vmatmul.f32.gmra.mxu0 %v3038
        %v3504 = vpop.f32.mrf.mxu0
        %v3505 = vadd.f32 %v3296, %v3504
        %3506 = vmatmul.f32.gmra.mxu0 %v3041
        %v3507 = vpop.f32.mrf.mxu0
        %v3508 = vadd.f32 %v3299, %v3507
        %3509 = vmatmul.f32.gmra.mxu0 %v3044
        %v3510 = vpop.f32.mrf.mxu0
        %v3511 = vadd.f32 %v3302, %v3510
        %3512 = vmatmul.f32.gmra.mxu0 %v3047
        %v3513 = vpop.f32.mrf.mxu0
        %v3514 = vadd.f32 %v3305, %v3513
        %3515 = vmatmul.f32.gmra.mxu0 %v3050
        %v3516 = vpop.f32.mrf.mxu0
        %v3517 = vadd.f32 %v3308, %v3516
        %3518 = vmatmul.f32.gmra.mxu0 %v3053
        %v3519 = vpop.f32.mrf.mxu0
        %v3520 = vadd.f32 %v3311, %v3519
        %3521 = vmatmul.f32.gmra.mxu0 %v3056
        %v3522 = vpop.f32.mrf.mxu0
        %v3523 = vadd.f32 %v3314, %v3522
        %3524 = vmatmul.f32.gmra.mxu0 %v3059
        %v3525 = vpop.f32.mrf.mxu0
        %v3526 = vadd.f32 %v3317, %v3525
        %3527 = vmatmul.f32.gmra.mxu0 %v3062
        %v3528 = vpop.f32.mrf.mxu0
        %v3529 = vadd.f32 %v3320, %v3528
        %3530 = vmatmul.f32.gmra.mxu0 %v3065
        %v3531 = vpop.f32.mrf.mxu0
        %v3532 = vadd.f32 %v3323, %v3531
        %3533 = vmatmul.f32.gmra.mxu0 %v3068
        %v3534 = vpop.f32.mrf.mxu0
        %v3535 = vadd.f32 %v3326, %v3534
        %3536 = vmatmul.f32.gmra.mxu0 %v3071
        %v3537 = vpop.f32.mrf.mxu0
        %v3538 = vadd.f32 %v3329, %v3537
        %3539 = vmatmul.f32.gmra.mxu0 %v3074
        %v3540 = vpop.f32.mrf.mxu0
        %v3541 = vadd.f32 %v3332, %v3540
        %3542 = vmatmul.f32.gmra.mxu0 %v3077
        %v3543 = vpop.f32.mrf.mxu0
        %v3544 = vadd.f32 %v3335, %v3543
        %3545 = vmatmul.f32.gmra.mxu0 %v3080
        %v3546 = vpop.f32.mrf.mxu0
        %v3547 = vadd.f32 %v3338, %v3546
        %3548 = vmatmul.f32.gmra.mxu0 %v3083
        %v3549 = vpop.f32.mrf.mxu0
        %v3550 = vadd.f32 %v3341, %v3549
        %3551 = vmatmul.f32.gmra.mxu0 %v3086
        %v3552 = vpop.f32.mrf.mxu0
        %v3553 = vadd.f32 %v3344, %v3552
        %3554 = vmatmul.f32.gmra.mxu0 %v3089
        %v3555 = vpop.f32.mrf.mxu0
        %v3556 = vadd.f32 %v3347, %v3555
        %3557 = vmatmul.f32.gmra.mxu0 %v3092
        %v3558 = vpop.f32.mrf.mxu0
        %v3559 = vadd.f32 %v3350, %v3558
        %3560 = vmatmul.f32.gmra.mxu0 %v3095
        %v3561 = vpop.f32.mrf.mxu0
        %v3562 = vadd.f32 %v3353, %v3561
        %3563 = vmatmul.f32.gmra.mxu0 %v3098
        %v3564 = vpop.f32.mrf.mxu0
        %v3565 = vadd.f32 %v3356, %v3564
        %3566 = vmatmul.f32.gmra.mxu0 %v3101
        %v3567 = vpop.f32.mrf.mxu0
        %v3568 = vadd.f32 %v3359, %v3567
        %3569 = vmatmul.f32.gmra.mxu0 %v3104
        %v3570 = vpop.f32.mrf.mxu0
        %v3571 = vadd.f32 %v3362, %v3570
        %3572 = vmatmul.f32.gmra.mxu0 %v3107
        %v3573 = vpop.f32.mrf.mxu0
        %v3574 = vadd.f32 %v3365, %v3573
        %3575 = vmatmul.f32.gmra.mxu0 %v3110
        %v3576 = vpop.f32.mrf.mxu0
        %v3577 = vadd.f32 %v3368, %v3576
        %3578 = vmatmul.f32.gmra.mxu0 %v3113
        %v3579 = vpop.f32.mrf.mxu0
        %v3580 = vadd.f32 %v3371, %v3579
        %3581 = vmatmul.f32.gmra.mxu0 %v3116
        %v3582 = vpop.f32.mrf.mxu0
        %v3583 = vadd.f32 %v3374, %v3582
        %3584 = vmatmul.f32.gmra.mxu0 %v3119
        %v3585 = vpop.f32.mrf.mxu0
        %v3586 = vadd.f32 %v3377, %v3585
        %3587 = vmatmul.f32.gmra.mxu0 %v3122
        %v3588 = vpop.f32.mrf.mxu0
        %v3589 = vadd.f32 %v3380, %v3588
        %3590 = vmatmul.f32.gmra.mxu0 %v3125
        %v3591 = vpop.f32.mrf.mxu0
        %v3592 = vadd.f32 %v3383, %v3591
        %3593 = vmatmul.f32.gmra.mxu0 %v3128
        %v3594 = vpop.f32.mrf.mxu0
        %v3595 = vadd.f32 %v3386, %v3594
        %3596 = vmatmul.f32.gmra.mxu0 %v3131
        %v3597 = vpop.f32.mrf.mxu0
        %v3598 = vadd.f32 %v3389, %v3597
        %3599 = vmatmul.f32.gmra.mxu0 %v3134
        %v3600 = vpop.f32.mrf.mxu0
        %v3601 = vadd.f32 %v3392, %v3600
        %3602 = vmatmul.f32.gmra.mxu0 %v3137
        %v3603 = vpop.f32.mrf.mxu0
        %v3604 = vadd.f32 %v3395, %v3603
        %3605 = vmatmul.f32.gmra.mxu0 %v3140
        %v3606 = vpop.f32.mrf.mxu0
        %v3607 = vadd.f32 %v3398, %v3606
        %3608 = vmatmul.f32.gmra.mxu0 %v3143
        %v3609 = vpop.f32.mrf.mxu0
        %v3610 = vadd.f32 %v3401, %v3609
        %3611 = vmatmul.f32.gmra.mxu0 %v3146
        %v3612 = vpop.f32.mrf.mxu0
        %v3613 = vadd.f32 %v3404, %v3612
        %3614 = vmatmul.f32.gmra.mxu0 %v3149
        %v3615 = vpop.f32.mrf.mxu0
        %v3616 = vadd.f32 %v3407, %v3615
        %3617 = vmatmul.f32.gmra.mxu0 %v3152
        %v3618 = vpop.f32.mrf.mxu0
        %v3619 = vadd.f32 %v3410, %v3618
        %3620 = vmatmul.f32.gmra.mxu0 %v3155
        %v3621 = vpop.f32.mrf.mxu0
        %v3622 = vadd.f32 %v3413, %v3621
        %3623 = vmatmul.f32.gmra.mxu0 %v3158
        %v3624 = vpop.f32.mrf.mxu0
        %v3625 = vadd.f32 %v3416, %v3624
        %3626 = vmatmul.f32.gmra.mxu0 %v3161
        %v3627 = vpop.f32.mrf.mxu0
        %v3628 = vadd.f32 %v3419, %v3627
        %3629 = vmatmul.f32.gmra.mxu0 %v3164
        %v3630 = vpop.f32.mrf.mxu0
        %v3631 = vadd.f32 %v3422, %v3630
        %3632 = vmatmul.f32.gmra.mxu0 %v3167
        %v3633 = vpop.f32.mrf.mxu0
        %v3634 = vadd.f32 %v3425, %v3633
        %3635 = vmatmul.f32.gmra.mxu0 %v3170
        %v3636 = vpop.f32.mrf.mxu0
        %v3637 = vadd.f32 %v3428, %v3636
        %3638 = vmatmul.f32.gmra.mxu0 %v3173
        %v3639 = vpop.f32.mrf.mxu0
        %v3640 = vadd.f32 %v3431, %v3639
        %3641 = vmatmul.f32.gmra.mxu0 %v3176
        %v3642 = vpop.f32.mrf.mxu0
        %v3643 = vadd.f32 %v3434, %v3642
        %3644 = vmatmul.f32.gmra.mxu0 %v3179
        %v3645 = vpop.f32.mrf.mxu0
        %v3646 = vadd.f32 %v3437, %v3645
        %3647 = vmatmul.f32.gmra.mxu0 %v3182
        %v3648 = vpop.f32.mrf.mxu0
        %v3649 = vadd.f32 %v3440, %v3648
        %3650 = vmatmul.f32.gmra.mxu0 %v3185
        %v3651 = vpop.f32.mrf.mxu0
        %v3652 = vadd.f32 %v3443, %v3651
        %3653 = vmatmul.f32.gmra.mxu0 %v3188
        %v3654 = vpop.f32.mrf.mxu0
        %v3655 = vadd.f32 %v3446, %v3654
        %3656 = vmatmul.f32.gmra.mxu0 %v3191
        %v3657 = vpop.f32.mrf.mxu0
        %v3658 = vadd.f32 %v3449, %v3657
        %3659 = vmatmul.f32.gmra.mxu0 %v3194
        %v3660 = vpop.f32.mrf.mxu0
        %v3661 = vadd.f32 %v3452, %v3660
        %3662 = vmatmul.f32.gmra.mxu0 %v3197
        %v3663 = vpop.f32.mrf.mxu0
        %v3664 = vadd.f32 %v3455, %v3663
        %3665 = vmatmul.f32.gmra.mxu0 %v3200
        %v3666 = vpop.f32.mrf.mxu0
        %v3667 = vadd.f32 %v3458, %v3666
        %3668 = vmatmul.f32.gmra.mxu0 %v3203
        %v3669 = vpop.f32.mrf.mxu0
        %v3670 = vadd.f32 %v3461, %v3669
        %3671 = vmatmul.f32.gmra.mxu0 %v3206
        %v3672 = vpop.f32.mrf.mxu0
        %v3673 = vadd.f32 %v3464, %v3672
        %3674 = vmatmul.f32.gmra.mxu0 %v3209
        %v3675 = vpop.f32.mrf.mxu0
        %v3676 = vadd.f32 %v3467, %v3675
        %3677 = vmatmul.f32.gmra.mxu0 %v3212
        %v3678 = vpop.f32.mrf.mxu0
        %v3679 = vadd.f32 %v3470, %v3678
        %3680 = vmatmul.f32.gmra.mxu0 %v3215
        %v3681 = vpop.f32.mrf.mxu0
        %v3682 = vadd.f32 %v3473, %v3681
        %3683 = vdwg.mxu0
        %3684 = vmatpush.msra.mxu0 %v3265
        %3685 = vmatpush.msra.mxu0 %v3264
        %3686 = vmatpush.msra.mxu0 %v3263
        %3687 = vmatpush.msra.mxu0 %v3262
        %3688 = vmatpush.msra.mxu0 %v3261
        %3689 = vmatpush.msra.mxu0 %v3260
        %3690 = vmatpush.msra.mxu0 %v3259
        %3691 = vmatpush.msra.mxu0 %v3258
        %3692 = vmatpush.msra.mxu0 %v3257
        %3693 = vmatpush.msra.mxu0 %v3256
        %3694 = vmatpush.msra.mxu0 %v3255
        %3695 = vmatpush.msra.mxu0 %v3254
        %3696 = vmatpush.msra.mxu0 %v3253
        %3697 = vmatpush.msra.mxu0 %v3252
        %3698 = vmatpush.msra.mxu0 %v3251
        %3699 = vmatpush.msra.mxu0 %v3250
        %3700 = vmatmul.f32.gmra.mxu0 %v3027
        %v3701 = vpop.f32.mrf.mxu0
        %v3702 = vadd.f32 %v3493, %v3701
        %3703 = vmatmul.f32.gmra.mxu0 %v3030
        %v3704 = vpop.f32.mrf.mxu0
        %v3705 = vadd.f32 %v3496, %v3704
        %3706 = vmatmul.f32.gmra.mxu0 %v3033
        %v3707 = vpop.f32.mrf.mxu0
        %v3708 = vadd.f32 %v3499, %v3707
        %3709 = vmatmul.f32.gmra.mxu0 %v3036
        %v3710 = vpop.f32.mrf.mxu0
        %v3711 = vadd.f32 %v3502, %v3710
        %3712 = vmatmul.f32.gmra.mxu0 %v3039
        %v3713 = vpop.f32.mrf.mxu0
        %v3714 = vadd.f32 %v3505, %v3713
        %3715 = vmatmul.f32.gmra.mxu0 %v3042
        %v3716 = vpop.f32.mrf.mxu0
        %v3717 = vadd.f32 %v3508, %v3716
        %3718 = vmatmul.f32.gmra.mxu0 %v3045
        %v3719 = vpop.f32.mrf.mxu0
        %v3720 = vadd.f32 %v3511, %v3719
        %3721 = vmatmul.f32.gmra.mxu0 %v3048
        %v3722 = vpop.f32.mrf.mxu0
        %v3723 = vadd.f32 %v3514, %v3722
        %3724 = vmatmul.f32.gmra.mxu0 %v3051
        %v3725 = vpop.f32.mrf.mxu0
        %v3726 = vadd.f32 %v3517, %v3725
        %3727 = vmatmul.f32.gmra.mxu0 %v3054
        %v3728 = vpop.f32.mrf.mxu0
        %v3729 = vadd.f32 %v3520, %v3728
        %3730 = vmatmul.f32.gmra.mxu0 %v3057
        %v3731 = vpop.f32.mrf.mxu0
        %v3732 = vadd.f32 %v3523, %v3731
        %3733 = vmatmul.f32.gmra.mxu0 %v3060
        %v3734 = vpop.f32.mrf.mxu0
        %v3735 = vadd.f32 %v3526, %v3734
        %3736 = vmatmul.f32.gmra.mxu0 %v3063
        %v3737 = vpop.f32.mrf.mxu0
        %v3738 = vadd.f32 %v3529, %v3737
        %3739 = vmatmul.f32.gmra.mxu0 %v3066
        %v3740 = vpop.f32.mrf.mxu0
        %v3741 = vadd.f32 %v3532, %v3740
        %3742 = vmatmul.f32.gmra.mxu0 %v3069
        %v3743 = vpop.f32.mrf.mxu0
        %v3744 = vadd.f32 %v3535, %v3743
        %3745 = vmatmul.f32.gmra.mxu0 %v3072
        %v3746 = vpop.f32.mrf.mxu0
        %v3747 = vadd.f32 %v3538, %v3746
        %3748 = vmatmul.f32.gmra.mxu0 %v3075
        %v3749 = vpop.f32.mrf.mxu0
        %v3750 = vadd.f32 %v3541, %v3749
        %3751 = vmatmul.f32.gmra.mxu0 %v3078
        %v3752 = vpop.f32.mrf.mxu0
        %v3753 = vadd.f32 %v3544, %v3752
        %3754 = vmatmul.f32.gmra.mxu0 %v3081
        %v3755 = vpop.f32.mrf.mxu0
        %v3756 = vadd.f32 %v3547, %v3755
        %3757 = vmatmul.f32.gmra.mxu0 %v3084
        %v3758 = vpop.f32.mrf.mxu0
        %v3759 = vadd.f32 %v3550, %v3758
        %3760 = vmatmul.f32.gmra.mxu0 %v3087
        %v3761 = vpop.f32.mrf.mxu0
        %v3762 = vadd.f32 %v3553, %v3761
        %3763 = vmatmul.f32.gmra.mxu0 %v3090
        %v3764 = vpop.f32.mrf.mxu0
        %v3765 = vadd.f32 %v3556, %v3764
        %3766 = vmatmul.f32.gmra.mxu0 %v3093
        %v3767 = vpop.f32.mrf.mxu0
        %v3768 = vadd.f32 %v3559, %v3767
        %3769 = vmatmul.f32.gmra.mxu0 %v3096
        %v3770 = vpop.f32.mrf.mxu0
        %v3771 = vadd.f32 %v3562, %v3770
        %3772 = vmatmul.f32.gmra.mxu0 %v3099
        %v3773 = vpop.f32.mrf.mxu0
        %v3774 = vadd.f32 %v3565, %v3773
        %3775 = vmatmul.f32.gmra.mxu0 %v3102
        %v3776 = vpop.f32.mrf.mxu0
        %v3777 = vadd.f32 %v3568, %v3776
        %3778 = vmatmul.f32.gmra.mxu0 %v3105
        %v3779 = vpop.f32.mrf.mxu0
        %v3780 = vadd.f32 %v3571, %v3779
        %3781 = vmatmul.f32.gmra.mxu0 %v3108
        %v3782 = vpop.f32.mrf.mxu0
        %v3783 = vadd.f32 %v3574, %v3782
        %3784 = vmatmul.f32.gmra.mxu0 %v3111
        %v3785 = vpop.f32.mrf.mxu0
        %v3786 = vadd.f32 %v3577, %v3785
        %3787 = vmatmul.f32.gmra.mxu0 %v3114
        %v3788 = vpop.f32.mrf.mxu0
        %v3789 = vadd.f32 %v3580, %v3788
        %3790 = vmatmul.f32.gmra.mxu0 %v3117
        %v3791 = vpop.f32.mrf.mxu0
        %v3792 = vadd.f32 %v3583, %v3791
        %3793 = vmatmul.f32.gmra.mxu0 %v3120
        %v3794 = vpop.f32.mrf.mxu0
        %v3795 = vadd.f32 %v3586, %v3794
        %3796 = vmatmul.f32.gmra.mxu0 %v3123
        %v3797 = vpop.f32.mrf.mxu0
        %v3798 = vadd.f32 %v3589, %v3797
        %3799 = vmatmul.f32.gmra.mxu0 %v3126
        %v3800 = vpop.f32.mrf.mxu0
        %v3801 = vadd.f32 %v3592, %v3800
        %3802 = vmatmul.f32.gmra.mxu0 %v3129
        %v3803 = vpop.f32.mrf.mxu0
        %v3804 = vadd.f32 %v3595, %v3803
        %3805 = vmatmul.f32.gmra.mxu0 %v3132
        %v3806 = vpop.f32.mrf.mxu0
        %v3807 = vadd.f32 %v3598, %v3806
        %3808 = vmatmul.f32.gmra.mxu0 %v3135
        %v3809 = vpop.f32.mrf.mxu0
        %v3810 = vadd.f32 %v3601, %v3809
        %3811 = vmatmul.f32.gmra.mxu0 %v3138
        %v3812 = vpop.f32.mrf.mxu0
        %v3813 = vadd.f32 %v3604, %v3812
        %3814 = vmatmul.f32.gmra.mxu0 %v3141
        %v3815 = vpop.f32.mrf.mxu0
        %v3816 = vadd.f32 %v3607, %v3815
        %3817 = vmatmul.f32.gmra.mxu0 %v3144
        %v3818 = vpop.f32.mrf.mxu0
        %v3819 = vadd.f32 %v3610, %v3818
        %3820 = vmatmul.f32.gmra.mxu0 %v3147
        %v3821 = vpop.f32.mrf.mxu0
        %v3822 = vadd.f32 %v3613, %v3821
        %3823 = vmatmul.f32.gmra.mxu0 %v3150
        %v3824 = vpop.f32.mrf.mxu0
        %v3825 = vadd.f32 %v3616, %v3824
        %3826 = vmatmul.f32.gmra.mxu0 %v3153
        %v3827 = vpop.f32.mrf.mxu0
        %v3828 = vadd.f32 %v3619, %v3827
        %3829 = vmatmul.f32.gmra.mxu0 %v3156
        %v3830 = vpop.f32.mrf.mxu0
        %v3831 = vadd.f32 %v3622, %v3830
        %3832 = vmatmul.f32.gmra.mxu0 %v3159
        %v3833 = vpop.f32.mrf.mxu0
        %v3834 = vadd.f32 %v3625, %v3833
        %3835 = vmatmul.f32.gmra.mxu0 %v3162
        %v3836 = vpop.f32.mrf.mxu0
        %v3837 = vadd.f32 %v3628, %v3836
        %3838 = vmatmul.f32.gmra.mxu0 %v3165
        %v3839 = vpop.f32.mrf.mxu0
        %v3840 = vadd.f32 %v3631, %v3839
        %3841 = vmatmul.f32.gmra.mxu0 %v3168
        %v3842 = vpop.f32.mrf.mxu0
        %v3843 = vadd.f32 %v3634, %v3842
        %3844 = vmatmul.f32.gmra.mxu0 %v3171
        %v3845 = vpop.f32.mrf.mxu0
        %v3846 = vadd.f32 %v3637, %v3845
        %3847 = vmatmul.f32.gmra.mxu0 %v3174
        %v3848 = vpop.f32.mrf.mxu0
        %v3849 = vadd.f32 %v3640, %v3848
        %3850 = vmatmul.f32.gmra.mxu0 %v3177
        %v3851 = vpop.f32.mrf.mxu0
        %v3852 = vadd.f32 %v3643, %v3851
        %3853 = vmatmul.f32.gmra.mxu0 %v3180
        %v3854 = vpop.f32.mrf.mxu0
        %v3855 = vadd.f32 %v3646, %v3854
        %3856 = vmatmul.f32.gmra.mxu0 %v3183
        %v3857 = vpop.f32.mrf.mxu0
        %v3858 = vadd.f32 %v3649, %v3857
        %3859 = vmatmul.f32.gmra.mxu0 %v3186
        %v3860 = vpop.f32.mrf.mxu0
        %v3861 = vadd.f32 %v3652, %v3860
        %3862 = vmatmul.f32.gmra.mxu0 %v3189
        %v3863 = vpop.f32.mrf.mxu0
        %v3864 = vadd.f32 %v3655, %v3863
        %3865 = vmatmul.f32.gmra.mxu0 %v3192
        %v3866 = vpop.f32.mrf.mxu0
        %v3867 = vadd.f32 %v3658, %v3866
        %3868 = vmatmul.f32.gmra.mxu0 %v3195
        %v3869 = vpop.f32.mrf.mxu0
        %v3870 = vadd.f32 %v3661, %v3869
        %3871 = vmatmul.f32.gmra.mxu0 %v3198
        %v3872 = vpop.f32.mrf.mxu0
        %v3873 = vadd.f32 %v3664, %v3872
        %3874 = vmatmul.f32.gmra.mxu0 %v3201
        %v3875 = vpop.f32.mrf.mxu0
        %v3876 = vadd.f32 %v3667, %v3875
        %3877 = vmatmul.f32.gmra.mxu0 %v3204
        %v3878 = vpop.f32.mrf.mxu0
        %v3879 = vadd.f32 %v3670, %v3878
        %3880 = vmatmul.f32.gmra.mxu0 %v3207
        %v3881 = vpop.f32.mrf.mxu0
        %v3882 = vadd.f32 %v3673, %v3881
        %3883 = vmatmul.f32.gmra.mxu0 %v3210
        %v3884 = vpop.f32.mrf.mxu0
        %v3885 = vadd.f32 %v3676, %v3884
        %3886 = vmatmul.f32.gmra.mxu0 %v3213
        %v3887 = vpop.f32.mrf.mxu0
        %v3888 = vadd.f32 %v3679, %v3887
        %3889 = vmatmul.f32.gmra.mxu0 %v3216
        %v3890 = vpop.f32.mrf.mxu0
        %v3891 = vadd.f32 %v3682, %v3890
        %3892 = vdwg.mxu0
        %v3893 = vadd.f32 %v2638, %v3702
        %v3894 = vadd.f32 %v2641, %v3705
        %v3895 = vadd.f32 %v2644, %v3708
        %v3896 = vadd.f32 %v2647, %v3711
        %v3897 = vadd.f32 %v2650, %v3714
        %v3898 = vadd.f32 %v2653, %v3717
        %v3899 = vadd.f32 %v2656, %v3720
        %v3900 = vadd.f32 %v2659, %v3723
        %v3901 = vadd.f32 %v2662, %v3726
        %v3902 = vadd.f32 %v2665, %v3729
        %v3903 = vadd.f32 %v2668, %v3732
        %v3904 = vadd.f32 %v2671, %v3735
        %v3905 = vadd.f32 %v2674, %v3738
        %v3906 = vadd.f32 %v2677, %v3741
        %v3907 = vadd.f32 %v2680, %v3744
        %v3908 = vadd.f32 %v2683, %v3747
        %v3909 = vadd.f32 %v2686, %v3750
        %v3910 = vadd.f32 %v2689, %v3753
        %v3911 = vadd.f32 %v2692, %v3756
        %v3912 = vadd.f32 %v2695, %v3759
        %v3913 = vadd.f32 %v2698, %v3762
        %v3914 = vadd.f32 %v2701, %v3765
        %v3915 = vadd.f32 %v2704, %v3768
        %v3916 = vadd.f32 %v2707, %v3771
        %v3917 = vadd.f32 %v2710, %v3774
        %v3918 = vadd.f32 %v2713, %v3777
        %v3919 = vadd.f32 %v2716, %v3780
        %v3920 = vadd.f32 %v2719, %v3783
        %v3921 = vadd.f32 %v2722, %v3786
        %v3922 = vadd.f32 %v2725, %v3789
        %v3923 = vadd.f32 %v2728, %v3792
        %v3924 = vadd.f32 %v2731, %v3795
        %v3925 = vadd.f32 %v2734, %v3798
        %v3926 = vadd.f32 %v2737, %v3801
        %v3927 = vadd.f32 %v2740, %v3804
        %v3928 = vadd.f32 %v2743, %v3807
        %v3929 = vadd.f32 %v2746, %v3810
        %v3930 = vadd.f32 %v2749, %v3813
        %v3931 = vadd.f32 %v2752, %v3816
        %v3932 = vadd.f32 %v2755, %v3819
        %v3933 = vadd.f32 %v2758, %v3822
        %v3934 = vadd.f32 %v2761, %v3825
        %v3935 = vadd.f32 %v2764, %v3828
        %v3936 = vadd.f32 %v2767, %v3831
        %v3937 = vadd.f32 %v2770, %v3834
        %v3938 = vadd.f32 %v2773, %v3837
        %v3939 = vadd.f32 %v2776, %v3840
        %v3940 = vadd.f32 %v2779, %v3843
        %v3941 = vadd.f32 %v2782, %v3846
        %v3942 = vadd.f32 %v2785, %v3849
        %v3943 = vadd.f32 %v2788, %v3852
        %v3944 = vadd.f32 %v2791, %v3855
        %v3945 = vadd.f32 %v2794, %v3858
        %v3946 = vadd.f32 %v2797, %v3861
        %v3947 = vadd.f32 %v2800, %v3864
        %v3948 = vadd.f32 %v2803, %v3867
        %v3949 = vadd.f32 %v2806, %v3870
        %v3950 = vadd.f32 %v2809, %v3873
        %v3951 = vadd.f32 %v2812, %v3876
        %v3952 = vadd.f32 %v2815, %v3879
        %v3953 = vadd.f32 %v2818, %v3882
        %v3954 = vadd.f32 %v2821, %v3885
        %v3955 = vadd.f32 %v2824, %v3888
        %v3956 = vadd.f32 %v2827, %v3891
        %v3957 = vadd.f32 %v3893, %v3894
        %v3958 = vadd.f32 %v3957, %v3895
        %v3959 = vadd.f32 %v3958, %v3896
        %v3960 = vadd.f32 %v3959, %v3897
        %v3961 = vadd.f32 %v3960, %v3898
        %v3962 = vadd.f32 %v3961, %v3899
        %v3963 = vadd.f32 %v3962, %v3900
        %v3964 = vadd.f32 %v3963, %v3901
        %v3965 = vadd.f32 %v3964, %v3902
        %v3966 = vadd.f32 %v3965, %v3903
        %v3967 = vadd.f32 %v3966, %v3904
        %v3968 = vadd.f32 %v3967, %v3905
        %v3969 = vadd.f32 %v3968, %v3906
        %v3970 = vadd.f32 %v3969, %v3907
        %v3971 = vadd.f32 %v3970, %v3908
        %v3972 = vadd.f32 %v3971, %v3909
        %v3973 = vadd.f32 %v3972, %v3910
        %v3974 = vadd.f32 %v3973, %v3911
        %v3975 = vadd.f32 %v3974, %v3912
        %v3976 = vadd.f32 %v3975, %v3913
        %v3977 = vadd.f32 %v3976, %v3914
        %v3978 = vadd.f32 %v3977, %v3915
        %v3979 = vadd.f32 %v3978, %v3916
        %v3980 = vadd.f32 %v3979, %v3917
        %v3981 = vadd.f32 %v3980, %v3918
        %v3982 = vadd.f32 %v3981, %v3919
        %v3983 = vadd.f32 %v3982, %v3920
        %v3984 = vadd.f32 %v3983, %v3921
        %v3985 = vadd.f32 %v3984, %v3922
        %v3986 = vadd.f32 %v3985, %v3923
        %v3987 = vadd.f32 %v3986, %v3924
        %v3988 = vrot.slane %v3987, 4
        %v3989 = vadd.f32 %v3987, %v3988
        %v3990 = vrot.slane %v3989, 2
        %v3991 = vadd.f32 %v3989, %v3990
        %v3992 = vrot.slane %v3991, 1
        %v3993 = vadd.f32 %v3991, %v3992
        %v3994 = vadd.f32 %v3925, %v3926
        %v3995 = vadd.f32 %v3994, %v3927
        %v3996 = vadd.f32 %v3995, %v3928
        %v3997 = vadd.f32 %v3996, %v3929
        %v3998 = vadd.f32 %v3997, %v3930
        %v3999 = vadd.f32 %v3998, %v3931
        %v4000 = vadd.f32 %v3999, %v3932
        %v4001 = vadd.f32 %v4000, %v3933
        %v4002 = vadd.f32 %v4001, %v3934
        %v4003 = vadd.f32 %v4002, %v3935
        %v4004 = vadd.f32 %v4003, %v3936
        %v4005 = vadd.f32 %v4004, %v3937
        %v4006 = vadd.f32 %v4005, %v3938
        %v4007 = vadd.f32 %v4006, %v3939
        %v4008 = vadd.f32 %v4007, %v3940
        %v4009 = vadd.f32 %v4008, %v3941
        %v4010 = vadd.f32 %v4009, %v3942
        %v4011 = vadd.f32 %v4010, %v3943
        %v4012 = vadd.f32 %v4011, %v3944
        %v4013 = vadd.f32 %v4012, %v3945
        %v4014 = vadd.f32 %v4013, %v3946
        %v4015 = vadd.f32 %v4014, %v3947
        %v4016 = vadd.f32 %v4015, %v3948
        %v4017 = vadd.f32 %v4016, %v3949
        %v4018 = vadd.f32 %v4017, %v3950
        %v4019 = vadd.f32 %v4018, %v3951
        %v4020 = vadd.f32 %v4019, %v3952
        %v4021 = vadd.f32 %v4020, %v3953
        %v4022 = vadd.f32 %v4021, %v3954
        %v4023 = vadd.f32 %v4022, %v3955
        %v4024 = vadd.f32 %v4023, %v3956
        %v4025 = vrot.slane %v4024, 4
        %v4026 = vadd.f32 %v4024, %v4025
        %v4027 = vrot.slane %v4026, 2
        %v4028 = vadd.f32 %v4026, %v4027
        %v4029 = vrot.slane %v4028, 1
        %v4030 = vadd.f32 %v4028, %v4029
        %v4031 = vrcp.pop 256.0
        %v4032 = vmul.f32 256.0, %v4031
        %v4033 = vsub.f32 1.0, %v4032
        %v4034 = vmul.f32 %v4031, %v4033
        %v4035 = vadd.f32 %v4031, %v4034
        %vm4036 = vweird.f32 %v4031
        %v4037 = vsel %vm4036, %v4031, %v4035
        %v4038 = vmul.f32 %v3993, %v4037
        %v4039 = vmul.f32 %v4030, %v4037
        %v4040 = vsub.f32 %v3893, %v4038
        %v4041 = vsub.f32 %v3894, %v4038
        %v4042 = vsub.f32 %v3895, %v4038
        %v4043 = vsub.f32 %v3896, %v4038
        %v4044 = vsub.f32 %v3897, %v4038
        %v4045 = vsub.f32 %v3898, %v4038
        %v4046 = vsub.f32 %v3899, %v4038
        %v4047 = vsub.f32 %v3900, %v4038
        %v4048 = vsub.f32 %v3901, %v4038
        %v4049 = vsub.f32 %v3902, %v4038
        %v4050 = vsub.f32 %v3903, %v4038
        %v4051 = vsub.f32 %v3904, %v4038
        %v4052 = vsub.f32 %v3905, %v4038
        %v4053 = vsub.f32 %v3906, %v4038
        %v4054 = vsub.f32 %v3907, %v4038
        %v4055 = vsub.f32 %v3908, %v4038
        %v4056 = vsub.f32 %v3909, %v4038
        %v4057 = vsub.f32 %v3910, %v4038
        %v4058 = vsub.f32 %v3911, %v4038
        %v4059 = vsub.f32 %v3912, %v4038
        %v4060 = vsub.f32 %v3913, %v4038
        %v4061 = vsub.f32 %v3914, %v4038
        %v4062 = vsub.f32 %v3915, %v4038
        %v4063 = vsub.f32 %v3916, %v4038
        %v4064 = vsub.f32 %v3917, %v4038
        %v4065 = vsub.f32 %v3918, %v4038
        %v4066 = vsub.f32 %v3919, %v4038
        %v4067 = vsub.f32 %v3920, %v4038
        %v4068 = vsub.f32 %v3921, %v4038
        %v4069 = vsub.f32 %v3922, %v4038
        %v4070 = vsub.f32 %v3923, %v4038
        %v4071 = vsub.f32 %v3924, %v4038
        %v4072 = vsub.f32 %v3925, %v4039
        %v4073 = vsub.f32 %v3926, %v4039
        %v4074 = vsub.f32 %v3927, %v4039
        %v4075 = vsub.f32 %v3928, %v4039
        %v4076 = vsub.f32 %v3929, %v4039
        %v4077 = vsub.f32 %v3930, %v4039
        %v4078 = vsub.f32 %v3931, %v4039
        %v4079 = vsub.f32 %v3932, %v4039
        %v4080 = vsub.f32 %v3933, %v4039
        %v4081 = vsub.f32 %v3934, %v4039
        %v4082 = vsub.f32 %v3935, %v4039
        %v4083 = vsub.f32 %v3936, %v4039
        %v4084 = vsub.f32 %v3937, %v4039
        %v4085 = vsub.f32 %v3938, %v4039
        %v4086 = vsub.f32 %v3939, %v4039
        %v4087 = vsub.f32 %v3940, %v4039
        %v4088 = vsub.f32 %v3941, %v4039
        %v4089 = vsub.f32 %v3942, %v4039
        %v4090 = vsub.f32 %v3943, %v4039
        %v4091 = vsub.f32 %v3944, %v4039
        %v4092 = vsub.f32 %v3945, %v4039
        %v4093 = vsub.f32 %v3946, %v4039
        %v4094 = vsub.f32 %v3947, %v4039
        %v4095 = vsub.f32 %v3948, %v4039
        %v4096 = vsub.f32 %v3949, %v4039
        %v4097 = vsub.f32 %v3950, %v4039
        %v4098 = vsub.f32 %v3951, %v4039
        %v4099 = vsub.f32 %v3952, %v4039
        %v4100 = vsub.f32 %v3953, %v4039
        %v4101 = vsub.f32 %v3954, %v4039
        %v4102 = vsub.f32 %v3955, %v4039
        %v4103 = vsub.f32 %v3956, %v4039
        %v4104 = vmul.f32 %v4040, %v4040
        %v4105 = vmul.f32 %v4041, %v4041
        %v4106 = vmul.f32 %v4042, %v4042
        %v4107 = vmul.f32 %v4043, %v4043
        %v4108 = vmul.f32 %v4044, %v4044
        %v4109 = vmul.f32 %v4045, %v4045
        %v4110 = vmul.f32 %v4046, %v4046
        %v4111 = vmul.f32 %v4047, %v4047
        %v4112 = vmul.f32 %v4048, %v4048
        %v4113 = vmul.f32 %v4049, %v4049
        %v4114 = vmul.f32 %v4050, %v4050
        %v4115 = vmul.f32 %v4051, %v4051
        %v4116 = vmul.f32 %v4052, %v4052
        %v4117 = vmul.f32 %v4053, %v4053
        %v4118 = vmul.f32 %v4054, %v4054
        %v4119 = vmul.f32 %v4055, %v4055
        %v4120 = vmul.f32 %v4056, %v4056
        %v4121 = vmul.f32 %v4057, %v4057
        %v4122 = vmul.f32 %v4058, %v4058
        %v4123 = vmul.f32 %v4059, %v4059
        %v4124 = vmul.f32 %v4060, %v4060
        %v4125 = vmul.f32 %v4061, %v4061
        %v4126 = vmul.f32 %v4062, %v4062
        %v4127 = vmul.f32 %v4063, %v4063
        %v4128 = vmul.f32 %v4064, %v4064
        %v4129 = vmul.f32 %v4065, %v4065
        %v4130 = vmul.f32 %v4066, %v4066
        %v4131 = vmul.f32 %v4067, %v4067
        %v4132 = vmul.f32 %v4068, %v4068
        %v4133 = vmul.f32 %v4069, %v4069
        %v4134 = vmul.f32 %v4070, %v4070
        %v4135 = vmul.f32 %v4071, %v4071
        %v4136 = vmul.f32 %v4072, %v4072
        %v4137 = vmul.f32 %v4073, %v4073
        %v4138 = vmul.f32 %v4074, %v4074
        %v4139 = vmul.f32 %v4075, %v4075
        %v4140 = vmul.f32 %v4076, %v4076
        %v4141 = vmul.f32 %v4077, %v4077
        %v4142 = vmul.f32 %v4078, %v4078
        %v4143 = vmul.f32 %v4079, %v4079
        %v4144 = vmul.f32 %v4080, %v4080
        %v4145 = vmul.f32 %v4081, %v4081
        %v4146 = vmul.f32 %v4082, %v4082
        %v4147 = vmul.f32 %v4083, %v4083
        %v4148 = vmul.f32 %v4084, %v4084
        %v4149 = vmul.f32 %v4085, %v4085
        %v4150 = vmul.f32 %v4086, %v4086
        %v4151 = vmul.f32 %v4087, %v4087
        %v4152 = vmul.f32 %v4088, %v4088
        %v4153 = vmul.f32 %v4089, %v4089
        %v4154 = vmul.f32 %v4090, %v4090
        %v4155 = vmul.f32 %v4091, %v4091
        %v4156 = vmul.f32 %v4092, %v4092
        %v4157 = vmul.f32 %v4093, %v4093
        %v4158 = vmul.f32 %v4094, %v4094
        %v4159 = vmul.f32 %v4095, %v4095
        %v4160 = vmul.f32 %v4096, %v4096
        %v4161 = vmul.f32 %v4097, %v4097
        %v4162 = vmul.f32 %v4098, %v4098
        %v4163 = vmul.f32 %v4099, %v4099
        %v4164 = vmul.f32 %v4100, %v4100
        %v4165 = vmul.f32 %v4101, %v4101
        %v4166 = vmul.f32 %v4102, %v4102
        %v4167 = vmul.f32 %v4103, %v4103
        %v4168 = vadd.f32 %v4104, %v4105
        %v4169 = vadd.f32 %v4168, %v4106
        %v4170 = vadd.f32 %v4169, %v4107
        %v4171 = vadd.f32 %v4170, %v4108
        %v4172 = vadd.f32 %v4171, %v4109
        %v4173 = vadd.f32 %v4172, %v4110
        %v4174 = vadd.f32 %v4173, %v4111
        %v4175 = vadd.f32 %v4174, %v4112
        %v4176 = vadd.f32 %v4175, %v4113
        %v4177 = vadd.f32 %v4176, %v4114
        %v4178 = vadd.f32 %v4177, %v4115
        %v4179 = vadd.f32 %v4178, %v4116
        %v4180 = vadd.f32 %v4179, %v4117
        %v4181 = vadd.f32 %v4180, %v4118
        %v4182 = vadd.f32 %v4181, %v4119
        %v4183 = vadd.f32 %v4182, %v4120
        %v4184 = vadd.f32 %v4183, %v4121
        %v4185 = vadd.f32 %v4184, %v4122
        %v4186 = vadd.f32 %v4185, %v4123
        %v4187 = vadd.f32 %v4186, %v4124
        %v4188 = vadd.f32 %v4187, %v4125
        %v4189 = vadd.f32 %v4188, %v4126
        %v4190 = vadd.f32 %v4189, %v4127
        %v4191 = vadd.f32 %v4190, %v4128
        %v4192 = vadd.f32 %v4191, %v4129
        %v4193 = vadd.f32 %v4192, %v4130
        %v4194 = vadd.f32 %v4193, %v4131
        %v4195 = vadd.f32 %v4194, %v4132
        %v4196 = vadd.f32 %v4195, %v4133
        %v4197 = vadd.f32 %v4196, %v4134
        %v4198 = vadd.f32 %v4197, %v4135
        %v4199 = vrot.slane %v4198, 4
        %v4200 = vadd.f32 %v4198, %v4199
        %v4201 = vrot.slane %v4200, 2
        %v4202 = vadd.f32 %v4200, %v4201
        %v4203 = vrot.slane %v4202, 1
        %v4204 = vadd.f32 %v4202, %v4203
        %v4205 = vadd.f32 %v4136, %v4137
        %v4206 = vadd.f32 %v4205, %v4138
        %v4207 = vadd.f32 %v4206, %v4139
        %v4208 = vadd.f32 %v4207, %v4140
        %v4209 = vadd.f32 %v4208, %v4141
        %v4210 = vadd.f32 %v4209, %v4142
        %v4211 = vadd.f32 %v4210, %v4143
        %v4212 = vadd.f32 %v4211, %v4144
        %v4213 = vadd.f32 %v4212, %v4145
        %v4214 = vadd.f32 %v4213, %v4146
        %v4215 = vadd.f32 %v4214, %v4147
        %v4216 = vadd.f32 %v4215, %v4148
        %v4217 = vadd.f32 %v4216, %v4149
        %v4218 = vadd.f32 %v4217, %v4150
        %v4219 = vadd.f32 %v4218, %v4151
        %v4220 = vadd.f32 %v4219, %v4152
        %v4221 = vadd.f32 %v4220, %v4153
        %v4222 = vadd.f32 %v4221, %v4154
        %v4223 = vadd.f32 %v4222, %v4155
        %v4224 = vadd.f32 %v4223, %v4156
        %v4225 = vadd.f32 %v4224, %v4157
        %v4226 = vadd.f32 %v4225, %v4158
        %v4227 = vadd.f32 %v4226, %v4159
        %v4228 = vadd.f32 %v4227, %v4160
        %v4229 = vadd.f32 %v4228, %v4161
        %v4230 = vadd.f32 %v4229, %v4162
        %v4231 = vadd.f32 %v4230, %v4163
        %v4232 = vadd.f32 %v4231, %v4164
        %v4233 = vadd.f32 %v4232, %v4165
        %v4234 = vadd.f32 %v4233, %v4166
        %v4235 = vadd.f32 %v4234, %v4167
        %v4236 = vrot.slane %v4235, 4
        %v4237 = vadd.f32 %v4235, %v4236
        %v4238 = vrot.slane %v4237, 2
        %v4239 = vadd.f32 %v4237, %v4238
        %v4240 = vrot.slane %v4239, 1
        %v4241 = vadd.f32 %v4239, %v4240
        %v4242 = vmul.f32 %v4204, %v4037
        %v4243 = vmul.f32 %v4241, %v4037
        %v4244 = vadd.f32 %v4242, 1e-05
        %v4245 = vadd.f32 %v4243, 1e-05
        %v4246 = vrsqrt.pop %v4244
        %v4247 = vmul.f32 %v4246, %v4244
        %v4248 = vmul.f32 %v4247, %v4246
        %v4249 = vmul.f32 0.5, %v4248
        %v4250 = vsub.f32 1.5, %v4249
        %v4251 = vmul.f32 %v4246, %v4250
        %vm4252 = vweird.f32 %v4244
        %vm4253 = vweird.f32 %v4246
        %vm4254 = vmor %vm4252, %vm4253
        %v4255 = vsel %vm4254, %v4246, %v4251
        %v4256 = vrsqrt.pop %v4245
        %v4257 = vmul.f32 %v4256, %v4245
        %v4258 = vmul.f32 %v4257, %v4256
        %v4259 = vmul.f32 0.5, %v4258
        %v4260 = vsub.f32 1.5, %v4259
        %v4261 = vmul.f32 %v4256, %v4260
        %vm4262 = vweird.f32 %v4245
        %vm4263 = vweird.f32 %v4256
        %vm4264 = vmor %vm4262, %vm4263
        %v4265 = vsel %vm4264, %v4256, %v4261
        %v4266 = vmul.f32 %v4040, %v4255
        %v4267 = vmul.f32 %v4041, %v4255
        %v4268 = vmul.f32 %v4042, %v4255
        %v4269 = vmul.f32 %v4043, %v4255
        %v4270 = vmul.f32 %v4044, %v4255
        %v4271 = vmul.f32 %v4045, %v4255
        %v4272 = vmul.f32 %v4046, %v4255
        %v4273 = vmul.f32 %v4047, %v4255
        %v4274 = vmul.f32 %v4048, %v4255
        %v4275 = vmul.f32 %v4049, %v4255
        %v4276 = vmul.f32 %v4050, %v4255
        %v4277 = vmul.f32 %v4051, %v4255
        %v4278 = vmul.f32 %v4052, %v4255
        %v4279 = vmul.f32 %v4053, %v4255
        %v4280 = vmul.f32 %v4054, %v4255
        %v4281 = vmul.f32 %v4055, %v4255
        %v4282 = vmul.f32 %v4056, %v4255
        %v4283 = vmul.f32 %v4057, %v4255
        %v4284 = vmul.f32 %v4058, %v4255
        %v4285 = vmul.f32 %v4059, %v4255
        %v4286 = vmul.f32 %v4060, %v4255
        %v4287 = vmul.f32 %v4061, %v4255
        %v4288 = vmul.f32 %v4062, %v4255
        %v4289 = vmul.f32 %v4063, %v4255
        %v4290 = vmul.f32 %v4064, %v4255
        %v4291 = vmul.f32 %v4065, %v4255
        %v4292 = vmul.f32 %v4066, %v4255
        %v4293 = vmul.f32 %v4067, %v4255
        %v4294 = vmul.f32 %v4068, %v4255
        %v4295 = vmul.f32 %v4069, %v4255
        %v4296 = vmul.f32 %v4070, %v4255
        %v4297 = vmul.f32 %v4071, %v4255
        %v4298 = vmul.f32 %v4072, %v4265
        %v4299 = vmul.f32 %v4073, %v4265
        %v4300 = vmul.f32 %v4074, %v4265
        %v4301 = vmul.f32 %v4075, %v4265
        %v4302 = vmul.f32 %v4076, %v4265
        %v4303 = vmul.f32 %v4077, %v4265
        %v4304 = vmul.f32 %v4078, %v4265
        %v4305 = vmul.f32 %v4079, %v4265
        %v4306 = vmul.f32 %v4080, %v4265
        %v4307 = vmul.f32 %v4081, %v4265
        %v4308 = vmul.f32 %v4082, %v4265
        %v4309 = vmul.f32 %v4083, %v4265
        %v4310 = vmul.f32 %v4084, %v4265
        %v4311 = vmul.f32 %v4085, %v4265
        %v4312 = vmul.f32 %v4086, %v4265
        %v4313 = vmul.f32 %v4087, %v4265
        %v4314 = vmul.f32 %v4088, %v4265
        %v4315 = vmul.f32 %v4089, %v4265
        %v4316 = vmul.f32 %v4090, %v4265
        %v4317 = vmul.f32 %v4091, %v4265
        %v4318 = vmul.f32 %v4092, %v4265
        %v4319 = vmul.f32 %v4093, %v4265
        %v4320 = vmul.f32 %v4094, %v4265
        %v4321 = vmul.f32 %v4095, %v4265
        %v4322 = vmul.f32 %v4096, %v4265
        %v4323 = vmul.f32 %v4097, %v4265
        %v4324 = vmul.f32 %v4098, %v4265
        %v4325 = vmul.f32 %v4099, %v4265
        %v4326 = vmul.f32 %v4100, %v4265
        %v4327 = vmul.f32 %v4101, %v4265
        %v4328 = vmul.f32 %v4102, %v4265
        %v4329 = vmul.f32 %v4103, %v4265
        %v4330 = vmax.f32 %v4266, 0.0
        %v4331 = vmax.f32 %v4267, 0.0
        %v4332 = vmax.f32 %v4268, 0.0
        %v4333 = vmax.f32 %v4269, 0.0
        %v4334 = vmax.f32 %v4270, 0.0
        %v4335 = vmax.f32 %v4271, 0.0
        %v4336 = vmax.f32 %v4272, 0.0
        %v4337 = vmax.f32 %v4273, 0.0
        %v4338 = vmax.f32 %v4274, 0.0
        %v4339 = vmax.f32 %v4275, 0.0
        %v4340 = vmax.f32 %v4276, 0.0
        %v4341 = vmax.f32 %v4277, 0.0
        %v4342 = vmax.f32 %v4278, 0.0
        %v4343 = vmax.f32 %v4279, 0.0
        %v4344 = vmax.f32 %v4280, 0.0
        %v4345 = vmax.f32 %v4281, 0.0
        %v4346 = vmax.f32 %v4282, 0.0
        %v4347 = vmax.f32 %v4283, 0.0
        %v4348 = vmax.f32 %v4284, 0.0
        %v4349 = vmax.f32 %v4285, 0.0
        %v4350 = vmax.f32 %v4286, 0.0
        %v4351 = vmax.f32 %v4287, 0.0
        %v4352 = vmax.f32 %v4288, 0.0
        %v4353 = vmax.f32 %v4289, 0.0
        %v4354 = vmax.f32 %v4290, 0.0
        %v4355 = vmax.f32 %v4291, 0.0
        %v4356 = vmax.f32 %v4292, 0.0
        %v4357 = vmax.f32 %v4293, 0.0
        %v4358 = vmax.f32 %v4294, 0.0
        %v4359 = vmax.f32 %v4295, 0.0
        %v4360 = vmax.f32 %v4296, 0.0
        %v4361 = vmax.f32 %v4297, 0.0
        %v4362 = vmax.f32 %v4298, 0.0
        %v4363 = vmax.f32 %v4299, 0.0
        %v4364 = vmax.f32 %v4300, 0.0
        %v4365 = vmax.f32 %v4301, 0.0
        %v4366 = vmax.f32 %v4302, 0.0
        %v4367 = vmax.f32 %v4303, 0.0
        %v4368 = vmax.f32 %v4304, 0.0
        %v4369 = vmax.f32 %v4305, 0.0
        %v4370 = vmax.f32 %v4306, 0.0
        %v4371 = vmax.f32 %v4307, 0.0
        %v4372 = vmax.f32 %v4308, 0.0
        %v4373 = vmax.f32 %v4309, 0.0
        %v4374 = vmax.f32 %v4310, 0.0
        %v4375 = vmax.f32 %v4311, 0.0
        %v4376 = vmax.f32 %v4312, 0.0
        %v4377 = vmax.f32 %v4313, 0.0
        %v4378 = vmax.f32 %v4314, 0.0
        %v4379 = vmax.f32 %v4315, 0.0
        %v4380 = vmax.f32 %v4316, 0.0
        %v4381 = vmax.f32 %v4317, 0.0
        %v4382 = vmax.f32 %v4318, 0.0
        %v4383 = vmax.f32 %v4319, 0.0
        %v4384 = vmax.f32 %v4320, 0.0
        %v4385 = vmax.f32 %v4321, 0.0
        %v4386 = vmax.f32 %v4322, 0.0
        %v4387 = vmax.f32 %v4323, 0.0
        %v4388 = vmax.f32 %v4324, 0.0
        %v4389 = vmax.f32 %v4325, 0.0
        %v4390 = vmax.f32 %v4326, 0.0
        %v4391 = vmax.f32 %v4327, 0.0
        %v4392 = vmax.f32 %v4328, 0.0
        %v4393 = vmax.f32 %v4329, 0.0
        %4394 = vst [vmem:[#allocation2 + $0x11] sm:$0xff] %v4330
        %4395 = vst [vmem:[#allocation2 + $0x19] sm:$0xff] %v4331
        %4396 = vst [vmem:[#allocation2 + $0x21] sm:$0xff] %v4332
        %4397 = vst [vmem:[#allocation2 + $0x29] sm:$0xff] %v4333
        %4398 = vst [vmem:[#allocation2 + $0x31] sm:$0xff] %v4334
        %4399 = vst [vmem:[#allocation2 + $0x39] sm:$0xff] %v4335
        %4400 = vst [vmem:[#allocation2 + $0x41] sm:$0xff] %v4336
        %4401 = vst [vmem:[#allocation2 + $0x49] sm:$0xff] %v4337
        %4402 = vst [vmem:[#allocation2 + $0x51] sm:$0xff] %v4338
        %4403 = vst [vmem:[#allocation2 + $0x59] sm:$0xff] %v4339
        %4404 = vst [vmem:[#allocation2 + $0x61] sm:$0xff] %v4340
        %4405 = vst [vmem:[#allocation2 + $0x69] sm:$0xff] %v4341
        %4406 = vst [vmem:[#allocation2 + $0x71] sm:$0xff] %v4342
        %4407 = vst [vmem:[#allocation2 + $0x79] sm:$0xff] %v4343
        %4408 = vst [vmem:[#allocation2 + $0x81] sm:$0xff] %v4344
        %4409 = vst [vmem:[#allocation2 + $0x89] sm:$0xff] %v4345
        %4410 = vst [vmem:[#allocation2 + $0x91] sm:$0xff] %v4346
        %4411 = vst [vmem:[#allocation2 + $0x99] sm:$0xff] %v4347
        %4412 = vst [vmem:[#allocation2 + $0xa1] sm:$0xff] %v4348
        %4413 = vst [vmem:[#allocation2 + $0xa9] sm:$0xff] %v4349
        %4414 = vst [vmem:[#allocation2 + $0xb1] sm:$0xff] %v4350
        %4415 = vst [vmem:[#allocation2 + $0xb9] sm:$0xff] %v4351
        %4416 = vst [vmem:[#allocation2 + $0xc1] sm:$0xff] %v4352
        %4417 = vst [vmem:[#allocation2 + $0xc9] sm:$0xff] %v4353
        %4418 = vst [vmem:[#allocation2 + $0xd1] sm:$0xff] %v4354
        %4419 = vst [vmem:[#allocation2 + $0xd9] sm:$0xff] %v4355
        %4420 = vst [vmem:[#allocation2 + $0xe1] sm:$0xff] %v4356
        %4421 = vst [vmem:[#allocation2 + $0xe9] sm:$0xff] %v4357
        %4422 = vst [vmem:[#allocation2 + $0xf1] sm:$0xff] %v4358
        %4423 = vst [vmem:[#allocation2 + $0xf9] sm:$0xff] %v4359
        %4424 = vst [vmem:[#allocation2 + $0x101] sm:$0xff] %v4360
        %4425 = vst [vmem:[#allocation2 + $0x109] sm:$0xff] %v4361
        %4426 = vst [vmem:[#allocation2 + $0x139] sm:$0xff] %v4362
        %4427 = vst [vmem:[#allocation2 + $0x141] sm:$0xff] %v4363
        %4428 = vst [vmem:[#allocation2 + $0x149] sm:$0xff] %v4364
        %4429 = vst [vmem:[#allocation2 + $0x151] sm:$0xff] %v4365
        %4430 = vst [vmem:[#allocation2 + $0x159] sm:$0xff] %v4366
        %4431 = vst [vmem:[#allocation2 + $0x161] sm:$0xff] %v4367
        %4432 = vst [vmem:[#allocation2 + $0x169] sm:$0xff] %v4368
        %4433 = vst [vmem:[#allocation2 + $0x171] sm:$0xff] %v4369
        %4434 = vst [vmem:[#allocation2 + $0x179] sm:$0xff] %v4370
        %4435 = vst [vmem:[#allocation2 + $0x181] sm:$0xff] %v4371
        %4436 = vst [vmem:[#allocation2 + $0x189] sm:$0xff] %v4372
        %4437 = vst [vmem:[#allocation2 + $0x191] sm:$0xff] %v4373
        %4438 = vst [vmem:[#allocation2 + $0x199] sm:$0xff] %v4374
        %4439 = vst [vmem:[#allocation2 + $0x1a1] sm:$0xff] %v4375
        %4440 = vst [vmem:[#allocation2 + $0x1a9] sm:$0xff] %v4376
        %4441 = vst [vmem:[#allocation2 + $0x1b1] sm:$0xff] %v4377
        %4442 = vst [vmem:[#allocation2 + $0x1b9] sm:$0xff] %v4378
        %4443 = vst [vmem:[#allocation2 + $0x1c1] sm:$0xff] %v4379
        %4444 = vst [vmem:[#allocation2 + $0x1c9] sm:$0xff] %v4380
        %4445 = vst [vmem:[#allocation2 + $0x1d1] sm:$0xff] %v4381
        %4446 = vst [vmem:[#allocation2 + $0x1d9] sm:$0xff] %v4382
        %4447 = vst [vmem:[#allocation2 + $0x1e1] sm:$0xff] %v4383
        %4448 = vst [vmem:[#allocation2 + $0x1e9] sm:$0xff] %v4384
        %4449 = vst [vmem:[#allocation2 + $0x1f1] sm:$0xff] %v4385
        %4450 = vst [vmem:[#allocation2 + $0x1f9] sm:$0xff] %v4386
        %4451 = vst [vmem:[#allocation2 + $0x201] sm:$0xff] %v4387
        %4452 = vst [vmem:[#allocation2 + $0x209] sm:$0xff] %v4388
        %4453 = vst [vmem:[#allocation2 + $0x211] sm:$0xff] %v4389
        %4454 = vst [vmem:[#allocation2 + $0x219] sm:$0xff] %v4390
        %4455 = vst [vmem:[#allocation2 + $0x221] sm:$0xff] %v4391
        %4456 = vst [vmem:[#allocation2 + $0x229] sm:$0xff] %v4392
        %4457 = vst [vmem:[#allocation2 + $0x231] sm:$0xff] %v4393
        %v4458 = vld [vmem:[#allocation2] sm:$0xff]
        %v4459 = vld [vmem:[#allocation2 + $0x8] sm:$0xff]
        %v4460 = vld [vmem:[#allocation2 + $0x10] sm:$0xff]
        %v4461 = vld [vmem:[#allocation2 + $0x18] sm:$0xff]
        %v4462 = vld [vmem:[#allocation2 + $0x20] sm:$0xff]
        %v4463 = vld [vmem:[#allocation2 + $0x28] sm:$0xff]
        %v4464 = vld [vmem:[#allocation2 + $0x30] sm:$0xff]
        %v4465 = vld [vmem:[#allocation2 + $0x38] sm:$0xff]
        %v4466 = vld [vmem:[#allocation2 + $0x40] sm:$0xff]
        %v4467 = vld [vmem:[#allocation2 + $0x48] sm:$0xff]
        %v4468 = vld [vmem:[#allocation2 + $0x50] sm:$0xff]
        %v4469 = vld [vmem:[#allocation2 + $0x58] sm:$0xff]
        %v4470 = vld [vmem:[#allocation2 + $0x60] sm:$0xff]
        %v4471 = vld [vmem:[#allocation2 + $0x68] sm:$0xff]
        %v4472 = vld [vmem:[#allocation2 + $0x70] sm:$0xff]
        %v4473 = vld [vmem:[#allocation2 + $0x78] sm:$0xff]
        %v4474 = vld [vmem:[#allocation2 + $0x80] sm:$0xff]
        %v4475 = vld [vmem:[#allocation2 + $0x88] sm:$0xff]
        %v4476 = vld [vmem:[#allocation2 + $0x90] sm:$0xff]
        %v4477 = vld [vmem:[#allocation2 + $0x98] sm:$0xff]
        %v4478 = vld [vmem:[#allocation2 + $0xa0] sm:$0xff]
        %v4479 = vld [vmem:[#allocation2 + $0xa8] sm:$0xff]
        %v4480 = vld [vmem:[#allocation2 + $0xb0] sm:$0xff]
        %v4481 = vld [vmem:[#allocation2 + $0xb8] sm:$0xff]
        %v4482 = vld [vmem:[#allocation2 + $0xc0] sm:$0xff]
        %v4483 = vld [vmem:[#allocation2 + $0xc8] sm:$0xff]
        %v4484 = vld [vmem:[#allocation2 + $0xd0] sm:$0xff]
        %v4485 = vld [vmem:[#allocation2 + $0xd8] sm:$0xff]
        %v4486 = vld [vmem:[#allocation2 + $0xe0] sm:$0xff]
        %v4487 = vld [vmem:[#allocation2 + $0xe8] sm:$0xff]
        %v4488 = vld [vmem:[#allocation2 + $0xf0] sm:$0xff]
        %v4489 = vld [vmem:[#allocation2 + $0xf8] sm:$0xff]
        %v4490 = vld [vmem:[#allocation2 + $0x128] sm:$0xff]
        %v4491 = vld [vmem:[#allocation2 + $0x130] sm:$0xff]
        %v4492 = vld [vmem:[#allocation2 + $0x138] sm:$0xff]
        %v4493 = vld [vmem:[#allocation2 + $0x140] sm:$0xff]
        %v4494 = vld [vmem:[#allocation2 + $0x148] sm:$0xff]
        %v4495 = vld [vmem:[#allocation2 + $0x150] sm:$0xff]
        %v4496 = vld [vmem:[#allocation2 + $0x158] sm:$0xff]
        %v4497 = vld [vmem:[#allocation2 + $0x160] sm:$0xff]
        %v4498 = vld [vmem:[#allocation2 + $0x168] sm:$0xff]
        %v4499 = vld [vmem:[#allocation2 + $0x170] sm:$0xff]
        %v4500 = vld [vmem:[#allocation2 + $0x178] sm:$0xff]
        %v4501 = vld [vmem:[#allocation2 + $0x180] sm:$0xff]
        %v4502 = vld [vmem:[#allocation2 + $0x188] sm:$0xff]
        %v4503 = vld [vmem:[#allocation2 + $0x190] sm:$0xff]
        %v4504 = vld [vmem:[#allocation2 + $0x198] sm:$0xff]
        %v4505 = vld [vmem:[#allocation2 + $0x1a0] sm:$0xff]
        %v4506 = vld [vmem:[#allocation2 + $0x1a8] sm:$0xff]
        %v4507 = vld [vmem:[#allocation2 + $0x1b0] sm:$0xff]
        %v4508 = vld [vmem:[#allocation2 + $0x1b8] sm:$0xff]
        %v4509 = vld [vmem:[#allocation2 + $0x1c0] sm:$0xff]
        %v4510 = vld [vmem:[#allocation2 + $0x1c8] sm:$0xff]
        %v4511 = vld [vmem:[#allocation2 + $0x1d0] sm:$0xff]
        %v4512 = vld [vmem:[#allocation2 + $0x1d8] sm:$0xff]
        %v4513 = vld [vmem:[#allocation2 + $0x1e0] sm:$0xff]
        %v4514 = vld [vmem:[#allocation2 + $0x1e8] sm:$0xff]
        %v4515 = vld [vmem:[#allocation2 + $0x1f0] sm:$0xff]
        %v4516 = vld [vmem:[#allocation2 + $0x1f8] sm:$0xff]
        %v4517 = vld [vmem:[#allocation2 + $0x200] sm:$0xff]
        %v4518 = vld [vmem:[#allocation2 + $0x208] sm:$0xff]
        %v4519 = vld [vmem:[#allocation2 + $0x210] sm:$0xff]
        %v4520 = vld [vmem:[#allocation2 + $0x218] sm:$0xff]
        %v4521 = vld [vmem:[#allocation2 + $0x220] sm:$0xff]
        %v4522 = vld [vmem:[#allocation2 + $0x100] sm:$0xff]
        %v4523 = vld [vmem:[#allocation2 + $0x108] sm:$0xff]
        %v4524 = vld [vmem:[#allocation2 + $0x228] sm:$0xff]
        %v4525 = vld [vmem:[#allocation2 + $0x230] sm:$0xff]
        %v4526 = vld [vmem:[#allocation2 + $0x110] sm:$0xff]
        %v4527 = vld [vmem:[#allocation2 + $0x118] sm:$0xff]
        %v4528 = vld [vmem:[#allocation2 + $0x238] sm:$0xff]
        %v4529 = vld [vmem:[#allocation2 + $0x240] sm:$0xff]
        %v4530 = vsel %vm1182, 0.0, %v4458
        %v4531 = vsel %vm1182, 0.0, %v4460
        %v4532 = vsel %vm1182, 0.0, %v4462
        %v4533 = vsel %vm1183, 0.0, %v4459
        %v4534 = vsel %vm1183, 0.0, %v4461
        %v4535 = vsel %vm1183, 0.0, %v4463
        %v4536 = vsel %vm1184, 0.0, %v4460
        %v4537 = vsel %vm1184, 0.0, %v4462
        %v4538 = vsel %vm1184, 0.0, %v4464
        %v4539 = vsel %vm1185, 0.0, %v4461
        %v4540 = vsel %vm1185, 0.0, %v4463
        %v4541 = vsel %vm1185, 0.0, %v4465
        %v4542 = vsel %vm1186, 0.0, %v4462
        %v4543 = vsel %vm1186, 0.0, %v4464
        %v4544 = vsel %vm1186, 0.0, %v4466
        %v4545 = vsel %vm1187, 0.0, %v4463
        %v4546 = vsel %vm1187, 0.0, %v4465
        %v4547 = vsel %vm1187, 0.0, %v4467
        %v4548 = vsel %vm1188, 0.0, %v4464
        %v4549 = vsel %vm1188, 0.0, %v4466
        %v4550 = vsel %vm1188, 0.0, %v4468
        %v4551 = vsel %vm1189, 0.0, %v4465
        %v4552 = vsel %vm1189, 0.0, %v4467
        %v4553 = vsel %vm1189, 0.0, %v4469
        %v4554 = vsel %vm1190, 0.0, %v4466
        %v4555 = vsel %vm1190, 0.0, %v4468
        %v4556 = vsel %vm1190, 0.0, %v4470
        %v4557 = vsel %vm1191, 0.0, %v4467
        %v4558 = vsel %vm1191, 0.0, %v4469
        %v4559 = vsel %vm1191, 0.0, %v4471
        %v4560 = vsel %vm1192, 0.0, %v4468
        %v4561 = vsel %vm1192, 0.0, %v4470
        %v4562 = vsel %vm1192, 0.0, %v4472
        %v4563 = vsel %vm1193, 0.0, %v4469
        %v4564 = vsel %vm1193, 0.0, %v4471
        %v4565 = vsel %vm1193, 0.0, %v4473
        %v4566 = vsel %vm1194, 0.0, %v4470
        %v4567 = vsel %vm1194, 0.0, %v4472
        %v4568 = vsel %vm1194, 0.0, %v4474
        %v4569 = vsel %vm1195, 0.0, %v4471
        %v4570 = vsel %vm1195, 0.0, %v4473
        %v4571 = vsel %vm1195, 0.0, %v4475
        %v4572 = vsel %vm1196, 0.0, %v4472
        %v4573 = vsel %vm1196, 0.0, %v4474
        %v4574 = vsel %vm1196, 0.0, %v4476
        %v4575 = vsel %vm1197, 0.0, %v4473
        %v4576 = vsel %vm1197, 0.0, %v4475
        %v4577 = vsel %vm1197, 0.0, %v4477
        %v4578 = vsel %vm1198, 0.0, %v4474
        %v4579 = vsel %vm1198, 0.0, %v4476
        %v4580 = vsel %vm1198, 0.0, %v4478
        %v4581 = vsel %vm1199, 0.0, %v4475
        %v4582 = vsel %vm1199, 0.0, %v4477
        %v4583 = vsel %vm1199, 0.0, %v4479
        %v4584 = vsel %vm1200, 0.0, %v4476
        %v4585 = vsel %vm1200, 0.0, %v4478
        %v4586 = vsel %vm1200, 0.0, %v4480
        %v4587 = vsel %vm1201, 0.0, %v4477
        %v4588 = vsel %vm1201, 0.0, %v4479
        %v4589 = vsel %vm1201, 0.0, %v4481
        %v4590 = vsel %vm1202, 0.0, %v4478
        %v4591 = vsel %vm1202, 0.0, %v4480
        %v4592 = vsel %vm1202, 0.0, %v4482
        %v4593 = vsel %vm1203, 0.0, %v4479
        %v4594 = vsel %vm1203, 0.0, %v4481
        %v4595 = vsel %vm1203, 0.0, %v4483
        %v4596 = vsel %vm1204, 0.0, %v4480
        %v4597 = vsel %vm1204, 0.0, %v4482
        %v4598 = vsel %vm1204, 0.0, %v4484
        %v4599 = vsel %vm1205, 0.0, %v4481
        %v4600 = vsel %vm1205, 0.0, %v4483
        %v4601 = vsel %vm1205, 0.0, %v4485
        %v4602 = vsel %vm1206, 0.0, %v4482
        %v4603 = vsel %vm1206, 0.0, %v4484
        %v4604 = vsel %vm1206, 0.0, %v4486
        %v4605 = vsel %vm1207, 0.0, %v4483
        %v4606 = vsel %vm1207, 0.0, %v4485
        %v4607 = vsel %vm1207, 0.0, %v4487
        %v4608 = vsel %vm1208, 0.0, %v4484
        %v4609 = vsel %vm1208, 0.0, %v4486
        %v4610 = vsel %vm1208, 0.0, %v4488
        %v4611 = vsel %vm1209, 0.0, %v4485
        %v4612 = vsel %vm1209, 0.0, %v4487
        %v4613 = vsel %vm1209, 0.0, %v4489
        %v4614 = vsel %vm1210, 0.0, %v4486
        %v4615 = vsel %vm1210, 0.0, %v4488
        %v4616 = vsel %vm1210, 0.0, %v4522
        %v4617 = vsel %vm1211, 0.0, %v4487
        %v4618 = vsel %vm1211, 0.0, %v4489
        %v4619 = vsel %vm1211, 0.0, %v4523
        %v4620 = vsel %vm1212, 0.0, %v4488
        %v4621 = vsel %vm1212, 0.0, %v4522
        %v4622 = vsel %vm1212, 0.0, %v4526
        %v4623 = vsel %vm1213, 0.0, %v4489
        %v4624 = vsel %vm1213, 0.0, %v4523
        %v4625 = vsel %vm1213, 0.0, %v4527
        %v4626 = vsel %vm1182, 0.0, %v4490
        %v4627 = vsel %vm1182, 0.0, %v4492
        %v4628 = vsel %vm1182, 0.0, %v4494
        %v4629 = vsel %vm1183, 0.0, %v4491
        %v4630 = vsel %vm1183, 0.0, %v4493
        %v4631 = vsel %vm1183, 0.0, %v4495
        %v4632 = vsel %vm1184, 0.0, %v4492
        %v4633 = vsel %vm1184, 0.0, %v4494
        %v4634 = vsel %vm1184, 0.0, %v4496
        %v4635 = vsel %vm1185, 0.0, %v4493
        %v4636 = vsel %vm1185, 0.0, %v4495
        %v4637 = vsel %vm1185, 0.0, %v4497
        %v4638 = vsel %vm1186, 0.0, %v4494
        %v4639 = vsel %vm1186, 0.0, %v4496
        %v4640 = vsel %vm1186, 0.0, %v4498
        %v4641 = vsel %vm1187, 0.0, %v4495
        %v4642 = vsel %vm1187, 0.0, %v4497
        %v4643 = vsel %vm1187, 0.0, %v4499
        %v4644 = vsel %vm1188, 0.0, %v4496
        %v4645 = vsel %vm1188, 0.0, %v4498
        %v4646 = vsel %vm1188, 0.0, %v4500
        %v4647 = vsel %vm1189, 0.0, %v4497
        %v4648 = vsel %vm1189, 0.0, %v4499
        %v4649 = vsel %vm1189, 0.0, %v4501
        %v4650 = vsel %vm1190, 0.0, %v4498
        %v4651 = vsel %vm1190, 0.0, %v4500
        %v4652 = vsel %vm1190, 0.0, %v4502
        %v4653 = vsel %vm1191, 0.0, %v4499
        %v4654 = vsel %vm1191, 0.0, %v4501
        %v4655 = vsel %vm1191, 0.0, %v4503
        %v4656 = vsel %vm1192, 0.0, %v4500
        %v4657 = vsel %vm1192, 0.0, %v4502
        %v4658 = vsel %vm1192, 0.0, %v4504
        %v4659 = vsel %vm1193, 0.0, %v4501
        %v4660 = vsel %vm1193, 0.0, %v4503
        %v4661 = vsel %vm1193, 0.0, %v4505
        %v4662 = vsel %vm1194, 0.0, %v4502
        %v4663 = vsel %vm1194, 0.0, %v4504
        %v4664 = vsel %vm1194, 0.0, %v4506
        %v4665 = vsel %vm1195, 0.0, %v4503
        %v4666 = vsel %vm1195, 0.0, %v4505
        %v4667 = vsel %vm1195, 0.0, %v4507
        %v4668 = vsel %vm1196, 0.0, %v4504
        %v4669 = vsel %vm1196, 0.0, %v4506
        %v4670 = vsel %vm1196, 0.0, %v4508
        %v4671 = vsel %vm1197, 0.0, %v4505
        %v4672 = vsel %vm1197, 0.0, %v4507
        %v4673 = vsel %vm1197, 0.0, %v4509
        %v4674 = vsel %vm1198, 0.0, %v4506
        %v4675 = vsel %vm1198, 0.0, %v4508
        %v4676 = vsel %vm1198, 0.0, %v4510
        %v4677 = vsel %vm1199, 0.0, %v4507
        %v4678 = vsel %vm1199, 0.0, %v4509
        %v4679 = vsel %vm1199, 0.0, %v4511
        %v4680 = vsel %vm1200, 0.0, %v4508
        %v4681 = vsel %vm1200, 0.0, %v4510
        %v4682 = vsel %vm1200, 0.0, %v4512
        %v4683 = vsel %vm1201, 0.0, %v4509
        %v4684 = vsel %vm1201, 0.0, %v4511
        %v4685 = vsel %vm1201, 0.0, %v4513
        %v4686 = vsel %vm1202, 0.0, %v4510
        %v4687 = vsel %vm1202, 0.0, %v4512
        %v4688 = vsel %vm1202, 0.0, %v4514
        %v4689 = vsel %vm1203, 0.0, %v4511
        %v4690 = vsel %vm1203, 0.0, %v4513
        %v4691 = vsel %vm1203, 0.0, %v4515
        %v4692 = vsel %vm1204, 0.0, %v4512
        %v4693 = vsel %vm1204, 0.0, %v4514
        %v4694 = vsel %vm1204, 0.0, %v4516
        %v4695 = vsel %vm1205, 0.0, %v4513
        %v4696 = vsel %vm1205, 0.0, %v4515
        %v4697 = vsel %vm1205, 0.0, %v4517
        %v4698 = vsel %vm1206, 0.0, %v4514
        %v4699 = vsel %vm1206, 0.0, %v4516
        %v4700 = vsel %vm1206, 0.0, %v4518
        %v4701 = vsel %vm1207, 0.0, %v4515
        %v4702 = vsel %vm1207, 0.0, %v4517
        %v4703 = vsel %vm1207, 0.0, %v4519
        %v4704 = vsel %vm1208, 0.0, %v4516
        %v4705 = vsel %vm1208, 0.0, %v4518
        %v4706 = vsel %vm1208, 0.0, %v4520
        %v4707 = vsel %vm1209, 0.0, %v4517
        %v4708 = vsel %vm1209, 0.0, %v4519
        %v4709 = vsel %vm1209, 0.0, %v4521
        %v4710 = vsel %vm1210, 0.0, %v4518
        %v4711 = vsel %vm1210, 0.0, %v4520
        %v4712 = vsel %vm1210, 0.0, %v4524
        %v4713 = vsel %vm1211, 0.0, %v4519
        %v4714 = vsel %vm1211, 0.0, %v4521
        %v4715 = vsel %vm1211, 0.0, %v4525
        %v4716 = vsel %vm1212, 0.0, %v4520
        %v4717 = vsel %vm1212, 0.0, %v4524
        %v4718 = vsel %vm1212, 0.0, %v4528
        %v4719 = vsel %vm1213, 0.0, %v4521
        %v4720 = vsel %vm1213, 0.0, %v4525
        %v4721 = vsel %vm1213, 0.0, %v4529
        %v4722 = vld [vmem:[%s237] sm:$0xff]
        %v4723 = vld [vmem:[%s237 + $0x8] sm:$0xff]
        %v4724 = vld [vmem:[%s237 + $0x10] sm:$0xff]
        %v4725 = vld [vmem:[%s237 + $0x18] sm:$0xff]
        %v4726 = vld [vmem:[%s237 + $0x20] sm:$0xff]
        %v4727 = vld [vmem:[%s237 + $0x28] sm:$0xff]
        %v4728 = vld [vmem:[%s237 + $0x30] sm:$0xff]
        %v4729 = vld [vmem:[%s237 + $0x38] sm:$0xff]
        %v4730 = vld [vmem:[%s237 + $0x40] sm:$0xff]
        %v4731 = vld [vmem:[%s237 + $0x48] sm:$0xff]
        %v4732 = vld [vmem:[%s237 + $0x50] sm:$0xff]
        %v4733 = vld [vmem:[%s237 + $0x58] sm:$0xff]
        %v4734 = vld [vmem:[%s237 + $0x60] sm:$0xff]
        %v4735 = vld [vmem:[%s237 + $0x68] sm:$0xff]
        %v4736 = vld [vmem:[%s237 + $0x70] sm:$0xff]
        %v4737 = vld [vmem:[%s237 + $0x78] sm:$0xff]
        %v4738 = vld [vmem:[%s237 + $0x80] sm:$0xff]
        %v4739 = vld [vmem:[%s237 + $0x88] sm:$0xff]
        %v4740 = vld [vmem:[%s237 + $0x90] sm:$0xff]
        %v4741 = vld [vmem:[%s237 + $0x98] sm:$0xff]
        %v4742 = vld [vmem:[%s237 + $0xa0] sm:$0xff]
        %v4743 = vld [vmem:[%s237 + $0xa8] sm:$0xff]
        %v4744 = vld [vmem:[%s237 + $0xb0] sm:$0xff]
        %v4745 = vld [vmem:[%s237 + $0xb8] sm:$0xff]
        %v4746 = vld [vmem:[%s237 + $0xc0] sm:$0xff]
        %v4747 = vld [vmem:[%s237 + $0xc8] sm:$0xff]
        %v4748 = vld [vmem:[%s237 + $0xd0] sm:$0xff]
        %v4749 = vld [vmem:[%s237 + $0xd8] sm:$0xff]
        %v4750 = vld [vmem:[%s237 + $0xe0] sm:$0xff]
        %v4751 = vld [vmem:[%s237 + $0xe8] sm:$0xff]
        %v4752 = vld [vmem:[%s237 + $0xf0] sm:$0xff]
        %v4753 = vld [vmem:[%s237 + $0xf8] sm:$0xff]
        %v4754 = vld [vmem:[%s237 + $0x100] sm:$0xff]
        %v4755 = vld [vmem:[%s237 + $0x108] sm:$0xff]
        %v4756 = vld [vmem:[%s237 + $0x110] sm:$0xff]
        %v4757 = vld [vmem:[%s237 + $0x118] sm:$0xff]
        %v4758 = vld [vmem:[%s237 + $0x120] sm:$0xff]
        %v4759 = vld [vmem:[%s237 + $0x128] sm:$0xff]
        %v4760 = vld [vmem:[%s237 + $0x130] sm:$0xff]
        %v4761 = vld [vmem:[%s237 + $0x138] sm:$0xff]
        %v4762 = vld [vmem:[%s237 + $0x140] sm:$0xff]
        %v4763 = vld [vmem:[%s237 + $0x148] sm:$0xff]
        %v4764 = vld [vmem:[%s237 + $0x150] sm:$0xff]
        %v4765 = vld [vmem:[%s237 + $0x158] sm:$0xff]
        %v4766 = vld [vmem:[%s237 + $0x160] sm:$0xff]
        %v4767 = vld [vmem:[%s237 + $0x168] sm:$0xff]
        %v4768 = vld [vmem:[%s237 + $0x170] sm:$0xff]
        %v4769 = vld [vmem:[%s237 + $0x178] sm:$0xff]
        %v4770 = vld [vmem:[#allocation2 + $0x1] sm:$0xff]
        %v4771 = vld [vmem:[#allocation2 + $0x9] sm:$0xff]
        %v4772 = vld [vmem:[#allocation2 + $0x11] sm:$0xff]
        %v4773 = vld [vmem:[#allocation2 + $0x19] sm:$0xff]
        %v4774 = vld [vmem:[#allocation2 + $0x21] sm:$0xff]
        %v4775 = vld [vmem:[#allocation2 + $0x29] sm:$0xff]
        %v4776 = vld [vmem:[#allocation2 + $0x31] sm:$0xff]
        %v4777 = vld [vmem:[#allocation2 + $0x39] sm:$0xff]
        %v4778 = vld [vmem:[#allocation2 + $0x41] sm:$0xff]
        %v4779 = vld [vmem:[#allocation2 + $0x49] sm:$0xff]
        %v4780 = vld [vmem:[#allocation2 + $0x51] sm:$0xff]
        %v4781 = vld [vmem:[#allocation2 + $0x59] sm:$0xff]
        %v4782 = vld [vmem:[#allocation2 + $0x61] sm:$0xff]
        %v4783 = vld [vmem:[#allocation2 + $0x69] sm:$0xff]
        %v4784 = vld [vmem:[#allocation2 + $0x71] sm:$0xff]
        %v4785 = vld [vmem:[#allocation2 + $0x79] sm:$0xff]
        %v4786 = vld [vmem:[#allocation2 + $0x81] sm:$0xff]
        %v4787 = vld [vmem:[#allocation2 + $0x89] sm:$0xff]
        %v4788 = vld [vmem:[#allocation2 + $0x91] sm:$0xff]
        %v4789 = vld [vmem:[#allocation2 + $0x99] sm:$0xff]
        %v4790 = vld [vmem:[#allocation2 + $0xa1] sm:$0xff]
        %v4791 = vld [vmem:[#allocation2 + $0xa9] sm:$0xff]
        %v4792 = vld [vmem:[#allocation2 + $0xb1] sm:$0xff]
        %v4793 = vld [vmem:[#allocation2 + $0xb9] sm:$0xff]
        %v4794 = vld [vmem:[#allocation2 + $0xc1] sm:$0xff]
        %v4795 = vld [vmem:[#allocation2 + $0xc9] sm:$0xff]
        %v4796 = vld [vmem:[#allocation2 + $0xd1] sm:$0xff]
        %v4797 = vld [vmem:[#allocation2 + $0xd9] sm:$0xff]
        %v4798 = vld [vmem:[#allocation2 + $0xe1] sm:$0xff]
        %v4799 = vld [vmem:[#allocation2 + $0xe9] sm:$0xff]
        %v4800 = vld [vmem:[#allocation2 + $0xf1] sm:$0xff]
        %v4801 = vld [vmem:[#allocation2 + $0xf9] sm:$0xff]
        %v4802 = vld [vmem:[#allocation2 + $0x129] sm:$0xff]
        %v4803 = vld [vmem:[#allocation2 + $0x131] sm:$0xff]
        %v4804 = vld [vmem:[#allocation2 + $0x139] sm:$0xff]
        %v4805 = vld [vmem:[#allocation2 + $0x141] sm:$0xff]
        %v4806 = vld [vmem:[#allocation2 + $0x149] sm:$0xff]
        %v4807 = vld [vmem:[#allocation2 + $0x151] sm:$0xff]
        %v4808 = vld [vmem:[#allocation2 + $0x159] sm:$0xff]
        %v4809 = vld [vmem:[#allocation2 + $0x161] sm:$0xff]
        %v4810 = vld [vmem:[#allocation2 + $0x169] sm:$0xff]
        %v4811 = vld [vmem:[#allocation2 + $0x171] sm:$0xff]
        %v4812 = vld [vmem:[#allocation2 + $0x179] sm:$0xff]
        %v4813 = vld [vmem:[#allocation2 + $0x181] sm:$0xff]
        %v4814 = vld [vmem:[#allocation2 + $0x189] sm:$0xff]
        %v4815 = vld [vmem:[#allocation2 + $0x191] sm:$0xff]
        %v4816 = vld [vmem:[#allocation2 + $0x199] sm:$0xff]
        %v4817 = vld [vmem:[#allocation2 + $0x1a1] sm:$0xff]
        %v4818 = vld [vmem:[#allocation2 + $0x1a9] sm:$0xff]
        %v4819 = vld [vmem:[#allocation2 + $0x1b1] sm:$0xff]
        %v4820 = vld [vmem:[#allocation2 + $0x1b9] sm:$0xff]
        %v4821 = vld [vmem:[#allocation2 + $0x1c1] sm:$0xff]
        %v4822 = vld [vmem:[#allocation2 + $0x1c9] sm:$0xff]
        %v4823 = vld [vmem:[#allocation2 + $0x1d1] sm:$0xff]
        %v4824 = vld [vmem:[#allocation2 + $0x1d9] sm:$0xff]
        %v4825 = vld [vmem:[#allocation2 + $0x1e1] sm:$0xff]
        %v4826 = vld [vmem:[#allocation2 + $0x1e9] sm:$0xff]
        %v4827 = vld [vmem:[#allocation2 + $0x1f1] sm:$0xff]
        %v4828 = vld [vmem:[#allocation2 + $0x1f9] sm:$0xff]
        %v4829 = vld [vmem:[#allocation2 + $0x201] sm:$0xff]
        %v4830 = vld [vmem:[#allocation2 + $0x209] sm:$0xff]
        %v4831 = vld [vmem:[#allocation2 + $0x211] sm:$0xff]
        %v4832 = vld [vmem:[#allocation2 + $0x219] sm:$0xff]
        %v4833 = vld [vmem:[#allocation2 + $0x221] sm:$0xff]
        %v4834 = vld [vmem:[#allocation2 + $0x101] sm:$0xff]
        %v4835 = vld [vmem:[#allocation2 + $0x109] sm:$0xff]
        %v4836 = vld [vmem:[#allocation2 + $0x229] sm:$0xff]
        %v4837 = vld [vmem:[#allocation2 + $0x231] sm:$0xff]
        %v4838 = vld [vmem:[#allocation2 + $0x111] sm:$0xff]
        %v4839 = vld [vmem:[#allocation2 + $0x119] sm:$0xff]
        %v4840 = vld [vmem:[#allocation2 + $0x239] sm:$0xff]
        %v4841 = vld [vmem:[#allocation2 + $0x241] sm:$0xff]
        %s4842 = scalar_lea.vmem %s237, 384 [#allocation8]
        %v4843 = vld [vmem:[%s4842] sm:$0xff]
        %v4844 = vld [vmem:[%s4842 + $0x8] sm:$0xff]
        %v4845 = vld [vmem:[%s4842 + $0x10] sm:$0xff]
        %v4846 = vld [vmem:[%s4842 + $0x18] sm:$0xff]
        %v4847 = vld [vmem:[%s4842 + $0x20] sm:$0xff]
        %v4848 = vld [vmem:[%s4842 + $0x28] sm:$0xff]
        %v4849 = vld [vmem:[%s4842 + $0x30] sm:$0xff]
        %v4850 = vld [vmem:[%s4842 + $0x38] sm:$0xff]
        %v4851 = vld [vmem:[%s4842 + $0x40] sm:$0xff]
        %v4852 = vld [vmem:[%s4842 + $0x48] sm:$0xff]
        %v4853 = vld [vmem:[%s4842 + $0x50] sm:$0xff]
        %v4854 = vld [vmem:[%s4842 + $0x58] sm:$0xff]
        %v4855 = vld [vmem:[%s4842 + $0x60] sm:$0xff]
        %v4856 = vld [vmem:[%s4842 + $0x68] sm:$0xff]
        %v4857 = vld [vmem:[%s4842 + $0x70] sm:$0xff]
        %v4858 = vld [vmem:[%s4842 + $0x78] sm:$0xff]
        %v4859 = vld [vmem:[%s4842 + $0x80] sm:$0xff]
        %v4860 = vld [vmem:[%s4842 + $0x88] sm:$0xff]
        %v4861 = vld [vmem:[%s4842 + $0x90] sm:$0xff]
        %v4862 = vld [vmem:[%s4842 + $0x98] sm:$0xff]
        %v4863 = vld [vmem:[%s4842 + $0xa0] sm:$0xff]
        %v4864 = vld [vmem:[%s4842 + $0xa8] sm:$0xff]
        %v4865 = vld [vmem:[%s4842 + $0xb0] sm:$0xff]
        %v4866 = vld [vmem:[%s4842 + $0xb8] sm:$0xff]
        %v4867 = vld [vmem:[%s4842 + $0xc0] sm:$0xff]
        %v4868 = vld [vmem:[%s4842 + $0xc8] sm:$0xff]
        %v4869 = vld [vmem:[%s4842 + $0xd0] sm:$0xff]
        %v4870 = vld [vmem:[%s4842 + $0xd8] sm:$0xff]
        %v4871 = vld [vmem:[%s4842 + $0xe0] sm:$0xff]
        %v4872 = vld [vmem:[%s4842 + $0xe8] sm:$0xff]
        %v4873 = vld [vmem:[%s4842 + $0xf0] sm:$0xff]
        %v4874 = vld [vmem:[%s4842 + $0xf8] sm:$0xff]
        %v4875 = vld [vmem:[%s4842 + $0x100] sm:$0xff]
        %v4876 = vld [vmem:[%s4842 + $0x108] sm:$0xff]
        %v4877 = vld [vmem:[%s4842 + $0x110] sm:$0xff]
        %v4878 = vld [vmem:[%s4842 + $0x118] sm:$0xff]
        %v4879 = vld [vmem:[%s4842 + $0x120] sm:$0xff]
        %v4880 = vld [vmem:[%s4842 + $0x128] sm:$0xff]
        %v4881 = vld [vmem:[%s4842 + $0x130] sm:$0xff]
        %v4882 = vld [vmem:[%s4842 + $0x138] sm:$0xff]
        %v4883 = vld [vmem:[%s4842 + $0x140] sm:$0xff]
        %v4884 = vld [vmem:[%s4842 + $0x148] sm:$0xff]
        %v4885 = vld [vmem:[%s4842 + $0x150] sm:$0xff]
        %v4886 = vld [vmem:[%s4842 + $0x158] sm:$0xff]
        %v4887 = vld [vmem:[%s4842 + $0x160] sm:$0xff]
        %v4888 = vld [vmem:[%s4842 + $0x168] sm:$0xff]
        %v4889 = vld [vmem:[%s4842 + $0x170] sm:$0xff]
        %v4890 = vld [vmem:[%s4842 + $0x178] sm:$0xff]
        %4891 = vmatpush.msra.mxu0 %v4858
        %4892 = vmatpush.msra.mxu0 %v4857
        %4893 = vmatpush.msra.mxu0 %v4856
        %4894 = vmatpush.msra.mxu0 %v4855
        %4895 = vmatpush.msra.mxu0 %v4854
        %4896 = vmatpush.msra.mxu0 %v4853
        %4897 = vmatpush.msra.mxu0 %v4852
        %4898 = vmatpush.msra.mxu0 %v4851
        %4899 = vmatpush.msra.mxu0 %v4850
        %4900 = vmatpush.msra.mxu0 %v4849
        %4901 = vmatpush.msra.mxu0 %v4848
        %4902 = vmatpush.msra.mxu0 %v4847
        %4903 = vmatpush.msra.mxu0 %v4846
        %4904 = vmatpush.msra.mxu0 %v4845
        %4905 = vmatpush.msra.mxu0 %v4844
        %4906 = vmatpush.msra.mxu0 %v4843
        %4907 = vmatmul.f32.gmra.mxu0 %v4770
        %v4908 = vpop.f32.mrf.mxu0
        %v4909 = vadd.f32 0.0, %v4908
        %4910 = vmatmul.f32.gmra.mxu0 %v4771
        %v4911 = vpop.f32.mrf.mxu0
        %v4912 = vadd.f32 0.0, %v4911
        %4913 = vmatmul.f32.gmra.mxu0 %v4772
        %v4914 = vpop.f32.mrf.mxu0
        %v4915 = vadd.f32 0.0, %v4914
        %4916 = vmatmul.f32.gmra.mxu0 %v4773
        %v4917 = vpop.f32.mrf.mxu0
        %v4918 = vadd.f32 0.0, %v4917
        %4919 = vmatmul.f32.gmra.mxu0 %v4774
        %v4920 = vpop.f32.mrf.mxu0
        %v4921 = vadd.f32 0.0, %v4920
        %4922 = vmatmul.f32.gmra.mxu0 %v4775
        %v4923 = vpop.f32.mrf.mxu0
        %v4924 = vadd.f32 0.0, %v4923
        %4925 = vmatmul.f32.gmra.mxu0 %v4776
        %v4926 = vpop.f32.mrf.mxu0
        %v4927 = vadd.f32 0.0, %v4926
        %4928 = vmatmul.f32.gmra.mxu0 %v4777
        %v4929 = vpop.f32.mrf.mxu0
        %v4930 = vadd.f32 0.0, %v4929
        %4931 = vmatmul.f32.gmra.mxu0 %v4778
        %v4932 = vpop.f32.mrf.mxu0
        %v4933 = vadd.f32 0.0, %v4932
        %4934 = vmatmul.f32.gmra.mxu0 %v4779
        %v4935 = vpop.f32.mrf.mxu0
        %v4936 = vadd.f32 0.0, %v4935
        %4937 = vmatmul.f32.gmra.mxu0 %v4780
        %v4938 = vpop.f32.mrf.mxu0
        %v4939 = vadd.f32 0.0, %v4938
        %4940 = vmatmul.f32.gmra.mxu0 %v4781
        %v4941 = vpop.f32.mrf.mxu0
        %v4942 = vadd.f32 0.0, %v4941
        %4943 = vmatmul.f32.gmra.mxu0 %v4782
        %v4944 = vpop.f32.mrf.mxu0
        %v4945 = vadd.f32 0.0, %v4944
        %4946 = vmatmul.f32.gmra.mxu0 %v4783
        %v4947 = vpop.f32.mrf.mxu0
        %v4948 = vadd.f32 0.0, %v4947
        %4949 = vmatmul.f32.gmra.mxu0 %v4784
        %v4950 = vpop.f32.mrf.mxu0
        %v4951 = vadd.f32 0.0, %v4950
        %4952 = vmatmul.f32.gmra.mxu0 %v4785
        %v4953 = vpop.f32.mrf.mxu0
        %v4954 = vadd.f32 0.0, %v4953
        %4955 = vmatmul.f32.gmra.mxu0 %v4786
        %v4956 = vpop.f32.mrf.mxu0
        %v4957 = vadd.f32 0.0, %v4956
        %4958 = vmatmul.f32.gmra.mxu0 %v4787
        %v4959 = vpop.f32.mrf.mxu0
        %v4960 = vadd.f32 0.0, %v4959
        %4961 = vmatmul.f32.gmra.mxu0 %v4788
        %v4962 = vpop.f32.mrf.mxu0
        %v4963 = vadd.f32 0.0, %v4962
        %4964 = vmatmul.f32.gmra.mxu0 %v4789
        %v4965 = vpop.f32.mrf.mxu0
        %v4966 = vadd.f32 0.0, %v4965
        %4967 = vmatmul.f32.gmra.mxu0 %v4790
        %v4968 = vpop.f32.mrf.mxu0
        %v4969 = vadd.f32 0.0, %v4968
        %4970 = vmatmul.f32.gmra.mxu0 %v4791
        %v4971 = vpop.f32.mrf.mxu0
        %v4972 = vadd.f32 0.0, %v4971
        %4973 = vmatmul.f32.gmra.mxu0 %v4792
        %v4974 = vpop.f32.mrf.mxu0
        %v4975 = vadd.f32 0.0, %v4974
        %4976 = vmatmul.f32.gmra.mxu0 %v4793
        %v4977 = vpop.f32.mrf.mxu0
        %v4978 = vadd.f32 0.0, %v4977
        %4979 = vmatmul.f32.gmra.mxu0 %v4794
        %v4980 = vpop.f32.mrf.mxu0
        %v4981 = vadd.f32 0.0, %v4980
        %4982 = vmatmul.f32.gmra.mxu0 %v4795
        %v4983 = vpop.f32.mrf.mxu0
        %v4984 = vadd.f32 0.0, %v4983
        %4985 = vmatmul.f32.gmra.mxu0 %v4796
        %v4986 = vpop.f32.mrf.mxu0
        %v4987 = vadd.f32 0.0, %v4986
        %4988 = vmatmul.f32.gmra.mxu0 %v4797
        %v4989 = vpop.f32.mrf.mxu0
        %v4990 = vadd.f32 0.0, %v4989
        %4991 = vmatmul.f32.gmra.mxu0 %v4798
        %v4992 = vpop.f32.mrf.mxu0
        %v4993 = vadd.f32 0.0, %v4992
        %4994 = vmatmul.f32.gmra.mxu0 %v4799
        %v4995 = vpop.f32.mrf.mxu0
        %v4996 = vadd.f32 0.0, %v4995
        %4997 = vmatmul.f32.gmra.mxu0 %v4800
        %v4998 = vpop.f32.mrf.mxu0
        %v4999 = vadd.f32 0.0, %v4998
        %5000 = vmatmul.f32.gmra.mxu0 %v4801
        %v5001 = vpop.f32.mrf.mxu0
        %v5002 = vadd.f32 0.0, %v5001
        %5003 = vmatmul.f32.gmra.mxu0 %v4802
        %v5004 = vpop.f32.mrf.mxu0
        %v5005 = vadd.f32 0.0, %v5004
        %5006 = vmatmul.f32.gmra.mxu0 %v4803
        %v5007 = vpop.f32.mrf.mxu0
        %v5008 = vadd.f32 0.0, %v5007
        %5009 = vmatmul.f32.gmra.mxu0 %v4804
        %v5010 = vpop.f32.mrf.mxu0
        %v5011 = vadd.f32 0.0, %v5010
        %5012 = vmatmul.f32.gmra.mxu0 %v4805
        %v5013 = vpop.f32.mrf.mxu0
        %v5014 = vadd.f32 0.0, %v5013
        %5015 = vmatmul.f32.gmra.mxu0 %v4806
        %v5016 = vpop.f32.mrf.mxu0
        %v5017 = vadd.f32 0.0, %v5016
        %5018 = vmatmul.f32.gmra.mxu0 %v4807
        %v5019 = vpop.f32.mrf.mxu0
        %v5020 = vadd.f32 0.0, %v5019
        %5021 = vmatmul.f32.gmra.mxu0 %v4808
        %v5022 = vpop.f32.mrf.mxu0
        %v5023 = vadd.f32 0.0, %v5022
        %5024 = vmatmul.f32.gmra.mxu0 %v4809
        %v5025 = vpop.f32.mrf.mxu0
        %v5026 = vadd.f32 0.0, %v5025
        %5027 = vmatmul.f32.gmra.mxu0 %v4810
        %v5028 = vpop.f32.mrf.mxu0
        %v5029 = vadd.f32 0.0, %v5028
        %5030 = vmatmul.f32.gmra.mxu0 %v4811
        %v5031 = vpop.f32.mrf.mxu0
        %v5032 = vadd.f32 0.0, %v5031
        %5033 = vmatmul.f32.gmra.mxu0 %v4812
        %v5034 = vpop.f32.mrf.mxu0
        %v5035 = vadd.f32 0.0, %v5034
        %5036 = vmatmul.f32.gmra.mxu0 %v4813
        %v5037 = vpop.f32.mrf.mxu0
        %v5038 = vadd.f32 0.0, %v5037
        %5039 = vmatmul.f32.gmra.mxu0 %v4814
        %v5040 = vpop.f32.mrf.mxu0
        %v5041 = vadd.f32 0.0, %v5040
        %5042 = vmatmul.f32.gmra.mxu0 %v4815
        %v5043 = vpop.f32.mrf.mxu0
        %v5044 = vadd.f32 0.0, %v5043
        %5045 = vmatmul.f32.gmra.mxu0 %v4816
        %v5046 = vpop.f32.mrf.mxu0
        %v5047 = vadd.f32 0.0, %v5046
        %5048 = vmatmul.f32.gmra.mxu0 %v4817
        %v5049 = vpop.f32.mrf.mxu0
        %v5050 = vadd.f32 0.0, %v5049
        %5051 = vmatmul.f32.gmra.mxu0 %v4818
        %v5052 = vpop.f32.mrf.mxu0
        %v5053 = vadd.f32 0.0, %v5052
        %5054 = vmatmul.f32.gmra.mxu0 %v4819
        %v5055 = vpop.f32.mrf.mxu0
        %v5056 = vadd.f32 0.0, %v5055
        %5057 = vmatmul.f32.gmra.mxu0 %v4820
        %v5058 = vpop.f32.mrf.mxu0
        %v5059 = vadd.f32 0.0, %v5058
        %5060 = vmatmul.f32.gmra.mxu0 %v4821
        %v5061 = vpop.f32.mrf.mxu0
        %v5062 = vadd.f32 0.0, %v5061
        %5063 = vmatmul.f32.gmra.mxu0 %v4822
        %v5064 = vpop.f32.mrf.mxu0
        %v5065 = vadd.f32 0.0, %v5064
        %5066 = vmatmul.f32.gmra.mxu0 %v4823
        %v5067 = vpop.f32.mrf.mxu0
        %v5068 = vadd.f32 0.0, %v5067
        %5069 = vmatmul.f32.gmra.mxu0 %v4824
        %v5070 = vpop.f32.mrf.mxu0
        %v5071 = vadd.f32 0.0, %v5070
        %5072 = vmatmul.f32.gmra.mxu0 %v4825
        %v5073 = vpop.f32.mrf.mxu0
        %v5074 = vadd.f32 0.0, %v5073
        %5075 = vmatmul.f32.gmra.mxu0 %v4826
        %v5076 = vpop.f32.mrf.mxu0
        %v5077 = vadd.f32 0.0, %v5076
        %5078 = vmatmul.f32.gmra.mxu0 %v4827
        %v5079 = vpop.f32.mrf.mxu0
        %v5080 = vadd.f32 0.0, %v5079
        %5081 = vmatmul.f32.gmra.mxu0 %v4828
        %v5082 = vpop.f32.mrf.mxu0
        %v5083 = vadd.f32 0.0, %v5082
        %5084 = vmatmul.f32.gmra.mxu0 %v4829
        %v5085 = vpop.f32.mrf.mxu0
        %v5086 = vadd.f32 0.0, %v5085
        %5087 = vmatmul.f32.gmra.mxu0 %v4830
        %v5088 = vpop.f32.mrf.mxu0
        %v5089 = vadd.f32 0.0, %v5088
        %5090 = vmatmul.f32.gmra.mxu0 %v4831
        %v5091 = vpop.f32.mrf.mxu0
        %v5092 = vadd.f32 0.0, %v5091
        %5093 = vmatmul.f32.gmra.mxu0 %v4832
        %v5094 = vpop.f32.mrf.mxu0
        %v5095 = vadd.f32 0.0, %v5094
        %5096 = vmatmul.f32.gmra.mxu0 %v4833
        %v5097 = vpop.f32.mrf.mxu0
        %v5098 = vadd.f32 0.0, %v5097
        %5099 = vdwg.mxu0
        %5100 = vmatpush.msra.mxu0 %v4874
        %5101 = vmatpush.msra.mxu0 %v4873
        %5102 = vmatpush.msra.mxu0 %v4872
        %5103 = vmatpush.msra.mxu0 %v4871
        %5104 = vmatpush.msra.mxu0 %v4870
        %5105 = vmatpush.msra.mxu0 %v4869
        %5106 = vmatpush.msra.mxu0 %v4868
        %5107 = vmatpush.msra.mxu0 %v4867
        %5108 = vmatpush.msra.mxu0 %v4866
        %5109 = vmatpush.msra.mxu0 %v4865
        %5110 = vmatpush.msra.mxu0 %v4864
        %5111 = vmatpush.msra.mxu0 %v4863
        %5112 = vmatpush.msra.mxu0 %v4862
        %5113 = vmatpush.msra.mxu0 %v4861
        %5114 = vmatpush.msra.mxu0 %v4860
        %5115 = vmatpush.msra.mxu0 %v4859
        %5116 = vmatmul.f32.gmra.mxu0 %v4772
        %v5117 = vpop.f32.mrf.mxu0
        %v5118 = vadd.f32 %v4909, %v5117
        %5119 = vmatmul.f32.gmra.mxu0 %v4773
        %v5120 = vpop.f32.mrf.mxu0
        %v5121 = vadd.f32 %v4912, %v5120
        %5122 = vmatmul.f32.gmra.mxu0 %v4774
        %v5123 = vpop.f32.mrf.mxu0
        %v5124 = vadd.f32 %v4915, %v5123
        %5125 = vmatmul.f32.gmra.mxu0 %v4775
        %v5126 = vpop.f32.mrf.mxu0
        %v5127 = vadd.f32 %v4918, %v5126
        %5128 = vmatmul.f32.gmra.mxu0 %v4776
        %v5129 = vpop.f32.mrf.mxu0
        %v5130 = vadd.f32 %v4921, %v5129
        %5131 = vmatmul.f32.gmra.mxu0 %v4777
        %v5132 = vpop.f32.mrf.mxu0
        %v5133 = vadd.f32 %v4924, %v5132
        %5134 = vmatmul.f32.gmra.mxu0 %v4778
        %v5135 = vpop.f32.mrf.mxu0
        %v5136 = vadd.f32 %v4927, %v5135
        %5137 = vmatmul.f32.gmra.mxu0 %v4779
        %v5138 = vpop.f32.mrf.mxu0
        %v5139 = vadd.f32 %v4930, %v5138
        %5140 = vmatmul.f32.gmra.mxu0 %v4780
        %v5141 = vpop.f32.mrf.mxu0
        %v5142 = vadd.f32 %v4933, %v5141
        %5143 = vmatmul.f32.gmra.mxu0 %v4781
        %v5144 = vpop.f32.mrf.mxu0
        %v5145 = vadd.f32 %v4936, %v5144
        %5146 = vmatmul.f32.gmra.mxu0 %v4782
        %v5147 = vpop.f32.mrf.mxu0
        %v5148 = vadd.f32 %v4939, %v5147
        %5149 = vmatmul.f32.gmra.mxu0 %v4783
        %v5150 = vpop.f32.mrf.mxu0
        %v5151 = vadd.f32 %v4942, %v5150
        %5152 = vmatmul.f32.gmra.mxu0 %v4784
        %v5153 = vpop.f32.mrf.mxu0
        %v5154 = vadd.f32 %v4945, %v5153
        %5155 = vmatmul.f32.gmra.mxu0 %v4785
        %v5156 = vpop.f32.mrf.mxu0
        %v5157 = vadd.f32 %v4948, %v5156
        %5158 = vmatmul.f32.gmra.mxu0 %v4786
        %v5159 = vpop.f32.mrf.mxu0
        %v5160 = vadd.f32 %v4951, %v5159
        %5161 = vmatmul.f32.gmra.mxu0 %v4787
        %v5162 = vpop.f32.mrf.mxu0
        %v5163 = vadd.f32 %v4954, %v5162
        %5164 = vmatmul.f32.gmra.mxu0 %v4788
        %v5165 = vpop.f32.mrf.mxu0
        %v5166 = vadd.f32 %v4957, %v5165
        %5167 = vmatmul.f32.gmra.mxu0 %v4789
        %v5168 = vpop.f32.mrf.mxu0
        %v5169 = vadd.f32 %v4960, %v5168
        %5170 = vmatmul.f32.gmra.mxu0 %v4790
        %v5171 = vpop.f32.mrf.mxu0
        %v5172 = vadd.f32 %v4963, %v5171
        %5173 = vmatmul.f32.gmra.mxu0 %v4791
        %v5174 = vpop.f32.mrf.mxu0
        %v5175 = vadd.f32 %v4966, %v5174
        %5176 = vmatmul.f32.gmra.mxu0 %v4792
        %v5177 = vpop.f32.mrf.mxu0
        %v5178 = vadd.f32 %v4969, %v5177
        %5179 = vmatmul.f32.gmra.mxu0 %v4793
        %v5180 = vpop.f32.mrf.mxu0
        %v5181 = vadd.f32 %v4972, %v5180
        %5182 = vmatmul.f32.gmra.mxu0 %v4794
        %v5183 = vpop.f32.mrf.mxu0
        %v5184 = vadd.f32 %v4975, %v5183
        %5185 = vmatmul.f32.gmra.mxu0 %v4795
        %v5186 = vpop.f32.mrf.mxu0
        %v5187 = vadd.f32 %v4978, %v5186
        %5188 = vmatmul.f32.gmra.mxu0 %v4796
        %v5189 = vpop.f32.mrf.mxu0
        %v5190 = vadd.f32 %v4981, %v5189
        %5191 = vmatmul.f32.gmra.mxu0 %v4797
        %v5192 = vpop.f32.mrf.mxu0
        %v5193 = vadd.f32 %v4984, %v5192
        %5194 = vmatmul.f32.gmra.mxu0 %v4798
        %v5195 = vpop.f32.mrf.mxu0
        %v5196 = vadd.f32 %v4987, %v5195
        %5197 = vmatmul.f32.gmra.mxu0 %v4799
        %v5198 = vpop.f32.mrf.mxu0
        %v5199 = vadd.f32 %v4990, %v5198
        %5200 = vmatmul.f32.gmra.mxu0 %v4800
        %v5201 = vpop.f32.mrf.mxu0
        %v5202 = vadd.f32 %v4993, %v5201
        %5203 = vmatmul.f32.gmra.mxu0 %v4801
        %v5204 = vpop.f32.mrf.mxu0
        %v5205 = vadd.f32 %v4996, %v5204
        %5206 = vmatmul.f32.gmra.mxu0 %v4834
        %v5207 = vpop.f32.mrf.mxu0
        %v5208 = vadd.f32 %v4999, %v5207
        %5209 = vmatmul.f32.gmra.mxu0 %v4835
        %v5210 = vpop.f32.mrf.mxu0
        %v5211 = vadd.f32 %v5002, %v5210
        %5212 = vmatmul.f32.gmra.mxu0 %v4804
        %v5213 = vpop.f32.mrf.mxu0
        %v5214 = vadd.f32 %v5005, %v5213
        %5215 = vmatmul.f32.gmra.mxu0 %v4805
        %v5216 = vpop.f32.mrf.mxu0
        %v5217 = vadd.f32 %v5008, %v5216
        %5218 = vmatmul.f32.gmra.mxu0 %v4806
        %v5219 = vpop.f32.mrf.mxu0
        %v5220 = vadd.f32 %v5011, %v5219
        %5221 = vmatmul.f32.gmra.mxu0 %v4807
        %v5222 = vpop.f32.mrf.mxu0
        %v5223 = vadd.f32 %v5014, %v5222
        %5224 = vmatmul.f32.gmra.mxu0 %v4808
        %v5225 = vpop.f32.mrf.mxu0
        %v5226 = vadd.f32 %v5017, %v5225
        %5227 = vmatmul.f32.gmra.mxu0 %v4809
        %v5228 = vpop.f32.mrf.mxu0
        %v5229 = vadd.f32 %v5020, %v5228
        %5230 = vmatmul.f32.gmra.mxu0 %v4810
        %v5231 = vpop.f32.mrf.mxu0
        %v5232 = vadd.f32 %v5023, %v5231
        %5233 = vmatmul.f32.gmra.mxu0 %v4811
        %v5234 = vpop.f32.mrf.mxu0
        %v5235 = vadd.f32 %v5026, %v5234
        %5236 = vmatmul.f32.gmra.mxu0 %v4812
        %v5237 = vpop.f32.mrf.mxu0
        %v5238 = vadd.f32 %v5029, %v5237
        %5239 = vmatmul.f32.gmra.mxu0 %v4813
        %v5240 = vpop.f32.mrf.mxu0
        %v5241 = vadd.f32 %v5032, %v5240
        %5242 = vmatmul.f32.gmra.mxu0 %v4814
        %v5243 = vpop.f32.mrf.mxu0
        %v5244 = vadd.f32 %v5035, %v5243
        %5245 = vmatmul.f32.gmra.mxu0 %v4815
        %v5246 = vpop.f32.mrf.mxu0
        %v5247 = vadd.f32 %v5038, %v5246
        %5248 = vmatmul.f32.gmra.mxu0 %v4816
        %v5249 = vpop.f32.mrf.mxu0
        %v5250 = vadd.f32 %v5041, %v5249
        %5251 = vmatmul.f32.gmra.mxu0 %v4817
        %v5252 = vpop.f32.mrf.mxu0
        %v5253 = vadd.f32 %v5044, %v5252
        %5254 = vmatmul.f32.gmra.mxu0 %v4818
        %v5255 = vpop.f32.mrf.mxu0
        %v5256 = vadd.f32 %v5047, %v5255
        %5257 = vmatmul.f32.gmra.mxu0 %v4819
        %v5258 = vpop.f32.mrf.mxu0
        %v5259 = vadd.f32 %v5050, %v5258
        %5260 = vmatmul.f32.gmra.mxu0 %v4820
        %v5261 = vpop.f32.mrf.mxu0
        %v5262 = vadd.f32 %v5053, %v5261
        %5263 = vmatmul.f32.gmra.mxu0 %v4821
        %v5264 = vpop.f32.mrf.mxu0
        %v5265 = vadd.f32 %v5056, %v5264
        %5266 = vmatmul.f32.gmra.mxu0 %v4822
        %v5267 = vpop.f32.mrf.mxu0
        %v5268 = vadd.f32 %v5059, %v5267
        %5269 = vmatmul.f32.gmra.mxu0 %v4823
        %v5270 = vpop.f32.mrf.mxu0
        %v5271 = vadd.f32 %v5062, %v5270
        %5272 = vmatmul.f32.gmra.mxu0 %v4824
        %v5273 = vpop.f32.mrf.mxu0
        %v5274 = vadd.f32 %v5065, %v5273
        %5275 = vmatmul.f32.gmra.mxu0 %v4825
        %v5276 = vpop.f32.mrf.mxu0
        %v5277 = vadd.f32 %v5068, %v5276
        %5278 = vmatmul.f32.gmra.mxu0 %v4826
        %v5279 = vpop.f32.mrf.mxu0
        %v5280 = vadd.f32 %v5071, %v5279
        %5281 = vmatmul.f32.gmra.mxu0 %v4827
        %v5282 = vpop.f32.mrf.mxu0
        %v5283 = vadd.f32 %v5074, %v5282
        %5284 = vmatmul.f32.gmra.mxu0 %v4828
        %v5285 = vpop.f32.mrf.mxu0
        %v5286 = vadd.f32 %v5077, %v5285
        %5287 = vmatmul.f32.gmra.mxu0 %v4829
        %v5288 = vpop.f32.mrf.mxu0
        %v5289 = vadd.f32 %v5080, %v5288
        %5290 = vmatmul.f32.gmra.mxu0 %v4830
        %v5291 = vpop.f32.mrf.mxu0
        %v5292 = vadd.f32 %v5083, %v5291
        %5293 = vmatmul.f32.gmra.mxu0 %v4831
        %v5294 = vpop.f32.mrf.mxu0
        %v5295 = vadd.f32 %v5086, %v5294
        %5296 = vmatmul.f32.gmra.mxu0 %v4832
        %v5297 = vpop.f32.mrf.mxu0
        %v5298 = vadd.f32 %v5089, %v5297
        %5299 = vmatmul.f32.gmra.mxu0 %v4833
        %v5300 = vpop.f32.mrf.mxu0
        %v5301 = vadd.f32 %v5092, %v5300
        %5302 = vmatmul.f32.gmra.mxu0 %v4836
        %v5303 = vpop.f32.mrf.mxu0
        %v5304 = vadd.f32 %v5095, %v5303
        %5305 = vmatmul.f32.gmra.mxu0 %v4837
        %v5306 = vpop.f32.mrf.mxu0
        %v5307 = vadd.f32 %v5098, %v5306
        %5308 = vdwg.mxu0
        %5309 = vmatpush.msra.mxu0 %v4890
        %5310 = vmatpush.msra.mxu0 %v4889
        %5311 = vmatpush.msra.mxu0 %v4888
        %5312 = vmatpush.msra.mxu0 %v4887
        %5313 = vmatpush.msra.mxu0 %v4886
        %5314 = vmatpush.msra.mxu0 %v4885
        %5315 = vmatpush.msra.mxu0 %v4884
        %5316 = vmatpush.msra.mxu0 %v4883
        %5317 = vmatpush.msra.mxu0 %v4882
        %5318 = vmatpush.msra.mxu0 %v4881
        %5319 = vmatpush.msra.mxu0 %v4880
        %5320 = vmatpush.msra.mxu0 %v4879
        %5321 = vmatpush.msra.mxu0 %v4878
        %5322 = vmatpush.msra.mxu0 %v4877
        %5323 = vmatpush.msra.mxu0 %v4876
        %5324 = vmatpush.msra.mxu0 %v4875
        %5325 = vmatmul.f32.gmra.mxu0 %v4774
        %v5326 = vpop.f32.mrf.mxu0
        %v5327 = vadd.f32 %v5118, %v5326
        %5328 = vmatmul.f32.gmra.mxu0 %v4775
        %v5329 = vpop.f32.mrf.mxu0
        %v5330 = vadd.f32 %v5121, %v5329
        %5331 = vmatmul.f32.gmra.mxu0 %v4776
        %v5332 = vpop.f32.mrf.mxu0
        %v5333 = vadd.f32 %v5124, %v5332
        %5334 = vmatmul.f32.gmra.mxu0 %v4777
        %v5335 = vpop.f32.mrf.mxu0
        %v5336 = vadd.f32 %v5127, %v5335
        %5337 = vmatmul.f32.gmra.mxu0 %v4778
        %v5338 = vpop.f32.mrf.mxu0
        %v5339 = vadd.f32 %v5130, %v5338
        %5340 = vmatmul.f32.gmra.mxu0 %v4779
        %v5341 = vpop.f32.mrf.mxu0
        %v5342 = vadd.f32 %v5133, %v5341
        %5343 = vmatmul.f32.gmra.mxu0 %v4780
        %v5344 = vpop.f32.mrf.mxu0
        %v5345 = vadd.f32 %v5136, %v5344
        %5346 = vmatmul.f32.gmra.mxu0 %v4781
        %v5347 = vpop.f32.mrf.mxu0
        %v5348 = vadd.f32 %v5139, %v5347
        %5349 = vmatmul.f32.gmra.mxu0 %v4782
        %v5350 = vpop.f32.mrf.mxu0
        %v5351 = vadd.f32 %v5142, %v5350
        %5352 = vmatmul.f32.gmra.mxu0 %v4783
        %v5353 = vpop.f32.mrf.mxu0
        %v5354 = vadd.f32 %v5145, %v5353
        %5355 = vmatmul.f32.gmra.mxu0 %v4784
        %v5356 = vpop.f32.mrf.mxu0
        %v5357 = vadd.f32 %v5148, %v5356
        %5358 = vmatmul.f32.gmra.mxu0 %v4785
        %v5359 = vpop.f32.mrf.mxu0
        %v5360 = vadd.f32 %v5151, %v5359
        %5361 = vmatmul.f32.gmra.mxu0 %v4786
        %v5362 = vpop.f32.mrf.mxu0
        %v5363 = vadd.f32 %v5154, %v5362
        %5364 = vmatmul.f32.gmra.mxu0 %v4787
        %v5365 = vpop.f32.mrf.mxu0
        %v5366 = vadd.f32 %v5157, %v5365
        %5367 = vmatmul.f32.gmra.mxu0 %v4788
        %v5368 = vpop.f32.mrf.mxu0
        %v5369 = vadd.f32 %v5160, %v5368
        %5370 = vmatmul.f32.gmra.mxu0 %v4789
        %v5371 = vpop.f32.mrf.mxu0
        %v5372 = vadd.f32 %v5163, %v5371
        %5373 = vmatmul.f32.gmra.mxu0 %v4790
        %v5374 = vpop.f32.mrf.mxu0
        %v5375 = vadd.f32 %v5166, %v5374
        %5376 = vmatmul.f32.gmra.mxu0 %v4791
        %v5377 = vpop.f32.mrf.mxu0
        %v5378 = vadd.f32 %v5169, %v5377
        %5379 = vmatmul.f32.gmra.mxu0 %v4792
        %v5380 = vpop.f32.mrf.mxu0
        %v5381 = vadd.f32 %v5172, %v5380
        %5382 = vmatmul.f32.gmra.mxu0 %v4793
        %v5383 = vpop.f32.mrf.mxu0
        %v5384 = vadd.f32 %v5175, %v5383
        %5385 = vmatmul.f32.gmra.mxu0 %v4794
        %v5386 = vpop.f32.mrf.mxu0
        %v5387 = vadd.f32 %v5178, %v5386
        %5388 = vmatmul.f32.gmra.mxu0 %v4795
        %v5389 = vpop.f32.mrf.mxu0
        %v5390 = vadd.f32 %v5181, %v5389
        %5391 = vmatmul.f32.gmra.mxu0 %v4796
        %v5392 = vpop.f32.mrf.mxu0
        %v5393 = vadd.f32 %v5184, %v5392
        %5394 = vmatmul.f32.gmra.mxu0 %v4797
        %v5395 = vpop.f32.mrf.mxu0
        %v5396 = vadd.f32 %v5187, %v5395
        %5397 = vmatmul.f32.gmra.mxu0 %v4798
        %v5398 = vpop.f32.mrf.mxu0
        %v5399 = vadd.f32 %v5190, %v5398
        %5400 = vmatmul.f32.gmra.mxu0 %v4799
        %v5401 = vpop.f32.mrf.mxu0
        %v5402 = vadd.f32 %v5193, %v5401
        %5403 = vmatmul.f32.gmra.mxu0 %v4800
        %v5404 = vpop.f32.mrf.mxu0
        %v5405 = vadd.f32 %v5196, %v5404
        %5406 = vmatmul.f32.gmra.mxu0 %v4801
        %v5407 = vpop.f32.mrf.mxu0
        %v5408 = vadd.f32 %v5199, %v5407
        %5409 = vmatmul.f32.gmra.mxu0 %v4834
        %v5410 = vpop.f32.mrf.mxu0
        %v5411 = vadd.f32 %v5202, %v5410
        %5412 = vmatmul.f32.gmra.mxu0 %v4835
        %v5413 = vpop.f32.mrf.mxu0
        %v5414 = vadd.f32 %v5205, %v5413
        %5415 = vmatmul.f32.gmra.mxu0 %v4838
        %v5416 = vpop.f32.mrf.mxu0
        %v5417 = vadd.f32 %v5208, %v5416
        %5418 = vmatmul.f32.gmra.mxu0 %v4839
        %v5419 = vpop.f32.mrf.mxu0
        %v5420 = vadd.f32 %v5211, %v5419
        %5421 = vmatmul.f32.gmra.mxu0 %v4806
        %v5422 = vpop.f32.mrf.mxu0
        %v5423 = vadd.f32 %v5214, %v5422
        %5424 = vmatmul.f32.gmra.mxu0 %v4807
        %v5425 = vpop.f32.mrf.mxu0
        %v5426 = vadd.f32 %v5217, %v5425
        %5427 = vmatmul.f32.gmra.mxu0 %v4808
        %v5428 = vpop.f32.mrf.mxu0
        %v5429 = vadd.f32 %v5220, %v5428
        %5430 = vmatmul.f32.gmra.mxu0 %v4809
        %v5431 = vpop.f32.mrf.mxu0
        %v5432 = vadd.f32 %v5223, %v5431
        %5433 = vmatmul.f32.gmra.mxu0 %v4810
        %v5434 = vpop.f32.mrf.mxu0
        %v5435 = vadd.f32 %v5226, %v5434
        %5436 = vmatmul.f32.gmra.mxu0 %v4811
        %v5437 = vpop.f32.mrf.mxu0
        %v5438 = vadd.f32 %v5229, %v5437
        %5439 = vmatmul.f32.gmra.mxu0 %v4812
        %v5440 = vpop.f32.mrf.mxu0
        %v5441 = vadd.f32 %v5232, %v5440
        %5442 = vmatmul.f32.gmra.mxu0 %v4813
        %v5443 = vpop.f32.mrf.mxu0
        %v5444 = vadd.f32 %v5235, %v5443
        %5445 = vmatmul.f32.gmra.mxu0 %v4814
        %v5446 = vpop.f32.mrf.mxu0
        %v5447 = vadd.f32 %v5238, %v5446
        %5448 = vmatmul.f32.gmra.mxu0 %v4815
        %v5449 = vpop.f32.mrf.mxu0
        %v5450 = vadd.f32 %v5241, %v5449
        %5451 = vmatmul.f32.gmra.mxu0 %v4816
        %v5452 = vpop.f32.mrf.mxu0
        %v5453 = vadd.f32 %v5244, %v5452
        %5454 = vmatmul.f32.gmra.mxu0 %v4817
        %v5455 = vpop.f32.mrf.mxu0
        %v5456 = vadd.f32 %v5247, %v5455
        %5457 = vmatmul.f32.gmra.mxu0 %v4818
        %v5458 = vpop.f32.mrf.mxu0
        %v5459 = vadd.f32 %v5250, %v5458
        %5460 = vmatmul.f32.gmra.mxu0 %v4819
        %v5461 = vpop.f32.mrf.mxu0
        %v5462 = vadd.f32 %v5253, %v5461
        %5463 = vmatmul.f32.gmra.mxu0 %v4820
        %v5464 = vpop.f32.mrf.mxu0
        %v5465 = vadd.f32 %v5256, %v5464
        %5466 = vmatmul.f32.gmra.mxu0 %v4821
        %v5467 = vpop.f32.mrf.mxu0
        %v5468 = vadd.f32 %v5259, %v5467
        %5469 = vmatmul.f32.gmra.mxu0 %v4822
        %v5470 = vpop.f32.mrf.mxu0
        %v5471 = vadd.f32 %v5262, %v5470
        %5472 = vmatmul.f32.gmra.mxu0 %v4823
        %v5473 = vpop.f32.mrf.mxu0
        %v5474 = vadd.f32 %v5265, %v5473
        %5475 = vmatmul.f32.gmra.mxu0 %v4824
        %v5476 = vpop.f32.mrf.mxu0
        %v5477 = vadd.f32 %v5268, %v5476
        %5478 = vmatmul.f32.gmra.mxu0 %v4825
        %v5479 = vpop.f32.mrf.mxu0
        %v5480 = vadd.f32 %v5271, %v5479
        %5481 = vmatmul.f32.gmra.mxu0 %v4826
        %v5482 = vpop.f32.mrf.mxu0
        %v5483 = vadd.f32 %v5274, %v5482
        %5484 = vmatmul.f32.gmra.mxu0 %v4827
        %v5485 = vpop.f32.mrf.mxu0
        %v5486 = vadd.f32 %v5277, %v5485
        %5487 = vmatmul.f32.gmra.mxu0 %v4828
        %v5488 = vpop.f32.mrf.mxu0
        %v5489 = vadd.f32 %v5280, %v5488
        %5490 = vmatmul.f32.gmra.mxu0 %v4829
        %v5491 = vpop.f32.mrf.mxu0
        %v5492 = vadd.f32 %v5283, %v5491
        %5493 = vmatmul.f32.gmra.mxu0 %v4830
        %v5494 = vpop.f32.mrf.mxu0
        %v5495 = vadd.f32 %v5286, %v5494
        %5496 = vmatmul.f32.gmra.mxu0 %v4831
        %v5497 = vpop.f32.mrf.mxu0
        %v5498 = vadd.f32 %v5289, %v5497
        %5499 = vmatmul.f32.gmra.mxu0 %v4832
        %v5500 = vpop.f32.mrf.mxu0
        %v5501 = vadd.f32 %v5292, %v5500
        %5502 = vmatmul.f32.gmra.mxu0 %v4833
        %v5503 = vpop.f32.mrf.mxu0
        %v5504 = vadd.f32 %v5295, %v5503
        %5505 = vmatmul.f32.gmra.mxu0 %v4836
        %v5506 = vpop.f32.mrf.mxu0
        %v5507 = vadd.f32 %v5298, %v5506
        %5508 = vmatmul.f32.gmra.mxu0 %v4837
        %v5509 = vpop.f32.mrf.mxu0
        %v5510 = vadd.f32 %v5301, %v5509
        %5511 = vmatmul.f32.gmra.mxu0 %v4840
        %v5512 = vpop.f32.mrf.mxu0
        %v5513 = vadd.f32 %v5304, %v5512
        %5514 = vmatmul.f32.gmra.mxu0 %v4841
        %v5515 = vpop.f32.mrf.mxu0
        %v5516 = vadd.f32 %v5307, %v5515
        %5517 = vdwg.mxu0
        %5518 = vmatpush.msra.mxu0 %v4737
        %5519 = vmatpush.msra.mxu0 %v4736
        %5520 = vmatpush.msra.mxu0 %v4735
        %5521 = vmatpush.msra.mxu0 %v4734
        %5522 = vmatpush.msra.mxu0 %v4733
        %5523 = vmatpush.msra.mxu0 %v4732
        %5524 = vmatpush.msra.mxu0 %v4731
        %5525 = vmatpush.msra.mxu0 %v4730
        %5526 = vmatpush.msra.mxu0 %v4729
        %5527 = vmatpush.msra.mxu0 %v4728
        %5528 = vmatpush.msra.mxu0 %v4727
        %5529 = vmatpush.msra.mxu0 %v4726
        %5530 = vmatpush.msra.mxu0 %v4725
        %5531 = vmatpush.msra.mxu0 %v4724
        %5532 = vmatpush.msra.mxu0 %v4723
        %5533 = vmatpush.msra.mxu0 %v4722
        %5534 = vmatmul.f32.gmra.mxu0 %v4530
        %v5535 = vpop.f32.mrf.mxu0
        %v5536 = vadd.f32 %v5327, %v5535
        %5537 = vmatmul.f32.gmra.mxu0 %v4533
        %v5538 = vpop.f32.mrf.mxu0
        %v5539 = vadd.f32 %v5330, %v5538
        %5540 = vmatmul.f32.gmra.mxu0 %v4536
        %v5541 = vpop.f32.mrf.mxu0
        %v5542 = vadd.f32 %v5333, %v5541
        %5543 = vmatmul.f32.gmra.mxu0 %v4539
        %v5544 = vpop.f32.mrf.mxu0
        %v5545 = vadd.f32 %v5336, %v5544
        %5546 = vmatmul.f32.gmra.mxu0 %v4542
        %v5547 = vpop.f32.mrf.mxu0
        %v5548 = vadd.f32 %v5339, %v5547
        %5549 = vmatmul.f32.gmra.mxu0 %v4545
        %v5550 = vpop.f32.mrf.mxu0
        %v5551 = vadd.f32 %v5342, %v5550
        %5552 = vmatmul.f32.gmra.mxu0 %v4548
        %v5553 = vpop.f32.mrf.mxu0
        %v5554 = vadd.f32 %v5345, %v5553
        %5555 = vmatmul.f32.gmra.mxu0 %v4551
        %v5556 = vpop.f32.mrf.mxu0
        %v5557 = vadd.f32 %v5348, %v5556
        %5558 = vmatmul.f32.gmra.mxu0 %v4554
        %v5559 = vpop.f32.mrf.mxu0
        %v5560 = vadd.f32 %v5351, %v5559
        %5561 = vmatmul.f32.gmra.mxu0 %v4557
        %v5562 = vpop.f32.mrf.mxu0
        %v5563 = vadd.f32 %v5354, %v5562
        %5564 = vmatmul.f32.gmra.mxu0 %v4560
        %v5565 = vpop.f32.mrf.mxu0
        %v5566 = vadd.f32 %v5357, %v5565
        %5567 = vmatmul.f32.gmra.mxu0 %v4563
        %v5568 = vpop.f32.mrf.mxu0
        %v5569 = vadd.f32 %v5360, %v5568
        %5570 = vmatmul.f32.gmra.mxu0 %v4566
        %v5571 = vpop.f32.mrf.mxu0
        %v5572 = vadd.f32 %v5363, %v5571
        %5573 = vmatmul.f32.gmra.mxu0 %v4569
        %v5574 = vpop.f32.mrf.mxu0
        %v5575 = vadd.f32 %v5366, %v5574
        %5576 = vmatmul.f32.gmra.mxu0 %v4572
        %v5577 = vpop.f32.mrf.mxu0
        %v5578 = vadd.f32 %v5369, %v5577
        %5579 = vmatmul.f32.gmra.mxu0 %v4575
        %v5580 = vpop.f32.mrf.mxu0
        %v5581 = vadd.f32 %v5372, %v5580
        %5582 = vmatmul.f32.gmra.mxu0 %v4578
        %v5583 = vpop.f32.mrf.mxu0
        %v5584 = vadd.f32 %v5375, %v5583
        %5585 = vmatmul.f32.gmra.mxu0 %v4581
        %v5586 = vpop.f32.mrf.mxu0
        %v5587 = vadd.f32 %v5378, %v5586
        %5588 = vmatmul.f32.gmra.mxu0 %v4584
        %v5589 = vpop.f32.mrf.mxu0
        %v5590 = vadd.f32 %v5381, %v5589
        %5591 = vmatmul.f32.gmra.mxu0 %v4587
        %v5592 = vpop.f32.mrf.mxu0
        %v5593 = vadd.f32 %v5384, %v5592
        %5594 = vmatmul.f32.gmra.mxu0 %v4590
        %v5595 = vpop.f32.mrf.mxu0
        %v5596 = vadd.f32 %v5387, %v5595
        %5597 = vmatmul.f32.gmra.mxu0 %v4593
        %v5598 = vpop.f32.mrf.mxu0
        %v5599 = vadd.f32 %v5390, %v5598
        %5600 = vmatmul.f32.gmra.mxu0 %v4596
        %v5601 = vpop.f32.mrf.mxu0
        %v5602 = vadd.f32 %v5393, %v5601
        %5603 = vmatmul.f32.gmra.mxu0 %v4599
        %v5604 = vpop.f32.mrf.mxu0
        %v5605 = vadd.f32 %v5396, %v5604
        %5606 = vmatmul.f32.gmra.mxu0 %v4602
        %v5607 = vpop.f32.mrf.mxu0
        %v5608 = vadd.f32 %v5399, %v5607
        %5609 = vmatmul.f32.gmra.mxu0 %v4605
        %v5610 = vpop.f32.mrf.mxu0
        %v5611 = vadd.f32 %v5402, %v5610
        %5612 = vmatmul.f32.gmra.mxu0 %v4608
        %v5613 = vpop.f32.mrf.mxu0
        %v5614 = vadd.f32 %v5405, %v5613
        %5615 = vmatmul.f32.gmra.mxu0 %v4611
        %v5616 = vpop.f32.mrf.mxu0
        %v5617 = vadd.f32 %v5408, %v5616
        %5618 = vmatmul.f32.gmra.mxu0 %v4614
        %v5619 = vpop.f32.mrf.mxu0
        %v5620 = vadd.f32 %v5411, %v5619
        %5621 = vmatmul.f32.gmra.mxu0 %v4617
        %v5622 = vpop.f32.mrf.mxu0
        %v5623 = vadd.f32 %v5414, %v5622
        %5624 = vmatmul.f32.gmra.mxu0 %v4620
        %v5625 = vpop.f32.mrf.mxu0
        %v5626 = vadd.f32 %v5417, %v5625
        %5627 = vmatmul.f32.gmra.mxu0 %v4623
        %v5628 = vpop.f32.mrf.mxu0
        %v5629 = vadd.f32 %v5420, %v5628
        %5630 = vmatmul.f32.gmra.mxu0 %v4626
        %v5631 = vpop.f32.mrf.mxu0
        %v5632 = vadd.f32 %v5423, %v5631
        %5633 = vmatmul.f32.gmra.mxu0 %v4629
        %v5634 = vpop.f32.mrf.mxu0
        %v5635 = vadd.f32 %v5426, %v5634
        %5636 = vmatmul.f32.gmra.mxu0 %v4632
        %v5637 = vpop.f32.mrf.mxu0
        %v5638 = vadd.f32 %v5429, %v5637
        %5639 = vmatmul.f32.gmra.mxu0 %v4635
        %v5640 = vpop.f32.mrf.mxu0
        %v5641 = vadd.f32 %v5432, %v5640
        %5642 = vmatmul.f32.gmra.mxu0 %v4638
        %v5643 = vpop.f32.mrf.mxu0
        %v5644 = vadd.f32 %v5435, %v5643
        %5645 = vmatmul.f32.gmra.mxu0 %v4641
        %v5646 = vpop.f32.mrf.mxu0
        %v5647 = vadd.f32 %v5438, %v5646
        %5648 = vmatmul.f32.gmra.mxu0 %v4644
        %v5649 = vpop.f32.mrf.mxu0
        %v5650 = vadd.f32 %v5441, %v5649
        %5651 = vmatmul.f32.gmra.mxu0 %v4647
        %v5652 = vpop.f32.mrf.mxu0
        %v5653 = vadd.f32 %v5444, %v5652
        %5654 = vmatmul.f32.gmra.mxu0 %v4650
        %v5655 = vpop.f32.mrf.mxu0
        %v5656 = vadd.f32 %v5447, %v5655
        %5657 = vmatmul.f32.gmra.mxu0 %v4653
        %v5658 = vpop.f32.mrf.mxu0
        %v5659 = vadd.f32 %v5450, %v5658
        %5660 = vmatmul.f32.gmra.mxu0 %v4656
        %v5661 = vpop.f32.mrf.mxu0
        %v5662 = vadd.f32 %v5453, %v5661
        %5663 = vmatmul.f32.gmra.mxu0 %v4659
        %v5664 = vpop.f32.mrf.mxu0
        %v5665 = vadd.f32 %v5456, %v5664
        %5666 = vmatmul.f32.gmra.mxu0 %v4662
        %v5667 = vpop.f32.mrf.mxu0
        %v5668 = vadd.f32 %v5459, %v5667
        %5669 = vmatmul.f32.gmra.mxu0 %v4665
        %v5670 = vpop.f32.mrf.mxu0
        %v5671 = vadd.f32 %v5462, %v5670
        %5672 = vmatmul.f32.gmra.mxu0 %v4668
        %v5673 = vpop.f32.mrf.mxu0
        %v5674 = vadd.f32 %v5465, %v5673
        %5675 = vmatmul.f32.gmra.mxu0 %v4671
        %v5676 = vpop.f32.mrf.mxu0
        %v5677 = vadd.f32 %v5468, %v5676
        %5678 = vmatmul.f32.gmra.mxu0 %v4674
        %v5679 = vpop.f32.mrf.mxu0
        %v5680 = vadd.f32 %v5471, %v5679
        %5681 = vmatmul.f32.gmra.mxu0 %v4677
        %v5682 = vpop.f32.mrf.mxu0
        %v5683 = vadd.f32 %v5474, %v5682
        %5684 = vmatmul.f32.gmra.mxu0 %v4680
        %v5685 = vpop.f32.mrf.mxu0
        %v5686 = vadd.f32 %v5477, %v5685
        %5687 = vmatmul.f32.gmra.mxu0 %v4683
        %v5688 = vpop.f32.mrf.mxu0
        %v5689 = vadd.f32 %v5480, %v5688
        %5690 = vmatmul.f32.gmra.mxu0 %v4686
        %v5691 = vpop.f32.mrf.mxu0
        %v5692 = vadd.f32 %v5483, %v5691
        %5693 = vmatmul.f32.gmra.mxu0 %v4689
        %v5694 = vpop.f32.mrf.mxu0
        %v5695 = vadd.f32 %v5486, %v5694
        %5696 = vmatmul.f32.gmra.mxu0 %v4692
        %v5697 = vpop.f32.mrf.mxu0
        %v5698 = vadd.f32 %v5489, %v5697
        %5699 = vmatmul.f32.gmra.mxu0 %v4695
        %v5700 = vpop.f32.mrf.mxu0
        %v5701 = vadd.f32 %v5492, %v5700
        %5702 = vmatmul.f32.gmra.mxu0 %v4698
        %v5703 = vpop.f32.mrf.mxu0
        %v5704 = vadd.f32 %v5495, %v5703
        %5705 = vmatmul.f32.gmra.mxu0 %v4701
        %v5706 = vpop.f32.mrf.mxu0
        %v5707 = vadd.f32 %v5498, %v5706
        %5708 = vmatmul.f32.gmra.mxu0 %v4704
        %v5709 = vpop.f32.mrf.mxu0
        %v5710 = vadd.f32 %v5501, %v5709
        %5711 = vmatmul.f32.gmra.mxu0 %v4707
        %v5712 = vpop.f32.mrf.mxu0
        %v5713 = vadd.f32 %v5504, %v5712
        %5714 = vmatmul.f32.gmra.mxu0 %v4710
        %v5715 = vpop.f32.mrf.mxu0
        %v5716 = vadd.f32 %v5507, %v5715
        %5717 = vmatmul.f32.gmra.mxu0 %v4713
        %v5718 = vpop.f32.mrf.mxu0
        %v5719 = vadd.f32 %v5510, %v5718
        %5720 = vmatmul.f32.gmra.mxu0 %v4716
        %v5721 = vpop.f32.mrf.mxu0
        %v5722 = vadd.f32 %v5513, %v5721
        %5723 = vmatmul.f32.gmra.mxu0 %v4719
        %v5724 = vpop.f32.mrf.mxu0
        %v5725 = vadd.f32 %v5516, %v5724
        %5726 = vdwg.mxu0
        %5727 = vmatpush.msra.mxu0 %v4753
        %5728 = vmatpush.msra.mxu0 %v4752
        %5729 = vmatpush.msra.mxu0 %v4751
        %5730 = vmatpush.msra.mxu0 %v4750
        %5731 = vmatpush.msra.mxu0 %v4749
        %5732 = vmatpush.msra.mxu0 %v4748
        %5733 = vmatpush.msra.mxu0 %v4747
        %5734 = vmatpush.msra.mxu0 %v4746
        %5735 = vmatpush.msra.mxu0 %v4745
        %5736 = vmatpush.msra.mxu0 %v4744
        %5737 = vmatpush.msra.mxu0 %v4743
        %5738 = vmatpush.msra.mxu0 %v4742
        %5739 = vmatpush.msra.mxu0 %v4741
        %5740 = vmatpush.msra.mxu0 %v4740
        %5741 = vmatpush.msra.mxu0 %v4739
        %5742 = vmatpush.msra.mxu0 %v4738
        %5743 = vmatmul.f32.gmra.mxu0 %v4531
        %v5744 = vpop.f32.mrf.mxu0
        %v5745 = vadd.f32 %v5536, %v5744
        %5746 = vmatmul.f32.gmra.mxu0 %v4534
        %v5747 = vpop.f32.mrf.mxu0
        %v5748 = vadd.f32 %v5539, %v5747
        %5749 = vmatmul.f32.gmra.mxu0 %v4537
        %v5750 = vpop.f32.mrf.mxu0
        %v5751 = vadd.f32 %v5542, %v5750
        %5752 = vmatmul.f32.gmra.mxu0 %v4540
        %v5753 = vpop.f32.mrf.mxu0
        %v5754 = vadd.f32 %v5545, %v5753
        %5755 = vmatmul.f32.gmra.mxu0 %v4543
        %v5756 = vpop.f32.mrf.mxu0
        %v5757 = vadd.f32 %v5548, %v5756
        %5758 = vmatmul.f32.gmra.mxu0 %v4546
        %v5759 = vpop.f32.mrf.mxu0
        %v5760 = vadd.f32 %v5551, %v5759
        %5761 = vmatmul.f32.gmra.mxu0 %v4549
        %v5762 = vpop.f32.mrf.mxu0
        %v5763 = vadd.f32 %v5554, %v5762
        %5764 = vmatmul.f32.gmra.mxu0 %v4552
        %v5765 = vpop.f32.mrf.mxu0
        %v5766 = vadd.f32 %v5557, %v5765
        %5767 = vmatmul.f32.gmra.mxu0 %v4555
        %v5768 = vpop.f32.mrf.mxu0
        %v5769 = vadd.f32 %v5560, %v5768
        %5770 = vmatmul.f32.gmra.mxu0 %v4558
        %v5771 = vpop.f32.mrf.mxu0
        %v5772 = vadd.f32 %v5563, %v5771
        %5773 = vmatmul.f32.gmra.mxu0 %v4561
        %v5774 = vpop.f32.mrf.mxu0
        %v5775 = vadd.f32 %v5566, %v5774
        %5776 = vmatmul.f32.gmra.mxu0 %v4564
        %v5777 = vpop.f32.mrf.mxu0
        %v5778 = vadd.f32 %v5569, %v5777
        %5779 = vmatmul.f32.gmra.mxu0 %v4567
        %v5780 = vpop.f32.mrf.mxu0
        %v5781 = vadd.f32 %v5572, %v5780
        %5782 = vmatmul.f32.gmra.mxu0 %v4570
        %v5783 = vpop.f32.mrf.mxu0
        %v5784 = vadd.f32 %v5575, %v5783
        %5785 = vmatmul.f32.gmra.mxu0 %v4573
        %v5786 = vpop.f32.mrf.mxu0
        %v5787 = vadd.f32 %v5578, %v5786
        %5788 = vmatmul.f32.gmra.mxu0 %v4576
        %v5789 = vpop.f32.mrf.mxu0
        %v5790 = vadd.f32 %v5581, %v5789
        %5791 = vmatmul.f32.gmra.mxu0 %v4579
        %v5792 = vpop.f32.mrf.mxu0
        %v5793 = vadd.f32 %v5584, %v5792
        %5794 = vmatmul.f32.gmra.mxu0 %v4582
        %v5795 = vpop.f32.mrf.mxu0
        %v5796 = vadd.f32 %v5587, %v5795
        %5797 = vmatmul.f32.gmra.mxu0 %v4585
        %v5798 = vpop.f32.mrf.mxu0
        %v5799 = vadd.f32 %v5590, %v5798
        %5800 = vmatmul.f32.gmra.mxu0 %v4588
        %v5801 = vpop.f32.mrf.mxu0
        %v5802 = vadd.f32 %v5593, %v5801
        %5803 = vmatmul.f32.gmra.mxu0 %v4591
        %v5804 = vpop.f32.mrf.mxu0
        %v5805 = vadd.f32 %v5596, %v5804
        %5806 = vmatmul.f32.gmra.mxu0 %v4594
        %v5807 = vpop.f32.mrf.mxu0
        %v5808 = vadd.f32 %v5599, %v5807
        %5809 = vmatmul.f32.gmra.mxu0 %v4597
        %v5810 = vpop.f32.mrf.mxu0
        %v5811 = vadd.f32 %v5602, %v5810
        %5812 = vmatmul.f32.gmra.mxu0 %v4600
        %v5813 = vpop.f32.mrf.mxu0
        %v5814 = vadd.f32 %v5605, %v5813
        %5815 = vmatmul.f32.gmra.mxu0 %v4603
        %v5816 = vpop.f32.mrf.mxu0
        %v5817 = vadd.f32 %v5608, %v5816
        %5818 = vmatmul.f32.gmra.mxu0 %v4606
        %v5819 = vpop.f32.mrf.mxu0
        %v5820 = vadd.f32 %v5611, %v5819
        %5821 = vmatmul.f32.gmra.mxu0 %v4609
        %v5822 = vpop.f32.mrf.mxu0
        %v5823 = vadd.f32 %v5614, %v5822
        %5824 = vmatmul.f32.gmra.mxu0 %v4612
        %v5825 = vpop.f32.mrf.mxu0
        %v5826 = vadd.f32 %v5617, %v5825
        %5827 = vmatmul.f32.gmra.mxu0 %v4615
        %v5828 = vpop.f32.mrf.mxu0
        %v5829 = vadd.f32 %v5620, %v5828
        %5830 = vmatmul.f32.gmra.mxu0 %v4618
        %v5831 = vpop.f32.mrf.mxu0
        %v5832 = vadd.f32 %v5623, %v5831
        %5833 = vmatmul.f32.gmra.mxu0 %v4621
        %v5834 = vpop.f32.mrf.mxu0
        %v5835 = vadd.f32 %v5626, %v5834
        %5836 = vmatmul.f32.gmra.mxu0 %v4624
        %v5837 = vpop.f32.mrf.mxu0
        %v5838 = vadd.f32 %v5629, %v5837
        %5839 = vmatmul.f32.gmra.mxu0 %v4627
        %v5840 = vpop.f32.mrf.mxu0
        %v5841 = vadd.f32 %v5632, %v5840
        %5842 = vmatmul.f32.gmra.mxu0 %v4630
        %v5843 = vpop.f32.mrf.mxu0
        %v5844 = vadd.f32 %v5635, %v5843
        %5845 = vmatmul.f32.gmra.mxu0 %v4633
        %v5846 = vpop.f32.mrf.mxu0
        %v5847 = vadd.f32 %v5638, %v5846
        %5848 = vmatmul.f32.gmra.mxu0 %v4636
        %v5849 = vpop.f32.mrf.mxu0
        %v5850 = vadd.f32 %v5641, %v5849
        %5851 = vmatmul.f32.gmra.mxu0 %v4639
        %v5852 = vpop.f32.mrf.mxu0
        %v5853 = vadd.f32 %v5644, %v5852
        %5854 = vmatmul.f32.gmra.mxu0 %v4642
        %v5855 = vpop.f32.mrf.mxu0
        %v5856 = vadd.f32 %v5647, %v5855
        %5857 = vmatmul.f32.gmra.mxu0 %v4645
        %v5858 = vpop.f32.mrf.mxu0
        %v5859 = vadd.f32 %v5650, %v5858
        %5860 = vmatmul.f32.gmra.mxu0 %v4648
        %v5861 = vpop.f32.mrf.mxu0
        %v5862 = vadd.f32 %v5653, %v5861
        %5863 = vmatmul.f32.gmra.mxu0 %v4651
        %v5864 = vpop.f32.mrf.mxu0
        %v5865 = vadd.f32 %v5656, %v5864
        %5866 = vmatmul.f32.gmra.mxu0 %v4654
        %v5867 = vpop.f32.mrf.mxu0
        %v5868 = vadd.f32 %v5659, %v5867
        %5869 = vmatmul.f32.gmra.mxu0 %v4657
        %v5870 = vpop.f32.mrf.mxu0
        %v5871 = vadd.f32 %v5662, %v5870
        %5872 = vmatmul.f32.gmra.mxu0 %v4660
        %v5873 = vpop.f32.mrf.mxu0
        %v5874 = vadd.f32 %v5665, %v5873
        %5875 = vmatmul.f32.gmra.mxu0 %v4663
        %v5876 = vpop.f32.mrf.mxu0
        %v5877 = vadd.f32 %v5668, %v5876
        %5878 = vmatmul.f32.gmra.mxu0 %v4666
        %v5879 = vpop.f32.mrf.mxu0
        %v5880 = vadd.f32 %v5671, %v5879
        %5881 = vmatmul.f32.gmra.mxu0 %v4669
        %v5882 = vpop.f32.mrf.mxu0
        %v5883 = vadd.f32 %v5674, %v5882
        %5884 = vmatmul.f32.gmra.mxu0 %v4672
        %v5885 = vpop.f32.mrf.mxu0
        %v5886 = vadd.f32 %v5677, %v5885
        %5887 = vmatmul.f32.gmra.mxu0 %v4675
        %v5888 = vpop.f32.mrf.mxu0
        %v5889 = vadd.f32 %v5680, %v5888
        %5890 = vmatmul.f32.gmra.mxu0 %v4678
        %v5891 = vpop.f32.mrf.mxu0
        %v5892 = vadd.f32 %v5683, %v5891
        %5893 = vmatmul.f32.gmra.mxu0 %v4681
        %v5894 = vpop.f32.mrf.mxu0
        %v5895 = vadd.f32 %v5686, %v5894
        %5896 = vmatmul.f32.gmra.mxu0 %v4684
        %v5897 = vpop.f32.mrf.mxu0
        %v5898 = vadd.f32 %v5689, %v5897
        %5899 = vmatmul.f32.gmra.mxu0 %v4687
        %v5900 = vpop.f32.mrf.mxu0
        %v5901 = vadd.f32 %v5692, %v5900
        %5902 = vmatmul.f32.gmra.mxu0 %v4690
        %v5903 = vpop.f32.mrf.mxu0
        %v5904 = vadd.f32 %v5695, %v5903
        %5905 = vmatmul.f32.gmra.mxu0 %v4693
        %v5906 = vpop.f32.mrf.mxu0
        %v5907 = vadd.f32 %v5698, %v5906
        %5908 = vmatmul.f32.gmra.mxu0 %v4696
        %v5909 = vpop.f32.mrf.mxu0
        %v5910 = vadd.f32 %v5701, %v5909
        %5911 = vmatmul.f32.gmra.mxu0 %v4699
        %v5912 = vpop.f32.mrf.mxu0
        %v5913 = vadd.f32 %v5704, %v5912
        %5914 = vmatmul.f32.gmra.mxu0 %v4702
        %v5915 = vpop.f32.mrf.mxu0
        %v5916 = vadd.f32 %v5707, %v5915
        %5917 = vmatmul.f32.gmra.mxu0 %v4705
        %v5918 = vpop.f32.mrf.mxu0
        %v5919 = vadd.f32 %v5710, %v5918
        %5920 = vmatmul.f32.gmra.mxu0 %v4708
        %v5921 = vpop.f32.mrf.mxu0
        %v5922 = vadd.f32 %v5713, %v5921
        %5923 = vmatmul.f32.gmra.mxu0 %v4711
        %v5924 = vpop.f32.mrf.mxu0
        %v5925 = vadd.f32 %v5716, %v5924
        %5926 = vmatmul.f32.gmra.mxu0 %v4714
        %v5927 = vpop.f32.mrf.mxu0
        %v5928 = vadd.f32 %v5719, %v5927
        %5929 = vmatmul.f32.gmra.mxu0 %v4717
        %v5930 = vpop.f32.mrf.mxu0
        %v5931 = vadd.f32 %v5722, %v5930
        %5932 = vmatmul.f32.gmra.mxu0 %v4720
        %v5933 = vpop.f32.mrf.mxu0
        %v5934 = vadd.f32 %v5725, %v5933
        %5935 = vdwg.mxu0
        %5936 = vmatpush.msra.mxu0 %v4769
        %5937 = vmatpush.msra.mxu0 %v4768
        %5938 = vmatpush.msra.mxu0 %v4767
        %5939 = vmatpush.msra.mxu0 %v4766
        %5940 = vmatpush.msra.mxu0 %v4765
        %5941 = vmatpush.msra.mxu0 %v4764
        %5942 = vmatpush.msra.mxu0 %v4763
        %5943 = vmatpush.msra.mxu0 %v4762
        %5944 = vmatpush.msra.mxu0 %v4761
        %5945 = vmatpush.msra.mxu0 %v4760
        %5946 = vmatpush.msra.mxu0 %v4759
        %5947 = vmatpush.msra.mxu0 %v4758
        %5948 = vmatpush.msra.mxu0 %v4757
        %5949 = vmatpush.msra.mxu0 %v4756
        %5950 = vmatpush.msra.mxu0 %v4755
        %5951 = vmatpush.msra.mxu0 %v4754
        %5952 = vmatmul.f32.gmra.mxu0 %v4532
        %v5953 = vpop.f32.mrf.mxu0
        %v5954 = vadd.f32 %v5745, %v5953
        %5955 = vmatmul.f32.gmra.mxu0 %v4535
        %v5956 = vpop.f32.mrf.mxu0
        %v5957 = vadd.f32 %v5748, %v5956
        %5958 = vmatmul.f32.gmra.mxu0 %v4538
        %v5959 = vpop.f32.mrf.mxu0
        %v5960 = vadd.f32 %v5751, %v5959
        %5961 = vmatmul.f32.gmra.mxu0 %v4541
        %v5962 = vpop.f32.mrf.mxu0
        %v5963 = vadd.f32 %v5754, %v5962
        %5964 = vmatmul.f32.gmra.mxu0 %v4544
        %v5965 = vpop.f32.mrf.mxu0
        %v5966 = vadd.f32 %v5757, %v5965
        %5967 = vmatmul.f32.gmra.mxu0 %v4547
        %v5968 = vpop.f32.mrf.mxu0
        %v5969 = vadd.f32 %v5760, %v5968
        %5970 = vmatmul.f32.gmra.mxu0 %v4550
        %v5971 = vpop.f32.mrf.mxu0
        %v5972 = vadd.f32 %v5763, %v5971
        %5973 = vmatmul.f32.gmra.mxu0 %v4553
        %v5974 = vpop.f32.mrf.mxu0
        %v5975 = vadd.f32 %v5766, %v5974
        %5976 = vmatmul.f32.gmra.mxu0 %v4556
        %v5977 = vpop.f32.mrf.mxu0
        %v5978 = vadd.f32 %v5769, %v5977
        %5979 = vmatmul.f32.gmra.mxu0 %v4559
        %v5980 = vpop.f32.mrf.mxu0
        %v5981 = vadd.f32 %v5772, %v5980
        %5982 = vmatmul.f32.gmra.mxu0 %v4562
        %v5983 = vpop.f32.mrf.mxu0
        %v5984 = vadd.f32 %v5775, %v5983
        %5985 = vmatmul.f32.gmra.mxu0 %v4565
        %v5986 = vpop.f32.mrf.mxu0
        %v5987 = vadd.f32 %v5778, %v5986
        %5988 = vmatmul.f32.gmra.mxu0 %v4568
        %v5989 = vpop.f32.mrf.mxu0
        %v5990 = vadd.f32 %v5781, %v5989
        %5991 = vmatmul.f32.gmra.mxu0 %v4571
        %v5992 = vpop.f32.mrf.mxu0
        %v5993 = vadd.f32 %v5784, %v5992
        %5994 = vmatmul.f32.gmra.mxu0 %v4574
        %v5995 = vpop.f32.mrf.mxu0
        %v5996 = vadd.f32 %v5787, %v5995
        %5997 = vmatmul.f32.gmra.mxu0 %v4577
        %v5998 = vpop.f32.mrf.mxu0
        %v5999 = vadd.f32 %v5790, %v5998
        %6000 = vmatmul.f32.gmra.mxu0 %v4580
        %v6001 = vpop.f32.mrf.mxu0
        %v6002 = vadd.f32 %v5793, %v6001
        %6003 = vmatmul.f32.gmra.mxu0 %v4583
        %v6004 = vpop.f32.mrf.mxu0
        %v6005 = vadd.f32 %v5796, %v6004
        %6006 = vmatmul.f32.gmra.mxu0 %v4586
        %v6007 = vpop.f32.mrf.mxu0
        %v6008 = vadd.f32 %v5799, %v6007
        %6009 = vmatmul.f32.gmra.mxu0 %v4589
        %v6010 = vpop.f32.mrf.mxu0
        %v6011 = vadd.f32 %v5802, %v6010
        %6012 = vmatmul.f32.gmra.mxu0 %v4592
        %v6013 = vpop.f32.mrf.mxu0
        %v6014 = vadd.f32 %v5805, %v6013
        %6015 = vmatmul.f32.gmra.mxu0 %v4595
        %v6016 = vpop.f32.mrf.mxu0
        %v6017 = vadd.f32 %v5808, %v6016
        %6018 = vmatmul.f32.gmra.mxu0 %v4598
        %v6019 = vpop.f32.mrf.mxu0
        %v6020 = vadd.f32 %v5811, %v6019
        %6021 = vmatmul.f32.gmra.mxu0 %v4601
        %v6022 = vpop.f32.mrf.mxu0
        %v6023 = vadd.f32 %v5814, %v6022
        %6024 = vmatmul.f32.gmra.mxu0 %v4604
        %v6025 = vpop.f32.mrf.mxu0
        %v6026 = vadd.f32 %v5817, %v6025
        %6027 = vmatmul.f32.gmra.mxu0 %v4607
        %v6028 = vpop.f32.mrf.mxu0
        %v6029 = vadd.f32 %v5820, %v6028
        %6030 = vmatmul.f32.gmra.mxu0 %v4610
        %v6031 = vpop.f32.mrf.mxu0
        %v6032 = vadd.f32 %v5823, %v6031
        %6033 = vmatmul.f32.gmra.mxu0 %v4613
        %v6034 = vpop.f32.mrf.mxu0
        %v6035 = vadd.f32 %v5826, %v6034
        %6036 = vmatmul.f32.gmra.mxu0 %v4616
        %v6037 = vpop.f32.mrf.mxu0
        %v6038 = vadd.f32 %v5829, %v6037
        %6039 = vmatmul.f32.gmra.mxu0 %v4619
        %v6040 = vpop.f32.mrf.mxu0
        %v6041 = vadd.f32 %v5832, %v6040
        %6042 = vmatmul.f32.gmra.mxu0 %v4622
        %v6043 = vpop.f32.mrf.mxu0
        %v6044 = vadd.f32 %v5835, %v6043
        %6045 = vmatmul.f32.gmra.mxu0 %v4625
        %v6046 = vpop.f32.mrf.mxu0
        %v6047 = vadd.f32 %v5838, %v6046
        %6048 = vmatmul.f32.gmra.mxu0 %v4628
        %v6049 = vpop.f32.mrf.mxu0
        %v6050 = vadd.f32 %v5841, %v6049
        %6051 = vmatmul.f32.gmra.mxu0 %v4631
        %v6052 = vpop.f32.mrf.mxu0
        %v6053 = vadd.f32 %v5844, %v6052
        %6054 = vmatmul.f32.gmra.mxu0 %v4634
        %v6055 = vpop.f32.mrf.mxu0
        %v6056 = vadd.f32 %v5847, %v6055
        %6057 = vmatmul.f32.gmra.mxu0 %v4637
        %v6058 = vpop.f32.mrf.mxu0
        %v6059 = vadd.f32 %v5850, %v6058
        %6060 = vmatmul.f32.gmra.mxu0 %v4640
        %v6061 = vpop.f32.mrf.mxu0
        %v6062 = vadd.f32 %v5853, %v6061
        %6063 = vmatmul.f32.gmra.mxu0 %v4643
        %v6064 = vpop.f32.mrf.mxu0
        %v6065 = vadd.f32 %v5856, %v6064
        %6066 = vmatmul.f32.gmra.mxu0 %v4646
        %v6067 = vpop.f32.mrf.mxu0
        %v6068 = vadd.f32 %v5859, %v6067
        %6069 = vmatmul.f32.gmra.mxu0 %v4649
        %v6070 = vpop.f32.mrf.mxu0
        %v6071 = vadd.f32 %v5862, %v6070
        %6072 = vmatmul.f32.gmra.mxu0 %v4652
        %v6073 = vpop.f32.mrf.mxu0
        %v6074 = vadd.f32 %v5865, %v6073
        %6075 = vmatmul.f32.gmra.mxu0 %v4655
        %v6076 = vpop.f32.mrf.mxu0
        %v6077 = vadd.f32 %v5868, %v6076
        %6078 = vmatmul.f32.gmra.mxu0 %v4658
        %v6079 = vpop.f32.mrf.mxu0
        %v6080 = vadd.f32 %v5871, %v6079
        %6081 = vmatmul.f32.gmra.mxu0 %v4661
        %v6082 = vpop.f32.mrf.mxu0
        %v6083 = vadd.f32 %v5874, %v6082
        %6084 = vmatmul.f32.gmra.mxu0 %v4664
        %v6085 = vpop.f32.mrf.mxu0
        %v6086 = vadd.f32 %v5877, %v6085
        %6087 = vmatmul.f32.gmra.mxu0 %v4667
        %v6088 = vpop.f32.mrf.mxu0
        %v6089 = vadd.f32 %v5880, %v6088
        %6090 = vmatmul.f32.gmra.mxu0 %v4670
        %v6091 = vpop.f32.mrf.mxu0
        %v6092 = vadd.f32 %v5883, %v6091
        %6093 = vmatmul.f32.gmra.mxu0 %v4673
        %v6094 = vpop.f32.mrf.mxu0
        %v6095 = vadd.f32 %v5886, %v6094
        %6096 = vmatmul.f32.gmra.mxu0 %v4676
        %v6097 = vpop.f32.mrf.mxu0
        %v6098 = vadd.f32 %v5889, %v6097
        %6099 = vmatmul.f32.gmra.mxu0 %v4679
        %v6100 = vpop.f32.mrf.mxu0
        %v6101 = vadd.f32 %v5892, %v6100
        %6102 = vmatmul.f32.gmra.mxu0 %v4682
        %v6103 = vpop.f32.mrf.mxu0
        %v6104 = vadd.f32 %v5895, %v6103
        %6105 = vmatmul.f32.gmra.mxu0 %v4685
        %v6106 = vpop.f32.mrf.mxu0
        %v6107 = vadd.f32 %v5898, %v6106
        %6108 = vmatmul.f32.gmra.mxu0 %v4688
        %v6109 = vpop.f32.mrf.mxu0
        %v6110 = vadd.f32 %v5901, %v6109
        %6111 = vmatmul.f32.gmra.mxu0 %v4691
        %v6112 = vpop.f32.mrf.mxu0
        %v6113 = vadd.f32 %v5904, %v6112
        %6114 = vmatmul.f32.gmra.mxu0 %v4694
        %v6115 = vpop.f32.mrf.mxu0
        %v6116 = vadd.f32 %v5907, %v6115
        %6117 = vmatmul.f32.gmra.mxu0 %v4697
        %v6118 = vpop.f32.mrf.mxu0
        %v6119 = vadd.f32 %v5910, %v6118
        %6120 = vmatmul.f32.gmra.mxu0 %v4700
        %v6121 = vpop.f32.mrf.mxu0
        %v6122 = vadd.f32 %v5913, %v6121
        %6123 = vmatmul.f32.gmra.mxu0 %v4703
        %v6124 = vpop.f32.mrf.mxu0
        %v6125 = vadd.f32 %v5916, %v6124
        %6126 = vmatmul.f32.gmra.mxu0 %v4706
        %v6127 = vpop.f32.mrf.mxu0
        %v6128 = vadd.f32 %v5919, %v6127
        %6129 = vmatmul.f32.gmra.mxu0 %v4709
        %v6130 = vpop.f32.mrf.mxu0
        %v6131 = vadd.f32 %v5922, %v6130
        %6132 = vmatmul.f32.gmra.mxu0 %v4712
        %v6133 = vpop.f32.mrf.mxu0
        %v6134 = vadd.f32 %v5925, %v6133
        %6135 = vmatmul.f32.gmra.mxu0 %v4715
        %v6136 = vpop.f32.mrf.mxu0
        %v6137 = vadd.f32 %v5928, %v6136
        %6138 = vmatmul.f32.gmra.mxu0 %v4718
        %v6139 = vpop.f32.mrf.mxu0
        %v6140 = vadd.f32 %v5931, %v6139
        %6141 = vmatmul.f32.gmra.mxu0 %v4721
        %v6142 = vpop.f32.mrf.mxu0
        %v6143 = vadd.f32 %v5934, %v6142
        %6144 = vdwg.mxu0
        %v6145 = vld [vmem:[#allocation2 + $0x2] sm:$0xff]
        %v6146 = vld [vmem:[#allocation2 + $0xa] sm:$0xff]
        %v6147 = vld [vmem:[#allocation2 + $0x12] sm:$0xff]
        %v6148 = vld [vmem:[#allocation2 + $0x1a] sm:$0xff]
        %v6149 = vld [vmem:[#allocation2 + $0x22] sm:$0xff]
        %v6150 = vld [vmem:[#allocation2 + $0x2a] sm:$0xff]
        %v6151 = vld [vmem:[#allocation2 + $0x32] sm:$0xff]
        %v6152 = vld [vmem:[#allocation2 + $0x3a] sm:$0xff]
        %v6153 = vld [vmem:[#allocation2 + $0x42] sm:$0xff]
        %v6154 = vld [vmem:[#allocation2 + $0x4a] sm:$0xff]
        %v6155 = vld [vmem:[#allocation2 + $0x52] sm:$0xff]
        %v6156 = vld [vmem:[#allocation2 + $0x5a] sm:$0xff]
        %v6157 = vld [vmem:[#allocation2 + $0x62] sm:$0xff]
        %v6158 = vld [vmem:[#allocation2 + $0x6a] sm:$0xff]
        %v6159 = vld [vmem:[#allocation2 + $0x72] sm:$0xff]
        %v6160 = vld [vmem:[#allocation2 + $0x7a] sm:$0xff]
        %v6161 = vld [vmem:[#allocation2 + $0x82] sm:$0xff]
        %v6162 = vld [vmem:[#allocation2 + $0x8a] sm:$0xff]
        %v6163 = vld [vmem:[#allocation2 + $0x92] sm:$0xff]
        %v6164 = vld [vmem:[#allocation2 + $0x9a] sm:$0xff]
        %v6165 = vld [vmem:[#allocation2 + $0xa2] sm:$0xff]
        %v6166 = vld [vmem:[#allocation2 + $0xaa] sm:$0xff]
        %v6167 = vld [vmem:[#allocation2 + $0xb2] sm:$0xff]
        %v6168 = vld [vmem:[#allocation2 + $0xba] sm:$0xff]
        %v6169 = vld [vmem:[#allocation2 + $0xc2] sm:$0xff]
        %v6170 = vld [vmem:[#allocation2 + $0xca] sm:$0xff]
        %v6171 = vld [vmem:[#allocation2 + $0xd2] sm:$0xff]
        %v6172 = vld [vmem:[#allocation2 + $0xda] sm:$0xff]
        %v6173 = vld [vmem:[#allocation2 + $0xe2] sm:$0xff]
        %v6174 = vld [vmem:[#allocation2 + $0xea] sm:$0xff]
        %v6175 = vld [vmem:[#allocation2 + $0xf2] sm:$0xff]
        %v6176 = vld [vmem:[#allocation2 + $0xfa] sm:$0xff]
        %v6177 = vld [vmem:[#allocation2 + $0x12a] sm:$0xff]
        %v6178 = vld [vmem:[#allocation2 + $0x132] sm:$0xff]
        %v6179 = vld [vmem:[#allocation2 + $0x13a] sm:$0xff]
        %v6180 = vld [vmem:[#allocation2 + $0x142] sm:$0xff]
        %v6181 = vld [vmem:[#allocation2 + $0x14a] sm:$0xff]
        %v6182 = vld [vmem:[#allocation2 + $0x152] sm:$0xff]
        %v6183 = vld [vmem:[#allocation2 + $0x15a] sm:$0xff]
        %v6184 = vld [vmem:[#allocation2 + $0x162] sm:$0xff]
        %v6185 = vld [vmem:[#allocation2 + $0x16a] sm:$0xff]
        %v6186 = vld [vmem:[#allocation2 + $0x172] sm:$0xff]
        %v6187 = vld [vmem:[#allocation2 + $0x17a] sm:$0xff]
        %v6188 = vld [vmem:[#allocation2 + $0x182] sm:$0xff]
        %v6189 = vld [vmem:[#allocation2 + $0x18a] sm:$0xff]
        %v6190 = vld [vmem:[#allocation2 + $0x192] sm:$0xff]
        %v6191 = vld [vmem:[#allocation2 + $0x19a] sm:$0xff]
        %v6192 = vld [vmem:[#allocation2 + $0x1a2] sm:$0xff]
        %v6193 = vld [vmem:[#allocation2 + $0x1aa] sm:$0xff]
        %v6194 = vld [vmem:[#allocation2 + $0x1b2] sm:$0xff]
        %v6195 = vld [vmem:[#allocation2 + $0x1ba] sm:$0xff]
        %v6196 = vld [vmem:[#allocation2 + $0x1c2] sm:$0xff]
        %v6197 = vld [vmem:[#allocation2 + $0x1ca] sm:$0xff]
        %v6198 = vld [vmem:[#allocation2 + $0x1d2] sm:$0xff]
        %v6199 = vld [vmem:[#allocation2 + $0x1da] sm:$0xff]
        %v6200 = vld [vmem:[#allocation2 + $0x1e2] sm:$0xff]
        %v6201 = vld [vmem:[#allocation2 + $0x1ea] sm:$0xff]
        %v6202 = vld [vmem:[#allocation2 + $0x1f2] sm:$0xff]
        %v6203 = vld [vmem:[#allocation2 + $0x1fa] sm:$0xff]
        %v6204 = vld [vmem:[#allocation2 + $0x202] sm:$0xff]
        %v6205 = vld [vmem:[#allocation2 + $0x20a] sm:$0xff]
        %v6206 = vld [vmem:[#allocation2 + $0x212] sm:$0xff]
        %v6207 = vld [vmem:[#allocation2 + $0x21a] sm:$0xff]
        %v6208 = vld [vmem:[#allocation2 + $0x222] sm:$0xff]
        %v6209 = vld [vmem:[#allocation2 + $0x102] sm:$0xff]
        %v6210 = vld [vmem:[#allocation2 + $0x10a] sm:$0xff]
        %v6211 = vld [vmem:[#allocation2 + $0x22a] sm:$0xff]
        %v6212 = vld [vmem:[#allocation2 + $0x232] sm:$0xff]
        %v6213 = vld [vmem:[#allocation2 + $0x22] sm:$0xff]
        %v6214 = vld [vmem:[#allocation2 + $0x2a] sm:$0xff]
        %v6215 = vld [vmem:[#allocation2 + $0x32] sm:$0xff]
        %v6216 = vld [vmem:[#allocation2 + $0x3a] sm:$0xff]
        %v6217 = vld [vmem:[#allocation2 + $0x42] sm:$0xff]
        %v6218 = vld [vmem:[#allocation2 + $0x4a] sm:$0xff]
        %v6219 = vld [vmem:[#allocation2 + $0x52] sm:$0xff]
        %v6220 = vld [vmem:[#allocation2 + $0x5a] sm:$0xff]
        %v6221 = vld [vmem:[#allocation2 + $0x62] sm:$0xff]
        %v6222 = vld [vmem:[#allocation2 + $0x6a] sm:$0xff]
        %v6223 = vld [vmem:[#allocation2 + $0x72] sm:$0xff]
        %v6224 = vld [vmem:[#allocation2 + $0x7a] sm:$0xff]
        %v6225 = vld [vmem:[#allocation2 + $0x82] sm:$0xff]
        %v6226 = vld [vmem:[#allocation2 + $0x8a] sm:$0xff]
        %v6227 = vld [vmem:[#allocation2 + $0x92] sm:$0xff]
        %v6228 = vld [vmem:[#allocation2 + $0x9a] sm:$0xff]
        %v6229 = vld [vmem:[#allocation2 + $0xa2] sm:$0xff]
        %v6230 = vld [vmem:[#allocation2 + $0xaa] sm:$0xff]
        %v6231 = vld [vmem:[#allocation2 + $0xb2] sm:$0xff]
        %v6232 = vld [vmem:[#allocation2 + $0xba] sm:$0xff]
        %v6233 = vld [vmem:[#allocation2 + $0xc2] sm:$0xff]
        %v6234 = vld [vmem:[#allocation2 + $0xca] sm:$0xff]
        %v6235 = vld [vmem:[#allocation2 + $0xd2] sm:$0xff]
        %v6236 = vld [vmem:[#allocation2 + $0xda] sm:$0xff]
        %v6237 = vld [vmem:[#allocation2 + $0xe2] sm:$0xff]
        %v6238 = vld [vmem:[#allocation2 + $0xea] sm:$0xff]
        %v6239 = vld [vmem:[#allocation2 + $0xf2] sm:$0xff]
        %v6240 = vld [vmem:[#allocation2 + $0xfa] sm:$0xff]
        %v6241 = vld [vmem:[#allocation2 + $0x102] sm:$0xff]
        %v6242 = vld [vmem:[#allocation2 + $0x10a] sm:$0xff]
        %v6243 = vld [vmem:[#allocation2 + $0x112] sm:$0xff]
        %v6244 = vld [vmem:[#allocation2 + $0x11a] sm:$0xff]
        %v6245 = vld [vmem:[#allocation2 + $0x14a] sm:$0xff]
        %v6246 = vld [vmem:[#allocation2 + $0x152] sm:$0xff]
        %v6247 = vld [vmem:[#allocation2 + $0x15a] sm:$0xff]
        %v6248 = vld [vmem:[#allocation2 + $0x162] sm:$0xff]
        %v6249 = vld [vmem:[#allocation2 + $0x16a] sm:$0xff]
        %v6250 = vld [vmem:[#allocation2 + $0x172] sm:$0xff]
        %v6251 = vld [vmem:[#allocation2 + $0x17a] sm:$0xff]
        %v6252 = vld [vmem:[#allocation2 + $0x182] sm:$0xff]
        %v6253 = vld [vmem:[#allocation2 + $0x18a] sm:$0xff]
        %v6254 = vld [vmem:[#allocation2 + $0x192] sm:$0xff]
        %v6255 = vld [vmem:[#allocation2 + $0x19a] sm:$0xff]
        %v6256 = vld [vmem:[#allocation2 + $0x1a2] sm:$0xff]
        %v6257 = vld [vmem:[#allocation2 + $0x1aa] sm:$0xff]
        %v6258 = vld [vmem:[#allocation2 + $0x1b2] sm:$0xff]
        %v6259 = vld [vmem:[#allocation2 + $0x1ba] sm:$0xff]
        %v6260 = vld [vmem:[#allocation2 + $0x1c2] sm:$0xff]
        %v6261 = vld [vmem:[#allocation2 + $0x1ca] sm:$0xff]
        %v6262 = vld [vmem:[#allocation2 + $0x1d2] sm:$0xff]
        %v6263 = vld [vmem:[#allocation2 + $0x1da] sm:$0xff]
        %v6264 = vld [vmem:[#allocation2 + $0x1e2] sm:$0xff]
        %v6265 = vld [vmem:[#allocation2 + $0x1ea] sm:$0xff]
        %v6266 = vld [vmem:[#allocation2 + $0x1f2] sm:$0xff]
        %v6267 = vld [vmem:[#allocation2 + $0x1fa] sm:$0xff]
        %v6268 = vld [vmem:[#allocation2 + $0x202] sm:$0xff]
        %v6269 = vld [vmem:[#allocation2 + $0x20a] sm:$0xff]
        %v6270 = vld [vmem:[#allocation2 + $0x212] sm:$0xff]
        %v6271 = vld [vmem:[#allocation2 + $0x21a] sm:$0xff]
        %v6272 = vld [vmem:[#allocation2 + $0x222] sm:$0xff]
        %v6273 = vld [vmem:[#allocation2 + $0x22a] sm:$0xff]
        %v6274 = vld [vmem:[#allocation2 + $0x232] sm:$0xff]
        %v6275 = vld [vmem:[#allocation2 + $0x23a] sm:$0xff]
        %v6276 = vld [vmem:[#allocation2 + $0x242] sm:$0xff]
        %v6277 = vsel %vm2993, 0.0, %v6145
        %v6278 = vsel %vm2993, 0.0, %v6147
        %v6279 = vsel %vm2993, 0.0, %v6213
        %v6280 = vsel %vm2994, 0.0, %v6146
        %v6281 = vsel %vm2994, 0.0, %v6148
        %v6282 = vsel %vm2994, 0.0, %v6214
        %v6283 = vsel %vm2995, 0.0, %v6147
        %v6284 = vsel %vm2995, 0.0, %v6149
        %v6285 = vsel %vm2995, 0.0, %v6215
        %v6286 = vsel %vm2996, 0.0, %v6148
        %v6287 = vsel %vm2996, 0.0, %v6150
        %v6288 = vsel %vm2996, 0.0, %v6216
        %v6289 = vsel %vm2997, 0.0, %v6149
        %v6290 = vsel %vm2997, 0.0, %v6151
        %v6291 = vsel %vm2997, 0.0, %v6217
        %v6292 = vsel %vm2998, 0.0, %v6150
        %v6293 = vsel %vm2998, 0.0, %v6152
        %v6294 = vsel %vm2998, 0.0, %v6218
        %v6295 = vsel %vm2999, 0.0, %v6151
        %v6296 = vsel %vm2999, 0.0, %v6153
        %v6297 = vsel %vm2999, 0.0, %v6219
        %v6298 = vsel %vm3000, 0.0, %v6152
        %v6299 = vsel %vm3000, 0.0, %v6154
        %v6300 = vsel %vm3000, 0.0, %v6220
        %v6301 = vsel %vm3001, 0.0, %v6153
        %v6302 = vsel %vm3001, 0.0, %v6155
        %v6303 = vsel %vm3001, 0.0, %v6221
        %v6304 = vsel %vm3002, 0.0, %v6154
        %v6305 = vsel %vm3002, 0.0, %v6156
        %v6306 = vsel %vm3002, 0.0, %v6222
        %v6307 = vsel %vm3003, 0.0, %v6155
        %v6308 = vsel %vm3003, 0.0, %v6157
        %v6309 = vsel %vm3003, 0.0, %v6223
        %v6310 = vsel %vm3004, 0.0, %v6156
        %v6311 = vsel %vm3004, 0.0, %v6158
        %v6312 = vsel %vm3004, 0.0, %v6224
        %v6313 = vsel %vm3005, 0.0, %v6157
        %v6314 = vsel %vm3005, 0.0, %v6159
        %v6315 = vsel %vm3005, 0.0, %v6225
        %v6316 = vsel %vm3006, 0.0, %v6158
        %v6317 = vsel %vm3006, 0.0, %v6160
        %v6318 = vsel %vm3006, 0.0, %v6226
        %v6319 = vsel %vm3007, 0.0, %v6159
        %v6320 = vsel %vm3007, 0.0, %v6161
        %v6321 = vsel %vm3007, 0.0, %v6227
        %v6322 = vsel %vm3008, 0.0, %v6160
        %v6323 = vsel %vm3008, 0.0, %v6162
        %v6324 = vsel %vm3008, 0.0, %v6228
        %v6325 = vsel %vm3009, 0.0, %v6161
        %v6326 = vsel %vm3009, 0.0, %v6163
        %v6327 = vsel %vm3009, 0.0, %v6229
        %v6328 = vsel %vm3010, 0.0, %v6162
        %v6329 = vsel %vm3010, 0.0, %v6164
        %v6330 = vsel %vm3010, 0.0, %v6230
        %v6331 = vsel %vm3011, 0.0, %v6163
        %v6332 = vsel %vm3011, 0.0, %v6165
        %v6333 = vsel %vm3011, 0.0, %v6231
        %v6334 = vsel %vm3012, 0.0, %v6164
        %v6335 = vsel %vm3012, 0.0, %v6166
        %v6336 = vsel %vm3012, 0.0, %v6232
        %v6337 = vsel %vm3013, 0.0, %v6165
        %v6338 = vsel %vm3013, 0.0, %v6167
        %v6339 = vsel %vm3013, 0.0, %v6233
        %v6340 = vsel %vm3014, 0.0, %v6166
        %v6341 = vsel %vm3014, 0.0, %v6168
        %v6342 = vsel %vm3014, 0.0, %v6234
        %v6343 = vsel %vm3015, 0.0, %v6167
        %v6344 = vsel %vm3015, 0.0, %v6169
        %v6345 = vsel %vm3015, 0.0, %v6235
        %v6346 = vsel %vm3016, 0.0, %v6168
        %v6347 = vsel %vm3016, 0.0, %v6170
        %v6348 = vsel %vm3016, 0.0, %v6236
        %v6349 = vsel %vm3017, 0.0, %v6169
        %v6350 = vsel %vm3017, 0.0, %v6171
        %v6351 = vsel %vm3017, 0.0, %v6237
        %v6352 = vsel %vm3018, 0.0, %v6170
        %v6353 = vsel %vm3018, 0.0, %v6172
        %v6354 = vsel %vm3018, 0.0, %v6238
        %v6355 = vsel %vm3019, 0.0, %v6171
        %v6356 = vsel %vm3019, 0.0, %v6173
        %v6357 = vsel %vm3019, 0.0, %v6239
        %v6358 = vsel %vm3020, 0.0, %v6172
        %v6359 = vsel %vm3020, 0.0, %v6174
        %v6360 = vsel %vm3020, 0.0, %v6240
        %v6361 = vsel %vm3021, 0.0, %v6173
        %v6362 = vsel %vm3021, 0.0, %v6175
        %v6363 = vsel %vm3021, 0.0, %v6241
        %v6364 = vsel %vm3022, 0.0, %v6174
        %v6365 = vsel %vm3022, 0.0, %v6176
        %v6366 = vsel %vm3022, 0.0, %v6242
        %v6367 = vsel %vm3023, 0.0, %v6175
        %v6368 = vsel %vm3023, 0.0, %v6209
        %v6369 = vsel %vm3023, 0.0, %v6243
        %v6370 = vsel %vm3024, 0.0, %v6176
        %v6371 = vsel %vm3024, 0.0, %v6210
        %v6372 = vsel %vm3024, 0.0, %v6244
        %v6373 = vsel %vm2993, 0.0, %v6177
        %v6374 = vsel %vm2993, 0.0, %v6179
        %v6375 = vsel %vm2993, 0.0, %v6245
        %v6376 = vsel %vm2994, 0.0, %v6178
        %v6377 = vsel %vm2994, 0.0, %v6180
        %v6378 = vsel %vm2994, 0.0, %v6246
        %v6379 = vsel %vm2995, 0.0, %v6179
        %v6380 = vsel %vm2995, 0.0, %v6181
        %v6381 = vsel %vm2995, 0.0, %v6247
        %v6382 = vsel %vm2996, 0.0, %v6180
        %v6383 = vsel %vm2996, 0.0, %v6182
        %v6384 = vsel %vm2996, 0.0, %v6248
        %v6385 = vsel %vm2997, 0.0, %v6181
        %v6386 = vsel %vm2997, 0.0, %v6183
        %v6387 = vsel %vm2997, 0.0, %v6249
        %v6388 = vsel %vm2998, 0.0, %v6182
        %v6389 = vsel %vm2998, 0.0, %v6184
        %v6390 = vsel %vm2998, 0.0, %v6250
        %v6391 = vsel %vm2999, 0.0, %v6183
        %v6392 = vsel %vm2999, 0.0, %v6185
        %v6393 = vsel %vm2999, 0.0, %v6251
        %v6394 = vsel %vm3000, 0.0, %v6184
        %v6395 = vsel %vm3000, 0.0, %v6186
        %v6396 = vsel %vm3000, 0.0, %v6252
        %v6397 = vsel %vm3001, 0.0, %v6185
        %v6398 = vsel %vm3001, 0.0, %v6187
        %v6399 = vsel %vm3001, 0.0, %v6253
        %v6400 = vsel %vm3002, 0.0, %v6186
        %v6401 = vsel %vm3002, 0.0, %v6188
        %v6402 = vsel %vm3002, 0.0, %v6254
        %v6403 = vsel %vm3003, 0.0, %v6187
        %v6404 = vsel %vm3003, 0.0, %v6189
        %v6405 = vsel %vm3003, 0.0, %v6255
        %v6406 = vsel %vm3004, 0.0, %v6188
        %v6407 = vsel %vm3004, 0.0, %v6190
        %v6408 = vsel %vm3004, 0.0, %v6256
        %v6409 = vsel %vm3005, 0.0, %v6189
        %v6410 = vsel %vm3005, 0.0, %v6191
        %v6411 = vsel %vm3005, 0.0, %v6257
        %v6412 = vsel %vm3006, 0.0, %v6190
        %v6413 = vsel %vm3006, 0.0, %v6192
        %v6414 = vsel %vm3006, 0.0, %v6258
        %v6415 = vsel %vm3007, 0.0, %v6191
        %v6416 = vsel %vm3007, 0.0, %v6193
        %v6417 = vsel %vm3007, 0.0, %v6259
        %v6418 = vsel %vm3008, 0.0, %v6192
        %v6419 = vsel %vm3008, 0.0, %v6194
        %v6420 = vsel %vm3008, 0.0, %v6260
        %v6421 = vsel %vm3009, 0.0, %v6193
        %v6422 = vsel %vm3009, 0.0, %v6195
        %v6423 = vsel %vm3009, 0.0, %v6261
        %v6424 = vsel %vm3010, 0.0, %v6194
        %v6425 = vsel %vm3010, 0.0, %v6196
        %v6426 = vsel %vm3010, 0.0, %v6262
        %v6427 = vsel %vm3011, 0.0, %v6195
        %v6428 = vsel %vm3011, 0.0, %v6197
        %v6429 = vsel %vm3011, 0.0, %v6263
        %v6430 = vsel %vm3012, 0.0, %v6196
        %v6431 = vsel %vm3012, 0.0, %v6198
        %v6432 = vsel %vm3012, 0.0, %v6264
        %v6433 = vsel %vm3013, 0.0, %v6197
        %v6434 = vsel %vm3013, 0.0, %v6199
        %v6435 = vsel %vm3013, 0.0, %v6265
        %v6436 = vsel %vm3014, 0.0, %v6198
        %v6437 = vsel %vm3014, 0.0, %v6200
        %v6438 = vsel %vm3014, 0.0, %v6266
        %v6439 = vsel %vm3015, 0.0, %v6199
        %v6440 = vsel %vm3015, 0.0, %v6201
        %v6441 = vsel %vm3015, 0.0, %v6267
        %v6442 = vsel %vm3016, 0.0, %v6200
        %v6443 = vsel %vm3016, 0.0, %v6202
        %v6444 = vsel %vm3016, 0.0, %v6268
        %v6445 = vsel %vm3017, 0.0, %v6201
        %v6446 = vsel %vm3017, 0.0, %v6203
        %v6447 = vsel %vm3017, 0.0, %v6269
        %v6448 = vsel %vm3018, 0.0, %v6202
        %v6449 = vsel %vm3018, 0.0, %v6204
        %v6450 = vsel %vm3018, 0.0, %v6270
        %v6451 = vsel %vm3019, 0.0, %v6203
        %v6452 = vsel %vm3019, 0.0, %v6205
        %v6453 = vsel %vm3019, 0.0, %v6271
        %v6454 = vsel %vm3020, 0.0, %v6204
        %v6455 = vsel %vm3020, 0.0, %v6206
        %v6456 = vsel %vm3020, 0.0, %v6272
        %v6457 = vsel %vm3021, 0.0, %v6205
        %v6458 = vsel %vm3021, 0.0, %v6207
        %v6459 = vsel %vm3021, 0.0, %v6273
        %v6460 = vsel %vm3022, 0.0, %v6206
        %v6461 = vsel %vm3022, 0.0, %v6208
        %v6462 = vsel %vm3022, 0.0, %v6274
        %v6463 = vsel %vm3023, 0.0, %v6207
        %v6464 = vsel %vm3023, 0.0, %v6211
        %v6465 = vsel %vm3023, 0.0, %v6275
        %v6466 = vsel %vm3024, 0.0, %v6208
        %v6467 = vsel %vm3024, 0.0, %v6212
        %v6468 = vsel %vm3024, 0.0, %v6276
        %s6469 = scalar_lea.vmem %s237, 768 [#allocation8]
        %v6470 = vld [vmem:[%s6469] sm:$0xff]
        %v6471 = vld [vmem:[%s6469 + $0x8] sm:$0xff]
        %v6472 = vld [vmem:[%s6469 + $0x10] sm:$0xff]
        %v6473 = vld [vmem:[%s6469 + $0x18] sm:$0xff]
        %v6474 = vld [vmem:[%s6469 + $0x20] sm:$0xff]
        %v6475 = vld [vmem:[%s6469 + $0x28] sm:$0xff]
        %v6476 = vld [vmem:[%s6469 + $0x30] sm:$0xff]
        %v6477 = vld [vmem:[%s6469 + $0x38] sm:$0xff]
        %v6478 = vld [vmem:[%s6469 + $0x40] sm:$0xff]
        %v6479 = vld [vmem:[%s6469 + $0x48] sm:$0xff]
        %v6480 = vld [vmem:[%s6469 + $0x50] sm:$0xff]
        %v6481 = vld [vmem:[%s6469 + $0x58] sm:$0xff]
        %v6482 = vld [vmem:[%s6469 + $0x60] sm:$0xff]
        %v6483 = vld [vmem:[%s6469 + $0x68] sm:$0xff]
        %v6484 = vld [vmem:[%s6469 + $0x70] sm:$0xff]
        %v6485 = vld [vmem:[%s6469 + $0x78] sm:$0xff]
        %v6486 = vld [vmem:[%s6469 + $0x80] sm:$0xff]
        %v6487 = vld [vmem:[%s6469 + $0x88] sm:$0xff]
        %v6488 = vld [vmem:[%s6469 + $0x90] sm:$0xff]
        %v6489 = vld [vmem:[%s6469 + $0x98] sm:$0xff]
        %v6490 = vld [vmem:[%s6469 + $0xa0] sm:$0xff]
        %v6491 = vld [vmem:[%s6469 + $0xa8] sm:$0xff]
        %v6492 = vld [vmem:[%s6469 + $0xb0] sm:$0xff]
        %v6493 = vld [vmem:[%s6469 + $0xb8] sm:$0xff]
        %v6494 = vld [vmem:[%s6469 + $0xc0] sm:$0xff]
        %v6495 = vld [vmem:[%s6469 + $0xc8] sm:$0xff]
        %v6496 = vld [vmem:[%s6469 + $0xd0] sm:$0xff]
        %v6497 = vld [vmem:[%s6469 + $0xd8] sm:$0xff]
        %v6498 = vld [vmem:[%s6469 + $0xe0] sm:$0xff]
        %v6499 = vld [vmem:[%s6469 + $0xe8] sm:$0xff]
        %v6500 = vld [vmem:[%s6469 + $0xf0] sm:$0xff]
        %v6501 = vld [vmem:[%s6469 + $0xf8] sm:$0xff]
        %v6502 = vld [vmem:[%s6469 + $0x100] sm:$0xff]
        %v6503 = vld [vmem:[%s6469 + $0x108] sm:$0xff]
        %v6504 = vld [vmem:[%s6469 + $0x110] sm:$0xff]
        %v6505 = vld [vmem:[%s6469 + $0x118] sm:$0xff]
        %v6506 = vld [vmem:[%s6469 + $0x120] sm:$0xff]
        %v6507 = vld [vmem:[%s6469 + $0x128] sm:$0xff]
        %v6508 = vld [vmem:[%s6469 + $0x130] sm:$0xff]
        %v6509 = vld [vmem:[%s6469 + $0x138] sm:$0xff]
        %v6510 = vld [vmem:[%s6469 + $0x140] sm:$0xff]
        %v6511 = vld [vmem:[%s6469 + $0x148] sm:$0xff]
        %v6512 = vld [vmem:[%s6469 + $0x150] sm:$0xff]
        %v6513 = vld [vmem:[%s6469 + $0x158] sm:$0xff]
        %v6514 = vld [vmem:[%s6469 + $0x160] sm:$0xff]
        %v6515 = vld [vmem:[%s6469 + $0x168] sm:$0xff]
        %v6516 = vld [vmem:[%s6469 + $0x170] sm:$0xff]
        %v6517 = vld [vmem:[%s6469 + $0x178] sm:$0xff]
        %6518 = vmatpush.msra.mxu0 %v6485
        %6519 = vmatpush.msra.mxu0 %v6484
        %6520 = vmatpush.msra.mxu0 %v6483
        %6521 = vmatpush.msra.mxu0 %v6482
        %6522 = vmatpush.msra.mxu0 %v6481
        %6523 = vmatpush.msra.mxu0 %v6480
        %6524 = vmatpush.msra.mxu0 %v6479
        %6525 = vmatpush.msra.mxu0 %v6478
        %6526 = vmatpush.msra.mxu0 %v6477
        %6527 = vmatpush.msra.mxu0 %v6476
        %6528 = vmatpush.msra.mxu0 %v6475
        %6529 = vmatpush.msra.mxu0 %v6474
        %6530 = vmatpush.msra.mxu0 %v6473
        %6531 = vmatpush.msra.mxu0 %v6472
        %6532 = vmatpush.msra.mxu0 %v6471
        %6533 = vmatpush.msra.mxu0 %v6470
        %6534 = vmatmul.f32.gmra.mxu0 %v6277
        %v6535 = vpop.f32.mrf.mxu0
        %v6536 = vadd.f32 0.0, %v6535
        %6537 = vmatmul.f32.gmra.mxu0 %v6280
        %v6538 = vpop.f32.mrf.mxu0
        %v6539 = vadd.f32 0.0, %v6538
        %6540 = vmatmul.f32.gmra.mxu0 %v6283
        %v6541 = vpop.f32.mrf.mxu0
        %v6542 = vadd.f32 0.0, %v6541
        %6543 = vmatmul.f32.gmra.mxu0 %v6286
        %v6544 = vpop.f32.mrf.mxu0
        %v6545 = vadd.f32 0.0, %v6544
        %6546 = vmatmul.f32.gmra.mxu0 %v6289
        %v6547 = vpop.f32.mrf.mxu0
        %v6548 = vadd.f32 0.0, %v6547
        %6549 = vmatmul.f32.gmra.mxu0 %v6292
        %v6550 = vpop.f32.mrf.mxu0
        %v6551 = vadd.f32 0.0, %v6550
        %6552 = vmatmul.f32.gmra.mxu0 %v6295
        %v6553 = vpop.f32.mrf.mxu0
        %v6554 = vadd.f32 0.0, %v6553
        %6555 = vmatmul.f32.gmra.mxu0 %v6298
        %v6556 = vpop.f32.mrf.mxu0
        %v6557 = vadd.f32 0.0, %v6556
        %6558 = vmatmul.f32.gmra.mxu0 %v6301
        %v6559 = vpop.f32.mrf.mxu0
        %v6560 = vadd.f32 0.0, %v6559
        %6561 = vmatmul.f32.gmra.mxu0 %v6304
        %v6562 = vpop.f32.mrf.mxu0
        %v6563 = vadd.f32 0.0, %v6562
        %6564 = vmatmul.f32.gmra.mxu0 %v6307
        %v6565 = vpop.f32.mrf.mxu0
        %v6566 = vadd.f32 0.0, %v6565
        %6567 = vmatmul.f32.gmra.mxu0 %v6310
        %v6568 = vpop.f32.mrf.mxu0
        %v6569 = vadd.f32 0.0, %v6568
        %6570 = vmatmul.f32.gmra.mxu0 %v6313
        %v6571 = vpop.f32.mrf.mxu0
        %v6572 = vadd.f32 0.0, %v6571
        %6573 = vmatmul.f32.gmra.mxu0 %v6316
        %v6574 = vpop.f32.mrf.mxu0
        %v6575 = vadd.f32 0.0, %v6574
        %6576 = vmatmul.f32.gmra.mxu0 %v6319
        %v6577 = vpop.f32.mrf.mxu0
        %v6578 = vadd.f32 0.0, %v6577
        %6579 = vmatmul.f32.gmra.mxu0 %v6322
        %v6580 = vpop.f32.mrf.mxu0
        %v6581 = vadd.f32 0.0, %v6580
        %6582 = vmatmul.f32.gmra.mxu0 %v6325
        %v6583 = vpop.f32.mrf.mxu0
        %v6584 = vadd.f32 0.0, %v6583
        %6585 = vmatmul.f32.gmra.mxu0 %v6328
        %v6586 = vpop.f32.mrf.mxu0
        %v6587 = vadd.f32 0.0, %v6586
        %6588 = vmatmul.f32.gmra.mxu0 %v6331
        %v6589 = vpop.f32.mrf.mxu0
        %v6590 = vadd.f32 0.0, %v6589
        %6591 = vmatmul.f32.gmra.mxu0 %v6334
        %v6592 = vpop.f32.mrf.mxu0
        %v6593 = vadd.f32 0.0, %v6592
        %6594 = vmatmul.f32.gmra.mxu0 %v6337
        %v6595 = vpop.f32.mrf.mxu0
        %v6596 = vadd.f32 0.0, %v6595
        %6597 = vmatmul.f32.gmra.mxu0 %v6340
        %v6598 = vpop.f32.mrf.mxu0
        %v6599 = vadd.f32 0.0, %v6598
        %6600 = vmatmul.f32.gmra.mxu0 %v6343
        %v6601 = vpop.f32.mrf.mxu0
        %v6602 = vadd.f32 0.0, %v6601
        %6603 = vmatmul.f32.gmra.mxu0 %v6346
        %v6604 = vpop.f32.mrf.mxu0
        %v6605 = vadd.f32 0.0, %v6604
        %6606 = vmatmul.f32.gmra.mxu0 %v6349
        %v6607 = vpop.f32.mrf.mxu0
        %v6608 = vadd.f32 0.0, %v6607
        %6609 = vmatmul.f32.gmra.mxu0 %v6352
        %v6610 = vpop.f32.mrf.mxu0
        %v6611 = vadd.f32 0.0, %v6610
        %6612 = vmatmul.f32.gmra.mxu0 %v6355
        %v6613 = vpop.f32.mrf.mxu0
        %v6614 = vadd.f32 0.0, %v6613
        %6615 = vmatmul.f32.gmra.mxu0 %v6358
        %v6616 = vpop.f32.mrf.mxu0
        %v6617 = vadd.f32 0.0, %v6616
        %6618 = vmatmul.f32.gmra.mxu0 %v6361
        %v6619 = vpop.f32.mrf.mxu0
        %v6620 = vadd.f32 0.0, %v6619
        %6621 = vmatmul.f32.gmra.mxu0 %v6364
        %v6622 = vpop.f32.mrf.mxu0
        %v6623 = vadd.f32 0.0, %v6622
        %6624 = vmatmul.f32.gmra.mxu0 %v6367
        %v6625 = vpop.f32.mrf.mxu0
        %v6626 = vadd.f32 0.0, %v6625
        %6627 = vmatmul.f32.gmra.mxu0 %v6370
        %v6628 = vpop.f32.mrf.mxu0
        %v6629 = vadd.f32 0.0, %v6628
        %6630 = vmatmul.f32.gmra.mxu0 %v6373
        %v6631 = vpop.f32.mrf.mxu0
        %v6632 = vadd.f32 0.0, %v6631
        %6633 = vmatmul.f32.gmra.mxu0 %v6376
        %v6634 = vpop.f32.mrf.mxu0
        %v6635 = vadd.f32 0.0, %v6634
        %6636 = vmatmul.f32.gmra.mxu0 %v6379
        %v6637 = vpop.f32.mrf.mxu0
        %v6638 = vadd.f32 0.0, %v6637
        %6639 = vmatmul.f32.gmra.mxu0 %v6382
        %v6640 = vpop.f32.mrf.mxu0
        %v6641 = vadd.f32 0.0, %v6640
        %6642 = vmatmul.f32.gmra.mxu0 %v6385
        %v6643 = vpop.f32.mrf.mxu0
        %v6644 = vadd.f32 0.0, %v6643
        %6645 = vmatmul.f32.gmra.mxu0 %v6388
        %v6646 = vpop.f32.mrf.mxu0
        %v6647 = vadd.f32 0.0, %v6646
        %6648 = vmatmul.f32.gmra.mxu0 %v6391
        %v6649 = vpop.f32.mrf.mxu0
        %v6650 = vadd.f32 0.0, %v6649
        %6651 = vmatmul.f32.gmra.mxu0 %v6394
        %v6652 = vpop.f32.mrf.mxu0
        %v6653 = vadd.f32 0.0, %v6652
        %6654 = vmatmul.f32.gmra.mxu0 %v6397
        %v6655 = vpop.f32.mrf.mxu0
        %v6656 = vadd.f32 0.0, %v6655
        %6657 = vmatmul.f32.gmra.mxu0 %v6400
        %v6658 = vpop.f32.mrf.mxu0
        %v6659 = vadd.f32 0.0, %v6658
        %6660 = vmatmul.f32.gmra.mxu0 %v6403
        %v6661 = vpop.f32.mrf.mxu0
        %v6662 = vadd.f32 0.0, %v6661
        %6663 = vmatmul.f32.gmra.mxu0 %v6406
        %v6664 = vpop.f32.mrf.mxu0
        %v6665 = vadd.f32 0.0, %v6664
        %6666 = vmatmul.f32.gmra.mxu0 %v6409
        %v6667 = vpop.f32.mrf.mxu0
        %v6668 = vadd.f32 0.0, %v6667
        %6669 = vmatmul.f32.gmra.mxu0 %v6412
        %v6670 = vpop.f32.mrf.mxu0
        %v6671 = vadd.f32 0.0, %v6670
        %6672 = vmatmul.f32.gmra.mxu0 %v6415
        %v6673 = vpop.f32.mrf.mxu0
        %v6674 = vadd.f32 0.0, %v6673
        %6675 = vmatmul.f32.gmra.mxu0 %v6418
        %v6676 = vpop.f32.mrf.mxu0
        %v6677 = vadd.f32 0.0, %v6676
        %6678 = vmatmul.f32.gmra.mxu0 %v6421
        %v6679 = vpop.f32.mrf.mxu0
        %v6680 = vadd.f32 0.0, %v6679
        %6681 = vmatmul.f32.gmra.mxu0 %v6424
        %v6682 = vpop.f32.mrf.mxu0
        %v6683 = vadd.f32 0.0, %v6682
        %6684 = vmatmul.f32.gmra.mxu0 %v6427
        %v6685 = vpop.f32.mrf.mxu0
        %v6686 = vadd.f32 0.0, %v6685
        %6687 = vmatmul.f32.gmra.mxu0 %v6430
        %v6688 = vpop.f32.mrf.mxu0
        %v6689 = vadd.f32 0.0, %v6688
        %6690 = vmatmul.f32.gmra.mxu0 %v6433
        %v6691 = vpop.f32.mrf.mxu0
        %v6692 = vadd.f32 0.0, %v6691
        %6693 = vmatmul.f32.gmra.mxu0 %v6436
        %v6694 = vpop.f32.mrf.mxu0
        %v6695 = vadd.f32 0.0, %v6694
        %6696 = vmatmul.f32.gmra.mxu0 %v6439
        %v6697 = vpop.f32.mrf.mxu0
        %v6698 = vadd.f32 0.0, %v6697
        %6699 = vmatmul.f32.gmra.mxu0 %v6442
        %v6700 = vpop.f32.mrf.mxu0
        %v6701 = vadd.f32 0.0, %v6700
        %6702 = vmatmul.f32.gmra.mxu0 %v6445
        %v6703 = vpop.f32.mrf.mxu0
        %v6704 = vadd.f32 0.0, %v6703
        %6705 = vmatmul.f32.gmra.mxu0 %v6448
        %v6706 = vpop.f32.mrf.mxu0
        %v6707 = vadd.f32 0.0, %v6706
        %6708 = vmatmul.f32.gmra.mxu0 %v6451
        %v6709 = vpop.f32.mrf.mxu0
        %v6710 = vadd.f32 0.0, %v6709
        %6711 = vmatmul.f32.gmra.mxu0 %v6454
        %v6712 = vpop.f32.mrf.mxu0
        %v6713 = vadd.f32 0.0, %v6712
        %6714 = vmatmul.f32.gmra.mxu0 %v6457
        %v6715 = vpop.f32.mrf.mxu0
        %v6716 = vadd.f32 0.0, %v6715
        %6717 = vmatmul.f32.gmra.mxu0 %v6460
        %v6718 = vpop.f32.mrf.mxu0
        %v6719 = vadd.f32 0.0, %v6718
        %6720 = vmatmul.f32.gmra.mxu0 %v6463
        %v6721 = vpop.f32.mrf.mxu0
        %v6722 = vadd.f32 0.0, %v6721
        %6723 = vmatmul.f32.gmra.mxu0 %v6466
        %v6724 = vpop.f32.mrf.mxu0
        %v6725 = vadd.f32 0.0, %v6724
        %6726 = vdwg.mxu0
        %6727 = vmatpush.msra.mxu0 %v6501
        %6728 = vmatpush.msra.mxu0 %v6500
        %6729 = vmatpush.msra.mxu0 %v6499
        %6730 = vmatpush.msra.mxu0 %v6498
        %6731 = vmatpush.msra.mxu0 %v6497
        %6732 = vmatpush.msra.mxu0 %v6496
        %6733 = vmatpush.msra.mxu0 %v6495
        %6734 = vmatpush.msra.mxu0 %v6494
        %6735 = vmatpush.msra.mxu0 %v6493
        %6736 = vmatpush.msra.mxu0 %v6492
        %6737 = vmatpush.msra.mxu0 %v6491
        %6738 = vmatpush.msra.mxu0 %v6490
        %6739 = vmatpush.msra.mxu0 %v6489
        %6740 = vmatpush.msra.mxu0 %v6488
        %6741 = vmatpush.msra.mxu0 %v6487
        %6742 = vmatpush.msra.mxu0 %v6486
        %6743 = vmatmul.f32.gmra.mxu0 %v6278
        %v6744 = vpop.f32.mrf.mxu0
        %v6745 = vadd.f32 %v6536, %v6744
        %6746 = vmatmul.f32.gmra.mxu0 %v6281
        %v6747 = vpop.f32.mrf.mxu0
        %v6748 = vadd.f32 %v6539, %v6747
        %6749 = vmatmul.f32.gmra.mxu0 %v6284
        %v6750 = vpop.f32.mrf.mxu0
        %v6751 = vadd.f32 %v6542, %v6750
        %6752 = vmatmul.f32.gmra.mxu0 %v6287
        %v6753 = vpop.f32.mrf.mxu0
        %v6754 = vadd.f32 %v6545, %v6753
        %6755 = vmatmul.f32.gmra.mxu0 %v6290
        %v6756 = vpop.f32.mrf.mxu0
        %v6757 = vadd.f32 %v6548, %v6756
        %6758 = vmatmul.f32.gmra.mxu0 %v6293
        %v6759 = vpop.f32.mrf.mxu0
        %v6760 = vadd.f32 %v6551, %v6759
        %6761 = vmatmul.f32.gmra.mxu0 %v6296
        %v6762 = vpop.f32.mrf.mxu0
        %v6763 = vadd.f32 %v6554, %v6762
        %6764 = vmatmul.f32.gmra.mxu0 %v6299
        %v6765 = vpop.f32.mrf.mxu0
        %v6766 = vadd.f32 %v6557, %v6765
        %6767 = vmatmul.f32.gmra.mxu0 %v6302
        %v6768 = vpop.f32.mrf.mxu0
        %v6769 = vadd.f32 %v6560, %v6768
        %6770 = vmatmul.f32.gmra.mxu0 %v6305
        %v6771 = vpop.f32.mrf.mxu0
        %v6772 = vadd.f32 %v6563, %v6771
        %6773 = vmatmul.f32.gmra.mxu0 %v6308
        %v6774 = vpop.f32.mrf.mxu0
        %v6775 = vadd.f32 %v6566, %v6774
        %6776 = vmatmul.f32.gmra.mxu0 %v6311
        %v6777 = vpop.f32.mrf.mxu0
        %v6778 = vadd.f32 %v6569, %v6777
        %6779 = vmatmul.f32.gmra.mxu0 %v6314
        %v6780 = vpop.f32.mrf.mxu0
        %v6781 = vadd.f32 %v6572, %v6780
        %6782 = vmatmul.f32.gmra.mxu0 %v6317
        %v6783 = vpop.f32.mrf.mxu0
        %v6784 = vadd.f32 %v6575, %v6783
        %6785 = vmatmul.f32.gmra.mxu0 %v6320
        %v6786 = vpop.f32.mrf.mxu0
        %v6787 = vadd.f32 %v6578, %v6786
        %6788 = vmatmul.f32.gmra.mxu0 %v6323
        %v6789 = vpop.f32.mrf.mxu0
        %v6790 = vadd.f32 %v6581, %v6789
        %6791 = vmatmul.f32.gmra.mxu0 %v6326
        %v6792 = vpop.f32.mrf.mxu0
        %v6793 = vadd.f32 %v6584, %v6792
        %6794 = vmatmul.f32.gmra.mxu0 %v6329
        %v6795 = vpop.f32.mrf.mxu0
        %v6796 = vadd.f32 %v6587, %v6795
        %6797 = vmatmul.f32.gmra.mxu0 %v6332
        %v6798 = vpop.f32.mrf.mxu0
        %v6799 = vadd.f32 %v6590, %v6798
        %6800 = vmatmul.f32.gmra.mxu0 %v6335
        %v6801 = vpop.f32.mrf.mxu0
        %v6802 = vadd.f32 %v6593, %v6801
        %6803 = vmatmul.f32.gmra.mxu0 %v6338
        %v6804 = vpop.f32.mrf.mxu0
        %v6805 = vadd.f32 %v6596, %v6804
        %6806 = vmatmul.f32.gmra.mxu0 %v6341
        %v6807 = vpop.f32.mrf.mxu0
        %v6808 = vadd.f32 %v6599, %v6807
        %6809 = vmatmul.f32.gmra.mxu0 %v6344
        %v6810 = vpop.f32.mrf.mxu0
        %v6811 = vadd.f32 %v6602, %v6810
        %6812 = vmatmul.f32.gmra.mxu0 %v6347
        %v6813 = vpop.f32.mrf.mxu0
        %v6814 = vadd.f32 %v6605, %v6813
        %6815 = vmatmul.f32.gmra.mxu0 %v6350
        %v6816 = vpop.f32.mrf.mxu0
        %v6817 = vadd.f32 %v6608, %v6816
        %6818 = vmatmul.f32.gmra.mxu0 %v6353
        %v6819 = vpop.f32.mrf.mxu0
        %v6820 = vadd.f32 %v6611, %v6819
        %6821 = vmatmul.f32.gmra.mxu0 %v6356
        %v6822 = vpop.f32.mrf.mxu0
        %v6823 = vadd.f32 %v6614, %v6822
        %6824 = vmatmul.f32.gmra.mxu0 %v6359
        %v6825 = vpop.f32.mrf.mxu0
        %v6826 = vadd.f32 %v6617, %v6825
        %6827 = vmatmul.f32.gmra.mxu0 %v6362
        %v6828 = vpop.f32.mrf.mxu0
        %v6829 = vadd.f32 %v6620, %v6828
        %6830 = vmatmul.f32.gmra.mxu0 %v6365
        %v6831 = vpop.f32.mrf.mxu0
        %v6832 = vadd.f32 %v6623, %v6831
        %6833 = vmatmul.f32.gmra.mxu0 %v6368
        %v6834 = vpop.f32.mrf.mxu0
        %v6835 = vadd.f32 %v6626, %v6834
        %6836 = vmatmul.f32.gmra.mxu0 %v6371
        %v6837 = vpop.f32.mrf.mxu0
        %v6838 = vadd.f32 %v6629, %v6837
        %6839 = vmatmul.f32.gmra.mxu0 %v6374
        %v6840 = vpop.f32.mrf.mxu0
        %v6841 = vadd.f32 %v6632, %v6840
        %6842 = vmatmul.f32.gmra.mxu0 %v6377
        %v6843 = vpop.f32.mrf.mxu0
        %v6844 = vadd.f32 %v6635, %v6843
        %6845 = vmatmul.f32.gmra.mxu0 %v6380
        %v6846 = vpop.f32.mrf.mxu0
        %v6847 = vadd.f32 %v6638, %v6846
        %6848 = vmatmul.f32.gmra.mxu0 %v6383
        %v6849 = vpop.f32.mrf.mxu0
        %v6850 = vadd.f32 %v6641, %v6849
        %6851 = vmatmul.f32.gmra.mxu0 %v6386
        %v6852 = vpop.f32.mrf.mxu0
        %v6853 = vadd.f32 %v6644, %v6852
        %6854 = vmatmul.f32.gmra.mxu0 %v6389
        %v6855 = vpop.f32.mrf.mxu0
        %v6856 = vadd.f32 %v6647, %v6855
        %6857 = vmatmul.f32.gmra.mxu0 %v6392
        %v6858 = vpop.f32.mrf.mxu0
        %v6859 = vadd.f32 %v6650, %v6858
        %6860 = vmatmul.f32.gmra.mxu0 %v6395
        %v6861 = vpop.f32.mrf.mxu0
        %v6862 = vadd.f32 %v6653, %v6861
        %6863 = vmatmul.f32.gmra.mxu0 %v6398
        %v6864 = vpop.f32.mrf.mxu0
        %v6865 = vadd.f32 %v6656, %v6864
        %6866 = vmatmul.f32.gmra.mxu0 %v6401
        %v6867 = vpop.f32.mrf.mxu0
        %v6868 = vadd.f32 %v6659, %v6867
        %6869 = vmatmul.f32.gmra.mxu0 %v6404
        %v6870 = vpop.f32.mrf.mxu0
        %v6871 = vadd.f32 %v6662, %v6870
        %6872 = vmatmul.f32.gmra.mxu0 %v6407
        %v6873 = vpop.f32.mrf.mxu0
        %v6874 = vadd.f32 %v6665, %v6873
        %6875 = vmatmul.f32.gmra.mxu0 %v6410
        %v6876 = vpop.f32.mrf.mxu0
        %v6877 = vadd.f32 %v6668, %v6876
        %6878 = vmatmul.f32.gmra.mxu0 %v6413
        %v6879 = vpop.f32.mrf.mxu0
        %v6880 = vadd.f32 %v6671, %v6879
        %6881 = vmatmul.f32.gmra.mxu0 %v6416
        %v6882 = vpop.f32.mrf.mxu0
        %v6883 = vadd.f32 %v6674, %v6882
        %6884 = vmatmul.f32.gmra.mxu0 %v6419
        %v6885 = vpop.f32.mrf.mxu0
        %v6886 = vadd.f32 %v6677, %v6885
        %6887 = vmatmul.f32.gmra.mxu0 %v6422
        %v6888 = vpop.f32.mrf.mxu0
        %v6889 = vadd.f32 %v6680, %v6888
        %6890 = vmatmul.f32.gmra.mxu0 %v6425
        %v6891 = vpop.f32.mrf.mxu0
        %v6892 = vadd.f32 %v6683, %v6891
        %6893 = vmatmul.f32.gmra.mxu0 %v6428
        %v6894 = vpop.f32.mrf.mxu0
        %v6895 = vadd.f32 %v6686, %v6894
        %6896 = vmatmul.f32.gmra.mxu0 %v6431
        %v6897 = vpop.f32.mrf.mxu0
        %v6898 = vadd.f32 %v6689, %v6897
        %6899 = vmatmul.f32.gmra.mxu0 %v6434
        %v6900 = vpop.f32.mrf.mxu0
        %v6901 = vadd.f32 %v6692, %v6900
        %6902 = vmatmul.f32.gmra.mxu0 %v6437
        %v6903 = vpop.f32.mrf.mxu0
        %v6904 = vadd.f32 %v6695, %v6903
        %6905 = vmatmul.f32.gmra.mxu0 %v6440
        %v6906 = vpop.f32.mrf.mxu0
        %v6907 = vadd.f32 %v6698, %v6906
        %6908 = vmatmul.f32.gmra.mxu0 %v6443
        %v6909 = vpop.f32.mrf.mxu0
        %v6910 = vadd.f32 %v6701, %v6909
        %6911 = vmatmul.f32.gmra.mxu0 %v6446
        %v6912 = vpop.f32.mrf.mxu0
        %v6913 = vadd.f32 %v6704, %v6912
        %6914 = vmatmul.f32.gmra.mxu0 %v6449
        %v6915 = vpop.f32.mrf.mxu0
        %v6916 = vadd.f32 %v6707, %v6915
        %6917 = vmatmul.f32.gmra.mxu0 %v6452
        %v6918 = vpop.f32.mrf.mxu0
        %v6919 = vadd.f32 %v6710, %v6918
        %6920 = vmatmul.f32.gmra.mxu0 %v6455
        %v6921 = vpop.f32.mrf.mxu0
        %v6922 = vadd.f32 %v6713, %v6921
        %6923 = vmatmul.f32.gmra.mxu0 %v6458
        %v6924 = vpop.f32.mrf.mxu0
        %v6925 = vadd.f32 %v6716, %v6924
        %6926 = vmatmul.f32.gmra.mxu0 %v6461
        %v6927 = vpop.f32.mrf.mxu0
        %v6928 = vadd.f32 %v6719, %v6927
        %6929 = vmatmul.f32.gmra.mxu0 %v6464
        %v6930 = vpop.f32.mrf.mxu0
        %v6931 = vadd.f32 %v6722, %v6930
        %6932 = vmatmul.f32.gmra.mxu0 %v6467
        %v6933 = vpop.f32.mrf.mxu0
        %v6934 = vadd.f32 %v6725, %v6933
        %6935 = vdwg.mxu0
        %6936 = vmatpush.msra.mxu0 %v6517
        %6937 = vmatpush.msra.mxu0 %v6516
        %6938 = vmatpush.msra.mxu0 %v6515
        %6939 = vmatpush.msra.mxu0 %v6514
        %6940 = vmatpush.msra.mxu0 %v6513
        %6941 = vmatpush.msra.mxu0 %v6512
        %6942 = vmatpush.msra.mxu0 %v6511
        %6943 = vmatpush.msra.mxu0 %v6510
        %6944 = vmatpush.msra.mxu0 %v6509
        %6945 = vmatpush.msra.mxu0 %v6508
        %6946 = vmatpush.msra.mxu0 %v6507
        %6947 = vmatpush.msra.mxu0 %v6506
        %6948 = vmatpush.msra.mxu0 %v6505
        %6949 = vmatpush.msra.mxu0 %v6504
        %6950 = vmatpush.msra.mxu0 %v6503
        %6951 = vmatpush.msra.mxu0 %v6502
        %6952 = vmatmul.f32.gmra.mxu0 %v6279
        %v6953 = vpop.f32.mrf.mxu0
        %v6954 = vadd.f32 %v6745, %v6953
        %6955 = vmatmul.f32.gmra.mxu0 %v6282
        %v6956 = vpop.f32.mrf.mxu0
        %v6957 = vadd.f32 %v6748, %v6956
        %6958 = vmatmul.f32.gmra.mxu0 %v6285
        %v6959 = vpop.f32.mrf.mxu0
        %v6960 = vadd.f32 %v6751, %v6959
        %6961 = vmatmul.f32.gmra.mxu0 %v6288
        %v6962 = vpop.f32.mrf.mxu0
        %v6963 = vadd.f32 %v6754, %v6962
        %6964 = vmatmul.f32.gmra.mxu0 %v6291
        %v6965 = vpop.f32.mrf.mxu0
        %v6966 = vadd.f32 %v6757, %v6965
        %6967 = vmatmul.f32.gmra.mxu0 %v6294
        %v6968 = vpop.f32.mrf.mxu0
        %v6969 = vadd.f32 %v6760, %v6968
        %6970 = vmatmul.f32.gmra.mxu0 %v6297
        %v6971 = vpop.f32.mrf.mxu0
        %v6972 = vadd.f32 %v6763, %v6971
        %6973 = vmatmul.f32.gmra.mxu0 %v6300
        %v6974 = vpop.f32.mrf.mxu0
        %v6975 = vadd.f32 %v6766, %v6974
        %6976 = vmatmul.f32.gmra.mxu0 %v6303
        %v6977 = vpop.f32.mrf.mxu0
        %v6978 = vadd.f32 %v6769, %v6977
        %6979 = vmatmul.f32.gmra.mxu0 %v6306
        %v6980 = vpop.f32.mrf.mxu0
        %v6981 = vadd.f32 %v6772, %v6980
        %6982 = vmatmul.f32.gmra.mxu0 %v6309
        %v6983 = vpop.f32.mrf.mxu0
        %v6984 = vadd.f32 %v6775, %v6983
        %6985 = vmatmul.f32.gmra.mxu0 %v6312
        %v6986 = vpop.f32.mrf.mxu0
        %v6987 = vadd.f32 %v6778, %v6986
        %6988 = vmatmul.f32.gmra.mxu0 %v6315
        %v6989 = vpop.f32.mrf.mxu0
        %v6990 = vadd.f32 %v6781, %v6989
        %6991 = vmatmul.f32.gmra.mxu0 %v6318
        %v6992 = vpop.f32.mrf.mxu0
        %v6993 = vadd.f32 %v6784, %v6992
        %6994 = vmatmul.f32.gmra.mxu0 %v6321
        %v6995 = vpop.f32.mrf.mxu0
        %v6996 = vadd.f32 %v6787, %v6995
        %6997 = vmatmul.f32.gmra.mxu0 %v6324
        %v6998 = vpop.f32.mrf.mxu0
        %v6999 = vadd.f32 %v6790, %v6998
        %7000 = vmatmul.f32.gmra.mxu0 %v6327
        %v7001 = vpop.f32.mrf.mxu0
        %v7002 = vadd.f32 %v6793, %v7001
        %7003 = vmatmul.f32.gmra.mxu0 %v6330
        %v7004 = vpop.f32.mrf.mxu0
        %v7005 = vadd.f32 %v6796, %v7004
        %7006 = vmatmul.f32.gmra.mxu0 %v6333
        %v7007 = vpop.f32.mrf.mxu0
        %v7008 = vadd.f32 %v6799, %v7007
        %7009 = vmatmul.f32.gmra.mxu0 %v6336
        %v7010 = vpop.f32.mrf.mxu0
        %v7011 = vadd.f32 %v6802, %v7010
        %7012 = vmatmul.f32.gmra.mxu0 %v6339
        %v7013 = vpop.f32.mrf.mxu0
        %v7014 = vadd.f32 %v6805, %v7013
        %7015 = vmatmul.f32.gmra.mxu0 %v6342
        %v7016 = vpop.f32.mrf.mxu0
        %v7017 = vadd.f32 %v6808, %v7016
        %7018 = vmatmul.f32.gmra.mxu0 %v6345
        %v7019 = vpop.f32.mrf.mxu0
        %v7020 = vadd.f32 %v6811, %v7019
        %7021 = vmatmul.f32.gmra.mxu0 %v6348
        %v7022 = vpop.f32.mrf.mxu0
        %v7023 = vadd.f32 %v6814, %v7022
        %7024 = vmatmul.f32.gmra.mxu0 %v6351
        %v7025 = vpop.f32.mrf.mxu0
        %v7026 = vadd.f32 %v6817, %v7025
        %7027 = vmatmul.f32.gmra.mxu0 %v6354
        %v7028 = vpop.f32.mrf.mxu0
        %v7029 = vadd.f32 %v6820, %v7028
        %7030 = vmatmul.f32.gmra.mxu0 %v6357
        %v7031 = vpop.f32.mrf.mxu0
        %v7032 = vadd.f32 %v6823, %v7031
        %7033 = vmatmul.f32.gmra.mxu0 %v6360
        %v7034 = vpop.f32.mrf.mxu0
        %v7035 = vadd.f32 %v6826, %v7034
        %7036 = vmatmul.f32.gmra.mxu0 %v6363
        %v7037 = vpop.f32.mrf.mxu0
        %v7038 = vadd.f32 %v6829, %v7037
        %7039 = vmatmul.f32.gmra.mxu0 %v6366
        %v7040 = vpop.f32.mrf.mxu0
        %v7041 = vadd.f32 %v6832, %v7040
        %7042 = vmatmul.f32.gmra.mxu0 %v6369
        %v7043 = vpop.f32.mrf.mxu0
        %v7044 = vadd.f32 %v6835, %v7043
        %7045 = vmatmul.f32.gmra.mxu0 %v6372
        %v7046 = vpop.f32.mrf.mxu0
        %v7047 = vadd.f32 %v6838, %v7046
        %7048 = vmatmul.f32.gmra.mxu0 %v6375
        %v7049 = vpop.f32.mrf.mxu0
        %v7050 = vadd.f32 %v6841, %v7049
        %7051 = vmatmul.f32.gmra.mxu0 %v6378
        %v7052 = vpop.f32.mrf.mxu0
        %v7053 = vadd.f32 %v6844, %v7052
        %7054 = vmatmul.f32.gmra.mxu0 %v6381
        %v7055 = vpop.f32.mrf.mxu0
        %v7056 = vadd.f32 %v6847, %v7055
        %7057 = vmatmul.f32.gmra.mxu0 %v6384
        %v7058 = vpop.f32.mrf.mxu0
        %v7059 = vadd.f32 %v6850, %v7058
        %7060 = vmatmul.f32.gmra.mxu0 %v6387
        %v7061 = vpop.f32.mrf.mxu0
        %v7062 = vadd.f32 %v6853, %v7061
        %7063 = vmatmul.f32.gmra.mxu0 %v6390
        %v7064 = vpop.f32.mrf.mxu0
        %v7065 = vadd.f32 %v6856, %v7064
        %7066 = vmatmul.f32.gmra.mxu0 %v6393
        %v7067 = vpop.f32.mrf.mxu0
        %v7068 = vadd.f32 %v6859, %v7067
        %7069 = vmatmul.f32.gmra.mxu0 %v6396
        %v7070 = vpop.f32.mrf.mxu0
        %v7071 = vadd.f32 %v6862, %v7070
        %7072 = vmatmul.f32.gmra.mxu0 %v6399
        %v7073 = vpop.f32.mrf.mxu0
        %v7074 = vadd.f32 %v6865, %v7073
        %7075 = vmatmul.f32.gmra.mxu0 %v6402
        %v7076 = vpop.f32.mrf.mxu0
        %v7077 = vadd.f32 %v6868, %v7076
        %7078 = vmatmul.f32.gmra.mxu0 %v6405
        %v7079 = vpop.f32.mrf.mxu0
        %v7080 = vadd.f32 %v6871, %v7079
        %7081 = vmatmul.f32.gmra.mxu0 %v6408
        %v7082 = vpop.f32.mrf.mxu0
        %v7083 = vadd.f32 %v6874, %v7082
        %7084 = vmatmul.f32.gmra.mxu0 %v6411
        %v7085 = vpop.f32.mrf.mxu0
        %v7086 = vadd.f32 %v6877, %v7085
        %7087 = vmatmul.f32.gmra.mxu0 %v6414
        %v7088 = vpop.f32.mrf.mxu0
        %v7089 = vadd.f32 %v6880, %v7088
        %7090 = vmatmul.f32.gmra.mxu0 %v6417
        %v7091 = vpop.f32.mrf.mxu0
        %v7092 = vadd.f32 %v6883, %v7091
        %7093 = vmatmul.f32.gmra.mxu0 %v6420
        %v7094 = vpop.f32.mrf.mxu0
        %v7095 = vadd.f32 %v6886, %v7094
        %7096 = vmatmul.f32.gmra.mxu0 %v6423
        %v7097 = vpop.f32.mrf.mxu0
        %v7098 = vadd.f32 %v6889, %v7097
        %7099 = vmatmul.f32.gmra.mxu0 %v6426
        %v7100 = vpop.f32.mrf.mxu0
        %v7101 = vadd.f32 %v6892, %v7100
        %7102 = vmatmul.f32.gmra.mxu0 %v6429
        %v7103 = vpop.f32.mrf.mxu0
        %v7104 = vadd.f32 %v6895, %v7103
        %7105 = vmatmul.f32.gmra.mxu0 %v6432
        %v7106 = vpop.f32.mrf.mxu0
        %v7107 = vadd.f32 %v6898, %v7106
        %7108 = vmatmul.f32.gmra.mxu0 %v6435
        %v7109 = vpop.f32.mrf.mxu0
        %v7110 = vadd.f32 %v6901, %v7109
        %7111 = vmatmul.f32.gmra.mxu0 %v6438
        %v7112 = vpop.f32.mrf.mxu0
        %v7113 = vadd.f32 %v6904, %v7112
        %7114 = vmatmul.f32.gmra.mxu0 %v6441
        %v7115 = vpop.f32.mrf.mxu0
        %v7116 = vadd.f32 %v6907, %v7115
        %7117 = vmatmul.f32.gmra.mxu0 %v6444
        %v7118 = vpop.f32.mrf.mxu0
        %v7119 = vadd.f32 %v6910, %v7118
        %7120 = vmatmul.f32.gmra.mxu0 %v6447
        %v7121 = vpop.f32.mrf.mxu0
        %v7122 = vadd.f32 %v6913, %v7121
        %7123 = vmatmul.f32.gmra.mxu0 %v6450
        %v7124 = vpop.f32.mrf.mxu0
        %v7125 = vadd.f32 %v6916, %v7124
        %7126 = vmatmul.f32.gmra.mxu0 %v6453
        %v7127 = vpop.f32.mrf.mxu0
        %v7128 = vadd.f32 %v6919, %v7127
        %7129 = vmatmul.f32.gmra.mxu0 %v6456
        %v7130 = vpop.f32.mrf.mxu0
        %v7131 = vadd.f32 %v6922, %v7130
        %7132 = vmatmul.f32.gmra.mxu0 %v6459
        %v7133 = vpop.f32.mrf.mxu0
        %v7134 = vadd.f32 %v6925, %v7133
        %7135 = vmatmul.f32.gmra.mxu0 %v6462
        %v7136 = vpop.f32.mrf.mxu0
        %v7137 = vadd.f32 %v6928, %v7136
        %7138 = vmatmul.f32.gmra.mxu0 %v6465
        %v7139 = vpop.f32.mrf.mxu0
        %v7140 = vadd.f32 %v6931, %v7139
        %7141 = vmatmul.f32.gmra.mxu0 %v6468
        %v7142 = vpop.f32.mrf.mxu0
        %v7143 = vadd.f32 %v6934, %v7142
        %7144 = vdwg.mxu0
        %v7145 = vadd.f32 %v5954, %v6954
        %v7146 = vadd.f32 %v5957, %v6957
        %v7147 = vadd.f32 %v5960, %v6960
        %v7148 = vadd.f32 %v5963, %v6963
        %v7149 = vadd.f32 %v5966, %v6966
        %v7150 = vadd.f32 %v5969, %v6969
        %v7151 = vadd.f32 %v5972, %v6972
        %v7152 = vadd.f32 %v5975, %v6975
        %v7153 = vadd.f32 %v5978, %v6978
        %v7154 = vadd.f32 %v5981, %v6981
        %v7155 = vadd.f32 %v5984, %v6984
        %v7156 = vadd.f32 %v5987, %v6987
        %v7157 = vadd.f32 %v5990, %v6990
        %v7158 = vadd.f32 %v5993, %v6993
        %v7159 = vadd.f32 %v5996, %v6996
        %v7160 = vadd.f32 %v5999, %v6999
        %v7161 = vadd.f32 %v6002, %v7002
        %v7162 = vadd.f32 %v6005, %v7005
        %v7163 = vadd.f32 %v6008, %v7008
        %v7164 = vadd.f32 %v6011, %v7011
        %v7165 = vadd.f32 %v6014, %v7014
        %v7166 = vadd.f32 %v6017, %v7017
        %v7167 = vadd.f32 %v6020, %v7020
        %v7168 = vadd.f32 %v6023, %v7023
        %v7169 = vadd.f32 %v6026, %v7026
        %v7170 = vadd.f32 %v6029, %v7029
        %v7171 = vadd.f32 %v6032, %v7032
        %v7172 = vadd.f32 %v6035, %v7035
        %v7173 = vadd.f32 %v6038, %v7038
        %v7174 = vadd.f32 %v6041, %v7041
        %v7175 = vadd.f32 %v6044, %v7044
        %v7176 = vadd.f32 %v6047, %v7047
        %v7177 = vadd.f32 %v6050, %v7050
        %v7178 = vadd.f32 %v6053, %v7053
        %v7179 = vadd.f32 %v6056, %v7056
        %v7180 = vadd.f32 %v6059, %v7059
        %v7181 = vadd.f32 %v6062, %v7062
        %v7182 = vadd.f32 %v6065, %v7065
        %v7183 = vadd.f32 %v6068, %v7068
        %v7184 = vadd.f32 %v6071, %v7071
        %v7185 = vadd.f32 %v6074, %v7074
        %v7186 = vadd.f32 %v6077, %v7077
        %v7187 = vadd.f32 %v6080, %v7080
        %v7188 = vadd.f32 %v6083, %v7083
        %v7189 = vadd.f32 %v6086, %v7086
        %v7190 = vadd.f32 %v6089, %v7089
        %v7191 = vadd.f32 %v6092, %v7092
        %v7192 = vadd.f32 %v6095, %v7095
        %v7193 = vadd.f32 %v6098, %v7098
        %v7194 = vadd.f32 %v6101, %v7101
        %v7195 = vadd.f32 %v6104, %v7104
        %v7196 = vadd.f32 %v6107, %v7107
        %v7197 = vadd.f32 %v6110, %v7110
        %v7198 = vadd.f32 %v6113, %v7113
        %v7199 = vadd.f32 %v6116, %v7116
        %v7200 = vadd.f32 %v6119, %v7119
        %v7201 = vadd.f32 %v6122, %v7122
        %v7202 = vadd.f32 %v6125, %v7125
        %v7203 = vadd.f32 %v6128, %v7128
        %v7204 = vadd.f32 %v6131, %v7131
        %v7205 = vadd.f32 %v6134, %v7134
        %v7206 = vadd.f32 %v6137, %v7137
        %v7207 = vadd.f32 %v6140, %v7140
        %v7208 = vadd.f32 %v6143, %v7143
        %v7209 = vadd.f32 %v7145, %v7146
        %v7210 = vadd.f32 %v7209, %v7147
        %v7211 = vadd.f32 %v7210, %v7148
        %v7212 = vadd.f32 %v7211, %v7149
        %v7213 = vadd.f32 %v7212, %v7150
        %v7214 = vadd.f32 %v7213, %v7151
        %v7215 = vadd.f32 %v7214, %v7152
        %v7216 = vadd.f32 %v7215, %v7153
        %v7217 = vadd.f32 %v7216, %v7154
        %v7218 = vadd.f32 %v7217, %v7155
        %v7219 = vadd.f32 %v7218, %v7156
        %v7220 = vadd.f32 %v7219, %v7157
        %v7221 = vadd.f32 %v7220, %v7158
        %v7222 = vadd.f32 %v7221, %v7159
        %v7223 = vadd.f32 %v7222, %v7160
        %v7224 = vadd.f32 %v7223, %v7161
        %v7225 = vadd.f32 %v7224, %v7162
        %v7226 = vadd.f32 %v7225, %v7163
        %v7227 = vadd.f32 %v7226, %v7164
        %v7228 = vadd.f32 %v7227, %v7165
        %v7229 = vadd.f32 %v7228, %v7166
        %v7230 = vadd.f32 %v7229, %v7167
        %v7231 = vadd.f32 %v7230, %v7168
        %v7232 = vadd.f32 %v7231, %v7169
        %v7233 = vadd.f32 %v7232, %v7170
        %v7234 = vadd.f32 %v7233, %v7171
        %v7235 = vadd.f32 %v7234, %v7172
        %v7236 = vadd.f32 %v7235, %v7173
        %v7237 = vadd.f32 %v7236, %v7174
        %v7238 = vadd.f32 %v7237, %v7175
        %v7239 = vadd.f32 %v7238, %v7176
        %v7240 = vrot.slane %v7239, 4
        %v7241 = vadd.f32 %v7239, %v7240
        %v7242 = vrot.slane %v7241, 2
        %v7243 = vadd.f32 %v7241, %v7242
        %v7244 = vrot.slane %v7243, 1
        %v7245 = vadd.f32 %v7243, %v7244
        %v7246 = vadd.f32 %v7177, %v7178
        %v7247 = vadd.f32 %v7246, %v7179
        %v7248 = vadd.f32 %v7247, %v7180
        %v7249 = vadd.f32 %v7248, %v7181
        %v7250 = vadd.f32 %v7249, %v7182
        %v7251 = vadd.f32 %v7250, %v7183
        %v7252 = vadd.f32 %v7251, %v7184
        %v7253 = vadd.f32 %v7252, %v7185
        %v7254 = vadd.f32 %v7253, %v7186
        %v7255 = vadd.f32 %v7254, %v7187
        %v7256 = vadd.f32 %v7255, %v7188
        %v7257 = vadd.f32 %v7256, %v7189
        %v7258 = vadd.f32 %v7257, %v7190
        %v7259 = vadd.f32 %v7258, %v7191
        %v7260 = vadd.f32 %v7259, %v7192
        %v7261 = vadd.f32 %v7260, %v7193
        %v7262 = vadd.f32 %v7261, %v7194
        %v7263 = vadd.f32 %v7262, %v7195
        %v7264 = vadd.f32 %v7263, %v7196
        %v7265 = vadd.f32 %v7264, %v7197
        %v7266 = vadd.f32 %v7265, %v7198
        %v7267 = vadd.f32 %v7266, %v7199
        %v7268 = vadd.f32 %v7267, %v7200
        %v7269 = vadd.f32 %v7268, %v7201
        %v7270 = vadd.f32 %v7269, %v7202
        %v7271 = vadd.f32 %v7270, %v7203
        %v7272 = vadd.f32 %v7271, %v7204
        %v7273 = vadd.f32 %v7272, %v7205
        %v7274 = vadd.f32 %v7273, %v7206
        %v7275 = vadd.f32 %v7274, %v7207
        %v7276 = vadd.f32 %v7275, %v7208
        %v7277 = vrot.slane %v7276, 4
        %v7278 = vadd.f32 %v7276, %v7277
        %v7279 = vrot.slane %v7278, 2
        %v7280 = vadd.f32 %v7278, %v7279
        %v7281 = vrot.slane %v7280, 1
        %v7282 = vadd.f32 %v7280, %v7281
        %v7283 = vmul.f32 %v7245, %v4037
        %v7284 = vmul.f32 %v7282, %v4037
        %v7285 = vsub.f32 %v7145, %v7283
        %v7286 = vsub.f32 %v7146, %v7283
        %v7287 = vsub.f32 %v7147, %v7283
        %v7288 = vsub.f32 %v7148, %v7283
        %v7289 = vsub.f32 %v7149, %v7283
        %v7290 = vsub.f32 %v7150, %v7283
        %v7291 = vsub.f32 %v7151, %v7283
        %v7292 = vsub.f32 %v7152, %v7283
        %v7293 = vsub.f32 %v7153, %v7283
        %v7294 = vsub.f32 %v7154, %v7283
        %v7295 = vsub.f32 %v7155, %v7283
        %v7296 = vsub.f32 %v7156, %v7283
        %v7297 = vsub.f32 %v7157, %v7283
        %v7298 = vsub.f32 %v7158, %v7283
        %v7299 = vsub.f32 %v7159, %v7283
        %v7300 = vsub.f32 %v7160, %v7283
        %v7301 = vsub.f32 %v7161, %v7283
        %v7302 = vsub.f32 %v7162, %v7283
        %v7303 = vsub.f32 %v7163, %v7283
        %v7304 = vsub.f32 %v7164, %v7283
        %v7305 = vsub.f32 %v7165, %v7283
        %v7306 = vsub.f32 %v7166, %v7283
        %v7307 = vsub.f32 %v7167, %v7283
        %v7308 = vsub.f32 %v7168, %v7283
        %v7309 = vsub.f32 %v7169, %v7283
        %v7310 = vsub.f32 %v7170, %v7283
        %v7311 = vsub.f32 %v7171, %v7283
        %v7312 = vsub.f32 %v7172, %v7283
        %v7313 = vsub.f32 %v7173, %v7283
        %v7314 = vsub.f32 %v7174, %v7283
        %v7315 = vsub.f32 %v7175, %v7283
        %v7316 = vsub.f32 %v7176, %v7283
        %v7317 = vsub.f32 %v7177, %v7284
        %v7318 = vsub.f32 %v7178, %v7284
        %v7319 = vsub.f32 %v7179, %v7284
        %v7320 = vsub.f32 %v7180, %v7284
        %v7321 = vsub.f32 %v7181, %v7284
        %v7322 = vsub.f32 %v7182, %v7284
        %v7323 = vsub.f32 %v7183, %v7284
        %v7324 = vsub.f32 %v7184, %v7284
        %v7325 = vsub.f32 %v7185, %v7284
        %v7326 = vsub.f32 %v7186, %v7284
        %v7327 = vsub.f32 %v7187, %v7284
        %v7328 = vsub.f32 %v7188, %v7284
        %v7329 = vsub.f32 %v7189, %v7284
        %v7330 = vsub.f32 %v7190, %v7284
        %v7331 = vsub.f32 %v7191, %v7284
        %v7332 = vsub.f32 %v7192, %v7284
        %v7333 = vsub.f32 %v7193, %v7284
        %v7334 = vsub.f32 %v7194, %v7284
        %v7335 = vsub.f32 %v7195, %v7284
        %v7336 = vsub.f32 %v7196, %v7284
        %v7337 = vsub.f32 %v7197, %v7284
        %v7338 = vsub.f32 %v7198, %v7284
        %v7339 = vsub.f32 %v7199, %v7284
        %v7340 = vsub.f32 %v7200, %v7284
        %v7341 = vsub.f32 %v7201, %v7284
        %v7342 = vsub.f32 %v7202, %v7284
        %v7343 = vsub.f32 %v7203, %v7284
        %v7344 = vsub.f32 %v7204, %v7284
        %v7345 = vsub.f32 %v7205, %v7284
        %v7346 = vsub.f32 %v7206, %v7284
        %v7347 = vsub.f32 %v7207, %v7284
        %v7348 = vsub.f32 %v7208, %v7284
        %v7349 = vmul.f32 %v7285, %v7285
        %v7350 = vmul.f32 %v7286, %v7286
        %v7351 = vmul.f32 %v7287, %v7287
        %v7352 = vmul.f32 %v7288, %v7288
        %v7353 = vmul.f32 %v7289, %v7289
        %v7354 = vmul.f32 %v7290, %v7290
        %v7355 = vmul.f32 %v7291, %v7291
        %v7356 = vmul.f32 %v7292, %v7292
        %v7357 = vmul.f32 %v7293, %v7293
        %v7358 = vmul.f32 %v7294, %v7294
        %v7359 = vmul.f32 %v7295, %v7295
        %v7360 = vmul.f32 %v7296, %v7296
        %v7361 = vmul.f32 %v7297, %v7297
        %v7362 = vmul.f32 %v7298, %v7298
        %v7363 = vmul.f32 %v7299, %v7299
        %v7364 = vmul.f32 %v7300, %v7300
        %v7365 = vmul.f32 %v7301, %v7301
        %v7366 = vmul.f32 %v7302, %v7302
        %v7367 = vmul.f32 %v7303, %v7303
        %v7368 = vmul.f32 %v7304, %v7304
        %v7369 = vmul.f32 %v7305, %v7305
        %v7370 = vmul.f32 %v7306, %v7306
        %v7371 = vmul.f32 %v7307, %v7307
        %v7372 = vmul.f32 %v7308, %v7308
        %v7373 = vmul.f32 %v7309, %v7309
        %v7374 = vmul.f32 %v7310, %v7310
        %v7375 = vmul.f32 %v7311, %v7311
        %v7376 = vmul.f32 %v7312, %v7312
        %v7377 = vmul.f32 %v7313, %v7313
        %v7378 = vmul.f32 %v7314, %v7314
        %v7379 = vmul.f32 %v7315, %v7315
        %v7380 = vmul.f32 %v7316, %v7316
        %v7381 = vmul.f32 %v7317, %v7317
        %v7382 = vmul.f32 %v7318, %v7318
        %v7383 = vmul.f32 %v7319, %v7319
        %v7384 = vmul.f32 %v7320, %v7320
        %v7385 = vmul.f32 %v7321, %v7321
        %v7386 = vmul.f32 %v7322, %v7322
        %v7387 = vmul.f32 %v7323, %v7323
        %v7388 = vmul.f32 %v7324, %v7324
        %v7389 = vmul.f32 %v7325, %v7325
        %v7390 = vmul.f32 %v7326, %v7326
        %v7391 = vmul.f32 %v7327, %v7327
        %v7392 = vmul.f32 %v7328, %v7328
        %v7393 = vmul.f32 %v7329, %v7329
        %v7394 = vmul.f32 %v7330, %v7330
        %v7395 = vmul.f32 %v7331, %v7331
        %v7396 = vmul.f32 %v7332, %v7332
        %v7397 = vmul.f32 %v7333, %v7333
        %v7398 = vmul.f32 %v7334, %v7334
        %v7399 = vmul.f32 %v7335, %v7335
        %v7400 = vmul.f32 %v7336, %v7336
        %v7401 = vmul.f32 %v7337, %v7337
        %v7402 = vmul.f32 %v7338, %v7338
        %v7403 = vmul.f32 %v7339, %v7339
        %v7404 = vmul.f32 %v7340, %v7340
        %v7405 = vmul.f32 %v7341, %v7341
        %v7406 = vmul.f32 %v7342, %v7342
        %v7407 = vmul.f32 %v7343, %v7343
        %v7408 = vmul.f32 %v7344, %v7344
        %v7409 = vmul.f32 %v7345, %v7345
        %v7410 = vmul.f32 %v7346, %v7346
        %v7411 = vmul.f32 %v7347, %v7347
        %v7412 = vmul.f32 %v7348, %v7348
        %v7413 = vadd.f32 %v7349, %v7350
        %v7414 = vadd.f32 %v7413, %v7351
        %v7415 = vadd.f32 %v7414, %v7352
        %v7416 = vadd.f32 %v7415, %v7353
        %v7417 = vadd.f32 %v7416, %v7354
        %v7418 = vadd.f32 %v7417, %v7355
        %v7419 = vadd.f32 %v7418, %v7356
        %v7420 = vadd.f32 %v7419, %v7357
        %v7421 = vadd.f32 %v7420, %v7358
        %v7422 = vadd.f32 %v7421, %v7359
        %v7423 = vadd.f32 %v7422, %v7360
        %v7424 = vadd.f32 %v7423, %v7361
        %v7425 = vadd.f32 %v7424, %v7362
        %v7426 = vadd.f32 %v7425, %v7363
        %v7427 = vadd.f32 %v7426, %v7364
        %v7428 = vadd.f32 %v7427, %v7365
        %v7429 = vadd.f32 %v7428, %v7366
        %v7430 = vadd.f32 %v7429, %v7367
        %v7431 = vadd.f32 %v7430, %v7368
        %v7432 = vadd.f32 %v7431, %v7369
        %v7433 = vadd.f32 %v7432, %v7370
        %v7434 = vadd.f32 %v7433, %v7371
        %v7435 = vadd.f32 %v7434, %v7372
        %v7436 = vadd.f32 %v7435, %v7373
        %v7437 = vadd.f32 %v7436, %v7374
        %v7438 = vadd.f32 %v7437, %v7375
        %v7439 = vadd.f32 %v7438, %v7376
        %v7440 = vadd.f32 %v7439, %v7377
        %v7441 = vadd.f32 %v7440, %v7378
        %v7442 = vadd.f32 %v7441, %v7379
        %v7443 = vadd.f32 %v7442, %v7380
        %v7444 = vrot.slane %v7443, 4
        %v7445 = vadd.f32 %v7443, %v7444
        %v7446 = vrot.slane %v7445, 2
        %v7447 = vadd.f32 %v7445, %v7446
        %v7448 = vrot.slane %v7447, 1
        %v7449 = vadd.f32 %v7447, %v7448
        %v7450 = vadd.f32 %v7381, %v7382
        %v7451 = vadd.f32 %v7450, %v7383
        %v7452 = vadd.f32 %v7451, %v7384
        %v7453 = vadd.f32 %v7452, %v7385
        %v7454 = vadd.f32 %v7453, %v7386
        %v7455 = vadd.f32 %v7454, %v7387
        %v7456 = vadd.f32 %v7455, %v7388
        %v7457 = vadd.f32 %v7456, %v7389
        %v7458 = vadd.f32 %v7457, %v7390
        %v7459 = vadd.f32 %v7458, %v7391
        %v7460 = vadd.f32 %v7459, %v7392
        %v7461 = vadd.f32 %v7460, %v7393
        %v7462 = vadd.f32 %v7461, %v7394
        %v7463 = vadd.f32 %v7462, %v7395
        %v7464 = vadd.f32 %v7463, %v7396
        %v7465 = vadd.f32 %v7464, %v7397
        %v7466 = vadd.f32 %v7465, %v7398
        %v7467 = vadd.f32 %v7466, %v7399
        %v7468 = vadd.f32 %v7467, %v7400
        %v7469 = vadd.f32 %v7468, %v7401
        %v7470 = vadd.f32 %v7469, %v7402
        %v7471 = vadd.f32 %v7470, %v7403
        %v7472 = vadd.f32 %v7471, %v7404
        %v7473 = vadd.f32 %v7472, %v7405
        %v7474 = vadd.f32 %v7473, %v7406
        %v7475 = vadd.f32 %v7474, %v7407
        %v7476 = vadd.f32 %v7475, %v7408
        %v7477 = vadd.f32 %v7476, %v7409
        %v7478 = vadd.f32 %v7477, %v7410
        %v7479 = vadd.f32 %v7478, %v7411
        %v7480 = vadd.f32 %v7479, %v7412
        %v7481 = vrot.slane %v7480, 4
        %v7482 = vadd.f32 %v7480, %v7481
        %v7483 = vrot.slane %v7482, 2
        %v7484 = vadd.f32 %v7482, %v7483
        %v7485 = vrot.slane %v7484, 1
        %v7486 = vadd.f32 %v7484, %v7485
        %v7487 = vmul.f32 %v7449, %v4037
        %v7488 = vmul.f32 %v7486, %v4037
        %v7489 = vadd.f32 %v7487, 1e-05
        %v7490 = vadd.f32 %v7488, 1e-05
        %v7491 = vrsqrt.pop %v7489
        %v7492 = vmul.f32 %v7491, %v7489
        %v7493 = vmul.f32 %v7492, %v7491
        %v7494 = vmul.f32 0.5, %v7493
        %v7495 = vsub.f32 1.5, %v7494
        %v7496 = vmul.f32 %v7491, %v7495
        %vm7497 = vweird.f32 %v7489
        %vm7498 = vweird.f32 %v7491
        %vm7499 = vmor %vm7497, %vm7498
        %v7500 = vsel %vm7499, %v7491, %v7496
        %v7501 = vrsqrt.pop %v7490
        %v7502 = vmul.f32 %v7501, %v7490
        %v7503 = vmul.f32 %v7502, %v7501
        %v7504 = vmul.f32 0.5, %v7503
        %v7505 = vsub.f32 1.5, %v7504
        %v7506 = vmul.f32 %v7501, %v7505
        %vm7507 = vweird.f32 %v7490
        %vm7508 = vweird.f32 %v7501
        %vm7509 = vmor %vm7507, %vm7508
        %v7510 = vsel %vm7509, %v7501, %v7506
        %v7511 = vmul.f32 %v7285, %v7500
        %v7512 = vmul.f32 %v7286, %v7500
        %v7513 = vmul.f32 %v7287, %v7500
        %v7514 = vmul.f32 %v7288, %v7500
        %v7515 = vmul.f32 %v7289, %v7500
        %v7516 = vmul.f32 %v7290, %v7500
        %v7517 = vmul.f32 %v7291, %v7500
        %v7518 = vmul.f32 %v7292, %v7500
        %v7519 = vmul.f32 %v7293, %v7500
        %v7520 = vmul.f32 %v7294, %v7500
        %v7521 = vmul.f32 %v7295, %v7500
        %v7522 = vmul.f32 %v7296, %v7500
        %v7523 = vmul.f32 %v7297, %v7500
        %v7524 = vmul.f32 %v7298, %v7500
        %v7525 = vmul.f32 %v7299, %v7500
        %v7526 = vmul.f32 %v7300, %v7500
        %v7527 = vmul.f32 %v7301, %v7500
        %v7528 = vmul.f32 %v7302, %v7500
        %v7529 = vmul.f32 %v7303, %v7500
        %v7530 = vmul.f32 %v7304, %v7500
        %v7531 = vmul.f32 %v7305, %v7500
        %v7532 = vmul.f32 %v7306, %v7500
        %v7533 = vmul.f32 %v7307, %v7500
        %v7534 = vmul.f32 %v7308, %v7500
        %v7535 = vmul.f32 %v7309, %v7500
        %v7536 = vmul.f32 %v7310, %v7500
        %v7537 = vmul.f32 %v7311, %v7500
        %v7538 = vmul.f32 %v7312, %v7500
        %v7539 = vmul.f32 %v7313, %v7500
        %v7540 = vmul.f32 %v7314, %v7500
        %v7541 = vmul.f32 %v7315, %v7500
        %v7542 = vmul.f32 %v7316, %v7500
        %v7543 = vmul.f32 %v7317, %v7510
        %v7544 = vmul.f32 %v7318, %v7510
        %v7545 = vmul.f32 %v7319, %v7510
        %v7546 = vmul.f32 %v7320, %v7510
        %v7547 = vmul.f32 %v7321, %v7510
        %v7548 = vmul.f32 %v7322, %v7510
        %v7549 = vmul.f32 %v7323, %v7510
        %v7550 = vmul.f32 %v7324, %v7510
        %v7551 = vmul.f32 %v7325, %v7510
        %v7552 = vmul.f32 %v7326, %v7510
        %v7553 = vmul.f32 %v7327, %v7510
        %v7554 = vmul.f32 %v7328, %v7510
        %v7555 = vmul.f32 %v7329, %v7510
        %v7556 = vmul.f32 %v7330, %v7510
        %v7557 = vmul.f32 %v7331, %v7510
        %v7558 = vmul.f32 %v7332, %v7510
        %v7559 = vmul.f32 %v7333, %v7510
        %v7560 = vmul.f32 %v7334, %v7510
        %v7561 = vmul.f32 %v7335, %v7510
        %v7562 = vmul.f32 %v7336, %v7510
        %v7563 = vmul.f32 %v7337, %v7510
        %v7564 = vmul.f32 %v7338, %v7510
        %v7565 = vmul.f32 %v7339, %v7510
        %v7566 = vmul.f32 %v7340, %v7510
        %v7567 = vmul.f32 %v7341, %v7510
        %v7568 = vmul.f32 %v7342, %v7510
        %v7569 = vmul.f32 %v7343, %v7510
        %v7570 = vmul.f32 %v7344, %v7510
        %v7571 = vmul.f32 %v7345, %v7510
        %v7572 = vmul.f32 %v7346, %v7510
        %v7573 = vmul.f32 %v7347, %v7510
        %v7574 = vmul.f32 %v7348, %v7510
        %v7575 = vadd.f32 %v950, %v7511
        %v7576 = vadd.f32 %v951, %v7512
        %v7577 = vadd.f32 %v952, %v7513
        %v7578 = vadd.f32 %v953, %v7514
        %v7579 = vadd.f32 %v954, %v7515
        %v7580 = vadd.f32 %v955, %v7516
        %v7581 = vadd.f32 %v956, %v7517
        %v7582 = vadd.f32 %v957, %v7518
        %v7583 = vadd.f32 %v958, %v7519
        %v7584 = vadd.f32 %v959, %v7520
        %v7585 = vadd.f32 %v960, %v7521
        %v7586 = vadd.f32 %v961, %v7522
        %v7587 = vadd.f32 %v962, %v7523
        %v7588 = vadd.f32 %v963, %v7524
        %v7589 = vadd.f32 %v964, %v7525
        %v7590 = vadd.f32 %v965, %v7526
        %v7591 = vadd.f32 %v966, %v7527
        %v7592 = vadd.f32 %v967, %v7528
        %v7593 = vadd.f32 %v968, %v7529
        %v7594 = vadd.f32 %v969, %v7530
        %v7595 = vadd.f32 %v970, %v7531
        %v7596 = vadd.f32 %v971, %v7532
        %v7597 = vadd.f32 %v972, %v7533
        %v7598 = vadd.f32 %v973, %v7534
        %v7599 = vadd.f32 %v974, %v7535
        %v7600 = vadd.f32 %v975, %v7536
        %v7601 = vadd.f32 %v976, %v7537
        %v7602 = vadd.f32 %v977, %v7538
        %v7603 = vadd.f32 %v978, %v7539
        %v7604 = vadd.f32 %v979, %v7540
        %v7605 = vadd.f32 %v980, %v7541
        %v7606 = vadd.f32 %v981, %v7542
        %v7607 = vadd.f32 %v982, %v7543
        %v7608 = vadd.f32 %v983, %v7544
        %v7609 = vadd.f32 %v984, %v7545
        %v7610 = vadd.f32 %v985, %v7546
        %v7611 = vadd.f32 %v986, %v7547
        %v7612 = vadd.f32 %v987, %v7548
        %v7613 = vadd.f32 %v988, %v7549
        %v7614 = vadd.f32 %v989, %v7550
        %v7615 = vadd.f32 %v990, %v7551
        %v7616 = vadd.f32 %v991, %v7552
        %v7617 = vadd.f32 %v992, %v7553
        %v7618 = vadd.f32 %v993, %v7554
        %v7619 = vadd.f32 %v994, %v7555
        %v7620 = vadd.f32 %v995, %v7556
        %v7621 = vadd.f32 %v996, %v7557
        %v7622 = vadd.f32 %v997, %v7558
        %v7623 = vadd.f32 %v998, %v7559
        %v7624 = vadd.f32 %v999, %v7560
        %v7625 = vadd.f32 %v1000, %v7561
        %v7626 = vadd.f32 %v1001, %v7562
        %v7627 = vadd.f32 %v1002, %v7563
        %v7628 = vadd.f32 %v1003, %v7564
        %v7629 = vadd.f32 %v1004, %v7565
        %v7630 = vadd.f32 %v1005, %v7566
        %v7631 = vadd.f32 %v1006, %v7567
        %v7632 = vadd.f32 %v1007, %v7568
        %v7633 = vadd.f32 %v1008, %v7569
        %v7634 = vadd.f32 %v1009, %v7570
        %v7635 = vadd.f32 %v1010, %v7571
        %v7636 = vadd.f32 %v1011, %v7572
        %v7637 = vadd.f32 %v1012, %v7573
        %v7638 = vadd.f32 %v1013, %v7574
        %7639 = vst [vmem:[#allocation9] sm:$0xff] %v7575
        %7640 = vst [vmem:[#allocation9 + $0x8] sm:$0xff] %v7576
        %7641 = vst [vmem:[#allocation9 + $0x10] sm:$0xff] %v7577
        %7642 = vst [vmem:[#allocation9 + $0x18] sm:$0xff] %v7578
        %7643 = vst [vmem:[#allocation9 + $0x20] sm:$0xff] %v7579
        %7644 = vst [vmem:[#allocation9 + $0x28] sm:$0xff] %v7580
        %7645 = vst [vmem:[#allocation9 + $0x30] sm:$0xff] %v7581
        %7646 = vst [vmem:[#allocation9 + $0x38] sm:$0xff] %v7582
        %7647 = vst [vmem:[#allocation9 + $0x40] sm:$0xff] %v7583
        %7648 = vst [vmem:[#allocation9 + $0x48] sm:$0xff] %v7584
        %7649 = vst [vmem:[#allocation9 + $0x50] sm:$0xff] %v7585
        %7650 = vst [vmem:[#allocation9 + $0x58] sm:$0xff] %v7586
        %7651 = vst [vmem:[#allocation9 + $0x60] sm:$0xff] %v7587
        %7652 = vst [vmem:[#allocation9 + $0x68] sm:$0xff] %v7588
        %7653 = vst [vmem:[#allocation9 + $0x70] sm:$0xff] %v7589
        %7654 = vst [vmem:[#allocation9 + $0x78] sm:$0xff] %v7590
        %7655 = vst [vmem:[#allocation9 + $0x80] sm:$0xff] %v7591
        %7656 = vst [vmem:[#allocation9 + $0x88] sm:$0xff] %v7592
        %7657 = vst [vmem:[#allocation9 + $0x90] sm:$0xff] %v7593
        %7658 = vst [vmem:[#allocation9 + $0x98] sm:$0xff] %v7594
        %7659 = vst [vmem:[#allocation9 + $0xa0] sm:$0xff] %v7595
        %7660 = vst [vmem:[#allocation9 + $0xa8] sm:$0xff] %v7596
        %7661 = vst [vmem:[#allocation9 + $0xb0] sm:$0xff] %v7597
        %7662 = vst [vmem:[#allocation9 + $0xb8] sm:$0xff] %v7598
        %7663 = vst [vmem:[#allocation9 + $0xc0] sm:$0xff] %v7599
        %7664 = vst [vmem:[#allocation9 + $0xc8] sm:$0xff] %v7600
        %7665 = vst [vmem:[#allocation9 + $0xd0] sm:$0xff] %v7601
        %7666 = vst [vmem:[#allocation9 + $0xd8] sm:$0xff] %v7602
        %7667 = vst [vmem:[#allocation9 + $0xe0] sm:$0xff] %v7603
        %7668 = vst [vmem:[#allocation9 + $0xe8] sm:$0xff] %v7604
        %7669 = vst [vmem:[#allocation9 + $0xf0] sm:$0xff] %v7605
        %7670 = vst [vmem:[#allocation9 + $0xf8] sm:$0xff] %v7606
        %7671 = vst [vmem:[#allocation9 + $0x100] sm:$0xff] %v7607
        %7672 = vst [vmem:[#allocation9 + $0x108] sm:$0xff] %v7608
        %7673 = vst [vmem:[#allocation9 + $0x110] sm:$0xff] %v7609
        %7674 = vst [vmem:[#allocation9 + $0x118] sm:$0xff] %v7610
        %7675 = vst [vmem:[#allocation9 + $0x120] sm:$0xff] %v7611
        %7676 = vst [vmem:[#allocation9 + $0x128] sm:$0xff] %v7612
        %7677 = vst [vmem:[#allocation9 + $0x130] sm:$0xff] %v7613
        %7678 = vst [vmem:[#allocation9 + $0x138] sm:$0xff] %v7614
        %7679 = vst [vmem:[#allocation9 + $0x140] sm:$0xff] %v7615
        %7680 = vst [vmem:[#allocation9 + $0x148] sm:$0xff] %v7616
        %7681 = vst [vmem:[#allocation9 + $0x150] sm:$0xff] %v7617
        %7682 = vst [vmem:[#allocation9 + $0x158] sm:$0xff] %v7618
        %7683 = vst [vmem:[#allocation9 + $0x160] sm:$0xff] %v7619
        %7684 = vst [vmem:[#allocation9 + $0x168] sm:$0xff] %v7620
        %7685 = vst [vmem:[#allocation9 + $0x170] sm:$0xff] %v7621
        %7686 = vst [vmem:[#allocation9 + $0x178] sm:$0xff] %v7622
        %7687 = vst [vmem:[#allocation9 + $0x180] sm:$0xff] %v7623
        %7688 = vst [vmem:[#allocation9 + $0x188] sm:$0xff] %v7624
        %7689 = vst [vmem:[#allocation9 + $0x190] sm:$0xff] %v7625
        %7690 = vst [vmem:[#allocation9 + $0x198] sm:$0xff] %v7626
        %7691 = vst [vmem:[#allocation9 + $0x1a0] sm:$0xff] %v7627
        %7692 = vst [vmem:[#allocation9 + $0x1a8] sm:$0xff] %v7628
        %7693 = vst [vmem:[#allocation9 + $0x1b0] sm:$0xff] %v7629
        %7694 = vst [vmem:[#allocation9 + $0x1b8] sm:$0xff] %v7630
        %7695 = vst [vmem:[#allocation9 + $0x1c0] sm:$0xff] %v7631
        %7696 = vst [vmem:[#allocation9 + $0x1c8] sm:$0xff] %v7632
        %7697 = vst [vmem:[#allocation9 + $0x1d0] sm:$0xff] %v7633
        %7698 = vst [vmem:[#allocation9 + $0x1d8] sm:$0xff] %v7634
        %7699 = vst [vmem:[#allocation9 + $0x1e0] sm:$0xff] %v7635
        %7700 = vst [vmem:[#allocation9 + $0x1e8] sm:$0xff] %v7636
        %7701 = vst [vmem:[#allocation9 + $0x1f0] sm:$0xff] %v7637
        %7702 = vst [vmem:[#allocation9 + $0x1f8] sm:$0xff] %v7638
        // Predicated region
        $region49: #{tpu_custom_call.1} parent=31 // pred_check
          %p7703 = pneg %p127
        $region50: #{tpu_custom_call.1} parent=31 // pred_check_branch
          %7705 = sbr.rel (%p7703) target = $region52
        $region51: #{tpu_custom_call.1} parent=31 // pred_region
          %s7706 = smul.u32 2, %s23
          %7708 = vsyncadd [#allocation5], 0
          %s7709 = smul.addr %s7706, 32
          %s7710 = smul.addr %s7709, 8
          %s7711 = scalar_lea.hbm %s3, %s7710
          %s7712 = sshll.u32 [#allocation9], 4
          %s7713 = int_to_ptr.vmem [resolvable:$true] %s7712
          %s7714 = sshll.u32 %s7711, 4
          %s7715 = int_to_ptr.hbm [resolvable:$true] %s7714
          %7720 = dma.vmem_to_hbm [thread:$0]  %s7713, 8192, %s7715, [#allocation5], 128, 128, 8
        $region52: #{tpu_custom_call.1} parent=31 // pred_fallthru
          _
        // Predicated region
        $region53: #{tpu_custom_call.1} parent=31 // pred_check
          %p7721 = pneg %p127
        $region54: #{tpu_custom_call.1} parent=31 // pred_check_branch
          %7723 = sbr.rel (%p7721) target = $region56
        $region55: #{tpu_custom_call.1} parent=31 // pred_region
          %7725 = dma.done [#allocation5], 8192
        $region56: #{tpu_custom_call.1} parent=31 // pred_fallthru
          _
      $region32: #{tpu_custom_call.1} parent=5 // pred_fallthru
        _
      %p7726 = scmp.le.s32.totalorder 2, %s14
      // Predicated region
      $region57: #{tpu_custom_call.1} parent=5 // pred_check
        %p7727 = pneg %p7726
      $region58: #{tpu_custom_call.1} parent=5 // pred_check_branch
        %7729 = sbr.rel (%p7727) target = $region60
      $region59: #{tpu_custom_call.1} parent=5 // pred_region
        %s7730 = ssub.s32 %s14, 2
      $region60: #{tpu_custom_call.1} parent=5 // pred_fallthru
        _
    $region6: #{tpu_custom_call.1} parent=1 // loop_footer
      %s18 = sadd.s32 1, %s14
    $region7: #{tpu_custom_call.1} parent=1 // loop_footer_branch
      %13 = sbr.rel target = $region3
    $region8: #{tpu_custom_call.1} parent=1 // loop_exit
      _
    %7731 = vsyncpa [#allocation4], 1
    %s7732 = scalar_lea.sflag [#allocation4], 1
    %7733 = vsyncpa %s7732, 1
    %7734 = vsyncpa [#allocation7], 1
    %s7735 = scalar_lea.sflag [#allocation7], 1
    %7736 = vsyncpa %s7735, 1
    %7737 = vsyncpa [#allocation5], 1
    %s7738 = scalar_lea.sflag [#allocation5], 1
    %7739 = vsyncpa %s7738, 1

</llo_original>
